<compile_context>
chip_gen: v7x
topology: tpu7x:2x2x1
jax: 0.10.0
libtpu: 0.0.40
codegen_flags: <defaults>
</compile_context>

<pallas_src>
import functools

import jax
import jax.numpy as jnp
from jax import lax
from jax.experimental import pallas as pl
from jax.experimental.pallas import tpu as pltpu


# --------------------------------------------------------------------------
# Fused kernel: hoisted input projection + 2-layer wavefront LSTM + Linear
# --------------------------------------------------------------------------
def fused_lstm_fc_kernel(x_ref,        # [T*BB, Dp]  bf16 (block-time-major)
                         wih0_ref,     # [Dp, 4H]    bf16
                         whh0_ref,     # [H, 4H]     bf16
                         b0_ref,       # [1, 4H]     f32
                         w1cat_ref,    # [2H, 4H]    bf16  (= [w_ih1^T ; w_hh1^T])
                         b1_ref,       # [1, 4H]     f32
                         wfc_ref,      # [H, Op]     bf16
                         bfc_ref,      # [1, Op]     f32
                         len_ref,      # [BB, 1]     int32
                         out_ref,      # [BB, Op]    f32
                         xw_sc):       # VMEM [T*BB, 4H] bf16
    BB = len_ref.shape[0]
    T = x_ref.shape[0] // BB
    H = whh0_ref.shape[0]

    lens = len_ref[...]                                     # [BB, 1] int32

    # ---- hoisted layer-0 input projection: one big MXU matmul, bf16 store --
    xw0 = jnp.dot(x_ref[...], wih0_ref[...],
                  preferred_element_type=jnp.float32)       # [T*BB, 4H] f32
    xw_sc[...] = (xw0 + b0_ref[...]).astype(jnp.bfloat16)

    whh0 = whh0_ref[...]
    w1cat = w1cat_ref[...]
    b1 = b1_ref[...]

    def gates(pre):                                         # pre: [BB, 4H] f32
        i = jax.nn.sigmoid(pre[:, 0 * H:1 * H])
        f = jax.nn.sigmoid(pre[:, 1 * H:2 * H])
        g = jnp.tanh(pre[:, 2 * H:3 * H])
        o = jax.nn.sigmoid(pre[:, 3 * H:4 * H])
        return i, f, g, o

    def wave(s, carry, do_l0, do_l1):
        # One wavefront step: layer-0 step s  +  layer-1 step s-1.
        # The two jnp.dot's are data-independent -> both in flight on the MXU.
        h0, c0, h1, c1, h_last, y_prev = carry
        if do_l0:
            if isinstance(s, int):
                off = s * BB
            else:
                off = pl.multiple_of(s * BB, 16 if BB % 16 == 0 else 8)
            pre0 = (xw_sc[pl.ds(off, BB), :].astype(jnp.float32)
                    + jnp.dot(h0.astype(jnp.bfloat16), whh0,
                              preferred_element_type=jnp.float32))
            i0, f0, g0, o0 = gates(pre0)
            c0 = f0 * c0 + i0 * g0
            h0 = o0 * jnp.tanh(c0)
        if do_l1:
            t = s - 1
            # fused [x_t ; h_{t-1}] @ [W_ih1^T ; W_hh1^T]
            inp1 = jnp.concatenate([y_prev, h1.astype(jnp.bfloat16)], axis=1)
            pre1 = jnp.dot(inp1, w1cat,
                           preferred_element_type=jnp.float32) + b1
            i1, f1, g1, o1 = gates(pre1)
            c1 = f1 * c1 + i1 * g1
            h1 = o1 * jnp.tanh(c1)
            # capture hidden at the last valid timestep of each sequence
            h_last = jnp.where((lens - 1) == t, h1, h_last)
        if do_l0:
            y_prev = h0.astype(jnp.bfloat16)
        return (h0, c0, h1, c1, h_last, y_prev)

    zf = jnp.zeros((BB, H), jnp.float32)
    carry = (zf, zf, zf, zf, zf, jnp.zeros((BB, H), jnp.bfloat16))

    carry = wave(0, carry, True, False)                     # prologue wave
    if T <= 16:
        for s in range(1, T):                               # full unroll, tiny T
            carry = wave(s, carry, True, True)
    else:
        # bound vreg live ranges for long sequences
        carry = lax.fori_loop(1, T, lambda s, c: wave(s, c, True, True),
                              carry, unroll=2)
    carry = wave(T, carry, False, True)                     # epilogue wave
    h_last = carry[4]

    # ---- FC epilogue ----
    out_ref[...] = (jnp.dot(h_last.astype(jnp.bfloat16), wfc_ref[...],
                            preferred_element_type=jnp.float32)
                    + bfc_ref[...])


# --------------------------------------------------------------------------
# Wrapper
# --------------------------------------------------------------------------
def _round_up(x, m):
    return ((x + m - 1) // m) * m


def prepare_params(params):
    """One-time weight layout prep (transpose/pad/cast/concat) -- hoisted out
    of the per-call forward path."""
    E = params["w_ih0"].shape[1]
    H = params["w_hh0"].shape[1]
    O = params["w_fc"].shape[0]
    Dp = _round_up(max(E, 128), 128)                        # lane-align contraction
    Op = _round_up(max(O, 128), 128)                        # lane-align FC output

    emb = jnp.pad(params["embedding"].astype(jnp.float32),
                  ((0, 0), (0, Dp - E))).astype(jnp.bfloat16)           # [V, Dp]
    wih0 = jnp.pad(jnp.transpose(params["w_ih0"]),
                   ((0, Dp - E), (0, 0))).astype(jnp.bfloat16)          # [Dp, 4H]
    whh0 = jnp.transpose(params["w_hh0"]).astype(jnp.bfloat16)          # [H, 4H]
    b0 = (params["b_ih0"] + params["b_hh0"]).reshape(1, 4 * H).astype(jnp.float32)
    # layer-1 input + recurrent weights fused into one [2H, 4H] matrix
    w1cat = jnp.concatenate([jnp.transpose(params["w_ih1"]),
                             jnp.transpose(params["w_hh1"])],
                            axis=0).astype(jnp.bfloat16)                # [2H, 4H]
    b1 = (params["b_ih1"] + params["b_hh1"]).reshape(1, 4 * H).astype(jnp.float32)
    wfc = jnp.pad(jnp.transpose(params["w_fc"]),
                  ((0, 0), (0, Op - O))).astype(jnp.bfloat16)           # [H, Op]
    bfc = jnp.pad(params["b_fc"], (0, Op - O)).reshape(1, Op).astype(jnp.float32)

    return {"emb": emb, "wih0": wih0, "whh0": whh0, "b0": b0,
            "w1cat": w1cat, "b1": b1, "wfc": wfc, "bfc": bfc}


def _choose_batch_block(b_pad, T, Dp, H, Op, vmem_budget_bytes):
    """VMEM-budget-derived batch block (multiple of 16, capped)."""
    # bf16 weights (assume double-buffered) + f32 biases
    weight_bytes = (2 * 2 * (Dp * 4 * H + H * 4 * H + 2 * H * 4 * H + H * Op)
                    + 2 * 4 * (2 * 4 * H + Op))
    per_row = (2 * T * Dp * 2        # x block (bf16, double-buffered)
               + T * 4 * H * 2       # xw_sc scratch (bf16)
               + 2 * Op * 4          # output block (f32, double-buffered)
               + 32 * H * 4)         # h/c/gate working-set headroom (f32)
    avail = max(vmem_budget_bytes - weight_bytes - (2 << 20), per_row * 16)
    bb = int(avail // per_row) // 16 * 16
    bb = max(16, min(bb, 256, b_pad))          # cap -> bound vreg pressure
    # v7x megacore: keep >= 2 grid blocks when the batch is large enough
    if b_pad >= 32:
        bb = min(bb, max(16, _round_up(b_pad // 2, 16)))
    return bb


@functools.partial(jax.jit, static_argnames=("out_dim",))
def lstm_forward(prepped, text, text_lengths, out_dim):
    """Eval-mode forward of the 2-layer LSTM classifier (dropout = identity)."""
    emb_tbl = prepped["emb"]
    Dp = emb_tbl.shape[1]
    H = prepped["whh0"].shape[0]
    Op = prepped["wfc"].shape[1]
    B, T = text.shape

    # --- batch padding / blocking (static python math under jit) ---
    b_pad0 = _round_up(max(B, 16), 16)           # >=16 rows: dense bf16 tiles
    BB = _choose_batch_block(b_pad0, T, Dp, H, Op, vmem_budget_bytes=40 << 20)
    B_pad = _round_up(b_pad0, BB)
    nb = B_pad // BB

    # --- per-call activation prep: embedding gather (plain JAX glue) +
    #     block-time-major layout [nb, T*BB, Dp] so the kernel never reshapes.
    # TODO(synk): embedding gather + eval-mode dropout (identity) stay as
    # plain JAX glue; training-mode dropout is not implemented.
    tokens = jnp.pad(text.astype(jnp.int32), ((0, B_pad - B), (0, 0)))
    lens = jnp.pad(jnp.clip(text_lengths.astype(jnp.int32), 1, T),
                   (0, B_pad - B), constant_values=1).reshape(B_pad, 1)
    x = emb_tbl[tokens]                                     # [B_pad, T, Dp] bf16
    x = x.reshape(nb, BB, T, Dp).transpose(0, 2, 1, 3).reshape(nb, T * BB, Dp)

    grid_spec = pltpu.PrefetchScalarGridSpec(
        num_scalar_prefetch=0,
        grid=(nb,),
        in_specs=[
            pl.BlockSpec((None, T * BB, Dp), lambda b: (b, 0, 0)),  # x
            pl.BlockSpec((Dp, 4 * H), lambda b: (0, 0)),            # wih0
            pl.BlockSpec((H, 4 * H), lambda b: (0, 0)),             # whh0
            pl.BlockSpec((1, 4 * H), lambda b: (0, 0)),             # b0
            pl.BlockSpec((2 * H, 4 * H), lambda b: (0, 0)),         # w1cat
            pl.BlockSpec((1, 4 * H), lambda b: (0, 0)),             # b1
            pl.BlockSpec((H, Op), lambda b: (0, 0)),                # wfc
            pl.BlockSpec((1, Op), lambda b: (0, 0)),                # bfc
            pl.BlockSpec((BB, 1), lambda b: (b, 0)),                # lens
        ],
        out_specs=pl.BlockSpec((BB, Op), lambda b: (b, 0)),
        scratch_shapes=[pltpu.VMEM((T * BB, 4 * H), jnp.bfloat16)],  # xw_sc
    )

    logits_pad = pl.pallas_call(
        fused_lstm_fc_kernel,
        out_shape=jax.ShapeDtypeStruct((B_pad, Op), jnp.float32),
        grid_spec=grid_spec,
        compiler_params=pltpu.CompilerParams(
            dimension_semantics=("parallel",),
            vmem_limit_bytes=48 * 1024 * 1024),
    )(x, prepped["wih0"], prepped["whh0"], prepped["b0"],
      prepped["w1cat"], prepped["b1"], prepped["wfc"], prepped["bfc"], lens)

    return logits_pad[:B, :out_dim]


# --------------------------------------------------------------------------
if __name__ == "__main__":
    # hyper-params (small, consistent with the module)
    vocab_size = 50
    embedding_dim = 100
    hidden_dim = 256
    output_dim = 3
    B, T = 2, 8
    PAD_IDX = 0

    key = jax.random.PRNGKey(0)
    ks = jax.random.split(key, 12)

    def init(k, shape, scale=0.05):
        return (scale * jax.random.normal(k, shape)).astype(jnp.float32)

    emb = init(ks[0], (vocab_size, embedding_dim), 1.0)
    emb = emb.at[PAD_IDX].set(0.0)                       # padding_idx row = 0

    params = {
        "embedding": emb,
        # layer 0: input = embedding_dim
        "w_ih0": init(ks[1], (4 * hidden_dim, embedding_dim)),
        "w_hh0": init(ks[2], (4 * hidden_dim, hidden_dim)),
        "b_ih0": init(ks[3], (4 * hidden_dim,)),
        "b_hh0": init(ks[4], (4 * hidden_dim,)),
        # layer 1: input = hidden_dim
        "w_ih1": init(ks[5], (4 * hidden_dim, hidden_dim)),
        "w_hh1": init(ks[6], (4 * hidden_dim, hidden_dim)),
        "b_ih1": init(ks[7], (4 * hidden_dim,)),
        "b_hh1": init(ks[8], (4 * hidden_dim,)),
        # fc
        "w_fc": init(ks[9], (output_dim, hidden_dim)),
        "b_fc": init(ks[10], (output_dim,)),
    }

    # deterministic example inputs: token ids [B, T], per-example lengths
    text_lengths = jnp.array([T, 5], dtype=jnp.int32)
    tokens = jax.random.randint(ks[11], (B, T), 1, vocab_size, dtype=jnp.int32)
    pos = jnp.arange(T)[None, :]
    text = jnp.where(pos < text_lengths[:, None], tokens, PAD_IDX)

    # one-time parameter preparation (hoisted out of the per-call path)
    prepped = prepare_params(params)
    prepped = jax.tree_util.tree_map(jax.block_until_ready, prepped)

    logits = lstm_forward(prepped, text, text_lengths, output_dim)
    logits = jax.block_until_ready(logits)
    assert logits.shape == (B, output_dim)
    assert bool(jnp.all(jnp.isfinite(logits)))
    print("KERNEL_OK")
</pallas_src>

<mosaic_0001>
module attributes {stable_mosaic.version = 11 : i64} {
  func.func @fused_lstm_fc_kernel(%arg0: i32, %arg1: memref<1x128x128xbf16, #tpu.memory_space<vmem>>, %arg2: memref<128x1024xbf16, #tpu.memory_space<vmem>>, %arg3: memref<256x1024xbf16, #tpu.memory_space<vmem>>, %arg4: memref<1x1024xf32, #tpu.memory_space<vmem>>, %arg5: memref<512x1024xbf16, #tpu.memory_space<vmem>>, %arg6: memref<1x1024xf32, #tpu.memory_space<vmem>>, %arg7: memref<256x128xbf16, #tpu.memory_space<vmem>>, %arg8: memref<1x128xf32, #tpu.memory_space<vmem>>, %arg9: memref<16x1xi32, #tpu.memory_space<vmem>>, %arg10: memref<16x128xf32, #tpu.memory_space<vmem>>, %arg11: memref<128x1024xbf16, #tpu.memory_space<vmem>>) attributes {dimension_semantics = [#tpu.dimension_semantics<parallel>], iteration_bounds = array<i64: 1>, scalar_prefetch = 0 : i64, scratch_operands = 1 : i64, tpu.core_type = #tpu.core_type<tc>, window_params = [{transform_indices = @transform_0, window_bounds = array<i64: 1, 128, 128>}, {pipeline_mode = #tpu.pipeline_mode<synchronous>, transform_indices = @transform_1, window_bounds = array<i64: 128, 1024>}, {pipeline_mode = #tpu.pipeline_mode<synchronous>, transform_indices = @transform_2, window_bounds = array<i64: 256, 1024>}, {pipeline_mode = #tpu.pipeline_mode<synchronous>, transform_indices = @transform_3, window_bounds = array<i64: 1, 1024>}, {pipeline_mode = #tpu.pipeline_mode<synchronous>, transform_indices = @transform_4, window_bounds = array<i64: 512, 1024>}, {pipeline_mode = #tpu.pipeline_mode<synchronous>, transform_indices = @transform_5, window_bounds = array<i64: 1, 1024>}, {pipeline_mode = #tpu.pipeline_mode<synchronous>, transform_indices = @transform_6, window_bounds = array<i64: 256, 128>}, {pipeline_mode = #tpu.pipeline_mode<synchronous>, transform_indices = @transform_7, window_bounds = array<i64: 1, 128>}, {transform_indices = @transform_8, window_bounds = array<i64: 16, 1>}, {transform_indices = @transform_9, window_bounds = array<i64: 16, 128>}]} {
    %c0 = arith.constant 0 : index
    %c0_0 = arith.constant 0 : index
    %0 = vector.load %arg9[%c0, %c0_0] : memref<16x1xi32, #tpu.memory_space<vmem>>, vector<16x1xi32>
    %c0_1 = arith.constant 0 : index
    %c0_2 = arith.constant 0 : index
    %c0_3 = arith.constant 0 : index
    %1 = vector.load %arg1[%c0_1, %c0_2, %c0_3] : memref<1x128x128xbf16, #tpu.memory_space<vmem>>, vector<1x128x128xbf16>
    %2 = vector.shape_cast %1 : vector<1x128x128xbf16> to vector<128x128xbf16>
    %c0_4 = arith.constant 0 : index
    %c0_5 = arith.constant 0 : index
    %3 = vector.load %arg2[%c0_4, %c0_5] : memref<128x1024xbf16, #tpu.memory_space<vmem>>, vector<128x1024xbf16>
    %cst = arith.constant dense<0.000000e+00> : vector<128x1024xf32>
    %4 = tpu.matmul %2, %3, %cst {dimension_numbers = #tpu.dot_dimension_numbers<[1], [0], [0], [1], [0, 0, 1, 1], [], []>} : vector<128x128xbf16>, vector<128x1024xbf16>, vector<128x1024xf32> -> vector<128x1024xf32>
    %c0_6 = arith.constant 0 : index
    %c0_7 = arith.constant 0 : index
    %5 = vector.load %arg4[%c0_6, %c0_7] : memref<1x1024xf32, #tpu.memory_space<vmem>>, vector<1x1024xf32>
    %6 = vector.broadcast %5 : vector<1x1024xf32> to vector<128x1024xf32>
    %7 = arith.addf %4, %6 : vector<128x1024xf32>
    %8 = arith.truncf %7 : vector<128x1024xf32> to vector<128x1024xbf16>
    %c0_8 = arith.constant 0 : index
    %c0_9 = arith.constant 0 : index
    %9 = vector.load %arg11[%c0_8, %c0_9] : memref<128x1024xbf16, #tpu.memory_space<vmem>>, vector<128x1024xbf16>
    tpu.vector_store %arg11[%c0_8, %c0_9], %8 {strides = array<i32>} : memref<128x1024xbf16, #tpu.memory_space<vmem>>, vector<128x1024xbf16>,
    %c0_10 = arith.constant 0 : index
    %c0_11 = arith.constant 0 : index
    %10 = vector.load %arg3[%c0_10, %c0_11] : memref<256x1024xbf16, #tpu.memory_space<vmem>>, vector<256x1024xbf16>
    %c0_12 = arith.constant 0 : index
    %c0_13 = arith.constant 0 : index
    %11 = vector.load %arg5[%c0_12, %c0_13] : memref<512x1024xbf16, #tpu.memory_space<vmem>>, vector<512x1024xbf16>
    %c0_14 = arith.constant 0 : index
    %c0_15 = arith.constant 0 : index
    %12 = vector.load %arg6[%c0_14, %c0_15] : memref<1x1024xf32, #tpu.memory_space<vmem>>, vector<1x1024xf32>
    %cst_16 = arith.constant 0.000000e+00 : f32
    %13 = vector.broadcast %cst_16 : f32 to vector<16x256xf32>
    %c0_17 = arith.constant 0 : index
    %c0_18 = arith.constant 0 : index
    %14 = vector.load %arg11[%c0_17, %c0_18] : memref<128x1024xbf16, #tpu.memory_space<vmem>>, vector<16x1024xbf16>
    %15 = arith.extf %14 : vector<16x1024xbf16> to vector<16x1024xf32>
    %16 = arith.truncf %13 : vector<16x256xf32> to vector<16x256xbf16>
    %cst_19 = arith.constant dense<0.000000e+00> : vector<16x1024xf32>
    %17 = tpu.matmul %16, %10, %cst_19 {dimension_numbers = #tpu.dot_dimension_numbers<[1], [0], [0], [1], [0, 0, 1, 1], [], []>} : vector<16x256xbf16>, vector<256x1024xbf16>, vector<16x1024xf32> -> vector<16x1024xf32>
    %18 = arith.addf %15, %17 : vector<16x1024xf32>
    %19 = vector.extract_strided_slice %18 {offsets = [0, 0], sizes = [16, 256], strides = [1, 1]} : vector<16x1024xf32> to vector<16x256xf32>
    %20 = arith.negf %19 : vector<16x256xf32>
    %21 = math.exp %20 : vector<16x256xf32>
    %cst_20 = arith.constant 1.000000e+00 : f32
    %22 = vector.broadcast %cst_20 : f32 to vector<16x256xf32>
    %23 = arith.addf %22, %21 : vector<16x256xf32>
    %24 = arith.divf %22, %23 : vector<16x256xf32>
    %25 = vector.extract_strided_slice %18 {offsets = [0, 256], sizes = [16, 256], strides = [1, 1]} : vector<16x1024xf32> to vector<16x256xf32>
    %26 = arith.negf %25 : vector<16x256xf32>
    %27 = math.exp %26 : vector<16x256xf32>
    %cst_21 = arith.constant 1.000000e+00 : f32
    %28 = vector.broadcast %cst_21 : f32 to vector<16x256xf32>
    %29 = arith.addf %28, %27 : vector<16x256xf32>
    %30 = arith.divf %28, %29 : vector<16x256xf32>
    %31 = vector.extract_strided_slice %18 {offsets = [0, 512], sizes = [16, 256], strides = [1, 1]} : vector<16x1024xf32> to vector<16x256xf32>
    %32 = math.tanh %31 : vector<16x256xf32>
    %33 = vector.extract_strided_slice %18 {offsets = [0, 768], sizes = [16, 256], strides = [1, 1]} : vector<16x1024xf32> to vector<16x256xf32>
    %34 = arith.negf %33 : vector<16x256xf32>
    %35 = math.exp %34 : vector<16x256xf32>
    %cst_22 = arith.constant 1.000000e+00 : f32
    %36 = vector.broadcast %cst_22 : f32 to vector<16x256xf32>
    %37 = arith.addf %36, %35 : vector<16x256xf32>
    %38 = arith.divf %36, %37 : vector<16x256xf32>
    %39 = arith.mulf %30, %13 : vector<16x256xf32>
    %40 = arith.mulf %24, %32 : vector<16x256xf32>
    %41 = arith.addf %39, %40 : vector<16x256xf32>
    %42 = math.tanh %41 : vector<16x256xf32>
    %43 = arith.mulf %38, %42 : vector<16x256xf32>
    %44 = arith.truncf %43 : vector<16x256xf32> to vector<16x256xbf16>
    %c16 = arith.constant 16 : index
    %c0_23 = arith.constant 0 : index
    %45 = vector.load %arg11[%c16, %c0_23] : memref<128x1024xbf16, #tpu.memory_space<vmem>>, vector<16x1024xbf16>
    %46 = arith.extf %45 : vector<16x1024xbf16> to vector<16x1024xf32>
    %47 = arith.truncf %43 : vector<16x256xf32> to vector<16x256xbf16>
    %cst_24 = arith.constant dense<0.000000e+00> : vector<16x1024xf32>
    %48 = tpu.matmul %47, %10, %cst_24 {dimension_numbers = #tpu.dot_dimension_numbers<[1], [0], [0], [1], [0, 0, 1, 1], [], []>} : vector<16x256xbf16>, vector<256x1024xbf16>, vector<16x1024xf32> -> vector<16x1024xf32>
    %49 = arith.addf %46, %48 : vector<16x1024xf32>
    %50 = vector.extract_strided_slice %49 {offsets = [0, 0], sizes = [16, 256], strides = [1, 1]} : vector<16x1024xf32> to vector<16x256xf32>
    %51 = arith.negf %50 : vector<16x256xf32>
    %52 = math.exp %51 : vector<16x256xf32>
    %cst_25 = arith.constant 1.000000e+00 : f32
    %53 = vector.broadcast %cst_25 : f32 to vector<16x256xf32>
    %54 = arith.addf %53, %52 : vector<16x256xf32>
    %55 = arith.divf %53, %54 : vector<16x256xf32>
    %56 = vector.extract_strided_slice %49 {offsets = [0, 256], sizes = [16, 256], strides = [1, 1]} : vector<16x1024xf32> to vector<16x256xf32>
    %57 = arith.negf %56 : vector<16x256xf32>
    %58 = math.exp %57 : vector<16x256xf32>
    %cst_26 = arith.constant 1.000000e+00 : f32
    %59 = vector.broadcast %cst_26 : f32 to vector<16x256xf32>
    %60 = arith.addf %59, %58 : vector<16x256xf32>
    %61 = arith.divf %59, %60 : vector<16x256xf32>
    %62 = vector.extract_strided_slice %49 {offsets = [0, 512], sizes = [16, 256], strides = [1, 1]} : vector<16x1024xf32> to vector<16x256xf32>
    %63 = math.tanh %62 : vector<16x256xf32>
    %64 = vector.extract_strided_slice %49 {offsets = [0, 768], sizes = [16, 256], strides = [1, 1]} : vector<16x1024xf32> to vector<16x256xf32>
    %65 = arith.negf %64 : vector<16x256xf32>
    %66 = math.exp %65 : vector<16x256xf32>
    %cst_27 = arith.constant 1.000000e+00 : f32
    %67 = vector.broadcast %cst_27 : f32 to vector<16x256xf32>
    %68 = arith.addf %67, %66 : vector<16x256xf32>
    %69 = arith.divf %67, %68 : vector<16x256xf32>
    %70 = arith.mulf %61, %41 : vector<16x256xf32>
    %71 = arith.mulf %55, %63 : vector<16x256xf32>
    %72 = arith.addf %70, %71 : vector<16x256xf32>
    %73 = math.tanh %72 : vector<16x256xf32>
    %74 = arith.mulf %69, %73 : vector<16x256xf32>
    %75 = arith.truncf %13 : vector<16x256xf32> to vector<16x256xbf16>
    %76 = tpu.concatenate %44, %75 in 1 : vector<16x256xbf16>, vector<16x256xbf16> -> vector<16x512xbf16>
    %cst_28 = arith.constant dense<0.000000e+00> : vector<16x1024xf32>
    %77 = tpu.matmul %76, %11, %cst_28 {dimension_numbers = #tpu.dot_dimension_numbers<[1], [0], [0], [1], [0, 0, 1, 1], [], []>} : vector<16x512xbf16>, vector<512x1024xbf16>, vector<16x1024xf32> -> vector<16x1024xf32>
    %78 = vector.broadcast %12 : vector<1x1024xf32> to vector<16x1024xf32>
    %79 = arith.addf %77, %78 : vector<16x1024xf32>
    %80 = vector.extract_strided_slice %79 {offsets = [0, 0], sizes = [16, 256], strides = [1, 1]} : vector<16x1024xf32> to vector<16x256xf32>
    %81 = arith.negf %80 : vector<16x256xf32>
    %82 = math.exp %81 : vector<16x256xf32>
    %cst_29 = arith.constant 1.000000e+00 : f32
    %83 = vector.broadcast %cst_29 : f32 to vector<16x256xf32>
    %84 = arith.addf %83, %82 : vector<16x256xf32>
    %85 = arith.divf %83, %84 : vector<16x256xf32>
    %86 = vector.extract_strided_slice %79 {offsets = [0, 256], sizes = [16, 256], strides = [1, 1]} : vector<16x1024xf32> to vector<16x256xf32>
    %87 = arith.negf %86 : vector<16x256xf32>
    %88 = math.exp %87 : vector<16x256xf32>
    %cst_30 = arith.constant 1.000000e+00 : f32
    %89 = vector.broadcast %cst_30 : f32 to vector<16x256xf32>
    %90 = arith.addf %89, %88 : vector<16x256xf32>
    %91 = arith.divf %89, %90 : vector<16x256xf32>
    %92 = vector.extract_strided_slice %79 {offsets = [0, 512], sizes = [16, 256], strides = [1, 1]} : vector<16x1024xf32> to vector<16x256xf32>
    %93 = math.tanh %92 : vector<16x256xf32>
    %94 = vector.extract_strided_slice %79 {offsets = [0, 768], sizes = [16, 256], strides = [1, 1]} : vector<16x1024xf32> to vector<16x256xf32>
    %95 = arith.negf %94 : vector<16x256xf32>
    %96 = math.exp %95 : vector<16x256xf32>
    %cst_31 = arith.constant 1.000000e+00 : f32
    %97 = vector.broadcast %cst_31 : f32 to vector<16x256xf32>
    %98 = arith.addf %97, %96 : vector<16x256xf32>
    %99 = arith.divf %97, %98 : vector<16x256xf32>
    %100 = arith.mulf %91, %13 : vector<16x256xf32>
    %101 = arith.mulf %85, %93 : vector<16x256xf32>
    %102 = arith.addf %100, %101 : vector<16x256xf32>
    %103 = math.tanh %102 : vector<16x256xf32>
    %104 = arith.mulf %99, %103 : vector<16x256xf32>
    %c1_i32 = arith.constant 1 : i32
    %105 = vector.broadcast %c1_i32 : i32 to vector<16x1xi32>
    %106 = arith.subi %0, %105 : vector<16x1xi32>
    %c0_i32 = arith.constant 0 : i32
    %107 = vector.broadcast %c0_i32 : i32 to vector<16x1xi32>
    %108 = arith.cmpi eq, %106, %107 : vector<16x1xi32>
    %109 = vector.shape_cast %108 : vector<16x1xi1> to vector<16x1xi1>
    %110 = vector.broadcast %109 : vector<16x1xi1> to vector<16x256xi1>
    %111 = arith.select %110, %104, %13 : vector<16x256xi1>, vector<16x256xf32>
    %112 = arith.truncf %74 : vector<16x256xf32> to vector<16x256xbf16>
    %c32 = arith.constant 32 : index
    %c0_32 = arith.constant 0 : index
    %113 = vector.load %arg11[%c32, %c0_32] : memref<128x1024xbf16, #tpu.memory_space<vmem>>, vector<16x1024xbf16>
    %114 = arith.extf %113 : vector<16x1024xbf16> to vector<16x1024xf32>
    %115 = arith.truncf %74 : vector<16x256xf32> to vector<16x256xbf16>
    %cst_33 = arith.constant dense<0.000000e+00> : vector<16x1024xf32>
    %116 = tpu.matmul %115, %10, %cst_33 {dimension_numbers = #tpu.dot_dimension_numbers<[1], [0], [0], [1], [0, 0, 1, 1], [], []>} : vector<16x256xbf16>, vector<256x1024xbf16>, vector<16x1024xf32> -> vector<16x1024xf32>
    %117 = arith.addf %114, %116 : vector<16x1024xf32>
    %118 = vector.extract_strided_slice %117 {offsets = [0, 0], sizes = [16, 256], strides = [1, 1]} : vector<16x1024xf32> to vector<16x256xf32>
    %119 = arith.negf %118 : vector<16x256xf32>
    %120 = math.exp %119 : vector<16x256xf32>
    %cst_34 = arith.constant 1.000000e+00 : f32
    %121 = vector.broadcast %cst_34 : f32 to vector<16x256xf32>
    %122 = arith.addf %121, %120 : vector<16x256xf32>
    %123 = arith.divf %121, %122 : vector<16x256xf32>
    %124 = vector.extract_strided_slice %117 {offsets = [0, 256], sizes = [16, 256], strides = [1, 1]} : vector<16x1024xf32> to vector<16x256xf32>
    %125 = arith.negf %124 : vector<16x256xf32>
    %126 = math.exp %125 : vector<16x256xf32>
    %cst_35 = arith.constant 1.000000e+00 : f32
    %127 = vector.broadcast %cst_35 : f32 to vector<16x256xf32>
    %128 = arith.addf %127, %126 : vector<16x256xf32>
    %129 = arith.divf %127, %128 : vector<16x256xf32>
    %130 = vector.extract_strided_slice %117 {offsets = [0, 512], sizes = [16, 256], strides = [1, 1]} : vector<16x1024xf32> to vector<16x256xf32>
    %131 = math.tanh %130 : vector<16x256xf32>
    %132 = vector.extract_strided_slice %117 {offsets = [0, 768], sizes = [16, 256], strides = [1, 1]} : vector<16x1024xf32> to vector<16x256xf32>
    %133 = arith.negf %132 : vector<16x256xf32>
    %134 = math.exp %133 : vector<16x256xf32>
    %cst_36 = arith.constant 1.000000e+00 : f32
    %135 = vector.broadcast %cst_36 : f32 to vector<16x256xf32>
    %136 = arith.addf %135, %134 : vector<16x256xf32>
    %137 = arith.divf %135, %136 : vector<16x256xf32>
    %138 = arith.mulf %129, %72 : vector<16x256xf32>
    %139 = arith.mulf %123, %131 : vector<16x256xf32>
    %140 = arith.addf %138, %139 : vector<16x256xf32>
    %141 = math.tanh %140 : vector<16x256xf32>
    %142 = arith.mulf %137, %141 : vector<16x256xf32>
    %143 = arith.truncf %104 : vector<16x256xf32> to vector<16x256xbf16>
    %144 = tpu.concatenate %112, %143 in 1 : vector<16x256xbf16>, vector<16x256xbf16> -> vector<16x512xbf16>
    %cst_37 = arith.constant dense<0.000000e+00> : vector<16x1024xf32>
    %145 = tpu.matmul %144, %11, %cst_37 {dimension_numbers = #tpu.dot_dimension_numbers<[1], [0], [0], [1], [0, 0, 1, 1], [], []>} : vector<16x512xbf16>, vector<512x1024xbf16>, vector<16x1024xf32> -> vector<16x1024xf32>
    %146 = vector.broadcast %12 : vector<1x1024xf32> to vector<16x1024xf32>
    %147 = arith.addf %145, %146 : vector<16x1024xf32>
    %148 = vector.extract_strided_slice %147 {offsets = [0, 0], sizes = [16, 256], strides = [1, 1]} : vector<16x1024xf32> to vector<16x256xf32>
    %149 = arith.negf %148 : vector<16x256xf32>
    %150 = math.exp %149 : vector<16x256xf32>
    %cst_38 = arith.constant 1.000000e+00 : f32
    %151 = vector.broadcast %cst_38 : f32 to vector<16x256xf32>
    %152 = arith.addf %151, %150 : vector<16x256xf32>
    %153 = arith.divf %151, %152 : vector<16x256xf32>
    %154 = vector.extract_strided_slice %147 {offsets = [0, 256], sizes = [16, 256], strides = [1, 1]} : vector<16x1024xf32> to vector<16x256xf32>
    %155 = arith.negf %154 : vector<16x256xf32>
    %156 = math.exp %155 : vector<16x256xf32>
    %cst_39 = arith.constant 1.000000e+00 : f32
    %157 = vector.broadcast %cst_39 : f32 to vector<16x256xf32>
    %158 = arith.addf %157, %156 : vector<16x256xf32>
    %159 = arith.divf %157, %158 : vector<16x256xf32>
    %160 = vector.extract_strided_slice %147 {offsets = [0, 512], sizes = [16, 256], strides = [1, 1]} : vector<16x1024xf32> to vector<16x256xf32>
    %161 = math.tanh %160 : vector<16x256xf32>
    %162 = vector.extract_strided_slice %147 {offsets = [0, 768], sizes = [16, 256], strides = [1, 1]} : vector<16x1024xf32> to vector<16x256xf32>
    %163 = arith.negf %162 : vector<16x256xf32>
    %164 = math.exp %163 : vector<16x256xf32>
    %cst_40 = arith.constant 1.000000e+00 : f32
    %165 = vector.broadcast %cst_40 : f32 to vector<16x256xf32>
    %166 = arith.addf %165, %164 : vector<16x256xf32>
    %167 = arith.divf %165, %166 : vector<16x256xf32>
    %168 = arith.mulf %159, %102 : vector<16x256xf32>
    %169 = arith.mulf %153, %161 : vector<16x256xf32>
    %170 = arith.addf %168, %169 : vector<16x256xf32>
    %171 = math.tanh %170 : vector<16x256xf32>
    %172 = arith.mulf %167, %171 : vector<16x256xf32>
    %c1_i32_41 = arith.constant 1 : i32
    %173 = vector.broadcast %c1_i32_41 : i32 to vector<16x1xi32>
    %174 = arith.subi %0, %173 : vector<16x1xi32>
    %c1_i32_42 = arith.constant 1 : i32
    %175 = vector.broadcast %c1_i32_42 : i32 to vector<16x1xi32>
    %176 = arith.cmpi eq, %174, %175 : vector<16x1xi32>
    %177 = vector.shape_cast %176 : vector<16x1xi1> to vector<16x1xi1>
    %178 = vector.broadcast %177 : vector<16x1xi1> to vector<16x256xi1>
    %179 = arith.select %178, %172, %111 : vector<16x256xi1>, vector<16x256xf32>
    %180 = arith.truncf %142 : vector<16x256xf32> to vector<16x256xbf16>
    %c48 = arith.constant 48 : index
    %c0_43 = arith.constant 0 : index
    %181 = vector.load %arg11[%c48, %c0_43] : memref<128x1024xbf16, #tpu.memory_space<vmem>>, vector<16x1024xbf16>
    %182 = arith.extf %181 : vector<16x1024xbf16> to vector<16x1024xf32>
    %183 = arith.truncf %142 : vector<16x256xf32> to vector<16x256xbf16>
    %cst_44 = arith.constant dense<0.000000e+00> : vector<16x1024xf32>
    %184 = tpu.matmul %183, %10, %cst_44 {dimension_numbers = #tpu.dot_dimension_numbers<[1], [0], [0], [1], [0, 0, 1, 1], [], []>} : vector<16x256xbf16>, vector<256x1024xbf16>, vector<16x1024xf32> -> vector<16x1024xf32>
    %185 = arith.addf %182, %184 : vector<16x1024xf32>
    %186 = vector.extract_strided_slice %185 {offsets = [0, 0], sizes = [16, 256], strides = [1, 1]} : vector<16x1024xf32> to vector<16x256xf32>
    %187 = arith.negf %186 : vector<16x256xf32>
    %188 = math.exp %187 : vector<16x256xf32>
    %cst_45 = arith.constant 1.000000e+00 : f32
    %189 = vector.broadcast %cst_45 : f32 to vector<16x256xf32>
    %190 = arith.addf %189, %188 : vector<16x256xf32>
    %191 = arith.divf %189, %190 : vector<16x256xf32>
    %192 = vector.extract_strided_slice %185 {offsets = [0, 256], sizes = [16, 256], strides = [1, 1]} : vector<16x1024xf32> to vector<16x256xf32>
    %193 = arith.negf %192 : vector<16x256xf32>
    %194 = math.exp %193 : vector<16x256xf32>
    %cst_46 = arith.constant 1.000000e+00 : f32
    %195 = vector.broadcast %cst_46 : f32 to vector<16x256xf32>
    %196 = arith.addf %195, %194 : vector<16x256xf32>
    %197 = arith.divf %195, %196 : vector<16x256xf32>
    %198 = vector.extract_strided_slice %185 {offsets = [0, 512], sizes = [16, 256], strides = [1, 1]} : vector<16x1024xf32> to vector<16x256xf32>
    %199 = math.tanh %198 : vector<16x256xf32>
    %200 = vector.extract_strided_slice %185 {offsets = [0, 768], sizes = [16, 256], strides = [1, 1]} : vector<16x1024xf32> to vector<16x256xf32>
    %201 = arith.negf %200 : vector<16x256xf32>
    %202 = math.exp %201 : vector<16x256xf32>
    %cst_47 = arith.constant 1.000000e+00 : f32
    %203 = vector.broadcast %cst_47 : f32 to vector<16x256xf32>
    %204 = arith.addf %203, %202 : vector<16x256xf32>
    %205 = arith.divf %203, %204 : vector<16x256xf32>
    %206 = arith.mulf %197, %140 : vector<16x256xf32>
    %207 = arith.mulf %191, %199 : vector<16x256xf32>
    %208 = arith.addf %206, %207 : vector<16x256xf32>
    %209 = math.tanh %208 : vector<16x256xf32>
    %210 = arith.mulf %205, %209 : vector<16x256xf32>
    %211 = arith.truncf %172 : vector<16x256xf32> to vector<16x256xbf16>
    %212 = tpu.concatenate %180, %211 in 1 : vector<16x256xbf16>, vector<16x256xbf16> -> vector<16x512xbf16>
    %cst_48 = arith.constant dense<0.000000e+00> : vector<16x1024xf32>
    %213 = tpu.matmul %212, %11, %cst_48 {dimension_numbers = #tpu.dot_dimension_numbers<[1], [0], [0], [1], [0, 0, 1, 1], [], []>} : vector<16x512xbf16>, vector<512x1024xbf16>, vector<16x1024xf32> -> vector<16x1024xf32>
    %214 = vector.broadcast %12 : vector<1x1024xf32> to vector<16x1024xf32>
    %215 = arith.addf %213, %214 : vector<16x1024xf32>
    %216 = vector.extract_strided_slice %215 {offsets = [0, 0], sizes = [16, 256], strides = [1, 1]} : vector<16x1024xf32> to vector<16x256xf32>
    %217 = arith.negf %216 : vector<16x256xf32>
    %218 = math.exp %217 : vector<16x256xf32>
    %cst_49 = arith.constant 1.000000e+00 : f32
    %219 = vector.broadcast %cst_49 : f32 to vector<16x256xf32>
    %220 = arith.addf %219, %218 : vector<16x256xf32>
    %221 = arith.divf %219, %220 : vector<16x256xf32>
    %222 = vector.extract_strided_slice %215 {offsets = [0, 256], sizes = [16, 256], strides = [1, 1]} : vector<16x1024xf32> to vector<16x256xf32>
    %223 = arith.negf %222 : vector<16x256xf32>
    %224 = math.exp %223 : vector<16x256xf32>
    %cst_50 = arith.constant 1.000000e+00 : f32
    %225 = vector.broadcast %cst_50 : f32 to vector<16x256xf32>
    %226 = arith.addf %225, %224 : vector<16x256xf32>
    %227 = arith.divf %225, %226 : vector<16x256xf32>
    %228 = vector.extract_strided_slice %215 {offsets = [0, 512], sizes = [16, 256], strides = [1, 1]} : vector<16x1024xf32> to vector<16x256xf32>
    %229 = math.tanh %228 : vector<16x256xf32>
    %230 = vector.extract_strided_slice %215 {offsets = [0, 768], sizes = [16, 256], strides = [1, 1]} : vector<16x1024xf32> to vector<16x256xf32>
    %231 = arith.negf %230 : vector<16x256xf32>
    %232 = math.exp %231 : vector<16x256xf32>
    %cst_51 = arith.constant 1.000000e+00 : f32
    %233 = vector.broadcast %cst_51 : f32 to vector<16x256xf32>
    %234 = arith.addf %233, %232 : vector<16x256xf32>
    %235 = arith.divf %233, %234 : vector<16x256xf32>
    %236 = arith.mulf %227, %170 : vector<16x256xf32>
    %237 = arith.mulf %221, %229 : vector<16x256xf32>
    %238 = arith.addf %236, %237 : vector<16x256xf32>
    %239 = math.tanh %238 : vector<16x256xf32>
    %240 = arith.mulf %235, %239 : vector<16x256xf32>
    %c1_i32_52 = arith.constant 1 : i32
    %241 = vector.broadcast %c1_i32_52 : i32 to vector<16x1xi32>
    %242 = arith.subi %0, %241 : vector<16x1xi32>
    %c2_i32 = arith.constant 2 : i32
    %243 = vector.broadcast %c2_i32 : i32 to vector<16x1xi32>
    %244 = arith.cmpi eq, %242, %243 : vector<16x1xi32>
    %245 = vector.shape_cast %244 : vector<16x1xi1> to vector<16x1xi1>
    %246 = vector.broadcast %245 : vector<16x1xi1> to vector<16x256xi1>
    %247 = arith.select %246, %240, %179 : vector<16x256xi1>, vector<16x256xf32>
    %248 = arith.truncf %210 : vector<16x256xf32> to vector<16x256xbf16>
    %c64 = arith.constant 64 : index
    %c0_53 = arith.constant 0 : index
    %249 = vector.load %arg11[%c64, %c0_53] : memref<128x1024xbf16, #tpu.memory_space<vmem>>, vector<16x1024xbf16>
    %250 = arith.extf %249 : vector<16x1024xbf16> to vector<16x1024xf32>
    %251 = arith.truncf %210 : vector<16x256xf32> to vector<16x256xbf16>
    %cst_54 = arith.constant dense<0.000000e+00> : vector<16x1024xf32>
    %252 = tpu.matmul %251, %10, %cst_54 {dimension_numbers = #tpu.dot_dimension_numbers<[1], [0], [0], [1], [0, 0, 1, 1], [], []>} : vector<16x256xbf16>, vector<256x1024xbf16>, vector<16x1024xf32> -> vector<16x1024xf32>
    %253 = arith.addf %250, %252 : vector<16x1024xf32>
    %254 = vector.extract_strided_slice %253 {offsets = [0, 0], sizes = [16, 256], strides = [1, 1]} : vector<16x1024xf32> to vector<16x256xf32>
    %255 = arith.negf %254 : vector<16x256xf32>
    %256 = math.exp %255 : vector<16x256xf32>
    %cst_55 = arith.constant 1.000000e+00 : f32
    %257 = vector.broadcast %cst_55 : f32 to vector<16x256xf32>
    %258 = arith.addf %257, %256 : vector<16x256xf32>
    %259 = arith.divf %257, %258 : vector<16x256xf32>
    %260 = vector.extract_strided_slice %253 {offsets = [0, 256], sizes = [16, 256], strides = [1, 1]} : vector<16x1024xf32> to vector<16x256xf32>
    %261 = arith.negf %260 : vector<16x256xf32>
    %262 = math.exp %261 : vector<16x256xf32>
    %cst_56 = arith.constant 1.000000e+00 : f32
    %263 = vector.broadcast %cst_56 : f32 to vector<16x256xf32>
    %264 = arith.addf %263, %262 : vector<16x256xf32>
    %265 = arith.divf %263, %264 : vector<16x256xf32>
    %266 = vector.extract_strided_slice %253 {offsets = [0, 512], sizes = [16, 256], strides = [1, 1]} : vector<16x1024xf32> to vector<16x256xf32>
    %267 = math.tanh %266 : vector<16x256xf32>
    %268 = vector.extract_strided_slice %253 {offsets = [0, 768], sizes = [16, 256], strides = [1, 1]} : vector<16x1024xf32> to vector<16x256xf32>
    %269 = arith.negf %268 : vector<16x256xf32>
    %270 = math.exp %269 : vector<16x256xf32>
    %cst_57 = arith.constant 1.000000e+00 : f32
    %271 = vector.broadcast %cst_57 : f32 to vector<16x256xf32>
    %272 = arith.addf %271, %270 : vector<16x256xf32>
    %273 = arith.divf %271, %272 : vector<16x256xf32>
    %274 = arith.mulf %265, %208 : vector<16x256xf32>
    %275 = arith.mulf %259, %267 : vector<16x256xf32>
    %276 = arith.addf %274, %275 : vector<16x256xf32>
    %277 = math.tanh %276 : vector<16x256xf32>
    %278 = arith.mulf %273, %277 : vector<16x256xf32>
    %279 = arith.truncf %240 : vector<16x256xf32> to vector<16x256xbf16>
    %280 = tpu.concatenate %248, %279 in 1 : vector<16x256xbf16>, vector<16x256xbf16> -> vector<16x512xbf16>
    %cst_58 = arith.constant dense<0.000000e+00> : vector<16x1024xf32>
    %281 = tpu.matmul %280, %11, %cst_58 {dimension_numbers = #tpu.dot_dimension_numbers<[1], [0], [0], [1], [0, 0, 1, 1], [], []>} : vector<16x512xbf16>, vector<512x1024xbf16>, vector<16x1024xf32> -> vector<16x1024xf32>
    %282 = vector.broadcast %12 : vector<1x1024xf32> to vector<16x1024xf32>
    %283 = arith.addf %281, %282 : vector<16x1024xf32>
    %284 = vector.extract_strided_slice %283 {offsets = [0, 0], sizes = [16, 256], strides = [1, 1]} : vector<16x1024xf32> to vector<16x256xf32>
    %285 = arith.negf %284 : vector<16x256xf32>
    %286 = math.exp %285 : vector<16x256xf32>
    %cst_59 = arith.constant 1.000000e+00 : f32
    %287 = vector.broadcast %cst_59 : f32 to vector<16x256xf32>
    %288 = arith.addf %287, %286 : vector<16x256xf32>
    %289 = arith.divf %287, %288 : vector<16x256xf32>
    %290 = vector.extract_strided_slice %283 {offsets = [0, 256], sizes = [16, 256], strides = [1, 1]} : vector<16x1024xf32> to vector<16x256xf32>
    %291 = arith.negf %290 : vector<16x256xf32>
    %292 = math.exp %291 : vector<16x256xf32>
    %cst_60 = arith.constant 1.000000e+00 : f32
    %293 = vector.broadcast %cst_60 : f32 to vector<16x256xf32>
    %294 = arith.addf %293, %292 : vector<16x256xf32>
    %295 = arith.divf %293, %294 : vector<16x256xf32>
    %296 = vector.extract_strided_slice %283 {offsets = [0, 512], sizes = [16, 256], strides = [1, 1]} : vector<16x1024xf32> to vector<16x256xf32>
    %297 = math.tanh %296 : vector<16x256xf32>
    %298 = vector.extract_strided_slice %283 {offsets = [0, 768], sizes = [16, 256], strides = [1, 1]} : vector<16x1024xf32> to vector<16x256xf32>
    %299 = arith.negf %298 : vector<16x256xf32>
    %300 = math.exp %299 : vector<16x256xf32>
    %cst_61 = arith.constant 1.000000e+00 : f32
    %301 = vector.broadcast %cst_61 : f32 to vector<16x256xf32>
    %302 = arith.addf %301, %300 : vector<16x256xf32>
    %303 = arith.divf %301, %302 : vector<16x256xf32>
    %304 = arith.mulf %295, %238 : vector<16x256xf32>
    %305 = arith.mulf %289, %297 : vector<16x256xf32>
    %306 = arith.addf %304, %305 : vector<16x256xf32>
    %307 = math.tanh %306 : vector<16x256xf32>
    %308 = arith.mulf %303, %307 : vector<16x256xf32>
    %c1_i32_62 = arith.constant 1 : i32
    %309 = vector.broadcast %c1_i32_62 : i32 to vector<16x1xi32>
    %310 = arith.subi %0, %309 : vector<16x1xi32>
    %c3_i32 = arith.constant 3 : i32
    %311 = vector.broadcast %c3_i32 : i32 to vector<16x1xi32>
    %312 = arith.cmpi eq, %310, %311 : vector<16x1xi32>
    %313 = vector.shape_cast %312 : vector<16x1xi1> to vector<16x1xi1>
    %314 = vector.broadcast %313 : vector<16x1xi1> to vector<16x256xi1>
    %315 = arith.select %314, %308, %247 : vector<16x256xi1>, vector<16x256xf32>
    %316 = arith.truncf %278 : vector<16x256xf32> to vector<16x256xbf16>
    %c80 = arith.constant 80 : index
    %c0_63 = arith.constant 0 : index
    %317 = vector.load %arg11[%c80, %c0_63] : memref<128x1024xbf16, #tpu.memory_space<vmem>>, vector<16x1024xbf16>
    %318 = arith.extf %317 : vector<16x1024xbf16> to vector<16x1024xf32>
    %319 = arith.truncf %278 : vector<16x256xf32> to vector<16x256xbf16>
    %cst_64 = arith.constant dense<0.000000e+00> : vector<16x1024xf32>
    %320 = tpu.matmul %319, %10, %cst_64 {dimension_numbers = #tpu.dot_dimension_numbers<[1], [0], [0], [1], [0, 0, 1, 1], [], []>} : vector<16x256xbf16>, vector<256x1024xbf16>, vector<16x1024xf32> -> vector<16x1024xf32>
    %321 = arith.addf %318, %320 : vector<16x1024xf32>
    %322 = vector.extract_strided_slice %321 {offsets = [0, 0], sizes = [16, 256], strides = [1, 1]} : vector<16x1024xf32> to vector<16x256xf32>
    %323 = arith.negf %322 : vector<16x256xf32>
    %324 = math.exp %323 : vector<16x256xf32>
    %cst_65 = arith.constant 1.000000e+00 : f32
    %325 = vector.broadcast %cst_65 : f32 to vector<16x256xf32>
    %326 = arith.addf %325, %324 : vector<16x256xf32>
    %327 = arith.divf %325, %326 : vector<16x256xf32>
    %328 = vector.extract_strided_slice %321 {offsets = [0, 256], sizes = [16, 256], strides = [1, 1]} : vector<16x1024xf32> to vector<16x256xf32>
    %329 = arith.negf %328 : vector<16x256xf32>
    %330 = math.exp %329 : vector<16x256xf32>
    %cst_66 = arith.constant 1.000000e+00 : f32
    %331 = vector.broadcast %cst_66 : f32 to vector<16x256xf32>
    %332 = arith.addf %331, %330 : vector<16x256xf32>
    %333 = arith.divf %331, %332 : vector<16x256xf32>
    %334 = vector.extract_strided_slice %321 {offsets = [0, 512], sizes = [16, 256], strides = [1, 1]} : vector<16x1024xf32> to vector<16x256xf32>
    %335 = math.tanh %334 : vector<16x256xf32>
    %336 = vector.extract_strided_slice %321 {offsets = [0, 768], sizes = [16, 256], strides = [1, 1]} : vector<16x1024xf32> to vector<16x256xf32>
    %337 = arith.negf %336 : vector<16x256xf32>
    %338 = math.exp %337 : vector<16x256xf32>
    %cst_67 = arith.constant 1.000000e+00 : f32
    %339 = vector.broadcast %cst_67 : f32 to vector<16x256xf32>
    %340 = arith.addf %339, %338 : vector<16x256xf32>
    %341 = arith.divf %339, %340 : vector<16x256xf32>
    %342 = arith.mulf %333, %276 : vector<16x256xf32>
    %343 = arith.mulf %327, %335 : vector<16x256xf32>
    %344 = arith.addf %342, %343 : vector<16x256xf32>
    %345 = math.tanh %344 : vector<16x256xf32>
    %346 = arith.mulf %341, %345 : vector<16x256xf32>
    %347 = arith.truncf %308 : vector<16x256xf32> to vector<16x256xbf16>
    %348 = tpu.concatenate %316, %347 in 1 : vector<16x256xbf16>, vector<16x256xbf16> -> vector<16x512xbf16>
    %cst_68 = arith.constant dense<0.000000e+00> : vector<16x1024xf32>
    %349 = tpu.matmul %348, %11, %cst_68 {dimension_numbers = #tpu.dot_dimension_numbers<[1], [0], [0], [1], [0, 0, 1, 1], [], []>} : vector<16x512xbf16>, vector<512x1024xbf16>, vector<16x1024xf32> -> vector<16x1024xf32>
    %350 = vector.broadcast %12 : vector<1x1024xf32> to vector<16x1024xf32>
    %351 = arith.addf %349, %350 : vector<16x1024xf32>
    %352 = vector.extract_strided_slice %351 {offsets = [0, 0], sizes = [16, 256], strides = [1, 1]} : vector<16x1024xf32> to vector<16x256xf32>
    %353 = arith.negf %352 : vector<16x256xf32>
    %354 = math.exp %353 : vector<16x256xf32>
    %cst_69 = arith.constant 1.000000e+00 : f32
    %355 = vector.broadcast %cst_69 : f32 to vector<16x256xf32>
    %356 = arith.addf %355, %354 : vector<16x256xf32>
    %357 = arith.divf %355, %356 : vector<16x256xf32>
    %358 = vector.extract_strided_slice %351 {offsets = [0, 256], sizes = [16, 256], strides = [1, 1]} : vector<16x1024xf32> to vector<16x256xf32>
    %359 = arith.negf %358 : vector<16x256xf32>
    %360 = math.exp %359 : vector<16x256xf32>
    %cst_70 = arith.constant 1.000000e+00 : f32
    %361 = vector.broadcast %cst_70 : f32 to vector<16x256xf32>
    %362 = arith.addf %361, %360 : vector<16x256xf32>
    %363 = arith.divf %361, %362 : vector<16x256xf32>
    %364 = vector.extract_strided_slice %351 {offsets = [0, 512], sizes = [16, 256], strides = [1, 1]} : vector<16x1024xf32> to vector<16x256xf32>
    %365 = math.tanh %364 : vector<16x256xf32>
    %366 = vector.extract_strided_slice %351 {offsets = [0, 768], sizes = [16, 256], strides = [1, 1]} : vector<16x1024xf32> to vector<16x256xf32>
    %367 = arith.negf %366 : vector<16x256xf32>
    %368 = math.exp %367 : vector<16x256xf32>
    %cst_71 = arith.constant 1.000000e+00 : f32
    %369 = vector.broadcast %cst_71 : f32 to vector<16x256xf32>
    %370 = arith.addf %369, %368 : vector<16x256xf32>
    %371 = arith.divf %369, %370 : vector<16x256xf32>
    %372 = arith.mulf %363, %306 : vector<16x256xf32>
    %373 = arith.mulf %357, %365 : vector<16x256xf32>
    %374 = arith.addf %372, %373 : vector<16x256xf32>
    %375 = math.tanh %374 : vector<16x256xf32>
    %376 = arith.mulf %371, %375 : vector<16x256xf32>
    %c1_i32_72 = arith.constant 1 : i32
    %377 = vector.broadcast %c1_i32_72 : i32 to vector<16x1xi32>
    %378 = arith.subi %0, %377 : vector<16x1xi32>
    %c4_i32 = arith.constant 4 : i32
    %379 = vector.broadcast %c4_i32 : i32 to vector<16x1xi32>
    %380 = arith.cmpi eq, %378, %379 : vector<16x1xi32>
    %381 = vector.shape_cast %380 : vector<16x1xi1> to vector<16x1xi1>
    %382 = vector.broadcast %381 : vector<16x1xi1> to vector<16x256xi1>
    %383 = arith.select %382, %376, %315 : vector<16x256xi1>, vector<16x256xf32>
    %384 = arith.truncf %346 : vector<16x256xf32> to vector<16x256xbf16>
    %c96 = arith.constant 96 : index
    %c0_73 = arith.constant 0 : index
    %385 = vector.load %arg11[%c96, %c0_73] : memref<128x1024xbf16, #tpu.memory_space<vmem>>, vector<16x1024xbf16>
    %386 = arith.extf %385 : vector<16x1024xbf16> to vector<16x1024xf32>
    %387 = arith.truncf %346 : vector<16x256xf32> to vector<16x256xbf16>
    %cst_74 = arith.constant dense<0.000000e+00> : vector<16x1024xf32>
    %388 = tpu.matmul %387, %10, %cst_74 {dimension_numbers = #tpu.dot_dimension_numbers<[1], [0], [0], [1], [0, 0, 1, 1], [], []>} : vector<16x256xbf16>, vector<256x1024xbf16>, vector<16x1024xf32> -> vector<16x1024xf32>
    %389 = arith.addf %386, %388 : vector<16x1024xf32>
    %390 = vector.extract_strided_slice %389 {offsets = [0, 0], sizes = [16, 256], strides = [1, 1]} : vector<16x1024xf32> to vector<16x256xf32>
    %391 = arith.negf %390 : vector<16x256xf32>
    %392 = math.exp %391 : vector<16x256xf32>
    %cst_75 = arith.constant 1.000000e+00 : f32
    %393 = vector.broadcast %cst_75 : f32 to vector<16x256xf32>
    %394 = arith.addf %393, %392 : vector<16x256xf32>
    %395 = arith.divf %393, %394 : vector<16x256xf32>
    %396 = vector.extract_strided_slice %389 {offsets = [0, 256], sizes = [16, 256], strides = [1, 1]} : vector<16x1024xf32> to vector<16x256xf32>
    %397 = arith.negf %396 : vector<16x256xf32>
    %398 = math.exp %397 : vector<16x256xf32>
    %cst_76 = arith.constant 1.000000e+00 : f32
    %399 = vector.broadcast %cst_76 : f32 to vector<16x256xf32>
    %400 = arith.addf %399, %398 : vector<16x256xf32>
    %401 = arith.divf %399, %400 : vector<16x256xf32>
    %402 = vector.extract_strided_slice %389 {offsets = [0, 512], sizes = [16, 256], strides = [1, 1]} : vector<16x1024xf32> to vector<16x256xf32>
    %403 = math.tanh %402 : vector<16x256xf32>
    %404 = vector.extract_strided_slice %389 {offsets = [0, 768], sizes = [16, 256], strides = [1, 1]} : vector<16x1024xf32> to vector<16x256xf32>
    %405 = arith.negf %404 : vector<16x256xf32>
    %406 = math.exp %405 : vector<16x256xf32>
    %cst_77 = arith.constant 1.000000e+00 : f32
    %407 = vector.broadcast %cst_77 : f32 to vector<16x256xf32>
    %408 = arith.addf %407, %406 : vector<16x256xf32>
    %409 = arith.divf %407, %408 : vector<16x256xf32>
    %410 = arith.mulf %401, %344 : vector<16x256xf32>
    %411 = arith.mulf %395, %403 : vector<16x256xf32>
    %412 = arith.addf %410, %411 : vector<16x256xf32>
    %413 = math.tanh %412 : vector<16x256xf32>
    %414 = arith.mulf %409, %413 : vector<16x256xf32>
    %415 = arith.truncf %376 : vector<16x256xf32> to vector<16x256xbf16>
    %416 = tpu.concatenate %384, %415 in 1 : vector<16x256xbf16>, vector<16x256xbf16> -> vector<16x512xbf16>
    %cst_78 = arith.constant dense<0.000000e+00> : vector<16x1024xf32>
    %417 = tpu.matmul %416, %11, %cst_78 {dimension_numbers = #tpu.dot_dimension_numbers<[1], [0], [0], [1], [0, 0, 1, 1], [], []>} : vector<16x512xbf16>, vector<512x1024xbf16>, vector<16x1024xf32> -> vector<16x1024xf32>
    %418 = vector.broadcast %12 : vector<1x1024xf32> to vector<16x1024xf32>
    %419 = arith.addf %417, %418 : vector<16x1024xf32>
    %420 = vector.extract_strided_slice %419 {offsets = [0, 0], sizes = [16, 256], strides = [1, 1]} : vector<16x1024xf32> to vector<16x256xf32>
    %421 = arith.negf %420 : vector<16x256xf32>
    %422 = math.exp %421 : vector<16x256xf32>
    %cst_79 = arith.constant 1.000000e+00 : f32
    %423 = vector.broadcast %cst_79 : f32 to vector<16x256xf32>
    %424 = arith.addf %423, %422 : vector<16x256xf32>
    %425 = arith.divf %423, %424 : vector<16x256xf32>
    %426 = vector.extract_strided_slice %419 {offsets = [0, 256], sizes = [16, 256], strides = [1, 1]} : vector<16x1024xf32> to vector<16x256xf32>
    %427 = arith.negf %426 : vector<16x256xf32>
    %428 = math.exp %427 : vector<16x256xf32>
    %cst_80 = arith.constant 1.000000e+00 : f32
    %429 = vector.broadcast %cst_80 : f32 to vector<16x256xf32>
    %430 = arith.addf %429, %428 : vector<16x256xf32>
    %431 = arith.divf %429, %430 : vector<16x256xf32>
    %432 = vector.extract_strided_slice %419 {offsets = [0, 512], sizes = [16, 256], strides = [1, 1]} : vector<16x1024xf32> to vector<16x256xf32>
    %433 = math.tanh %432 : vector<16x256xf32>
    %434 = vector.extract_strided_slice %419 {offsets = [0, 768], sizes = [16, 256], strides = [1, 1]} : vector<16x1024xf32> to vector<16x256xf32>
    %435 = arith.negf %434 : vector<16x256xf32>
    %436 = math.exp %435 : vector<16x256xf32>
    %cst_81 = arith.constant 1.000000e+00 : f32
    %437 = vector.broadcast %cst_81 : f32 to vector<16x256xf32>
    %438 = arith.addf %437, %436 : vector<16x256xf32>
    %439 = arith.divf %437, %438 : vector<16x256xf32>
    %440 = arith.mulf %431, %374 : vector<16x256xf32>
    %441 = arith.mulf %425, %433 : vector<16x256xf32>
    %442 = arith.addf %440, %441 : vector<16x256xf32>
    %443 = math.tanh %442 : vector<16x256xf32>
    %444 = arith.mulf %439, %443 : vector<16x256xf32>
    %c1_i32_82 = arith.constant 1 : i32
    %445 = vector.broadcast %c1_i32_82 : i32 to vector<16x1xi32>
    %446 = arith.subi %0, %445 : vector<16x1xi32>
    %c5_i32 = arith.constant 5 : i32
    %447 = vector.broadcast %c5_i32 : i32 to vector<16x1xi32>
    %448 = arith.cmpi eq, %446, %447 : vector<16x1xi32>
    %449 = vector.shape_cast %448 : vector<16x1xi1> to vector<16x1xi1>
    %450 = vector.broadcast %449 : vector<16x1xi1> to vector<16x256xi1>
    %451 = arith.select %450, %444, %383 : vector<16x256xi1>, vector<16x256xf32>
    %452 = arith.truncf %414 : vector<16x256xf32> to vector<16x256xbf16>
    %c112 = arith.constant 112 : index
    %c0_83 = arith.constant 0 : index
    %453 = vector.load %arg11[%c112, %c0_83] : memref<128x1024xbf16, #tpu.memory_space<vmem>>, vector<16x1024xbf16>
    %454 = arith.extf %453 : vector<16x1024xbf16> to vector<16x1024xf32>
    %455 = arith.truncf %414 : vector<16x256xf32> to vector<16x256xbf16>
    %cst_84 = arith.constant dense<0.000000e+00> : vector<16x1024xf32>
    %456 = tpu.matmul %455, %10, %cst_84 {dimension_numbers = #tpu.dot_dimension_numbers<[1], [0], [0], [1], [0, 0, 1, 1], [], []>} : vector<16x256xbf16>, vector<256x1024xbf16>, vector<16x1024xf32> -> vector<16x1024xf32>
    %457 = arith.addf %454, %456 : vector<16x1024xf32>
    %458 = vector.extract_strided_slice %457 {offsets = [0, 0], sizes = [16, 256], strides = [1, 1]} : vector<16x1024xf32> to vector<16x256xf32>
    %459 = arith.negf %458 : vector<16x256xf32>
    %460 = math.exp %459 : vector<16x256xf32>
    %cst_85 = arith.constant 1.000000e+00 : f32
    %461 = vector.broadcast %cst_85 : f32 to vector<16x256xf32>
    %462 = arith.addf %461, %460 : vector<16x256xf32>
    %463 = arith.divf %461, %462 : vector<16x256xf32>
    %464 = vector.extract_strided_slice %457 {offsets = [0, 256], sizes = [16, 256], strides = [1, 1]} : vector<16x1024xf32> to vector<16x256xf32>
    %465 = arith.negf %464 : vector<16x256xf32>
    %466 = math.exp %465 : vector<16x256xf32>
    %cst_86 = arith.constant 1.000000e+00 : f32
    %467 = vector.broadcast %cst_86 : f32 to vector<16x256xf32>
    %468 = arith.addf %467, %466 : vector<16x256xf32>
    %469 = arith.divf %467, %468 : vector<16x256xf32>
    %470 = vector.extract_strided_slice %457 {offsets = [0, 512], sizes = [16, 256], strides = [1, 1]} : vector<16x1024xf32> to vector<16x256xf32>
    %471 = math.tanh %470 : vector<16x256xf32>
    %472 = vector.extract_strided_slice %457 {offsets = [0, 768], sizes = [16, 256], strides = [1, 1]} : vector<16x1024xf32> to vector<16x256xf32>
    %473 = arith.negf %472 : vector<16x256xf32>
    %474 = math.exp %473 : vector<16x256xf32>
    %cst_87 = arith.constant 1.000000e+00 : f32
    %475 = vector.broadcast %cst_87 : f32 to vector<16x256xf32>
    %476 = arith.addf %475, %474 : vector<16x256xf32>
    %477 = arith.divf %475, %476 : vector<16x256xf32>
    %478 = arith.mulf %469, %412 : vector<16x256xf32>
    %479 = arith.mulf %463, %471 : vector<16x256xf32>
    %480 = arith.addf %478, %479 : vector<16x256xf32>
    %481 = math.tanh %480 : vector<16x256xf32>
    %482 = arith.mulf %477, %481 : vector<16x256xf32>
    %483 = arith.truncf %444 : vector<16x256xf32> to vector<16x256xbf16>
    %484 = tpu.concatenate %452, %483 in 1 : vector<16x256xbf16>, vector<16x256xbf16> -> vector<16x512xbf16>
    %cst_88 = arith.constant dense<0.000000e+00> : vector<16x1024xf32>
    %485 = tpu.matmul %484, %11, %cst_88 {dimension_numbers = #tpu.dot_dimension_numbers<[1], [0], [0], [1], [0, 0, 1, 1], [], []>} : vector<16x512xbf16>, vector<512x1024xbf16>, vector<16x1024xf32> -> vector<16x1024xf32>
    %486 = vector.broadcast %12 : vector<1x1024xf32> to vector<16x1024xf32>
    %487 = arith.addf %485, %486 : vector<16x1024xf32>
    %488 = vector.extract_strided_slice %487 {offsets = [0, 0], sizes = [16, 256], strides = [1, 1]} : vector<16x1024xf32> to vector<16x256xf32>
    %489 = arith.negf %488 : vector<16x256xf32>
    %490 = math.exp %489 : vector<16x256xf32>
    %cst_89 = arith.constant 1.000000e+00 : f32
    %491 = vector.broadcast %cst_89 : f32 to vector<16x256xf32>
    %492 = arith.addf %491, %490 : vector<16x256xf32>
    %493 = arith.divf %491, %492 : vector<16x256xf32>
    %494 = vector.extract_strided_slice %487 {offsets = [0, 256], sizes = [16, 256], strides = [1, 1]} : vector<16x1024xf32> to vector<16x256xf32>
    %495 = arith.negf %494 : vector<16x256xf32>
    %496 = math.exp %495 : vector<16x256xf32>
    %cst_90 = arith.constant 1.000000e+00 : f32
    %497 = vector.broadcast %cst_90 : f32 to vector<16x256xf32>
    %498 = arith.addf %497, %496 : vector<16x256xf32>
    %499 = arith.divf %497, %498 : vector<16x256xf32>
    %500 = vector.extract_strided_slice %487 {offsets = [0, 512], sizes = [16, 256], strides = [1, 1]} : vector<16x1024xf32> to vector<16x256xf32>
    %501 = math.tanh %500 : vector<16x256xf32>
    %502 = vector.extract_strided_slice %487 {offsets = [0, 768], sizes = [16, 256], strides = [1, 1]} : vector<16x1024xf32> to vector<16x256xf32>
    %503 = arith.negf %502 : vector<16x256xf32>
    %504 = math.exp %503 : vector<16x256xf32>
    %cst_91 = arith.constant 1.000000e+00 : f32
    %505 = vector.broadcast %cst_91 : f32 to vector<16x256xf32>
    %506 = arith.addf %505, %504 : vector<16x256xf32>
    %507 = arith.divf %505, %506 : vector<16x256xf32>
    %508 = arith.mulf %499, %442 : vector<16x256xf32>
    %509 = arith.mulf %493, %501 : vector<16x256xf32>
    %510 = arith.addf %508, %509 : vector<16x256xf32>
    %511 = math.tanh %510 : vector<16x256xf32>
    %512 = arith.mulf %507, %511 : vector<16x256xf32>
    %c1_i32_92 = arith.constant 1 : i32
    %513 = vector.broadcast %c1_i32_92 : i32 to vector<16x1xi32>
    %514 = arith.subi %0, %513 : vector<16x1xi32>
    %c6_i32 = arith.constant 6 : i32
    %515 = vector.broadcast %c6_i32 : i32 to vector<16x1xi32>
    %516 = arith.cmpi eq, %514, %515 : vector<16x1xi32>
    %517 = vector.shape_cast %516 : vector<16x1xi1> to vector<16x1xi1>
    %518 = vector.broadcast %517 : vector<16x1xi1> to vector<16x256xi1>
    %519 = arith.select %518, %512, %451 : vector<16x256xi1>, vector<16x256xf32>
    %520 = arith.truncf %482 : vector<16x256xf32> to vector<16x256xbf16>
    %521 = arith.truncf %512 : vector<16x256xf32> to vector<16x256xbf16>
    %522 = tpu.concatenate %520, %521 in 1 : vector<16x256xbf16>, vector<16x256xbf16> -> vector<16x512xbf16>
    %cst_93 = arith.constant dense<0.000000e+00> : vector<16x1024xf32>
    %523 = tpu.matmul %522, %11, %cst_93 {dimension_numbers = #tpu.dot_dimension_numbers<[1], [0], [0], [1], [0, 0, 1, 1], [], []>} : vector<16x512xbf16>, vector<512x1024xbf16>, vector<16x1024xf32> -> vector<16x1024xf32>
    %524 = vector.broadcast %12 : vector<1x1024xf32> to vector<16x1024xf32>
    %525 = arith.addf %523, %524 : vector<16x1024xf32>
    %526 = vector.extract_strided_slice %525 {offsets = [0, 0], sizes = [16, 256], strides = [1, 1]} : vector<16x1024xf32> to vector<16x256xf32>
    %527 = arith.negf %526 : vector<16x256xf32>
    %528 = math.exp %527 : vector<16x256xf32>
    %cst_94 = arith.constant 1.000000e+00 : f32
    %529 = vector.broadcast %cst_94 : f32 to vector<16x256xf32>
    %530 = arith.addf %529, %528 : vector<16x256xf32>
    %531 = arith.divf %529, %530 : vector<16x256xf32>
    %532 = vector.extract_strided_slice %525 {offsets = [0, 256], sizes = [16, 256], strides = [1, 1]} : vector<16x1024xf32> to vector<16x256xf32>
    %533 = arith.negf %532 : vector<16x256xf32>
    %534 = math.exp %533 : vector<16x256xf32>
    %cst_95 = arith.constant 1.000000e+00 : f32
    %535 = vector.broadcast %cst_95 : f32 to vector<16x256xf32>
    %536 = arith.addf %535, %534 : vector<16x256xf32>
    %537 = arith.divf %535, %536 : vector<16x256xf32>
    %538 = vector.extract_strided_slice %525 {offsets = [0, 512], sizes = [16, 256], strides = [1, 1]} : vector<16x1024xf32> to vector<16x256xf32>
    %539 = math.tanh %538 : vector<16x256xf32>
    %540 = vector.extract_strided_slice %525 {offsets = [0, 768], sizes = [16, 256], strides = [1, 1]} : vector<16x1024xf32> to vector<16x256xf32>
    %541 = arith.negf %540 : vector<16x256xf32>
    %542 = math.exp %541 : vector<16x256xf32>
    %cst_96 = arith.constant 1.000000e+00 : f32
    %543 = vector.broadcast %cst_96 : f32 to vector<16x256xf32>
    %544 = arith.addf %543, %542 : vector<16x256xf32>
    %545 = arith.divf %543, %544 : vector<16x256xf32>
    %546 = arith.mulf %537, %510 : vector<16x256xf32>
    %547 = arith.mulf %531, %539 : vector<16x256xf32>
    %548 = arith.addf %546, %547 : vector<16x256xf32>
    %549 = math.tanh %548 : vector<16x256xf32>
    %550 = arith.mulf %545, %549 : vector<16x256xf32>
    %c1_i32_97 = arith.constant 1 : i32
    %551 = vector.broadcast %c1_i32_97 : i32 to vector<16x1xi32>
    %552 = arith.subi %0, %551 : vector<16x1xi32>
    %c7_i32 = arith.constant 7 : i32
    %553 = vector.broadcast %c7_i32 : i32 to vector<16x1xi32>
    %554 = arith.cmpi eq, %552, %553 : vector<16x1xi32>
    %555 = vector.shape_cast %554 : vector<16x1xi1> to vector<16x1xi1>
    %556 = vector.broadcast %555 : vector<16x1xi1> to vector<16x256xi1>
    %557 = arith.select %556, %550, %519 : vector<16x256xi1>, vector<16x256xf32>
    %558 = arith.truncf %557 : vector<16x256xf32> to vector<16x256xbf16>
    %c0_98 = arith.constant 0 : index
    %c0_99 = arith.constant 0 : index
    %559 = vector.load %arg7[%c0_98, %c0_99] : memref<256x128xbf16, #tpu.memory_space<vmem>>, vector<256x128xbf16>
    %cst_100 = arith.constant dense<0.000000e+00> : vector<16x128xf32>
    %560 = tpu.matmul %558, %559, %cst_100 {dimension_numbers = #tpu.dot_dimension_numbers<[1], [0], [0], [1], [0, 0, 1, 1], [], []>} : vector<16x256xbf16>, vector<256x128xbf16>, vector<16x128xf32> -> vector<16x128xf32>
    %c0_101 = arith.constant 0 : index
    %c0_102 = arith.constant 0 : index
    %561 = vector.load %arg8[%c0_101, %c0_102] : memref<1x128xf32, #tpu.memory_space<vmem>>, vector<1x128xf32>
    %562 = vector.broadcast %561 : vector<1x128xf32> to vector<16x128xf32>
    %563 = arith.addf %560, %562 : vector<16x128xf32>
    %c0_103 = arith.constant 0 : index
    %c0_104 = arith.constant 0 : index
    %564 = vector.load %arg10[%c0_103, %c0_104] : memref<16x128xf32, #tpu.memory_space<vmem>>, vector<16x128xf32>
    tpu.vector_store %arg10[%c0_103, %c0_104], %563 {strides = array<i32>} : memref<16x128xf32, #tpu.memory_space<vmem>>, vector<16x128xf32>,
    return
  }
  func.func @transform_0(%arg0: i32) -> (i32, i32, i32) {
    %c0_i32 = arith.constant 0 : i32
    %c0_i32_0 = arith.constant 0 : i32
    %c0_i32_1 = arith.constant 0 : i32
    return %arg0, %c0_i32, %c0_i32_0 : i32, i32, i32
  }
  func.func @transform_1(%arg0: i32) -> (i32, i32) {
    %c0_i32 = arith.constant 0 : i32
    %c0_i32_0 = arith.constant 0 : i32
    %c0_i32_1 = arith.constant 0 : i32
    return %c0_i32, %c0_i32_0 : i32, i32
  }
  func.func @transform_2(%arg0: i32) -> (i32, i32) {
    %c0_i32 = arith.constant 0 : i32
    %c0_i32_0 = arith.constant 0 : i32
    %c0_i32_1 = arith.constant 0 : i32
    return %c0_i32, %c0_i32_0 : i32, i32
  }
  func.func @transform_3(%arg0: i32) -> (i32, i32) {
    %c0_i32 = arith.constant 0 : i32
    %c0_i32_0 = arith.constant 0 : i32
    %c0_i32_1 = arith.constant 0 : i32
    return %c0_i32, %c0_i32_0 : i32, i32
  }
  func.func @transform_4(%arg0: i32) -> (i32, i32) {
    %c0_i32 = arith.constant 0 : i32
    %c0_i32_0 = arith.constant 0 : i32
    %c0_i32_1 = arith.constant 0 : i32
    return %c0_i32, %c0_i32_0 : i32, i32
  }
  func.func @transform_5(%arg0: i32) -> (i32, i32) {
    %c0_i32 = arith.constant 0 : i32
    %c0_i32_0 = arith.constant 0 : i32
    %c0_i32_1 = arith.constant 0 : i32
    return %c0_i32, %c0_i32_0 : i32, i32
  }
  func.func @transform_6(%arg0: i32) -> (i32, i32) {
    %c0_i32 = arith.constant 0 : i32
    %c0_i32_0 = arith.constant 0 : i32
    %c0_i32_1 = arith.constant 0 : i32
    return %c0_i32, %c0_i32_0 : i32, i32
  }
  func.func @transform_7(%arg0: i32) -> (i32, i32) {
    %c0_i32 = arith.constant 0 : i32
    %c0_i32_0 = arith.constant 0 : i32
    %c0_i32_1 = arith.constant 0 : i32
    return %c0_i32, %c0_i32_0 : i32, i32
  }
  func.func @transform_8(%arg0: i32) -> (i32, i32) {
    %c0_i32 = arith.constant 0 : i32
    %c0_i32_0 = arith.constant 0 : i32
    return %arg0, %c0_i32 : i32, i32
  }
  func.func @transform_9(%arg0: i32) -> (i32, i32) {
    %c0_i32 = arith.constant 0 : i32
    %c0_i32_0 = arith.constant 0 : i32
    return %arg0, %c0_i32 : i32, i32
  }
}

</mosaic_0001>

<llo_original>
// kernel: lstm_forward.1
$region0: #{lstm_forward.1}
  #allocation0 [shape = 'u32[]', space=smem, size = 0x4, offset = 0x4, fixed_abs, tag = 'smem constant byte address 0x4 - core index']
  #allocation1 [shape = 'u32[144,128]{1,0:T(1,128)}', space=vmem, size = 0x12000, scoped, tag = 'internal scratch']
  #allocation2 [shape = 'bf16[128,1024]{1,0:T(16,128)(2,1)}', space=vmem, size = 0x40000, scoped, tag = 'scratch operand']
  %s0 = inlined_call_operand.vmem [shape: bf16[1,128,128], index: 0, kind: input, shape index: {}]
  %s1 = inlined_call_operand.vmem [shape: bf16[128,1024], index: 1, kind: input, shape index: {}]
  %s2 = inlined_call_operand.hbm [shape: bf16[256,1024], index: 2, kind: input, shape index: {}]
  %s3 = inlined_call_operand.vmem [shape: f32[1,1024], index: 3, kind: input, shape index: {}]
  %s4 = inlined_call_operand.hbm [shape: bf16[512,1024], index: 4, kind: input, shape index: {}]
  %s5 = inlined_call_operand.vmem [shape: f32[1,1024], index: 5, kind: input, shape index: {}]
  %s6 = inlined_call_operand.vmem [shape: bf16[256,128], index: 6, kind: input, shape index: {}]
  %s7 = inlined_call_operand.vmem [shape: f32[1,128], index: 7, kind: input, shape index: {}]
  %s8 = inlined_call_operand.vmem [shape: s32[16,1], index: 8, kind: input, shape index: {}]
  %s9 = inlined_call_operand.vmem [shape: f32[16,128], index: 9, kind: output, shape index: {}]
  %s10 = sld [smem:[#allocation0]]
  $region54: #{lstm_forward.1} parent=0
    _
  %s12 = ssub.s32 1, %s10
  %s13 = scalar_select 0, %s12, %s10
  $region1: #{lstm_forward.1} parent=0
    #allocation3 [shape = 'u8[524288]{0}', space=vmem, size = 0x80000, scoped, tag = 'input window, operand 2, single buffered']
    #allocation4 [shape = 's32[1]{0}', space=sflag, size = 0x4, scoped, tag = 'scoped memory for lstm_forward.1']
    #allocation5 [shape = 'u8[1048576]{0}', space=vmem, size = 0x100000, scoped, tag = 'input window, operand 4, single buffered']
    #allocation6 [shape = 's32[1]{0}', space=sflag, size = 0x4, scoped, tag = 'scoped memory for lstm_forward.1']
    %14 = vsyncpa [#allocation4], 0
    %15 = vsyncpa [#allocation6], 0
    // Predicated region
    $region2: #{lstm_forward.1} parent=1 // pred_check
      _
    $region3: #{lstm_forward.1} parent=1 // pred_check_branch
      %17 = sbr.rel (0) target = $region5
    $region4: #{lstm_forward.1} parent=1 // pred_region
      _
    $region5: #{lstm_forward.1} parent=1 // pred_fallthru
      _
    // Predicated region
    $region6: #{lstm_forward.1} parent=1 // pred_check
      _
    $region7: #{lstm_forward.1} parent=1 // pred_check_branch
      %19 = sbr.rel (0) target = $region9
    $region8: #{lstm_forward.1} parent=1 // pred_region
      _
    $region9: #{lstm_forward.1} parent=1 // pred_fallthru
      _
    // Predicated region
    $region10: #{lstm_forward.1} parent=1 // pred_check
      _
    $region11: #{lstm_forward.1} parent=1 // pred_check_branch
      %21 = sbr.rel (0) target = $region13
    $region12: #{lstm_forward.1} parent=1 // pred_region
      %s23 = ssub.s32 16384, 16384
      %24 = vsyncadd [#allocation4], %s23
      %s25 = sshll.u32 [#allocation3], 4
      %s26 = int_to_ptr.vmem [resolvable:$true] %s25
      %31 = dma.hbm_to_vmem [thread:$0]  %s2, 16384, %s26, [#allocation4], 512, 512, 32
    $region13: #{lstm_forward.1} parent=1 // pred_fallthru
      _
    // Predicated region
    $region14: #{lstm_forward.1} parent=1 // pred_check
      _
    $region15: #{lstm_forward.1} parent=1 // pred_check_branch
      %33 = sbr.rel (0) target = $region17
    $region16: #{lstm_forward.1} parent=1 // pred_region
      _
    $region17: #{lstm_forward.1} parent=1 // pred_fallthru
      _
    // Predicated region
    $region18: #{lstm_forward.1} parent=1 // pred_check
      _
    $region19: #{lstm_forward.1} parent=1 // pred_check_branch
      %35 = sbr.rel (0) target = $region21
    $region20: #{lstm_forward.1} parent=1 // pred_region
      %s37 = ssub.s32 32768, 32768
      %38 = vsyncadd [#allocation6], %s37
      %s39 = sshll.u32 [#allocation5], 4
      %s40 = int_to_ptr.vmem [resolvable:$true] %s39
      %45 = dma.hbm_to_vmem [thread:$0]  %s4, 32768, %s40, [#allocation6], 512, 512, 32
    $region21: #{lstm_forward.1} parent=1 // pred_fallthru
      _
    // Predicated region
    $region22: #{lstm_forward.1} parent=1 // pred_check
      _
    $region23: #{lstm_forward.1} parent=1 // pred_check_branch
      %47 = sbr.rel (0) target = $region25
    $region24: #{lstm_forward.1} parent=1 // pred_region
      _
    $region25: #{lstm_forward.1} parent=1 // pred_fallthru
      _
    // Predicated region
    $region26: #{lstm_forward.1} parent=1 // pred_check
      _
    $region27: #{lstm_forward.1} parent=1 // pred_check_branch
      %49 = sbr.rel (0) target = $region29
    $region28: #{lstm_forward.1} parent=1 // pred_region
      _
    $region29: #{lstm_forward.1} parent=1 // pred_fallthru
      _
    // Predicated region
    $region30: #{lstm_forward.1} parent=1 // pred_check
      _
    $region31: #{lstm_forward.1} parent=1 // pred_check_branch
      %51 = sbr.rel (0) target = $region33
    $region32: #{lstm_forward.1} parent=1 // pred_region
      _
    $region33: #{lstm_forward.1} parent=1 // pred_fallthru
      _
    // Predicated region
    $region34: #{lstm_forward.1} parent=1 // pred_check
      _
    $region35: #{lstm_forward.1} parent=1 // pred_check_branch
      %53 = sbr.rel (0) target = $region37
    $region36: #{lstm_forward.1} parent=1 // pred_region
      _
    $region37: #{lstm_forward.1} parent=1 // pred_fallthru
      _
    // Predicated region
    $region38: #{lstm_forward.1} parent=1 // pred_check
      _
    $region39: #{lstm_forward.1} parent=1 // pred_check_branch
      %55 = sbr.rel (0) target = $region41
    $region40: #{lstm_forward.1} parent=1 // pred_region
      %56 = dma.done [#allocation4], 16384
    $region41: #{lstm_forward.1} parent=1 // pred_fallthru
      _
    // Predicated region
    $region42: #{lstm_forward.1} parent=1 // pred_check
      _
    $region43: #{lstm_forward.1} parent=1 // pred_check_branch
      %58 = sbr.rel (0) target = $region45
    $region44: #{lstm_forward.1} parent=1 // pred_region
      %59 = dma.done [#allocation6], 32768
    $region45: #{lstm_forward.1} parent=1 // pred_fallthru
      _
    %v61 = vld [vmem:[%s8] sm:$0xff]
    %v62 = vld [vmem:[%s8 + $0x8] sm:$0xff]
    %v63 = vld [vmem:[%s0] sm:$0xf]
    %v64 = vld [vmem:[%s0 + $0x4] sm:$0xf]
    %v65 = vld [vmem:[%s0 + $0x8] sm:$0xf]
    %v66 = vld [vmem:[%s0 + $0xc] sm:$0xf]
    %v67 = vld [vmem:[%s0 + $0x10] sm:$0xf]
    %v68 = vld [vmem:[%s0 + $0x14] sm:$0xf]
    %v69 = vld [vmem:[%s0 + $0x18] sm:$0xf]
    %v70 = vld [vmem:[%s0 + $0x1c] sm:$0xf]
    %v71 = vld [vmem:[%s0 + $0x20] sm:$0xf]
    %v72 = vld [vmem:[%s0 + $0x24] sm:$0xf]
    %v73 = vld [vmem:[%s0 + $0x28] sm:$0xf]
    %v74 = vld [vmem:[%s0 + $0x2c] sm:$0xf]
    %v75 = vld [vmem:[%s0 + $0x30] sm:$0xf]
    %v76 = vld [vmem:[%s0 + $0x34] sm:$0xf]
    %v77 = vld [vmem:[%s0 + $0x38] sm:$0xf]
    %v78 = vld [vmem:[%s0 + $0x3c] sm:$0xf]
    %v79 = vld [vmem:[%s1] sm:$0xff]
    %v80 = vld [vmem:[%s1 + $0x8] sm:$0xff]
    %v81 = vld [vmem:[%s1 + $0x10] sm:$0xff]
    %v82 = vld [vmem:[%s1 + $0x18] sm:$0xff]
    %v83 = vld [vmem:[%s1 + $0x20] sm:$0xff]
    %v84 = vld [vmem:[%s1 + $0x28] sm:$0xff]
    %v85 = vld [vmem:[%s1 + $0x30] sm:$0xff]
    %v86 = vld [vmem:[%s1 + $0x38] sm:$0xff]
    %v87 = vld [vmem:[%s1 + $0x40] sm:$0xff]
    %v88 = vld [vmem:[%s1 + $0x48] sm:$0xff]
    %v89 = vld [vmem:[%s1 + $0x50] sm:$0xff]
    %v90 = vld [vmem:[%s1 + $0x58] sm:$0xff]
    %v91 = vld [vmem:[%s1 + $0x60] sm:$0xff]
    %v92 = vld [vmem:[%s1 + $0x68] sm:$0xff]
    %v93 = vld [vmem:[%s1 + $0x70] sm:$0xff]
    %v94 = vld [vmem:[%s1 + $0x78] sm:$0xff]
    %v95 = vld [vmem:[%s1 + $0x80] sm:$0xff]
    %v96 = vld [vmem:[%s1 + $0x88] sm:$0xff]
    %v97 = vld [vmem:[%s1 + $0x90] sm:$0xff]
    %v98 = vld [vmem:[%s1 + $0x98] sm:$0xff]
    %v99 = vld [vmem:[%s1 + $0xa0] sm:$0xff]
    %v100 = vld [vmem:[%s1 + $0xa8] sm:$0xff]
    %v101 = vld [vmem:[%s1 + $0xb0] sm:$0xff]
    %v102 = vld [vmem:[%s1 + $0xb8] sm:$0xff]
    %v103 = vld [vmem:[%s1 + $0xc0] sm:$0xff]
    %v104 = vld [vmem:[%s1 + $0xc8] sm:$0xff]
    %v105 = vld [vmem:[%s1 + $0xd0] sm:$0xff]
    %v106 = vld [vmem:[%s1 + $0xd8] sm:$0xff]
    %v107 = vld [vmem:[%s1 + $0xe0] sm:$0xff]
    %v108 = vld [vmem:[%s1 + $0xe8] sm:$0xff]
    %v109 = vld [vmem:[%s1 + $0xf0] sm:$0xff]
    %v110 = vld [vmem:[%s1 + $0xf8] sm:$0xff]
    %v111 = vld [vmem:[%s1 + $0x100] sm:$0xff]
    %v112 = vld [vmem:[%s1 + $0x108] sm:$0xff]
    %v113 = vld [vmem:[%s1 + $0x110] sm:$0xff]
    %v114 = vld [vmem:[%s1 + $0x118] sm:$0xff]
    %v115 = vld [vmem:[%s1 + $0x120] sm:$0xff]
    %v116 = vld [vmem:[%s1 + $0x128] sm:$0xff]
    %v117 = vld [vmem:[%s1 + $0x130] sm:$0xff]
    %v118 = vld [vmem:[%s1 + $0x138] sm:$0xff]
    %v119 = vld [vmem:[%s1 + $0x140] sm:$0xff]
    %v120 = vld [vmem:[%s1 + $0x148] sm:$0xff]
    %v121 = vld [vmem:[%s1 + $0x150] sm:$0xff]
    %v122 = vld [vmem:[%s1 + $0x158] sm:$0xff]
    %v123 = vld [vmem:[%s1 + $0x160] sm:$0xff]
    %v124 = vld [vmem:[%s1 + $0x168] sm:$0xff]
    %v125 = vld [vmem:[%s1 + $0x170] sm:$0xff]
    %v126 = vld [vmem:[%s1 + $0x178] sm:$0xff]
    %v127 = vld [vmem:[%s1 + $0x180] sm:$0xff]
    %v128 = vld [vmem:[%s1 + $0x188] sm:$0xff]
    %v129 = vld [vmem:[%s1 + $0x190] sm:$0xff]
    %v130 = vld [vmem:[%s1 + $0x198] sm:$0xff]
    %v131 = vld [vmem:[%s1 + $0x1a0] sm:$0xff]
    %v132 = vld [vmem:[%s1 + $0x1a8] sm:$0xff]
    %v133 = vld [vmem:[%s1 + $0x1b0] sm:$0xff]
    %v134 = vld [vmem:[%s1 + $0x1b8] sm:$0xff]
    %v135 = vld [vmem:[%s1 + $0x1c0] sm:$0xff]
    %v136 = vld [vmem:[%s1 + $0x1c8] sm:$0xff]
    %v137 = vld [vmem:[%s1 + $0x1d0] sm:$0xff]
    %v138 = vld [vmem:[%s1 + $0x1d8] sm:$0xff]
    %v139 = vld [vmem:[%s1 + $0x1e0] sm:$0xff]
    %v140 = vld [vmem:[%s1 + $0x1e8] sm:$0xff]
    %v141 = vld [vmem:[%s1 + $0x1f0] sm:$0xff]
    %v142 = vld [vmem:[%s1 + $0x1f8] sm:$0xff]
    %v143 = vld [vmem:[%s3] sm:$0xff]
    %v145 = vlaneseq
    %v146 = vshrl.u32 %v145, 7
    %v147 = vsub.s32 0, %v146
    %v148 = vrot.slane %v143, %v147
    %v149 = vlaneseq
    %v150 = vshrl.u32 %v149, 7
    %v151 = vsub.s32 1, %v150
    %v152 = vrot.slane %v143, %v151
    %v153 = vlaneseq
    %v154 = vshrl.u32 %v153, 7
    %v155 = vsub.s32 2, %v154
    %v156 = vrot.slane %v143, %v155
    %v157 = vlaneseq
    %v158 = vshrl.u32 %v157, 7
    %v159 = vsub.s32 3, %v158
    %v160 = vrot.slane %v143, %v159
    %v161 = vlaneseq
    %v162 = vshrl.u32 %v161, 7
    %v163 = vsub.s32 4, %v162
    %v164 = vrot.slane %v143, %v163
    %v165 = vlaneseq
    %v166 = vshrl.u32 %v165, 7
    %v167 = vsub.s32 5, %v166
    %v168 = vrot.slane %v143, %v167
    %v169 = vlaneseq
    %v170 = vshrl.u32 %v169, 7
    %v171 = vsub.s32 6, %v170
    %v172 = vrot.slane %v143, %v171
    %v173 = vlaneseq
    %v174 = vshrl.u32 %v173, 7
    %v175 = vsub.s32 7, %v174
    %v176 = vrot.slane %v143, %v175
    %v201 = vunpack.c.l.b16 %v63
    %v202 = vunpack.c.l.b16 %v64
    %v203 = vunpack.c.l.b16 %v65
    %v204 = vunpack.c.l.b16 %v66
    %v205 = vunpack.c.l.b16 %v67
    %v206 = vunpack.c.l.b16 %v68
    %v207 = vunpack.c.l.b16 %v69
    %v208 = vunpack.c.l.b16 %v70
    %v209 = vunpack.c.l.b16 %v71
    %v210 = vunpack.c.l.b16 %v72
    %v211 = vunpack.c.l.b16 %v73
    %v212 = vunpack.c.l.b16 %v74
    %v213 = vunpack.c.l.b16 %v75
    %v214 = vunpack.c.l.b16 %v76
    %v215 = vunpack.c.l.b16 %v77
    %v216 = vunpack.c.l.b16 %v78
    %v217 = vpack.c.b16 %v202, %v201
    %v218 = vpack.c.b16 %v204, %v203
    %v219 = vpack.c.b16 %v206, %v205
    %v220 = vpack.c.b16 %v208, %v207
    %v221 = vpack.c.b16 %v210, %v209
    %v222 = vpack.c.b16 %v212, %v211
    %v223 = vpack.c.b16 %v214, %v213
    %v224 = vpack.c.b16 %v216, %v215
    %v297 = vunpack.c.l.b16 %v79
    %v298 = vunpack.c.h.b16 %v79
    %v299 = vunpack.c.l.b16 %v80
    %v300 = vunpack.c.h.b16 %v80
    %v301 = vunpack.c.l.b16 %v81
    %v302 = vunpack.c.h.b16 %v81
    %v303 = vunpack.c.l.b16 %v82
    %v304 = vunpack.c.h.b16 %v82
    %v305 = vunpack.c.l.b16 %v83
    %v306 = vunpack.c.h.b16 %v83
    %v307 = vunpack.c.l.b16 %v84
    %v308 = vunpack.c.h.b16 %v84
    %v309 = vunpack.c.l.b16 %v85
    %v310 = vunpack.c.h.b16 %v85
    %v311 = vunpack.c.l.b16 %v86
    %v312 = vunpack.c.h.b16 %v86
    %v313 = vunpack.c.l.b16 %v87
    %v314 = vunpack.c.h.b16 %v87
    %v315 = vunpack.c.l.b16 %v88
    %v316 = vunpack.c.h.b16 %v88
    %v317 = vunpack.c.l.b16 %v89
    %v318 = vunpack.c.h.b16 %v89
    %v319 = vunpack.c.l.b16 %v90
    %v320 = vunpack.c.h.b16 %v90
    %v321 = vunpack.c.l.b16 %v91
    %v322 = vunpack.c.h.b16 %v91
    %v323 = vunpack.c.l.b16 %v92
    %v324 = vunpack.c.h.b16 %v92
    %v325 = vunpack.c.l.b16 %v93
    %v326 = vunpack.c.h.b16 %v93
    %v327 = vunpack.c.l.b16 %v94
    %v328 = vunpack.c.h.b16 %v94
    %v329 = vunpack.c.l.b16 %v95
    %v330 = vunpack.c.h.b16 %v95
    %v331 = vunpack.c.l.b16 %v96
    %v332 = vunpack.c.h.b16 %v96
    %v333 = vunpack.c.l.b16 %v97
    %v334 = vunpack.c.h.b16 %v97
    %v335 = vunpack.c.l.b16 %v98
    %v336 = vunpack.c.h.b16 %v98
    %v337 = vunpack.c.l.b16 %v99
    %v338 = vunpack.c.h.b16 %v99
    %v339 = vunpack.c.l.b16 %v100
    %v340 = vunpack.c.h.b16 %v100
    %v341 = vunpack.c.l.b16 %v101
    %v342 = vunpack.c.h.b16 %v101
    %v343 = vunpack.c.l.b16 %v102
    %v344 = vunpack.c.h.b16 %v102
    %v345 = vunpack.c.l.b16 %v103
    %v346 = vunpack.c.h.b16 %v103
    %v347 = vunpack.c.l.b16 %v104
    %v348 = vunpack.c.h.b16 %v104
    %v349 = vunpack.c.l.b16 %v105
    %v350 = vunpack.c.h.b16 %v105
    %v351 = vunpack.c.l.b16 %v106
    %v352 = vunpack.c.h.b16 %v106
    %v353 = vunpack.c.l.b16 %v107
    %v354 = vunpack.c.h.b16 %v107
    %v355 = vunpack.c.l.b16 %v108
    %v356 = vunpack.c.h.b16 %v108
    %v357 = vunpack.c.l.b16 %v109
    %v358 = vunpack.c.h.b16 %v109
    %v359 = vunpack.c.l.b16 %v110
    %v360 = vunpack.c.h.b16 %v110
    %v361 = vunpack.c.l.b16 %v111
    %v362 = vunpack.c.h.b16 %v111
    %v363 = vunpack.c.l.b16 %v112
    %v364 = vunpack.c.h.b16 %v112
    %v365 = vunpack.c.l.b16 %v113
    %v366 = vunpack.c.h.b16 %v113
    %v367 = vunpack.c.l.b16 %v114
    %v368 = vunpack.c.h.b16 %v114
    %v369 = vunpack.c.l.b16 %v115
    %v370 = vunpack.c.h.b16 %v115
    %v371 = vunpack.c.l.b16 %v116
    %v372 = vunpack.c.h.b16 %v116
    %v373 = vunpack.c.l.b16 %v117
    %v374 = vunpack.c.h.b16 %v117
    %v375 = vunpack.c.l.b16 %v118
    %v376 = vunpack.c.h.b16 %v118
    %v377 = vunpack.c.l.b16 %v119
    %v378 = vunpack.c.h.b16 %v119
    %v379 = vunpack.c.l.b16 %v120
    %v380 = vunpack.c.h.b16 %v120
    %v381 = vunpack.c.l.b16 %v121
    %v382 = vunpack.c.h.b16 %v121
    %v383 = vunpack.c.l.b16 %v122
    %v384 = vunpack.c.h.b16 %v122
    %v385 = vunpack.c.l.b16 %v123
    %v386 = vunpack.c.h.b16 %v123
    %v387 = vunpack.c.l.b16 %v124
    %v388 = vunpack.c.h.b16 %v124
    %v389 = vunpack.c.l.b16 %v125
    %v390 = vunpack.c.h.b16 %v125
    %v391 = vunpack.c.l.b16 %v126
    %v392 = vunpack.c.h.b16 %v126
    %v393 = vunpack.c.l.b16 %v127
    %v394 = vunpack.c.h.b16 %v127
    %v395 = vunpack.c.l.b16 %v128
    %v396 = vunpack.c.h.b16 %v128
    %v397 = vunpack.c.l.b16 %v129
    %v398 = vunpack.c.h.b16 %v129
    %v399 = vunpack.c.l.b16 %v130
    %v400 = vunpack.c.h.b16 %v130
    %v401 = vunpack.c.l.b16 %v131
    %v402 = vunpack.c.h.b16 %v131
    %v403 = vunpack.c.l.b16 %v132
    %v404 = vunpack.c.h.b16 %v132
    %v405 = vunpack.c.l.b16 %v133
    %v406 = vunpack.c.h.b16 %v133
    %v407 = vunpack.c.l.b16 %v134
    %v408 = vunpack.c.h.b16 %v134
    %v409 = vunpack.c.l.b16 %v135
    %v410 = vunpack.c.h.b16 %v135
    %v411 = vunpack.c.l.b16 %v136
    %v412 = vunpack.c.h.b16 %v136
    %v413 = vunpack.c.l.b16 %v137
    %v414 = vunpack.c.h.b16 %v137
    %v415 = vunpack.c.l.b16 %v138
    %v416 = vunpack.c.h.b16 %v138
    %v417 = vunpack.c.l.b16 %v139
    %v418 = vunpack.c.h.b16 %v139
    %v419 = vunpack.c.l.b16 %v140
    %v420 = vunpack.c.h.b16 %v140
    %v421 = vunpack.c.l.b16 %v141
    %v422 = vunpack.c.h.b16 %v141
    %v423 = vunpack.c.l.b16 %v142
    %v424 = vunpack.c.h.b16 %v142
    %v425 = vpack.c.b16 %v305, %v297
    %v426 = vpack.c.b16 %v306, %v298
    %v427 = vpack.c.b16 %v307, %v299
    %v428 = vpack.c.b16 %v308, %v300
    %v429 = vpack.c.b16 %v309, %v301
    %v430 = vpack.c.b16 %v310, %v302
    %v431 = vpack.c.b16 %v311, %v303
    %v432 = vpack.c.b16 %v312, %v304
    %v433 = vpack.c.b16 %v321, %v313
    %v434 = vpack.c.b16 %v322, %v314
    %v435 = vpack.c.b16 %v323, %v315
    %v436 = vpack.c.b16 %v324, %v316
    %v437 = vpack.c.b16 %v325, %v317
    %v438 = vpack.c.b16 %v326, %v318
    %v439 = vpack.c.b16 %v327, %v319
    %v440 = vpack.c.b16 %v328, %v320
    %v441 = vpack.c.b16 %v337, %v329
    %v442 = vpack.c.b16 %v338, %v330
    %v443 = vpack.c.b16 %v339, %v331
    %v444 = vpack.c.b16 %v340, %v332
    %v445 = vpack.c.b16 %v341, %v333
    %v446 = vpack.c.b16 %v342, %v334
    %v447 = vpack.c.b16 %v343, %v335
    %v448 = vpack.c.b16 %v344, %v336
    %v449 = vpack.c.b16 %v353, %v345
    %v450 = vpack.c.b16 %v354, %v346
    %v451 = vpack.c.b16 %v355, %v347
    %v452 = vpack.c.b16 %v356, %v348
    %v453 = vpack.c.b16 %v357, %v349
    %v454 = vpack.c.b16 %v358, %v350
    %v455 = vpack.c.b16 %v359, %v351
    %v456 = vpack.c.b16 %v360, %v352
    %v457 = vpack.c.b16 %v369, %v361
    %v458 = vpack.c.b16 %v370, %v362
    %v459 = vpack.c.b16 %v371, %v363
    %v460 = vpack.c.b16 %v372, %v364
    %v461 = vpack.c.b16 %v373, %v365
    %v462 = vpack.c.b16 %v374, %v366
    %v463 = vpack.c.b16 %v375, %v367
    %v464 = vpack.c.b16 %v376, %v368
    %v465 = vpack.c.b16 %v385, %v377
    %v466 = vpack.c.b16 %v386, %v378
    %v467 = vpack.c.b16 %v387, %v379
    %v468 = vpack.c.b16 %v388, %v380
    %v469 = vpack.c.b16 %v389, %v381
    %v470 = vpack.c.b16 %v390, %v382
    %v471 = vpack.c.b16 %v391, %v383
    %v472 = vpack.c.b16 %v392, %v384
    %v473 = vpack.c.b16 %v401, %v393
    %v474 = vpack.c.b16 %v402, %v394
    %v475 = vpack.c.b16 %v403, %v395
    %v476 = vpack.c.b16 %v404, %v396
    %v477 = vpack.c.b16 %v405, %v397
    %v478 = vpack.c.b16 %v406, %v398
    %v479 = vpack.c.b16 %v407, %v399
    %v480 = vpack.c.b16 %v408, %v400
    %v481 = vpack.c.b16 %v417, %v409
    %v482 = vpack.c.b16 %v418, %v410
    %v483 = vpack.c.b16 %v419, %v411
    %v484 = vpack.c.b16 %v420, %v412
    %v485 = vpack.c.b16 %v421, %v413
    %v486 = vpack.c.b16 %v422, %v414
    %v487 = vpack.c.b16 %v423, %v415
    %v488 = vpack.c.b16 %v424, %v416
    %553 = vmatprep.subr.bf16.mxu0 %v426
    %554 = vmatpush1.bf16.msra.mxu0 %v425
    %555 = vmatprep.subr.bf16.mxu0 %v434
    %556 = vmatpush1.bf16.msra.mxu0 %v433
    %557 = vmatprep.subr.bf16.mxu0 %v442
    %558 = vmatpush1.bf16.msra.mxu0 %v441
    %559 = vmatprep.subr.bf16.mxu0 %v450
    %560 = vmatpush1.bf16.msra.mxu0 %v449
    %561 = vmatprep.subr.bf16.mxu0 %v458
    %562 = vmatpush1.bf16.msra.mxu0 %v457
    %563 = vmatprep.subr.bf16.mxu0 %v466
    %564 = vmatpush1.bf16.msra.mxu0 %v465
    %565 = vmatprep.subr.bf16.mxu0 %v474
    %566 = vmatpush1.bf16.msra.mxu0 %v473
    %567 = vmatprep.subr.bf16.mxu0 %v482
    %568 = vmatpush1.bf16.msra.mxu0 %v481
    %569 = vmatprep.subr.bf16.mxu0 0
    %570 = vmatpush1.bf16.msra.mxu0 0
    %571 = vmatprep.subr.bf16.mxu0 0
    %572 = vmatpush1.bf16.msra.mxu0 0
    %573 = vmatprep.subr.bf16.mxu0 0
    %574 = vmatpush1.bf16.msra.mxu0 0
    %575 = vmatprep.subr.bf16.mxu0 0
    %576 = vmatpush1.bf16.msra.mxu0 0
    %577 = vmatprep.subr.bf16.mxu0 0
    %578 = vmatpush1.bf16.msra.mxu0 0
    %579 = vmatprep.subr.bf16.mxu0 0
    %580 = vmatpush1.bf16.msra.mxu0 0
    %581 = vmatprep.subr.bf16.mxu0 0
    %582 = vmatpush1.bf16.msra.mxu0 0
    %583 = vmatprep.subr.bf16.mxu0 0
    %584 = vmatpush1.bf16.msra.mxu0 0
    %585 = vmatprep.mubr.bf16.mxu0 0
    %586 = vmatmul.mubr.bf16.gmra.mrb[0].mxu0 %v217
    %v587 = vpop.f32.mrb[0].mxu0
    %v588 = vadd.f32 %v148, %v587
    %v589 = vpop.f32.mrb[0].mxu0
    %v590 = vadd.f32 %v152, %v589
    %v591 = vpop.f32.mrb[0].mxu0
    %v592 = vadd.f32 %v148, %v591
    %v593 = vpop.f32.mrb[0].mxu0
    %v594 = vadd.f32 %v152, %v593
    %595 = vmatprep.mubr.bf16.mxu0 0
    %596 = vmatmul.mubr.bf16.gmra.mrb[0].mxu0 %v218
    %v597 = vpop.f32.mrb[0].mxu0
    %v598 = vadd.f32 %v148, %v597
    %v599 = vpop.f32.mrb[0].mxu0
    %v600 = vadd.f32 %v152, %v599
    %v601 = vpop.f32.mrb[0].mxu0
    %v602 = vadd.f32 %v148, %v601
    %v603 = vpop.f32.mrb[0].mxu0
    %v604 = vadd.f32 %v152, %v603
    %605 = vmatprep.mubr.bf16.mxu0 0
    %606 = vmatmul.mubr.bf16.gmra.mrb[0].mxu0 %v219
    %v607 = vpop.f32.mrb[0].mxu0
    %v608 = vadd.f32 %v148, %v607
    %v609 = vpop.f32.mrb[0].mxu0
    %v610 = vadd.f32 %v152, %v609
    %v611 = vpop.f32.mrb[0].mxu0
    %v612 = vadd.f32 %v148, %v611
    %v613 = vpop.f32.mrb[0].mxu0
    %v614 = vadd.f32 %v152, %v613
    %615 = vmatprep.mubr.bf16.mxu0 0
    %616 = vmatmul.mubr.bf16.gmra.mrb[0].mxu0 %v220
    %v617 = vpop.f32.mrb[0].mxu0
    %v618 = vadd.f32 %v148, %v617
    %v619 = vpop.f32.mrb[0].mxu0
    %v620 = vadd.f32 %v152, %v619
    %v621 = vpop.f32.mrb[0].mxu0
    %v622 = vadd.f32 %v148, %v621
    %v623 = vpop.f32.mrb[0].mxu0
    %v624 = vadd.f32 %v152, %v623
    %625 = vmatprep.mubr.bf16.mxu0 0
    %626 = vmatmul.mubr.bf16.gmra.mrb[0].mxu0 %v221
    %v627 = vpop.f32.mrb[0].mxu0
    %v628 = vadd.f32 %v148, %v627
    %v629 = vpop.f32.mrb[0].mxu0
    %v630 = vadd.f32 %v152, %v629
    %v631 = vpop.f32.mrb[0].mxu0
    %v632 = vadd.f32 %v148, %v631
    %v633 = vpop.f32.mrb[0].mxu0
    %v634 = vadd.f32 %v152, %v633
    %635 = vmatprep.mubr.bf16.mxu0 0
    %636 = vmatmul.mubr.bf16.gmra.mrb[0].mxu0 %v222
    %v637 = vpop.f32.mrb[0].mxu0
    %v638 = vadd.f32 %v148, %v637
    %v639 = vpop.f32.mrb[0].mxu0
    %v640 = vadd.f32 %v152, %v639
    %v641 = vpop.f32.mrb[0].mxu0
    %v642 = vadd.f32 %v148, %v641
    %v643 = vpop.f32.mrb[0].mxu0
    %v644 = vadd.f32 %v152, %v643
    %645 = vmatprep.mubr.bf16.mxu0 0
    %646 = vmatmul.mubr.bf16.gmra.mrb[0].mxu0 %v223
    %v647 = vpop.f32.mrb[0].mxu0
    %v648 = vadd.f32 %v148, %v647
    %v649 = vpop.f32.mrb[0].mxu0
    %v650 = vadd.f32 %v152, %v649
    %v651 = vpop.f32.mrb[0].mxu0
    %v652 = vadd.f32 %v148, %v651
    %v653 = vpop.f32.mrb[0].mxu0
    %v654 = vadd.f32 %v152, %v653
    %655 = vmatprep.mubr.bf16.mxu0 0
    %656 = vmatmul.mubr.bf16.gmra.mrb[0].mxu0 %v224
    %v657 = vpop.f32.mrb[0].mxu0
    %v658 = vadd.f32 %v148, %v657
    %v659 = vpop.f32.mrb[0].mxu0
    %v660 = vadd.f32 %v152, %v659
    %v661 = vpop.f32.mrb[0].mxu0
    %v662 = vadd.f32 %v148, %v661
    %v663 = vpop.f32.mrb[0].mxu0
    %v664 = vadd.f32 %v152, %v663
    %665 = vdwg.mxu0
    %666 = vmatprep.subr.bf16.mxu0 %v428
    %667 = vmatpush1.bf16.msra.mxu0 %v427
    %668 = vmatprep.subr.bf16.mxu0 %v436
    %669 = vmatpush1.bf16.msra.mxu0 %v435
    %670 = vmatprep.subr.bf16.mxu0 %v444
    %671 = vmatpush1.bf16.msra.mxu0 %v443
    %672 = vmatprep.subr.bf16.mxu0 %v452
    %673 = vmatpush1.bf16.msra.mxu0 %v451
    %674 = vmatprep.subr.bf16.mxu0 %v460
    %675 = vmatpush1.bf16.msra.mxu0 %v459
    %676 = vmatprep.subr.bf16.mxu0 %v468
    %677 = vmatpush1.bf16.msra.mxu0 %v467
    %678 = vmatprep.subr.bf16.mxu0 %v476
    %679 = vmatpush1.bf16.msra.mxu0 %v475
    %680 = vmatprep.subr.bf16.mxu0 %v484
    %681 = vmatpush1.bf16.msra.mxu0 %v483
    %682 = vmatprep.subr.bf16.mxu0 0
    %683 = vmatpush1.bf16.msra.mxu0 0
    %684 = vmatprep.subr.bf16.mxu0 0
    %685 = vmatpush1.bf16.msra.mxu0 0
    %686 = vmatprep.subr.bf16.mxu0 0
    %687 = vmatpush1.bf16.msra.mxu0 0
    %688 = vmatprep.subr.bf16.mxu0 0
    %689 = vmatpush1.bf16.msra.mxu0 0
    %690 = vmatprep.subr.bf16.mxu0 0
    %691 = vmatpush1.bf16.msra.mxu0 0
    %692 = vmatprep.subr.bf16.mxu0 0
    %693 = vmatpush1.bf16.msra.mxu0 0
    %694 = vmatprep.subr.bf16.mxu0 0
    %695 = vmatpush1.bf16.msra.mxu0 0
    %696 = vmatprep.subr.bf16.mxu0 0
    %697 = vmatpush1.bf16.msra.mxu0 0
    %698 = vmatprep.mubr.bf16.mxu0 0
    %699 = vmatmul.mubr.bf16.gmra.mrb[0].mxu0 %v217
    %v700 = vpop.f32.mrb[0].mxu0
    %v701 = vadd.f32 %v156, %v700
    %v702 = vpop.f32.mrb[0].mxu0
    %v703 = vadd.f32 %v160, %v702
    %v704 = vpop.f32.mrb[0].mxu0
    %v705 = vadd.f32 %v156, %v704
    %v706 = vpop.f32.mrb[0].mxu0
    %v707 = vadd.f32 %v160, %v706
    %708 = vmatprep.mubr.bf16.mxu0 0
    %709 = vmatmul.mubr.bf16.gmra.mrb[0].mxu0 %v218
    %v710 = vpop.f32.mrb[0].mxu0
    %v711 = vadd.f32 %v156, %v710
    %v712 = vpop.f32.mrb[0].mxu0
    %v713 = vadd.f32 %v160, %v712
    %v714 = vpop.f32.mrb[0].mxu0
    %v715 = vadd.f32 %v156, %v714
    %v716 = vpop.f32.mrb[0].mxu0
    %v717 = vadd.f32 %v160, %v716
    %718 = vmatprep.mubr.bf16.mxu0 0
    %719 = vmatmul.mubr.bf16.gmra.mrb[0].mxu0 %v219
    %v720 = vpop.f32.mrb[0].mxu0
    %v721 = vadd.f32 %v156, %v720
    %v722 = vpop.f32.mrb[0].mxu0
    %v723 = vadd.f32 %v160, %v722
    %v724 = vpop.f32.mrb[0].mxu0
    %v725 = vadd.f32 %v156, %v724
    %v726 = vpop.f32.mrb[0].mxu0
    %v727 = vadd.f32 %v160, %v726
    %728 = vmatprep.mubr.bf16.mxu0 0
    %729 = vmatmul.mubr.bf16.gmra.mrb[0].mxu0 %v220
    %v730 = vpop.f32.mrb[0].mxu0
    %v731 = vadd.f32 %v156, %v730
    %v732 = vpop.f32.mrb[0].mxu0
    %v733 = vadd.f32 %v160, %v732
    %v734 = vpop.f32.mrb[0].mxu0
    %v735 = vadd.f32 %v156, %v734
    %v736 = vpop.f32.mrb[0].mxu0
    %v737 = vadd.f32 %v160, %v736
    %738 = vmatprep.mubr.bf16.mxu0 0
    %739 = vmatmul.mubr.bf16.gmra.mrb[0].mxu0 %v221
    %v740 = vpop.f32.mrb[0].mxu0
    %v741 = vadd.f32 %v156, %v740
    %v742 = vpop.f32.mrb[0].mxu0
    %v743 = vadd.f32 %v160, %v742
    %v744 = vpop.f32.mrb[0].mxu0
    %v745 = vadd.f32 %v156, %v744
    %v746 = vpop.f32.mrb[0].mxu0
    %v747 = vadd.f32 %v160, %v746
    %748 = vmatprep.mubr.bf16.mxu0 0
    %749 = vmatmul.mubr.bf16.gmra.mrb[0].mxu0 %v222
    %v750 = vpop.f32.mrb[0].mxu0
    %v751 = vadd.f32 %v156, %v750
    %v752 = vpop.f32.mrb[0].mxu0
    %v753 = vadd.f32 %v160, %v752
    %v754 = vpop.f32.mrb[0].mxu0
    %v755 = vadd.f32 %v156, %v754
    %v756 = vpop.f32.mrb[0].mxu0
    %v757 = vadd.f32 %v160, %v756
    %758 = vmatprep.mubr.bf16.mxu0 0
    %759 = vmatmul.mubr.bf16.gmra.mrb[0].mxu0 %v223
    %v760 = vpop.f32.mrb[0].mxu0
    %v761 = vadd.f32 %v156, %v760
    %v762 = vpop.f32.mrb[0].mxu0
    %v763 = vadd.f32 %v160, %v762
    %v764 = vpop.f32.mrb[0].mxu0
    %v765 = vadd.f32 %v156, %v764
    %v766 = vpop.f32.mrb[0].mxu0
    %v767 = vadd.f32 %v160, %v766
    %768 = vmatprep.mubr.bf16.mxu0 0
    %769 = vmatmul.mubr.bf16.gmra.mrb[0].mxu0 %v224
    %v770 = vpop.f32.mrb[0].mxu0
    %v771 = vadd.f32 %v156, %v770
    %v772 = vpop.f32.mrb[0].mxu0
    %v773 = vadd.f32 %v160, %v772
    %v774 = vpop.f32.mrb[0].mxu0
    %v775 = vadd.f32 %v156, %v774
    %v776 = vpop.f32.mrb[0].mxu0
    %v777 = vadd.f32 %v160, %v776
    %778 = vdwg.mxu0
    %779 = vmatprep.subr.bf16.mxu0 %v430
    %780 = vmatpush1.bf16.msra.mxu0 %v429
    %781 = vmatprep.subr.bf16.mxu0 %v438
    %782 = vmatpush1.bf16.msra.mxu0 %v437
    %783 = vmatprep.subr.bf16.mxu0 %v446
    %784 = vmatpush1.bf16.msra.mxu0 %v445
    %785 = vmatprep.subr.bf16.mxu0 %v454
    %786 = vmatpush1.bf16.msra.mxu0 %v453
    %787 = vmatprep.subr.bf16.mxu0 %v462
    %788 = vmatpush1.bf16.msra.mxu0 %v461
    %789 = vmatprep.subr.bf16.mxu0 %v470
    %790 = vmatpush1.bf16.msra.mxu0 %v469
    %791 = vmatprep.subr.bf16.mxu0 %v478
    %792 = vmatpush1.bf16.msra.mxu0 %v477
    %793 = vmatprep.subr.bf16.mxu0 %v486
    %794 = vmatpush1.bf16.msra.mxu0 %v485
    %795 = vmatprep.subr.bf16.mxu0 0
    %796 = vmatpush1.bf16.msra.mxu0 0
    %797 = vmatprep.subr.bf16.mxu0 0
    %798 = vmatpush1.bf16.msra.mxu0 0
    %799 = vmatprep.subr.bf16.mxu0 0
    %800 = vmatpush1.bf16.msra.mxu0 0
    %801 = vmatprep.subr.bf16.mxu0 0
    %802 = vmatpush1.bf16.msra.mxu0 0
    %803 = vmatprep.subr.bf16.mxu0 0
    %804 = vmatpush1.bf16.msra.mxu0 0
    %805 = vmatprep.subr.bf16.mxu0 0
    %806 = vmatpush1.bf16.msra.mxu0 0
    %807 = vmatprep.subr.bf16.mxu0 0
    %808 = vmatpush1.bf16.msra.mxu0 0
    %809 = vmatprep.subr.bf16.mxu0 0
    %810 = vmatpush1.bf16.msra.mxu0 0
    %811 = vmatprep.mubr.bf16.mxu0 0
    %812 = vmatmul.mubr.bf16.gmra.mrb[0].mxu0 %v217
    %v813 = vpop.f32.mrb[0].mxu0
    %v814 = vadd.f32 %v164, %v813
    %v815 = vpop.f32.mrb[0].mxu0
    %v816 = vadd.f32 %v168, %v815
    %v817 = vpop.f32.mrb[0].mxu0
    %v818 = vadd.f32 %v164, %v817
    %v819 = vpop.f32.mrb[0].mxu0
    %v820 = vadd.f32 %v168, %v819
    %821 = vmatprep.mubr.bf16.mxu0 0
    %822 = vmatmul.mubr.bf16.gmra.mrb[0].mxu0 %v218
    %v823 = vpop.f32.mrb[0].mxu0
    %v824 = vadd.f32 %v164, %v823
    %v825 = vpop.f32.mrb[0].mxu0
    %v826 = vadd.f32 %v168, %v825
    %v827 = vpop.f32.mrb[0].mxu0
    %v828 = vadd.f32 %v164, %v827
    %v829 = vpop.f32.mrb[0].mxu0
    %v830 = vadd.f32 %v168, %v829
    %831 = vmatprep.mubr.bf16.mxu0 0
    %832 = vmatmul.mubr.bf16.gmra.mrb[0].mxu0 %v219
    %v833 = vpop.f32.mrb[0].mxu0
    %v834 = vadd.f32 %v164, %v833
    %v835 = vpop.f32.mrb[0].mxu0
    %v836 = vadd.f32 %v168, %v835
    %v837 = vpop.f32.mrb[0].mxu0
    %v838 = vadd.f32 %v164, %v837
    %v839 = vpop.f32.mrb[0].mxu0
    %v840 = vadd.f32 %v168, %v839
    %841 = vmatprep.mubr.bf16.mxu0 0
    %842 = vmatmul.mubr.bf16.gmra.mrb[0].mxu0 %v220
    %v843 = vpop.f32.mrb[0].mxu0
    %v844 = vadd.f32 %v164, %v843
    %v845 = vpop.f32.mrb[0].mxu0
    %v846 = vadd.f32 %v168, %v845
    %v847 = vpop.f32.mrb[0].mxu0
    %v848 = vadd.f32 %v164, %v847
    %v849 = vpop.f32.mrb[0].mxu0
    %v850 = vadd.f32 %v168, %v849
    %851 = vmatprep.mubr.bf16.mxu0 0
    %852 = vmatmul.mubr.bf16.gmra.mrb[0].mxu0 %v221
    %v853 = vpop.f32.mrb[0].mxu0
    %v854 = vadd.f32 %v164, %v853
    %v855 = vpop.f32.mrb[0].mxu0
    %v856 = vadd.f32 %v168, %v855
    %v857 = vpop.f32.mrb[0].mxu0
    %v858 = vadd.f32 %v164, %v857
    %v859 = vpop.f32.mrb[0].mxu0
    %v860 = vadd.f32 %v168, %v859
    %861 = vmatprep.mubr.bf16.mxu0 0
    %862 = vmatmul.mubr.bf16.gmra.mrb[0].mxu0 %v222
    %v863 = vpop.f32.mrb[0].mxu0
    %v864 = vadd.f32 %v164, %v863
    %v865 = vpop.f32.mrb[0].mxu0
    %v866 = vadd.f32 %v168, %v865
    %v867 = vpop.f32.mrb[0].mxu0
    %v868 = vadd.f32 %v164, %v867
    %v869 = vpop.f32.mrb[0].mxu0
    %v870 = vadd.f32 %v168, %v869
    %871 = vmatprep.mubr.bf16.mxu0 0
    %872 = vmatmul.mubr.bf16.gmra.mrb[0].mxu0 %v223
    %v873 = vpop.f32.mrb[0].mxu0
    %v874 = vadd.f32 %v164, %v873
    %v875 = vpop.f32.mrb[0].mxu0
    %v876 = vadd.f32 %v168, %v875
    %v877 = vpop.f32.mrb[0].mxu0
    %v878 = vadd.f32 %v164, %v877
    %v879 = vpop.f32.mrb[0].mxu0
    %v880 = vadd.f32 %v168, %v879
    %881 = vmatprep.mubr.bf16.mxu0 0
    %882 = vmatmul.mubr.bf16.gmra.mrb[0].mxu0 %v224
    %v883 = vpop.f32.mrb[0].mxu0
    %v884 = vadd.f32 %v164, %v883
    %v885 = vpop.f32.mrb[0].mxu0
    %v886 = vadd.f32 %v168, %v885
    %v887 = vpop.f32.mrb[0].mxu0
    %v888 = vadd.f32 %v164, %v887
    %v889 = vpop.f32.mrb[0].mxu0
    %v890 = vadd.f32 %v168, %v889
    %891 = vdwg.mxu0
    %892 = vmatprep.subr.bf16.mxu0 %v432
    %893 = vmatpush1.bf16.msra.mxu0 %v431
    %894 = vmatprep.subr.bf16.mxu0 %v440
    %895 = vmatpush1.bf16.msra.mxu0 %v439
    %896 = vmatprep.subr.bf16.mxu0 %v448
    %897 = vmatpush1.bf16.msra.mxu0 %v447
    %898 = vmatprep.subr.bf16.mxu0 %v456
    %899 = vmatpush1.bf16.msra.mxu0 %v455
    %900 = vmatprep.subr.bf16.mxu0 %v464
    %901 = vmatpush1.bf16.msra.mxu0 %v463
    %902 = vmatprep.subr.bf16.mxu0 %v472
    %903 = vmatpush1.bf16.msra.mxu0 %v471
    %904 = vmatprep.subr.bf16.mxu0 %v480
    %905 = vmatpush1.bf16.msra.mxu0 %v479
    %906 = vmatprep.subr.bf16.mxu0 %v488
    %907 = vmatpush1.bf16.msra.mxu0 %v487
    %908 = vmatprep.subr.bf16.mxu0 0
    %909 = vmatpush1.bf16.msra.mxu0 0
    %910 = vmatprep.subr.bf16.mxu0 0
    %911 = vmatpush1.bf16.msra.mxu0 0
    %912 = vmatprep.subr.bf16.mxu0 0
    %913 = vmatpush1.bf16.msra.mxu0 0
    %914 = vmatprep.subr.bf16.mxu0 0
    %915 = vmatpush1.bf16.msra.mxu0 0
    %916 = vmatprep.subr.bf16.mxu0 0
    %917 = vmatpush1.bf16.msra.mxu0 0
    %918 = vmatprep.subr.bf16.mxu0 0
    %919 = vmatpush1.bf16.msra.mxu0 0
    %920 = vmatprep.subr.bf16.mxu0 0
    %921 = vmatpush1.bf16.msra.mxu0 0
    %922 = vmatprep.subr.bf16.mxu0 0
    %923 = vmatpush1.bf16.msra.mxu0 0
    %924 = vmatprep.mubr.bf16.mxu0 0
    %925 = vmatmul.mubr.bf16.gmra.mrb[0].mxu0 %v217
    %v926 = vpop.f32.mrb[0].mxu0
    %v927 = vadd.f32 %v172, %v926
    %v928 = vpop.f32.mrb[0].mxu0
    %v929 = vadd.f32 %v176, %v928
    %v930 = vpop.f32.mrb[0].mxu0
    %v931 = vadd.f32 %v172, %v930
    %v932 = vpop.f32.mrb[0].mxu0
    %v933 = vadd.f32 %v176, %v932
    %934 = vmatprep.mubr.bf16.mxu0 0
    %935 = vmatmul.mubr.bf16.gmra.mrb[0].mxu0 %v218
    %v936 = vpop.f32.mrb[0].mxu0
    %v937 = vadd.f32 %v172, %v936
    %v938 = vpop.f32.mrb[0].mxu0
    %v939 = vadd.f32 %v176, %v938
    %v940 = vpop.f32.mrb[0].mxu0
    %v941 = vadd.f32 %v172, %v940
    %v942 = vpop.f32.mrb[0].mxu0
    %v943 = vadd.f32 %v176, %v942
    %944 = vmatprep.mubr.bf16.mxu0 0
    %945 = vmatmul.mubr.bf16.gmra.mrb[0].mxu0 %v219
    %v946 = vpop.f32.mrb[0].mxu0
    %v947 = vadd.f32 %v172, %v946
    %v948 = vpop.f32.mrb[0].mxu0
    %v949 = vadd.f32 %v176, %v948
    %v950 = vpop.f32.mrb[0].mxu0
    %v951 = vadd.f32 %v172, %v950
    %v952 = vpop.f32.mrb[0].mxu0
    %v953 = vadd.f32 %v176, %v952
    %954 = vmatprep.mubr.bf16.mxu0 0
    %955 = vmatmul.mubr.bf16.gmra.mrb[0].mxu0 %v220
    %v956 = vpop.f32.mrb[0].mxu0
    %v957 = vadd.f32 %v172, %v956
    %v958 = vpop.f32.mrb[0].mxu0
    %v959 = vadd.f32 %v176, %v958
    %v960 = vpop.f32.mrb[0].mxu0
    %v961 = vadd.f32 %v172, %v960
    %v962 = vpop.f32.mrb[0].mxu0
    %v963 = vadd.f32 %v176, %v962
    %964 = vmatprep.mubr.bf16.mxu0 0
    %965 = vmatmul.mubr.bf16.gmra.mrb[0].mxu0 %v221
    %v966 = vpop.f32.mrb[0].mxu0
    %v967 = vadd.f32 %v172, %v966
    %v968 = vpop.f32.mrb[0].mxu0
    %v969 = vadd.f32 %v176, %v968
    %v970 = vpop.f32.mrb[0].mxu0
    %v971 = vadd.f32 %v172, %v970
    %v972 = vpop.f32.mrb[0].mxu0
    %v973 = vadd.f32 %v176, %v972
    %974 = vmatprep.mubr.bf16.mxu0 0
    %975 = vmatmul.mubr.bf16.gmra.mrb[0].mxu0 %v222
    %v976 = vpop.f32.mrb[0].mxu0
    %v977 = vadd.f32 %v172, %v976
    %v978 = vpop.f32.mrb[0].mxu0
    %v979 = vadd.f32 %v176, %v978
    %v980 = vpop.f32.mrb[0].mxu0
    %v981 = vadd.f32 %v172, %v980
    %v982 = vpop.f32.mrb[0].mxu0
    %v983 = vadd.f32 %v176, %v982
    %984 = vmatprep.mubr.bf16.mxu0 0
    %985 = vmatmul.mubr.bf16.gmra.mrb[0].mxu0 %v223
    %v986 = vpop.f32.mrb[0].mxu0
    %v987 = vadd.f32 %v172, %v986
    %v988 = vpop.f32.mrb[0].mxu0
    %v989 = vadd.f32 %v176, %v988
    %v990 = vpop.f32.mrb[0].mxu0
    %v991 = vadd.f32 %v172, %v990
    %v992 = vpop.f32.mrb[0].mxu0
    %v993 = vadd.f32 %v176, %v992
    %994 = vmatprep.mubr.bf16.mxu0 0
    %995 = vmatmul.mubr.bf16.gmra.mrb[0].mxu0 %v224
    %v996 = vpop.f32.mrb[0].mxu0
    %v997 = vadd.f32 %v172, %v996
    %v998 = vpop.f32.mrb[0].mxu0
    %v999 = vadd.f32 %v176, %v998
    %v1000 = vpop.f32.mrb[0].mxu0
    %v1001 = vadd.f32 %v172, %v1000
    %v1002 = vpop.f32.mrb[0].mxu0
    %v1003 = vadd.f32 %v176, %v1002
    %1004 = vdwg.mxu0
    %v1005 = vpack.c.bf16 %v592, %v588
    %v1006 = vpack.c.bf16 %v594, %v590
    %v1007 = vpack.c.bf16 %v705, %v701
    %v1008 = vpack.c.bf16 %v707, %v703
    %v1009 = vpack.c.bf16 %v818, %v814
    %v1010 = vpack.c.bf16 %v820, %v816
    %v1011 = vpack.c.bf16 %v931, %v927
    %v1012 = vpack.c.bf16 %v933, %v929
    %v1013 = vpack.c.bf16 %v602, %v598
    %v1014 = vpack.c.bf16 %v604, %v600
    %v1015 = vpack.c.bf16 %v715, %v711
    %v1016 = vpack.c.bf16 %v717, %v713
    %v1017 = vpack.c.bf16 %v828, %v824
    %v1018 = vpack.c.bf16 %v830, %v826
    %v1019 = vpack.c.bf16 %v941, %v937
    %v1020 = vpack.c.bf16 %v943, %v939
    %v1021 = vpack.c.bf16 %v612, %v608
    %v1022 = vpack.c.bf16 %v614, %v610
    %v1023 = vpack.c.bf16 %v725, %v721
    %v1024 = vpack.c.bf16 %v727, %v723
    %v1025 = vpack.c.bf16 %v838, %v834
    %v1026 = vpack.c.bf16 %v840, %v836
    %v1027 = vpack.c.bf16 %v951, %v947
    %v1028 = vpack.c.bf16 %v953, %v949
    %v1029 = vpack.c.bf16 %v622, %v618
    %v1030 = vpack.c.bf16 %v624, %v620
    %v1031 = vpack.c.bf16 %v735, %v731
    %v1032 = vpack.c.bf16 %v737, %v733
    %v1033 = vpack.c.bf16 %v848, %v844
    %v1034 = vpack.c.bf16 %v850, %v846
    %v1035 = vpack.c.bf16 %v961, %v957
    %v1036 = vpack.c.bf16 %v963, %v959
    %v1037 = vpack.c.bf16 %v632, %v628
    %v1038 = vpack.c.bf16 %v634, %v630
    %v1039 = vpack.c.bf16 %v745, %v741
    %v1040 = vpack.c.bf16 %v747, %v743
    %v1041 = vpack.c.bf16 %v858, %v854
    %v1042 = vpack.c.bf16 %v860, %v856
    %v1043 = vpack.c.bf16 %v971, %v967
    %v1044 = vpack.c.bf16 %v973, %v969
    %v1045 = vpack.c.bf16 %v642, %v638
    %v1046 = vpack.c.bf16 %v644, %v640
    %v1047 = vpack.c.bf16 %v755, %v751
    %v1048 = vpack.c.bf16 %v757, %v753
    %v1049 = vpack.c.bf16 %v868, %v864
    %v1050 = vpack.c.bf16 %v870, %v866
    %v1051 = vpack.c.bf16 %v981, %v977
    %v1052 = vpack.c.bf16 %v983, %v979
    %v1053 = vpack.c.bf16 %v652, %v648
    %v1054 = vpack.c.bf16 %v654, %v650
    %v1055 = vpack.c.bf16 %v765, %v761
    %v1056 = vpack.c.bf16 %v767, %v763
    %v1057 = vpack.c.bf16 %v878, %v874
    %v1058 = vpack.c.bf16 %v880, %v876
    %v1059 = vpack.c.bf16 %v991, %v987
    %v1060 = vpack.c.bf16 %v993, %v989
    %v1061 = vpack.c.bf16 %v662, %v658
    %v1062 = vpack.c.bf16 %v664, %v660
    %v1063 = vpack.c.bf16 %v775, %v771
    %v1064 = vpack.c.bf16 %v777, %v773
    %v1065 = vpack.c.bf16 %v888, %v884
    %v1066 = vpack.c.bf16 %v890, %v886
    %v1067 = vpack.c.bf16 %v1001, %v997
    %v1068 = vpack.c.bf16 %v1003, %v999
    %1069 = vst [vmem:[#allocation2] sm:$0xff] %v1005
    %1070 = vst [vmem:[#allocation2 + $0x8] sm:$0xff] %v1006
    %1071 = vst [vmem:[#allocation2 + $0x10] sm:$0xff] %v1007
    %1072 = vst [vmem:[#allocation2 + $0x18] sm:$0xff] %v1008
    %1073 = vst [vmem:[#allocation2 + $0x20] sm:$0xff] %v1009
    %1074 = vst [vmem:[#allocation2 + $0x28] sm:$0xff] %v1010
    %1075 = vst [vmem:[#allocation2 + $0x30] sm:$0xff] %v1011
    %1076 = vst [vmem:[#allocation2 + $0x38] sm:$0xff] %v1012
    %1077 = vst [vmem:[#allocation2 + $0x40] sm:$0xff] %v1013
    %1078 = vst [vmem:[#allocation2 + $0x48] sm:$0xff] %v1014
    %1079 = vst [vmem:[#allocation2 + $0x50] sm:$0xff] %v1015
    %1080 = vst [vmem:[#allocation2 + $0x58] sm:$0xff] %v1016
    %1081 = vst [vmem:[#allocation2 + $0x60] sm:$0xff] %v1017
    %1082 = vst [vmem:[#allocation2 + $0x68] sm:$0xff] %v1018
    %1083 = vst [vmem:[#allocation2 + $0x70] sm:$0xff] %v1019
    %1084 = vst [vmem:[#allocation2 + $0x78] sm:$0xff] %v1020
    %1085 = vst [vmem:[#allocation2 + $0x80] sm:$0xff] %v1021
    %1086 = vst [vmem:[#allocation2 + $0x88] sm:$0xff] %v1022
    %1087 = vst [vmem:[#allocation2 + $0x90] sm:$0xff] %v1023
    %1088 = vst [vmem:[#allocation2 + $0x98] sm:$0xff] %v1024
    %1089 = vst [vmem:[#allocation2 + $0xa0] sm:$0xff] %v1025
    %1090 = vst [vmem:[#allocation2 + $0xa8] sm:$0xff] %v1026
    %1091 = vst [vmem:[#allocation2 + $0xb0] sm:$0xff] %v1027
    %1092 = vst [vmem:[#allocation2 + $0xb8] sm:$0xff] %v1028
    %1093 = vst [vmem:[#allocation2 + $0xc0] sm:$0xff] %v1029
    %1094 = vst [vmem:[#allocation2 + $0xc8] sm:$0xff] %v1030
    %1095 = vst [vmem:[#allocation2 + $0xd0] sm:$0xff] %v1031
    %1096 = vst [vmem:[#allocation2 + $0xd8] sm:$0xff] %v1032
    %1097 = vst [vmem:[#allocation2 + $0xe0] sm:$0xff] %v1033
    %1098 = vst [vmem:[#allocation2 + $0xe8] sm:$0xff] %v1034
    %1099 = vst [vmem:[#allocation2 + $0xf0] sm:$0xff] %v1035
    %1100 = vst [vmem:[#allocation2 + $0xf8] sm:$0xff] %v1036
    %1101 = vst [vmem:[#allocation2 + $0x100] sm:$0xff] %v1037
    %1102 = vst [vmem:[#allocation2 + $0x108] sm:$0xff] %v1038
    %1103 = vst [vmem:[#allocation2 + $0x110] sm:$0xff] %v1039
    %1104 = vst [vmem:[#allocation2 + $0x118] sm:$0xff] %v1040
    %1105 = vst [vmem:[#allocation2 + $0x120] sm:$0xff] %v1041
    %1106 = vst [vmem:[#allocation2 + $0x128] sm:$0xff] %v1042
    %1107 = vst [vmem:[#allocation2 + $0x130] sm:$0xff] %v1043
    %1108 = vst [vmem:[#allocation2 + $0x138] sm:$0xff] %v1044
    %1109 = vst [vmem:[#allocation2 + $0x140] sm:$0xff] %v1045
    %1110 = vst [vmem:[#allocation2 + $0x148] sm:$0xff] %v1046
    %1111 = vst [vmem:[#allocation2 + $0x150] sm:$0xff] %v1047
    %1112 = vst [vmem:[#allocation2 + $0x158] sm:$0xff] %v1048
    %1113 = vst [vmem:[#allocation2 + $0x160] sm:$0xff] %v1049
    %1114 = vst [vmem:[#allocation2 + $0x168] sm:$0xff] %v1050
    %1115 = vst [vmem:[#allocation2 + $0x170] sm:$0xff] %v1051
    %1116 = vst [vmem:[#allocation2 + $0x178] sm:$0xff] %v1052
    %1117 = vst [vmem:[#allocation2 + $0x180] sm:$0xff] %v1053
    %1118 = vst [vmem:[#allocation2 + $0x188] sm:$0xff] %v1054
    %1119 = vst [vmem:[#allocation2 + $0x190] sm:$0xff] %v1055
    %1120 = vst [vmem:[#allocation2 + $0x198] sm:$0xff] %v1056
    %1121 = vst [vmem:[#allocation2 + $0x1a0] sm:$0xff] %v1057
    %1122 = vst [vmem:[#allocation2 + $0x1a8] sm:$0xff] %v1058
    %1123 = vst [vmem:[#allocation2 + $0x1b0] sm:$0xff] %v1059
    %1124 = vst [vmem:[#allocation2 + $0x1b8] sm:$0xff] %v1060
    %1125 = vst [vmem:[#allocation2 + $0x1c0] sm:$0xff] %v1061
    %1126 = vst [vmem:[#allocation2 + $0x1c8] sm:$0xff] %v1062
    %1127 = vst [vmem:[#allocation2 + $0x1d0] sm:$0xff] %v1063
    %1128 = vst [vmem:[#allocation2 + $0x1d8] sm:$0xff] %v1064
    %1129 = vst [vmem:[#allocation2 + $0x1e0] sm:$0xff] %v1065
    %1130 = vst [vmem:[#allocation2 + $0x1e8] sm:$0xff] %v1066
    %1131 = vst [vmem:[#allocation2 + $0x1f0] sm:$0xff] %v1067
    %1132 = vst [vmem:[#allocation2 + $0x1f8] sm:$0xff] %v1068
    %v1133 = vld [vmem:[#allocation3] sm:$0xff]
    %v1134 = vld [vmem:[#allocation3 + $0x8] sm:$0xff]
    %v1135 = vld [vmem:[#allocation3 + $0x10] sm:$0xff]
    %v1136 = vld [vmem:[#allocation3 + $0x18] sm:$0xff]
    %v1137 = vld [vmem:[#allocation3 + $0x20] sm:$0xff]
    %v1138 = vld [vmem:[#allocation3 + $0x28] sm:$0xff]
    %v1139 = vld [vmem:[#allocation3 + $0x30] sm:$0xff]
    %v1140 = vld [vmem:[#allocation3 + $0x38] sm:$0xff]
    %v1141 = vld [vmem:[#allocation3 + $0x40] sm:$0xff]
    %v1142 = vld [vmem:[#allocation3 + $0x48] sm:$0xff]
    %v1143 = vld [vmem:[#allocation3 + $0x50] sm:$0xff]
    %v1144 = vld [vmem:[#allocation3 + $0x58] sm:$0xff]
    %v1145 = vld [vmem:[#allocation3 + $0x60] sm:$0xff]
    %v1146 = vld [vmem:[#allocation3 + $0x68] sm:$0xff]
    %v1147 = vld [vmem:[#allocation3 + $0x70] sm:$0xff]
    %v1148 = vld [vmem:[#allocation3 + $0x78] sm:$0xff]
    %v1149 = vld [vmem:[#allocation3 + $0x80] sm:$0xff]
    %v1150 = vld [vmem:[#allocation3 + $0x88] sm:$0xff]
    %v1151 = vld [vmem:[#allocation3 + $0x90] sm:$0xff]
    %v1152 = vld [vmem:[#allocation3 + $0x98] sm:$0xff]
    %v1153 = vld [vmem:[#allocation3 + $0xa0] sm:$0xff]
    %v1154 = vld [vmem:[#allocation3 + $0xa8] sm:$0xff]
    %v1155 = vld [vmem:[#allocation3 + $0xb0] sm:$0xff]
    %v1156 = vld [vmem:[#allocation3 + $0xb8] sm:$0xff]
    %v1157 = vld [vmem:[#allocation3 + $0xc0] sm:$0xff]
    %v1158 = vld [vmem:[#allocation3 + $0xc8] sm:$0xff]
    %v1159 = vld [vmem:[#allocation3 + $0xd0] sm:$0xff]
    %v1160 = vld [vmem:[#allocation3 + $0xd8] sm:$0xff]
    %v1161 = vld [vmem:[#allocation3 + $0xe0] sm:$0xff]
    %v1162 = vld [vmem:[#allocation3 + $0xe8] sm:$0xff]
    %v1163 = vld [vmem:[#allocation3 + $0xf0] sm:$0xff]
    %v1164 = vld [vmem:[#allocation3 + $0xf8] sm:$0xff]
    %v1165 = vld [vmem:[#allocation3 + $0x100] sm:$0xff]
    %v1166 = vld [vmem:[#allocation3 + $0x108] sm:$0xff]
    %v1167 = vld [vmem:[#allocation3 + $0x110] sm:$0xff]
    %v1168 = vld [vmem:[#allocation3 + $0x118] sm:$0xff]
    %v1169 = vld [vmem:[#allocation3 + $0x120] sm:$0xff]
    %v1170 = vld [vmem:[#allocation3 + $0x128] sm:$0xff]
    %v1171 = vld [vmem:[#allocation3 + $0x130] sm:$0xff]
    %v1172 = vld [vmem:[#allocation3 + $0x138] sm:$0xff]
    %v1173 = vld [vmem:[#allocation3 + $0x140] sm:$0xff]
    %v1174 = vld [vmem:[#allocation3 + $0x148] sm:$0xff]
    %v1175 = vld [vmem:[#allocation3 + $0x150] sm:$0xff]
    %v1176 = vld [vmem:[#allocation3 + $0x158] sm:$0xff]
    %v1177 = vld [vmem:[#allocation3 + $0x160] sm:$0xff]
    %v1178 = vld [vmem:[#allocation3 + $0x168] sm:$0xff]
    %v1179 = vld [vmem:[#allocation3 + $0x170] sm:$0xff]
    %v1180 = vld [vmem:[#allocation3 + $0x178] sm:$0xff]
    %v1181 = vld [vmem:[#allocation3 + $0x180] sm:$0xff]
    %v1182 = vld [vmem:[#allocation3 + $0x188] sm:$0xff]
    %v1183 = vld [vmem:[#allocation3 + $0x190] sm:$0xff]
    %v1184 = vld [vmem:[#allocation3 + $0x198] sm:$0xff]
    %v1185 = vld [vmem:[#allocation3 + $0x1a0] sm:$0xff]
    %v1186 = vld [vmem:[#allocation3 + $0x1a8] sm:$0xff]
    %v1187 = vld [vmem:[#allocation3 + $0x1b0] sm:$0xff]
    %v1188 = vld [vmem:[#allocation3 + $0x1b8] sm:$0xff]
    %v1189 = vld [vmem:[#allocation3 + $0x1c0] sm:$0xff]
    %v1190 = vld [vmem:[#allocation3 + $0x1c8] sm:$0xff]
    %v1191 = vld [vmem:[#allocation3 + $0x1d0] sm:$0xff]
    %v1192 = vld [vmem:[#allocation3 + $0x1d8] sm:$0xff]
    %v1193 = vld [vmem:[#allocation3 + $0x1e0] sm:$0xff]
    %v1194 = vld [vmem:[#allocation3 + $0x1e8] sm:$0xff]
    %v1195 = vld [vmem:[#allocation3 + $0x1f0] sm:$0xff]
    %v1196 = vld [vmem:[#allocation3 + $0x1f8] sm:$0xff]
    %v1197 = vld [vmem:[#allocation3 + $0x200] sm:$0xff]
    %v1198 = vld [vmem:[#allocation3 + $0x208] sm:$0xff]
    %v1199 = vld [vmem:[#allocation3 + $0x210] sm:$0xff]
    %v1200 = vld [vmem:[#allocation3 + $0x218] sm:$0xff]
    %v1201 = vld [vmem:[#allocation3 + $0x220] sm:$0xff]
    %v1202 = vld [vmem:[#allocation3 + $0x228] sm:$0xff]
    %v1203 = vld [vmem:[#allocation3 + $0x230] sm:$0xff]
    %v1204 = vld [vmem:[#allocation3 + $0x238] sm:$0xff]
    %v1205 = vld [vmem:[#allocation3 + $0x240] sm:$0xff]
    %v1206 = vld [vmem:[#allocation3 + $0x248] sm:$0xff]
    %v1207 = vld [vmem:[#allocation3 + $0x250] sm:$0xff]
    %v1208 = vld [vmem:[#allocation3 + $0x258] sm:$0xff]
    %v1209 = vld [vmem:[#allocation3 + $0x260] sm:$0xff]
    %v1210 = vld [vmem:[#allocation3 + $0x268] sm:$0xff]
    %v1211 = vld [vmem:[#allocation3 + $0x270] sm:$0xff]
    %v1212 = vld [vmem:[#allocation3 + $0x278] sm:$0xff]
    %v1213 = vld [vmem:[#allocation3 + $0x280] sm:$0xff]
    %v1214 = vld [vmem:[#allocation3 + $0x288] sm:$0xff]
    %v1215 = vld [vmem:[#allocation3 + $0x290] sm:$0xff]
    %v1216 = vld [vmem:[#allocation3 + $0x298] sm:$0xff]
    %v1217 = vld [vmem:[#allocation3 + $0x2a0] sm:$0xff]
    %v1218 = vld [vmem:[#allocation3 + $0x2a8] sm:$0xff]
    %v1219 = vld [vmem:[#allocation3 + $0x2b0] sm:$0xff]
    %v1220 = vld [vmem:[#allocation3 + $0x2b8] sm:$0xff]
    %v1221 = vld [vmem:[#allocation3 + $0x2c0] sm:$0xff]
    %v1222 = vld [vmem:[#allocation3 + $0x2c8] sm:$0xff]
    %v1223 = vld [vmem:[#allocation3 + $0x2d0] sm:$0xff]
    %v1224 = vld [vmem:[#allocation3 + $0x2d8] sm:$0xff]
    %v1225 = vld [vmem:[#allocation3 + $0x2e0] sm:$0xff]
    %v1226 = vld [vmem:[#allocation3 + $0x2e8] sm:$0xff]
    %v1227 = vld [vmem:[#allocation3 + $0x2f0] sm:$0xff]
    %v1228 = vld [vmem:[#allocation3 + $0x2f8] sm:$0xff]
    %v1229 = vld [vmem:[#allocation3 + $0x300] sm:$0xff]
    %v1230 = vld [vmem:[#allocation3 + $0x308] sm:$0xff]
    %v1231 = vld [vmem:[#allocation3 + $0x310] sm:$0xff]
    %v1232 = vld [vmem:[#allocation3 + $0x318] sm:$0xff]
    %v1233 = vld [vmem:[#allocation3 + $0x320] sm:$0xff]
    %v1234 = vld [vmem:[#allocation3 + $0x328] sm:$0xff]
    %v1235 = vld [vmem:[#allocation3 + $0x330] sm:$0xff]
    %v1236 = vld [vmem:[#allocation3 + $0x338] sm:$0xff]
    %v1237 = vld [vmem:[#allocation3 + $0x340] sm:$0xff]
    %v1238 = vld [vmem:[#allocation3 + $0x348] sm:$0xff]
    %v1239 = vld [vmem:[#allocation3 + $0x350] sm:$0xff]
    %v1240 = vld [vmem:[#allocation3 + $0x358] sm:$0xff]
    %v1241 = vld [vmem:[#allocation3 + $0x360] sm:$0xff]
    %v1242 = vld [vmem:[#allocation3 + $0x368] sm:$0xff]
    %v1243 = vld [vmem:[#allocation3 + $0x370] sm:$0xff]
    %v1244 = vld [vmem:[#allocation3 + $0x378] sm:$0xff]
    %v1245 = vld [vmem:[#allocation3 + $0x380] sm:$0xff]
    %v1246 = vld [vmem:[#allocation3 + $0x388] sm:$0xff]
    %v1247 = vld [vmem:[#allocation3 + $0x390] sm:$0xff]
    %v1248 = vld [vmem:[#allocation3 + $0x398] sm:$0xff]
    %v1249 = vld [vmem:[#allocation3 + $0x3a0] sm:$0xff]
    %v1250 = vld [vmem:[#allocation3 + $0x3a8] sm:$0xff]
    %v1251 = vld [vmem:[#allocation3 + $0x3b0] sm:$0xff]
    %v1252 = vld [vmem:[#allocation3 + $0x3b8] sm:$0xff]
    %v1253 = vld [vmem:[#allocation3 + $0x3c0] sm:$0xff]
    %v1254 = vld [vmem:[#allocation3 + $0x3c8] sm:$0xff]
    %v1255 = vld [vmem:[#allocation3 + $0x3d0] sm:$0xff]
    %v1256 = vld [vmem:[#allocation3 + $0x3d8] sm:$0xff]
    %v1257 = vld [vmem:[#allocation3 + $0x3e0] sm:$0xff]
    %v1258 = vld [vmem:[#allocation3 + $0x3e8] sm:$0xff]
    %v1259 = vld [vmem:[#allocation3 + $0x3f0] sm:$0xff]
    %v1260 = vld [vmem:[#allocation3 + $0x3f8] sm:$0xff]
    %v1261 = vld [vmem:[#allocation5] sm:$0xff]
    %v1262 = vld [vmem:[#allocation5 + $0x8] sm:$0xff]
    %v1263 = vld [vmem:[#allocation5 + $0x10] sm:$0xff]
    %v1264 = vld [vmem:[#allocation5 + $0x18] sm:$0xff]
    %v1265 = vld [vmem:[#allocation5 + $0x20] sm:$0xff]
    %v1266 = vld [vmem:[#allocation5 + $0x28] sm:$0xff]
    %v1267 = vld [vmem:[#allocation5 + $0x30] sm:$0xff]
    %v1268 = vld [vmem:[#allocation5 + $0x38] sm:$0xff]
    %v1269 = vld [vmem:[#allocation5 + $0x40] sm:$0xff]
    %v1270 = vld [vmem:[#allocation5 + $0x48] sm:$0xff]
    %v1271 = vld [vmem:[#allocation5 + $0x50] sm:$0xff]
    %v1272 = vld [vmem:[#allocation5 + $0x58] sm:$0xff]
    %v1273 = vld [vmem:[#allocation5 + $0x60] sm:$0xff]
    %v1274 = vld [vmem:[#allocation5 + $0x68] sm:$0xff]
    %v1275 = vld [vmem:[#allocation5 + $0x70] sm:$0xff]
    %v1276 = vld [vmem:[#allocation5 + $0x78] sm:$0xff]
    %v1277 = vld [vmem:[#allocation5 + $0x80] sm:$0xff]
    %v1278 = vld [vmem:[#allocation5 + $0x88] sm:$0xff]
    %v1279 = vld [vmem:[#allocation5 + $0x90] sm:$0xff]
    %v1280 = vld [vmem:[#allocation5 + $0x98] sm:$0xff]
    %v1281 = vld [vmem:[#allocation5 + $0xa0] sm:$0xff]
    %v1282 = vld [vmem:[#allocation5 + $0xa8] sm:$0xff]
    %v1283 = vld [vmem:[#allocation5 + $0xb0] sm:$0xff]
    %v1284 = vld [vmem:[#allocation5 + $0xb8] sm:$0xff]
    %v1285 = vld [vmem:[#allocation5 + $0xc0] sm:$0xff]
    %v1286 = vld [vmem:[#allocation5 + $0xc8] sm:$0xff]
    %v1287 = vld [vmem:[#allocation5 + $0xd0] sm:$0xff]
    %v1288 = vld [vmem:[#allocation5 + $0xd8] sm:$0xff]
    %v1289 = vld [vmem:[#allocation5 + $0xe0] sm:$0xff]
    %v1290 = vld [vmem:[#allocation5 + $0xe8] sm:$0xff]
    %v1291 = vld [vmem:[#allocation5 + $0xf0] sm:$0xff]
    %v1292 = vld [vmem:[#allocation5 + $0xf8] sm:$0xff]
    %v1293 = vld [vmem:[#allocation5 + $0x100] sm:$0xff]
    %v1294 = vld [vmem:[#allocation5 + $0x108] sm:$0xff]
    %v1295 = vld [vmem:[#allocation5 + $0x110] sm:$0xff]
    %v1296 = vld [vmem:[#allocation5 + $0x118] sm:$0xff]
    %v1297 = vld [vmem:[#allocation5 + $0x120] sm:$0xff]
    %v1298 = vld [vmem:[#allocation5 + $0x128] sm:$0xff]
    %v1299 = vld [vmem:[#allocation5 + $0x130] sm:$0xff]
    %v1300 = vld [vmem:[#allocation5 + $0x138] sm:$0xff]
    %v1301 = vld [vmem:[#allocation5 + $0x140] sm:$0xff]
    %v1302 = vld [vmem:[#allocation5 + $0x148] sm:$0xff]
    %v1303 = vld [vmem:[#allocation5 + $0x150] sm:$0xff]
    %v1304 = vld [vmem:[#allocation5 + $0x158] sm:$0xff]
    %v1305 = vld [vmem:[#allocation5 + $0x160] sm:$0xff]
    %v1306 = vld [vmem:[#allocation5 + $0x168] sm:$0xff]
    %v1307 = vld [vmem:[#allocation5 + $0x170] sm:$0xff]
    %v1308 = vld [vmem:[#allocation5 + $0x178] sm:$0xff]
    %v1309 = vld [vmem:[#allocation5 + $0x180] sm:$0xff]
    %v1310 = vld [vmem:[#allocation5 + $0x188] sm:$0xff]
    %v1311 = vld [vmem:[#allocation5 + $0x190] sm:$0xff]
    %v1312 = vld [vmem:[#allocation5 + $0x198] sm:$0xff]
    %v1313 = vld [vmem:[#allocation5 + $0x1a0] sm:$0xff]
    %v1314 = vld [vmem:[#allocation5 + $0x1a8] sm:$0xff]
    %v1315 = vld [vmem:[#allocation5 + $0x1b0] sm:$0xff]
    %v1316 = vld [vmem:[#allocation5 + $0x1b8] sm:$0xff]
    %v1317 = vld [vmem:[#allocation5 + $0x1c0] sm:$0xff]
    %v1318 = vld [vmem:[#allocation5 + $0x1c8] sm:$0xff]
    %v1319 = vld [vmem:[#allocation5 + $0x1d0] sm:$0xff]
    %v1320 = vld [vmem:[#allocation5 + $0x1d8] sm:$0xff]
    %v1321 = vld [vmem:[#allocation5 + $0x1e0] sm:$0xff]
    %v1322 = vld [vmem:[#allocation5 + $0x1e8] sm:$0xff]
    %v1323 = vld [vmem:[#allocation5 + $0x1f0] sm:$0xff]
    %v1324 = vld [vmem:[#allocation5 + $0x1f8] sm:$0xff]
    %v1325 = vld [vmem:[#allocation5 + $0x200] sm:$0xff]
    %v1326 = vld [vmem:[#allocation5 + $0x208] sm:$0xff]
    %v1327 = vld [vmem:[#allocation5 + $0x210] sm:$0xff]
    %v1328 = vld [vmem:[#allocation5 + $0x218] sm:$0xff]
    %v1329 = vld [vmem:[#allocation5 + $0x220] sm:$0xff]
    %v1330 = vld [vmem:[#allocation5 + $0x228] sm:$0xff]
    %v1331 = vld [vmem:[#allocation5 + $0x230] sm:$0xff]
    %v1332 = vld [vmem:[#allocation5 + $0x238] sm:$0xff]
    %v1333 = vld [vmem:[#allocation5 + $0x240] sm:$0xff]
    %v1334 = vld [vmem:[#allocation5 + $0x248] sm:$0xff]
    %v1335 = vld [vmem:[#allocation5 + $0x250] sm:$0xff]
    %v1336 = vld [vmem:[#allocation5 + $0x258] sm:$0xff]
    %v1337 = vld [vmem:[#allocation5 + $0x260] sm:$0xff]
    %v1338 = vld [vmem:[#allocation5 + $0x268] sm:$0xff]
    %v1339 = vld [vmem:[#allocation5 + $0x270] sm:$0xff]
    %v1340 = vld [vmem:[#allocation5 + $0x278] sm:$0xff]
    %v1341 = vld [vmem:[#allocation5 + $0x280] sm:$0xff]
    %v1342 = vld [vmem:[#allocation5 + $0x288] sm:$0xff]
    %v1343 = vld [vmem:[#allocation5 + $0x290] sm:$0xff]
    %v1344 = vld [vmem:[#allocation5 + $0x298] sm:$0xff]
    %v1345 = vld [vmem:[#allocation5 + $0x2a0] sm:$0xff]
    %v1346 = vld [vmem:[#allocation5 + $0x2a8] sm:$0xff]
    %v1347 = vld [vmem:[#allocation5 + $0x2b0] sm:$0xff]
    %v1348 = vld [vmem:[#allocation5 + $0x2b8] sm:$0xff]
    %v1349 = vld [vmem:[#allocation5 + $0x2c0] sm:$0xff]
    %v1350 = vld [vmem:[#allocation5 + $0x2c8] sm:$0xff]
    %v1351 = vld [vmem:[#allocation5 + $0x2d0] sm:$0xff]
    %v1352 = vld [vmem:[#allocation5 + $0x2d8] sm:$0xff]
    %v1353 = vld [vmem:[#allocation5 + $0x2e0] sm:$0xff]
    %v1354 = vld [vmem:[#allocation5 + $0x2e8] sm:$0xff]
    %v1355 = vld [vmem:[#allocation5 + $0x2f0] sm:$0xff]
    %v1356 = vld [vmem:[#allocation5 + $0x2f8] sm:$0xff]
    %v1357 = vld [vmem:[#allocation5 + $0x300] sm:$0xff]
    %v1358 = vld [vmem:[#allocation5 + $0x308] sm:$0xff]
    %v1359 = vld [vmem:[#allocation5 + $0x310] sm:$0xff]
    %v1360 = vld [vmem:[#allocation5 + $0x318] sm:$0xff]
    %v1361 = vld [vmem:[#allocation5 + $0x320] sm:$0xff]
    %v1362 = vld [vmem:[#allocation5 + $0x328] sm:$0xff]
    %v1363 = vld [vmem:[#allocation5 + $0x330] sm:$0xff]
    %v1364 = vld [vmem:[#allocation5 + $0x338] sm:$0xff]
    %v1365 = vld [vmem:[#allocation5 + $0x340] sm:$0xff]
    %v1366 = vld [vmem:[#allocation5 + $0x348] sm:$0xff]
    %v1367 = vld [vmem:[#allocation5 + $0x350] sm:$0xff]
    %v1368 = vld [vmem:[#allocation5 + $0x358] sm:$0xff]
    %v1369 = vld [vmem:[#allocation5 + $0x360] sm:$0xff]
    %v1370 = vld [vmem:[#allocation5 + $0x368] sm:$0xff]
    %v1371 = vld [vmem:[#allocation5 + $0x370] sm:$0xff]
    %v1372 = vld [vmem:[#allocation5 + $0x378] sm:$0xff]
    %v1373 = vld [vmem:[#allocation5 + $0x380] sm:$0xff]
    %v1374 = vld [vmem:[#allocation5 + $0x388] sm:$0xff]
    %v1375 = vld [vmem:[#allocation5 + $0x390] sm:$0xff]
    %v1376 = vld [vmem:[#allocation5 + $0x398] sm:$0xff]
    %v1377 = vld [vmem:[#allocation5 + $0x3a0] sm:$0xff]
    %v1378 = vld [vmem:[#allocation5 + $0x3a8] sm:$0xff]
    %v1379 = vld [vmem:[#allocation5 + $0x3b0] sm:$0xff]
    %v1380 = vld [vmem:[#allocation5 + $0x3b8] sm:$0xff]
    %v1381 = vld [vmem:[#allocation5 + $0x3c0] sm:$0xff]
    %v1382 = vld [vmem:[#allocation5 + $0x3c8] sm:$0xff]
    %v1383 = vld [vmem:[#allocation5 + $0x3d0] sm:$0xff]
    %v1384 = vld [vmem:[#allocation5 + $0x3d8] sm:$0xff]
    %v1385 = vld [vmem:[#allocation5 + $0x3e0] sm:$0xff]
    %v1386 = vld [vmem:[#allocation5 + $0x3e8] sm:$0xff]
    %v1387 = vld [vmem:[#allocation5 + $0x3f0] sm:$0xff]
    %v1388 = vld [vmem:[#allocation5 + $0x3f8] sm:$0xff]
    %v1389 = vld [vmem:[#allocation5 + $0x400] sm:$0xff]
    %v1390 = vld [vmem:[#allocation5 + $0x408] sm:$0xff]
    %v1391 = vld [vmem:[#allocation5 + $0x410] sm:$0xff]
    %v1392 = vld [vmem:[#allocation5 + $0x418] sm:$0xff]
    %v1393 = vld [vmem:[#allocation5 + $0x420] sm:$0xff]
    %v1394 = vld [vmem:[#allocation5 + $0x428] sm:$0xff]
    %v1395 = vld [vmem:[#allocation5 + $0x430] sm:$0xff]
    %v1396 = vld [vmem:[#allocation5 + $0x438] sm:$0xff]
    %v1397 = vld [vmem:[#allocation5 + $0x440] sm:$0xff]
    %v1398 = vld [vmem:[#allocation5 + $0x448] sm:$0xff]
    %v1399 = vld [vmem:[#allocation5 + $0x450] sm:$0xff]
    %v1400 = vld [vmem:[#allocation5 + $0x458] sm:$0xff]
    %v1401 = vld [vmem:[#allocation5 + $0x460] sm:$0xff]
    %v1402 = vld [vmem:[#allocation5 + $0x468] sm:$0xff]
    %v1403 = vld [vmem:[#allocation5 + $0x470] sm:$0xff]
    %v1404 = vld [vmem:[#allocation5 + $0x478] sm:$0xff]
    %v1405 = vld [vmem:[#allocation5 + $0x480] sm:$0xff]
    %v1406 = vld [vmem:[#allocation5 + $0x488] sm:$0xff]
    %v1407 = vld [vmem:[#allocation5 + $0x490] sm:$0xff]
    %v1408 = vld [vmem:[#allocation5 + $0x498] sm:$0xff]
    %v1409 = vld [vmem:[#allocation5 + $0x4a0] sm:$0xff]
    %v1410 = vld [vmem:[#allocation5 + $0x4a8] sm:$0xff]
    %v1411 = vld [vmem:[#allocation5 + $0x4b0] sm:$0xff]
    %v1412 = vld [vmem:[#allocation5 + $0x4b8] sm:$0xff]
    %v1413 = vld [vmem:[#allocation5 + $0x4c0] sm:$0xff]
    %v1414 = vld [vmem:[#allocation5 + $0x4c8] sm:$0xff]
    %v1415 = vld [vmem:[#allocation5 + $0x4d0] sm:$0xff]
    %v1416 = vld [vmem:[#allocation5 + $0x4d8] sm:$0xff]
    %v1417 = vld [vmem:[#allocation5 + $0x4e0] sm:$0xff]
    %v1418 = vld [vmem:[#allocation5 + $0x4e8] sm:$0xff]
    %v1419 = vld [vmem:[#allocation5 + $0x4f0] sm:$0xff]
    %v1420 = vld [vmem:[#allocation5 + $0x4f8] sm:$0xff]
    %v1421 = vld [vmem:[#allocation5 + $0x500] sm:$0xff]
    %v1422 = vld [vmem:[#allocation5 + $0x508] sm:$0xff]
    %v1423 = vld [vmem:[#allocation5 + $0x510] sm:$0xff]
    %v1424 = vld [vmem:[#allocation5 + $0x518] sm:$0xff]
    %v1425 = vld [vmem:[#allocation5 + $0x520] sm:$0xff]
    %v1426 = vld [vmem:[#allocation5 + $0x528] sm:$0xff]
    %v1427 = vld [vmem:[#allocation5 + $0x530] sm:$0xff]
    %v1428 = vld [vmem:[#allocation5 + $0x538] sm:$0xff]
    %v1429 = vld [vmem:[#allocation5 + $0x540] sm:$0xff]
    %v1430 = vld [vmem:[#allocation5 + $0x548] sm:$0xff]
    %v1431 = vld [vmem:[#allocation5 + $0x550] sm:$0xff]
    %v1432 = vld [vmem:[#allocation5 + $0x558] sm:$0xff]
    %v1433 = vld [vmem:[#allocation5 + $0x560] sm:$0xff]
    %v1434 = vld [vmem:[#allocation5 + $0x568] sm:$0xff]
    %v1435 = vld [vmem:[#allocation5 + $0x570] sm:$0xff]
    %v1436 = vld [vmem:[#allocation5 + $0x578] sm:$0xff]
    %v1437 = vld [vmem:[#allocation5 + $0x580] sm:$0xff]
    %v1438 = vld [vmem:[#allocation5 + $0x588] sm:$0xff]
    %v1439 = vld [vmem:[#allocation5 + $0x590] sm:$0xff]
    %v1440 = vld [vmem:[#allocation5 + $0x598] sm:$0xff]
    %v1441 = vld [vmem:[#allocation5 + $0x5a0] sm:$0xff]
    %v1442 = vld [vmem:[#allocation5 + $0x5a8] sm:$0xff]
    %v1443 = vld [vmem:[#allocation5 + $0x5b0] sm:$0xff]
    %v1444 = vld [vmem:[#allocation5 + $0x5b8] sm:$0xff]
    %v1445 = vld [vmem:[#allocation5 + $0x5c0] sm:$0xff]
    %v1446 = vld [vmem:[#allocation5 + $0x5c8] sm:$0xff]
    %v1447 = vld [vmem:[#allocation5 + $0x5d0] sm:$0xff]
    %v1448 = vld [vmem:[#allocation5 + $0x5d8] sm:$0xff]
    %v1449 = vld [vmem:[#allocation5 + $0x5e0] sm:$0xff]
    %v1450 = vld [vmem:[#allocation5 + $0x5e8] sm:$0xff]
    %v1451 = vld [vmem:[#allocation5 + $0x5f0] sm:$0xff]
    %v1452 = vld [vmem:[#allocation5 + $0x5f8] sm:$0xff]
    %v1453 = vld [vmem:[#allocation5 + $0x600] sm:$0xff]
    %v1454 = vld [vmem:[#allocation5 + $0x608] sm:$0xff]
    %v1455 = vld [vmem:[#allocation5 + $0x610] sm:$0xff]
    %v1456 = vld [vmem:[#allocation5 + $0x618] sm:$0xff]
    %v1457 = vld [vmem:[#allocation5 + $0x620] sm:$0xff]
    %v1458 = vld [vmem:[#allocation5 + $0x628] sm:$0xff]
    %v1459 = vld [vmem:[#allocation5 + $0x630] sm:$0xff]
    %v1460 = vld [vmem:[#allocation5 + $0x638] sm:$0xff]
    %v1461 = vld [vmem:[#allocation5 + $0x640] sm:$0xff]
    %v1462 = vld [vmem:[#allocation5 + $0x648] sm:$0xff]
    %v1463 = vld [vmem:[#allocation5 + $0x650] sm:$0xff]
    %v1464 = vld [vmem:[#allocation5 + $0x658] sm:$0xff]
    %v1465 = vld [vmem:[#allocation5 + $0x660] sm:$0xff]
    %v1466 = vld [vmem:[#allocation5 + $0x668] sm:$0xff]
    %v1467 = vld [vmem:[#allocation5 + $0x670] sm:$0xff]
    %v1468 = vld [vmem:[#allocation5 + $0x678] sm:$0xff]
    %v1469 = vld [vmem:[#allocation5 + $0x680] sm:$0xff]
    %v1470 = vld [vmem:[#allocation5 + $0x688] sm:$0xff]
    %v1471 = vld [vmem:[#allocation5 + $0x690] sm:$0xff]
    %v1472 = vld [vmem:[#allocation5 + $0x698] sm:$0xff]
    %v1473 = vld [vmem:[#allocation5 + $0x6a0] sm:$0xff]
    %v1474 = vld [vmem:[#allocation5 + $0x6a8] sm:$0xff]
    %v1475 = vld [vmem:[#allocation5 + $0x6b0] sm:$0xff]
    %v1476 = vld [vmem:[#allocation5 + $0x6b8] sm:$0xff]
    %v1477 = vld [vmem:[#allocation5 + $0x6c0] sm:$0xff]
    %v1478 = vld [vmem:[#allocation5 + $0x6c8] sm:$0xff]
    %v1479 = vld [vmem:[#allocation5 + $0x6d0] sm:$0xff]
    %v1480 = vld [vmem:[#allocation5 + $0x6d8] sm:$0xff]
    %v1481 = vld [vmem:[#allocation5 + $0x6e0] sm:$0xff]
    %v1482 = vld [vmem:[#allocation5 + $0x6e8] sm:$0xff]
    %v1483 = vld [vmem:[#allocation5 + $0x6f0] sm:$0xff]
    %v1484 = vld [vmem:[#allocation5 + $0x6f8] sm:$0xff]
    %v1485 = vld [vmem:[#allocation5 + $0x700] sm:$0xff]
    %v1486 = vld [vmem:[#allocation5 + $0x708] sm:$0xff]
    %v1487 = vld [vmem:[#allocation5 + $0x710] sm:$0xff]
    %v1488 = vld [vmem:[#allocation5 + $0x718] sm:$0xff]
    %v1489 = vld [vmem:[#allocation5 + $0x720] sm:$0xff]
    %v1490 = vld [vmem:[#allocation5 + $0x728] sm:$0xff]
    %v1491 = vld [vmem:[#allocation5 + $0x730] sm:$0xff]
    %v1492 = vld [vmem:[#allocation5 + $0x738] sm:$0xff]
    %v1493 = vld [vmem:[#allocation5 + $0x740] sm:$0xff]
    %v1494 = vld [vmem:[#allocation5 + $0x748] sm:$0xff]
    %v1495 = vld [vmem:[#allocation5 + $0x750] sm:$0xff]
    %v1496 = vld [vmem:[#allocation5 + $0x758] sm:$0xff]
    %v1497 = vld [vmem:[#allocation5 + $0x760] sm:$0xff]
    %v1498 = vld [vmem:[#allocation5 + $0x768] sm:$0xff]
    %v1499 = vld [vmem:[#allocation5 + $0x770] sm:$0xff]
    %v1500 = vld [vmem:[#allocation5 + $0x778] sm:$0xff]
    %v1501 = vld [vmem:[#allocation5 + $0x780] sm:$0xff]
    %v1502 = vld [vmem:[#allocation5 + $0x788] sm:$0xff]
    %v1503 = vld [vmem:[#allocation5 + $0x790] sm:$0xff]
    %v1504 = vld [vmem:[#allocation5 + $0x798] sm:$0xff]
    %v1505 = vld [vmem:[#allocation5 + $0x7a0] sm:$0xff]
    %v1506 = vld [vmem:[#allocation5 + $0x7a8] sm:$0xff]
    %v1507 = vld [vmem:[#allocation5 + $0x7b0] sm:$0xff]
    %v1508 = vld [vmem:[#allocation5 + $0x7b8] sm:$0xff]
    %v1509 = vld [vmem:[#allocation5 + $0x7c0] sm:$0xff]
    %v1510 = vld [vmem:[#allocation5 + $0x7c8] sm:$0xff]
    %v1511 = vld [vmem:[#allocation5 + $0x7d0] sm:$0xff]
    %v1512 = vld [vmem:[#allocation5 + $0x7d8] sm:$0xff]
    %v1513 = vld [vmem:[#allocation5 + $0x7e0] sm:$0xff]
    %v1514 = vld [vmem:[#allocation5 + $0x7e8] sm:$0xff]
    %v1515 = vld [vmem:[#allocation5 + $0x7f0] sm:$0xff]
    %v1516 = vld [vmem:[#allocation5 + $0x7f8] sm:$0xff]
    %v1517 = vld [vmem:[%s5] sm:$0xff]
    %v1518 = vld [vmem:[#allocation2] sm:$0xff]
    %v1519 = vld [vmem:[#allocation2 + $0x8] sm:$0xff]
    %v1520 = vld [vmem:[#allocation2 + $0x10] sm:$0xff]
    %v1521 = vld [vmem:[#allocation2 + $0x18] sm:$0xff]
    %v1522 = vld [vmem:[#allocation2 + $0x20] sm:$0xff]
    %v1523 = vld [vmem:[#allocation2 + $0x28] sm:$0xff]
    %v1524 = vld [vmem:[#allocation2 + $0x30] sm:$0xff]
    %v1525 = vld [vmem:[#allocation2 + $0x38] sm:$0xff]
    %v1526 = vunpack.c.l.bf16 %v1518
    %v1527 = vunpack.c.l.bf16 %v1519
    %v1528 = vunpack.c.l.bf16 %v1520
    %v1529 = vunpack.c.l.bf16 %v1521
    %v1530 = vunpack.c.l.bf16 %v1522
    %v1531 = vunpack.c.l.bf16 %v1523
    %v1532 = vunpack.c.l.bf16 %v1524
    %v1533 = vunpack.c.l.bf16 %v1525
    %v1534 = vunpack.c.h.bf16 %v1518
    %v1535 = vunpack.c.h.bf16 %v1519
    %v1536 = vunpack.c.h.bf16 %v1520
    %v1537 = vunpack.c.h.bf16 %v1521
    %v1538 = vunpack.c.h.bf16 %v1522
    %v1539 = vunpack.c.h.bf16 %v1523
    %v1540 = vunpack.c.h.bf16 %v1524
    %v1541 = vunpack.c.h.bf16 %v1525
    %v1670 = vunpack.c.l.b16 %v1133
    %v1671 = vunpack.c.h.b16 %v1133
    %v1672 = vunpack.c.l.b16 %v1134
    %v1673 = vunpack.c.h.b16 %v1134
    %v1674 = vunpack.c.l.b16 %v1135
    %v1675 = vunpack.c.h.b16 %v1135
    %v1676 = vunpack.c.l.b16 %v1136
    %v1677 = vunpack.c.h.b16 %v1136
    %v1678 = vunpack.c.l.b16 %v1137
    %v1679 = vunpack.c.h.b16 %v1137
    %v1680 = vunpack.c.l.b16 %v1138
    %v1681 = vunpack.c.h.b16 %v1138
    %v1682 = vunpack.c.l.b16 %v1139
    %v1683 = vunpack.c.h.b16 %v1139
    %v1684 = vunpack.c.l.b16 %v1140
    %v1685 = vunpack.c.h.b16 %v1140
    %v1686 = vunpack.c.l.b16 %v1141
    %v1687 = vunpack.c.h.b16 %v1141
    %v1688 = vunpack.c.l.b16 %v1142
    %v1689 = vunpack.c.h.b16 %v1142
    %v1690 = vunpack.c.l.b16 %v1143
    %v1691 = vunpack.c.h.b16 %v1143
    %v1692 = vunpack.c.l.b16 %v1144
    %v1693 = vunpack.c.h.b16 %v1144
    %v1694 = vunpack.c.l.b16 %v1145
    %v1695 = vunpack.c.h.b16 %v1145
    %v1696 = vunpack.c.l.b16 %v1146
    %v1697 = vunpack.c.h.b16 %v1146
    %v1698 = vunpack.c.l.b16 %v1147
    %v1699 = vunpack.c.h.b16 %v1147
    %v1700 = vunpack.c.l.b16 %v1148
    %v1701 = vunpack.c.h.b16 %v1148
    %v1702 = vunpack.c.l.b16 %v1149
    %v1703 = vunpack.c.h.b16 %v1149
    %v1704 = vunpack.c.l.b16 %v1150
    %v1705 = vunpack.c.h.b16 %v1150
    %v1706 = vunpack.c.l.b16 %v1151
    %v1707 = vunpack.c.h.b16 %v1151
    %v1708 = vunpack.c.l.b16 %v1152
    %v1709 = vunpack.c.h.b16 %v1152
    %v1710 = vunpack.c.l.b16 %v1153
    %v1711 = vunpack.c.h.b16 %v1153
    %v1712 = vunpack.c.l.b16 %v1154
    %v1713 = vunpack.c.h.b16 %v1154
    %v1714 = vunpack.c.l.b16 %v1155
    %v1715 = vunpack.c.h.b16 %v1155
    %v1716 = vunpack.c.l.b16 %v1156
    %v1717 = vunpack.c.h.b16 %v1156
    %v1718 = vunpack.c.l.b16 %v1157
    %v1719 = vunpack.c.h.b16 %v1157
    %v1720 = vunpack.c.l.b16 %v1158
    %v1721 = vunpack.c.h.b16 %v1158
    %v1722 = vunpack.c.l.b16 %v1159
    %v1723 = vunpack.c.h.b16 %v1159
    %v1724 = vunpack.c.l.b16 %v1160
    %v1725 = vunpack.c.h.b16 %v1160
    %v1726 = vunpack.c.l.b16 %v1161
    %v1727 = vunpack.c.h.b16 %v1161
    %v1728 = vunpack.c.l.b16 %v1162
    %v1729 = vunpack.c.h.b16 %v1162
    %v1730 = vunpack.c.l.b16 %v1163
    %v1731 = vunpack.c.h.b16 %v1163
    %v1732 = vunpack.c.l.b16 %v1164
    %v1733 = vunpack.c.h.b16 %v1164
    %v1734 = vunpack.c.l.b16 %v1165
    %v1735 = vunpack.c.h.b16 %v1165
    %v1736 = vunpack.c.l.b16 %v1166
    %v1737 = vunpack.c.h.b16 %v1166
    %v1738 = vunpack.c.l.b16 %v1167
    %v1739 = vunpack.c.h.b16 %v1167
    %v1740 = vunpack.c.l.b16 %v1168
    %v1741 = vunpack.c.h.b16 %v1168
    %v1742 = vunpack.c.l.b16 %v1169
    %v1743 = vunpack.c.h.b16 %v1169
    %v1744 = vunpack.c.l.b16 %v1170
    %v1745 = vunpack.c.h.b16 %v1170
    %v1746 = vunpack.c.l.b16 %v1171
    %v1747 = vunpack.c.h.b16 %v1171
    %v1748 = vunpack.c.l.b16 %v1172
    %v1749 = vunpack.c.h.b16 %v1172
    %v1750 = vunpack.c.l.b16 %v1173
    %v1751 = vunpack.c.h.b16 %v1173
    %v1752 = vunpack.c.l.b16 %v1174
    %v1753 = vunpack.c.h.b16 %v1174
    %v1754 = vunpack.c.l.b16 %v1175
    %v1755 = vunpack.c.h.b16 %v1175
    %v1756 = vunpack.c.l.b16 %v1176
    %v1757 = vunpack.c.h.b16 %v1176
    %v1758 = vunpack.c.l.b16 %v1177
    %v1759 = vunpack.c.h.b16 %v1177
    %v1760 = vunpack.c.l.b16 %v1178
    %v1761 = vunpack.c.h.b16 %v1178
    %v1762 = vunpack.c.l.b16 %v1179
    %v1763 = vunpack.c.h.b16 %v1179
    %v1764 = vunpack.c.l.b16 %v1180
    %v1765 = vunpack.c.h.b16 %v1180
    %v1766 = vunpack.c.l.b16 %v1181
    %v1767 = vunpack.c.h.b16 %v1181
    %v1768 = vunpack.c.l.b16 %v1182
    %v1769 = vunpack.c.h.b16 %v1182
    %v1770 = vunpack.c.l.b16 %v1183
    %v1771 = vunpack.c.h.b16 %v1183
    %v1772 = vunpack.c.l.b16 %v1184
    %v1773 = vunpack.c.h.b16 %v1184
    %v1774 = vunpack.c.l.b16 %v1185
    %v1775 = vunpack.c.h.b16 %v1185
    %v1776 = vunpack.c.l.b16 %v1186
    %v1777 = vunpack.c.h.b16 %v1186
    %v1778 = vunpack.c.l.b16 %v1187
    %v1779 = vunpack.c.h.b16 %v1187
    %v1780 = vunpack.c.l.b16 %v1188
    %v1781 = vunpack.c.h.b16 %v1188
    %v1782 = vunpack.c.l.b16 %v1189
    %v1783 = vunpack.c.h.b16 %v1189
    %v1784 = vunpack.c.l.b16 %v1190
    %v1785 = vunpack.c.h.b16 %v1190
    %v1786 = vunpack.c.l.b16 %v1191
    %v1787 = vunpack.c.h.b16 %v1191
    %v1788 = vunpack.c.l.b16 %v1192
    %v1789 = vunpack.c.h.b16 %v1192
    %v1790 = vunpack.c.l.b16 %v1193
    %v1791 = vunpack.c.h.b16 %v1193
    %v1792 = vunpack.c.l.b16 %v1194
    %v1793 = vunpack.c.h.b16 %v1194
    %v1794 = vunpack.c.l.b16 %v1195
    %v1795 = vunpack.c.h.b16 %v1195
    %v1796 = vunpack.c.l.b16 %v1196
    %v1797 = vunpack.c.h.b16 %v1196
    %v1798 = vunpack.c.l.b16 %v1197
    %v1799 = vunpack.c.h.b16 %v1197
    %v1800 = vunpack.c.l.b16 %v1198
    %v1801 = vunpack.c.h.b16 %v1198
    %v1802 = vunpack.c.l.b16 %v1199
    %v1803 = vunpack.c.h.b16 %v1199
    %v1804 = vunpack.c.l.b16 %v1200
    %v1805 = vunpack.c.h.b16 %v1200
    %v1806 = vunpack.c.l.b16 %v1201
    %v1807 = vunpack.c.h.b16 %v1201
    %v1808 = vunpack.c.l.b16 %v1202
    %v1809 = vunpack.c.h.b16 %v1202
    %v1810 = vunpack.c.l.b16 %v1203
    %v1811 = vunpack.c.h.b16 %v1203
    %v1812 = vunpack.c.l.b16 %v1204
    %v1813 = vunpack.c.h.b16 %v1204
    %v1814 = vunpack.c.l.b16 %v1205
    %v1815 = vunpack.c.h.b16 %v1205
    %v1816 = vunpack.c.l.b16 %v1206
    %v1817 = vunpack.c.h.b16 %v1206
    %v1818 = vunpack.c.l.b16 %v1207
    %v1819 = vunpack.c.h.b16 %v1207
    %v1820 = vunpack.c.l.b16 %v1208
    %v1821 = vunpack.c.h.b16 %v1208
    %v1822 = vunpack.c.l.b16 %v1209
    %v1823 = vunpack.c.h.b16 %v1209
    %v1824 = vunpack.c.l.b16 %v1210
    %v1825 = vunpack.c.h.b16 %v1210
    %v1826 = vunpack.c.l.b16 %v1211
    %v1827 = vunpack.c.h.b16 %v1211
    %v1828 = vunpack.c.l.b16 %v1212
    %v1829 = vunpack.c.h.b16 %v1212
    %v1830 = vunpack.c.l.b16 %v1213
    %v1831 = vunpack.c.h.b16 %v1213
    %v1832 = vunpack.c.l.b16 %v1214
    %v1833 = vunpack.c.h.b16 %v1214
    %v1834 = vunpack.c.l.b16 %v1215
    %v1835 = vunpack.c.h.b16 %v1215
    %v1836 = vunpack.c.l.b16 %v1216
    %v1837 = vunpack.c.h.b16 %v1216
    %v1838 = vunpack.c.l.b16 %v1217
    %v1839 = vunpack.c.h.b16 %v1217
    %v1840 = vunpack.c.l.b16 %v1218
    %v1841 = vunpack.c.h.b16 %v1218
    %v1842 = vunpack.c.l.b16 %v1219
    %v1843 = vunpack.c.h.b16 %v1219
    %v1844 = vunpack.c.l.b16 %v1220
    %v1845 = vunpack.c.h.b16 %v1220
    %v1846 = vunpack.c.l.b16 %v1221
    %v1847 = vunpack.c.h.b16 %v1221
    %v1848 = vunpack.c.l.b16 %v1222
    %v1849 = vunpack.c.h.b16 %v1222
    %v1850 = vunpack.c.l.b16 %v1223
    %v1851 = vunpack.c.h.b16 %v1223
    %v1852 = vunpack.c.l.b16 %v1224
    %v1853 = vunpack.c.h.b16 %v1224
    %v1854 = vunpack.c.l.b16 %v1225
    %v1855 = vunpack.c.h.b16 %v1225
    %v1856 = vunpack.c.l.b16 %v1226
    %v1857 = vunpack.c.h.b16 %v1226
    %v1858 = vunpack.c.l.b16 %v1227
    %v1859 = vunpack.c.h.b16 %v1227
    %v1860 = vunpack.c.l.b16 %v1228
    %v1861 = vunpack.c.h.b16 %v1228
    %v1862 = vunpack.c.l.b16 %v1229
    %v1863 = vunpack.c.h.b16 %v1229
    %v1864 = vunpack.c.l.b16 %v1230
    %v1865 = vunpack.c.h.b16 %v1230
    %v1866 = vunpack.c.l.b16 %v1231
    %v1867 = vunpack.c.h.b16 %v1231
    %v1868 = vunpack.c.l.b16 %v1232
    %v1869 = vunpack.c.h.b16 %v1232
    %v1870 = vunpack.c.l.b16 %v1233
    %v1871 = vunpack.c.h.b16 %v1233
    %v1872 = vunpack.c.l.b16 %v1234
    %v1873 = vunpack.c.h.b16 %v1234
    %v1874 = vunpack.c.l.b16 %v1235
    %v1875 = vunpack.c.h.b16 %v1235
    %v1876 = vunpack.c.l.b16 %v1236
    %v1877 = vunpack.c.h.b16 %v1236
    %v1878 = vunpack.c.l.b16 %v1237
    %v1879 = vunpack.c.h.b16 %v1237
    %v1880 = vunpack.c.l.b16 %v1238
    %v1881 = vunpack.c.h.b16 %v1238
    %v1882 = vunpack.c.l.b16 %v1239
    %v1883 = vunpack.c.h.b16 %v1239
    %v1884 = vunpack.c.l.b16 %v1240
    %v1885 = vunpack.c.h.b16 %v1240
    %v1886 = vunpack.c.l.b16 %v1241
    %v1887 = vunpack.c.h.b16 %v1241
    %v1888 = vunpack.c.l.b16 %v1242
    %v1889 = vunpack.c.h.b16 %v1242
    %v1890 = vunpack.c.l.b16 %v1243
    %v1891 = vunpack.c.h.b16 %v1243
    %v1892 = vunpack.c.l.b16 %v1244
    %v1893 = vunpack.c.h.b16 %v1244
    %v1894 = vunpack.c.l.b16 %v1245
    %v1895 = vunpack.c.h.b16 %v1245
    %v1896 = vunpack.c.l.b16 %v1246
    %v1897 = vunpack.c.h.b16 %v1246
    %v1898 = vunpack.c.l.b16 %v1247
    %v1899 = vunpack.c.h.b16 %v1247
    %v1900 = vunpack.c.l.b16 %v1248
    %v1901 = vunpack.c.h.b16 %v1248
    %v1902 = vunpack.c.l.b16 %v1249
    %v1903 = vunpack.c.h.b16 %v1249
    %v1904 = vunpack.c.l.b16 %v1250
    %v1905 = vunpack.c.h.b16 %v1250
    %v1906 = vunpack.c.l.b16 %v1251
    %v1907 = vunpack.c.h.b16 %v1251
    %v1908 = vunpack.c.l.b16 %v1252
    %v1909 = vunpack.c.h.b16 %v1252
    %v1910 = vunpack.c.l.b16 %v1253
    %v1911 = vunpack.c.h.b16 %v1253
    %v1912 = vunpack.c.l.b16 %v1254
    %v1913 = vunpack.c.h.b16 %v1254
    %v1914 = vunpack.c.l.b16 %v1255
    %v1915 = vunpack.c.h.b16 %v1255
    %v1916 = vunpack.c.l.b16 %v1256
    %v1917 = vunpack.c.h.b16 %v1256
    %v1918 = vunpack.c.l.b16 %v1257
    %v1919 = vunpack.c.h.b16 %v1257
    %v1920 = vunpack.c.l.b16 %v1258
    %v1921 = vunpack.c.h.b16 %v1258
    %v1922 = vunpack.c.l.b16 %v1259
    %v1923 = vunpack.c.h.b16 %v1259
    %v1924 = vunpack.c.l.b16 %v1260
    %v1925 = vunpack.c.h.b16 %v1260
    %v1926 = vpack.c.b16 %v1678, %v1670
    %v1927 = vpack.c.b16 %v1679, %v1671
    %v1928 = vpack.c.b16 %v1680, %v1672
    %v1929 = vpack.c.b16 %v1681, %v1673
    %v1930 = vpack.c.b16 %v1682, %v1674
    %v1931 = vpack.c.b16 %v1683, %v1675
    %v1932 = vpack.c.b16 %v1684, %v1676
    %v1933 = vpack.c.b16 %v1685, %v1677
    %v1934 = vpack.c.b16 %v1694, %v1686
    %v1935 = vpack.c.b16 %v1695, %v1687
    %v1936 = vpack.c.b16 %v1696, %v1688
    %v1937 = vpack.c.b16 %v1697, %v1689
    %v1938 = vpack.c.b16 %v1698, %v1690
    %v1939 = vpack.c.b16 %v1699, %v1691
    %v1940 = vpack.c.b16 %v1700, %v1692
    %v1941 = vpack.c.b16 %v1701, %v1693
    %v1942 = vpack.c.b16 %v1710, %v1702
    %v1943 = vpack.c.b16 %v1711, %v1703
    %v1944 = vpack.c.b16 %v1712, %v1704
    %v1945 = vpack.c.b16 %v1713, %v1705
    %v1946 = vpack.c.b16 %v1714, %v1706
    %v1947 = vpack.c.b16 %v1715, %v1707
    %v1948 = vpack.c.b16 %v1716, %v1708
    %v1949 = vpack.c.b16 %v1717, %v1709
    %v1950 = vpack.c.b16 %v1726, %v1718
    %v1951 = vpack.c.b16 %v1727, %v1719
    %v1952 = vpack.c.b16 %v1728, %v1720
    %v1953 = vpack.c.b16 %v1729, %v1721
    %v1954 = vpack.c.b16 %v1730, %v1722
    %v1955 = vpack.c.b16 %v1731, %v1723
    %v1956 = vpack.c.b16 %v1732, %v1724
    %v1957 = vpack.c.b16 %v1733, %v1725
    %v1958 = vpack.c.b16 %v1742, %v1734
    %v1959 = vpack.c.b16 %v1743, %v1735
    %v1960 = vpack.c.b16 %v1744, %v1736
    %v1961 = vpack.c.b16 %v1745, %v1737
    %v1962 = vpack.c.b16 %v1746, %v1738
    %v1963 = vpack.c.b16 %v1747, %v1739
    %v1964 = vpack.c.b16 %v1748, %v1740
    %v1965 = vpack.c.b16 %v1749, %v1741
    %v1966 = vpack.c.b16 %v1758, %v1750
    %v1967 = vpack.c.b16 %v1759, %v1751
    %v1968 = vpack.c.b16 %v1760, %v1752
    %v1969 = vpack.c.b16 %v1761, %v1753
    %v1970 = vpack.c.b16 %v1762, %v1754
    %v1971 = vpack.c.b16 %v1763, %v1755
    %v1972 = vpack.c.b16 %v1764, %v1756
    %v1973 = vpack.c.b16 %v1765, %v1757
    %v1974 = vpack.c.b16 %v1774, %v1766
    %v1975 = vpack.c.b16 %v1775, %v1767
    %v1976 = vpack.c.b16 %v1776, %v1768
    %v1977 = vpack.c.b16 %v1777, %v1769
    %v1978 = vpack.c.b16 %v1778, %v1770
    %v1979 = vpack.c.b16 %v1779, %v1771
    %v1980 = vpack.c.b16 %v1780, %v1772
    %v1981 = vpack.c.b16 %v1781, %v1773
    %v1982 = vpack.c.b16 %v1790, %v1782
    %v1983 = vpack.c.b16 %v1791, %v1783
    %v1984 = vpack.c.b16 %v1792, %v1784
    %v1985 = vpack.c.b16 %v1793, %v1785
    %v1986 = vpack.c.b16 %v1794, %v1786
    %v1987 = vpack.c.b16 %v1795, %v1787
    %v1988 = vpack.c.b16 %v1796, %v1788
    %v1989 = vpack.c.b16 %v1797, %v1789
    %v1990 = vpack.c.b16 %v1806, %v1798
    %v1991 = vpack.c.b16 %v1807, %v1799
    %v1992 = vpack.c.b16 %v1808, %v1800
    %v1993 = vpack.c.b16 %v1809, %v1801
    %v1994 = vpack.c.b16 %v1810, %v1802
    %v1995 = vpack.c.b16 %v1811, %v1803
    %v1996 = vpack.c.b16 %v1812, %v1804
    %v1997 = vpack.c.b16 %v1813, %v1805
    %v1998 = vpack.c.b16 %v1822, %v1814
    %v1999 = vpack.c.b16 %v1823, %v1815
    %v2000 = vpack.c.b16 %v1824, %v1816
    %v2001 = vpack.c.b16 %v1825, %v1817
    %v2002 = vpack.c.b16 %v1826, %v1818
    %v2003 = vpack.c.b16 %v1827, %v1819
    %v2004 = vpack.c.b16 %v1828, %v1820
    %v2005 = vpack.c.b16 %v1829, %v1821
    %v2006 = vpack.c.b16 %v1838, %v1830
    %v2007 = vpack.c.b16 %v1839, %v1831
    %v2008 = vpack.c.b16 %v1840, %v1832
    %v2009 = vpack.c.b16 %v1841, %v1833
    %v2010 = vpack.c.b16 %v1842, %v1834
    %v2011 = vpack.c.b16 %v1843, %v1835
    %v2012 = vpack.c.b16 %v1844, %v1836
    %v2013 = vpack.c.b16 %v1845, %v1837
    %v2014 = vpack.c.b16 %v1854, %v1846
    %v2015 = vpack.c.b16 %v1855, %v1847
    %v2016 = vpack.c.b16 %v1856, %v1848
    %v2017 = vpack.c.b16 %v1857, %v1849
    %v2018 = vpack.c.b16 %v1858, %v1850
    %v2019 = vpack.c.b16 %v1859, %v1851
    %v2020 = vpack.c.b16 %v1860, %v1852
    %v2021 = vpack.c.b16 %v1861, %v1853
    %v2022 = vpack.c.b16 %v1870, %v1862
    %v2023 = vpack.c.b16 %v1871, %v1863
    %v2024 = vpack.c.b16 %v1872, %v1864
    %v2025 = vpack.c.b16 %v1873, %v1865
    %v2026 = vpack.c.b16 %v1874, %v1866
    %v2027 = vpack.c.b16 %v1875, %v1867
    %v2028 = vpack.c.b16 %v1876, %v1868
    %v2029 = vpack.c.b16 %v1877, %v1869
    %v2030 = vpack.c.b16 %v1886, %v1878
    %v2031 = vpack.c.b16 %v1887, %v1879
    %v2032 = vpack.c.b16 %v1888, %v1880
    %v2033 = vpack.c.b16 %v1889, %v1881
    %v2034 = vpack.c.b16 %v1890, %v1882
    %v2035 = vpack.c.b16 %v1891, %v1883
    %v2036 = vpack.c.b16 %v1892, %v1884
    %v2037 = vpack.c.b16 %v1893, %v1885
    %v2038 = vpack.c.b16 %v1902, %v1894
    %v2039 = vpack.c.b16 %v1903, %v1895
    %v2040 = vpack.c.b16 %v1904, %v1896
    %v2041 = vpack.c.b16 %v1905, %v1897
    %v2042 = vpack.c.b16 %v1906, %v1898
    %v2043 = vpack.c.b16 %v1907, %v1899
    %v2044 = vpack.c.b16 %v1908, %v1900
    %v2045 = vpack.c.b16 %v1909, %v1901
    %v2046 = vpack.c.b16 %v1918, %v1910
    %v2047 = vpack.c.b16 %v1919, %v1911
    %v2048 = vpack.c.b16 %v1920, %v1912
    %v2049 = vpack.c.b16 %v1921, %v1913
    %v2050 = vpack.c.b16 %v1922, %v1914
    %v2051 = vpack.c.b16 %v1923, %v1915
    %v2052 = vpack.c.b16 %v1924, %v1916
    %v2053 = vpack.c.b16 %v1925, %v1917
    %2182 = vmatprep.subr.bf16.mxu0 %v1927
    %2183 = vmatpush1.bf16.msra.mxu0 %v1926
    %2184 = vmatprep.subr.bf16.mxu0 %v1935
    %2185 = vmatpush1.bf16.msra.mxu0 %v1934
    %2186 = vmatprep.subr.bf16.mxu0 %v1943
    %2187 = vmatpush1.bf16.msra.mxu0 %v1942
    %2188 = vmatprep.subr.bf16.mxu0 %v1951
    %2189 = vmatpush1.bf16.msra.mxu0 %v1950
    %2190 = vmatprep.subr.bf16.mxu0 %v1959
    %2191 = vmatpush1.bf16.msra.mxu0 %v1958
    %2192 = vmatprep.subr.bf16.mxu0 %v1967
    %2193 = vmatpush1.bf16.msra.mxu0 %v1966
    %2194 = vmatprep.subr.bf16.mxu0 %v1975
    %2195 = vmatpush1.bf16.msra.mxu0 %v1974
    %2196 = vmatprep.subr.bf16.mxu0 %v1983
    %2197 = vmatpush1.bf16.msra.mxu0 %v1982
    %2198 = vmatprep.subr.bf16.mxu0 %v1991
    %2199 = vmatpush1.bf16.msra.mxu0 %v1990
    %2200 = vmatprep.subr.bf16.mxu0 %v1999
    %2201 = vmatpush1.bf16.msra.mxu0 %v1998
    %2202 = vmatprep.subr.bf16.mxu0 %v2007
    %2203 = vmatpush1.bf16.msra.mxu0 %v2006
    %2204 = vmatprep.subr.bf16.mxu0 %v2015
    %2205 = vmatpush1.bf16.msra.mxu0 %v2014
    %2206 = vmatprep.subr.bf16.mxu0 %v2023
    %2207 = vmatpush1.bf16.msra.mxu0 %v2022
    %2208 = vmatprep.subr.bf16.mxu0 %v2031
    %2209 = vmatpush1.bf16.msra.mxu0 %v2030
    %2210 = vmatprep.subr.bf16.mxu0 %v2039
    %2211 = vmatpush1.bf16.msra.mxu0 %v2038
    %2212 = vmatprep.subr.bf16.mxu0 %v2047
    %2213 = vmatpush1.bf16.msra.mxu0 %v2046
    %2214 = vmatprep.mubr.bf16.mxu0 0
    %2215 = vmatmul.mubr.bf16.gmra.mrb[0].mxu0 0
    %v2216 = vpop.f32.mrb[0].mxu0
    %v2217 = vadd.f32 0.0, %v2216
    %v2218 = vpop.f32.mrb[0].mxu0
    %v2219 = vadd.f32 0.0, %v2218
    %v2220 = vpop.f32.mrb[0].mxu0
    %v2221 = vadd.f32 0.0, %v2220
    %v2222 = vpop.f32.mrb[0].mxu0
    %v2223 = vadd.f32 0.0, %v2222
    %2224 = vdwg.mxu0
    %2225 = vmatprep.subr.bf16.mxu0 %v1929
    %2226 = vmatpush1.bf16.msra.mxu0 %v1928
    %2227 = vmatprep.subr.bf16.mxu0 %v1937
    %2228 = vmatpush1.bf16.msra.mxu0 %v1936
    %2229 = vmatprep.subr.bf16.mxu0 %v1945
    %2230 = vmatpush1.bf16.msra.mxu0 %v1944
    %2231 = vmatprep.subr.bf16.mxu0 %v1953
    %2232 = vmatpush1.bf16.msra.mxu0 %v1952
    %2233 = vmatprep.subr.bf16.mxu0 %v1961
    %2234 = vmatpush1.bf16.msra.mxu0 %v1960
    %2235 = vmatprep.subr.bf16.mxu0 %v1969
    %2236 = vmatpush1.bf16.msra.mxu0 %v1968
    %2237 = vmatprep.subr.bf16.mxu0 %v1977
    %2238 = vmatpush1.bf16.msra.mxu0 %v1976
    %2239 = vmatprep.subr.bf16.mxu0 %v1985
    %2240 = vmatpush1.bf16.msra.mxu0 %v1984
    %2241 = vmatprep.subr.bf16.mxu0 %v1993
    %2242 = vmatpush1.bf16.msra.mxu0 %v1992
    %2243 = vmatprep.subr.bf16.mxu0 %v2001
    %2244 = vmatpush1.bf16.msra.mxu0 %v2000
    %2245 = vmatprep.subr.bf16.mxu0 %v2009
    %2246 = vmatpush1.bf16.msra.mxu0 %v2008
    %2247 = vmatprep.subr.bf16.mxu0 %v2017
    %2248 = vmatpush1.bf16.msra.mxu0 %v2016
    %2249 = vmatprep.subr.bf16.mxu0 %v2025
    %2250 = vmatpush1.bf16.msra.mxu0 %v2024
    %2251 = vmatprep.subr.bf16.mxu0 %v2033
    %2252 = vmatpush1.bf16.msra.mxu0 %v2032
    %2253 = vmatprep.subr.bf16.mxu0 %v2041
    %2254 = vmatpush1.bf16.msra.mxu0 %v2040
    %2255 = vmatprep.subr.bf16.mxu0 %v2049
    %2256 = vmatpush1.bf16.msra.mxu0 %v2048
    %2257 = vmatprep.mubr.bf16.mxu0 0
    %2258 = vmatmul.mubr.bf16.gmra.mrb[0].mxu0 0
    %v2259 = vpop.f32.mrb[0].mxu0
    %v2260 = vadd.f32 0.0, %v2259
    %v2261 = vpop.f32.mrb[0].mxu0
    %v2262 = vadd.f32 0.0, %v2261
    %v2263 = vpop.f32.mrb[0].mxu0
    %v2264 = vadd.f32 0.0, %v2263
    %v2265 = vpop.f32.mrb[0].mxu0
    %v2266 = vadd.f32 0.0, %v2265
    %2267 = vdwg.mxu0
    %2268 = vmatprep.subr.bf16.mxu0 %v1931
    %2269 = vmatpush1.bf16.msra.mxu0 %v1930
    %2270 = vmatprep.subr.bf16.mxu0 %v1939
    %2271 = vmatpush1.bf16.msra.mxu0 %v1938
    %2272 = vmatprep.subr.bf16.mxu0 %v1947
    %2273 = vmatpush1.bf16.msra.mxu0 %v1946
    %2274 = vmatprep.subr.bf16.mxu0 %v1955
    %2275 = vmatpush1.bf16.msra.mxu0 %v1954
    %2276 = vmatprep.subr.bf16.mxu0 %v1963
    %2277 = vmatpush1.bf16.msra.mxu0 %v1962
    %2278 = vmatprep.subr.bf16.mxu0 %v1971
    %2279 = vmatpush1.bf16.msra.mxu0 %v1970
    %2280 = vmatprep.subr.bf16.mxu0 %v1979
    %2281 = vmatpush1.bf16.msra.mxu0 %v1978
    %2282 = vmatprep.subr.bf16.mxu0 %v1987
    %2283 = vmatpush1.bf16.msra.mxu0 %v1986
    %2284 = vmatprep.subr.bf16.mxu0 %v1995
    %2285 = vmatpush1.bf16.msra.mxu0 %v1994
    %2286 = vmatprep.subr.bf16.mxu0 %v2003
    %2287 = vmatpush1.bf16.msra.mxu0 %v2002
    %2288 = vmatprep.subr.bf16.mxu0 %v2011
    %2289 = vmatpush1.bf16.msra.mxu0 %v2010
    %2290 = vmatprep.subr.bf16.mxu0 %v2019
    %2291 = vmatpush1.bf16.msra.mxu0 %v2018
    %2292 = vmatprep.subr.bf16.mxu0 %v2027
    %2293 = vmatpush1.bf16.msra.mxu0 %v2026
    %2294 = vmatprep.subr.bf16.mxu0 %v2035
    %2295 = vmatpush1.bf16.msra.mxu0 %v2034
    %2296 = vmatprep.subr.bf16.mxu0 %v2043
    %2297 = vmatpush1.bf16.msra.mxu0 %v2042
    %2298 = vmatprep.subr.bf16.mxu0 %v2051
    %2299 = vmatpush1.bf16.msra.mxu0 %v2050
    %2300 = vmatprep.mubr.bf16.mxu0 0
    %2301 = vmatmul.mubr.bf16.gmra.mrb[0].mxu0 0
    %v2302 = vpop.f32.mrb[0].mxu0
    %v2303 = vadd.f32 0.0, %v2302
    %v2304 = vpop.f32.mrb[0].mxu0
    %v2305 = vadd.f32 0.0, %v2304
    %v2306 = vpop.f32.mrb[0].mxu0
    %v2307 = vadd.f32 0.0, %v2306
    %v2308 = vpop.f32.mrb[0].mxu0
    %v2309 = vadd.f32 0.0, %v2308
    %2310 = vdwg.mxu0
    %2311 = vmatprep.subr.bf16.mxu0 %v1933
    %2312 = vmatpush1.bf16.msra.mxu0 %v1932
    %2313 = vmatprep.subr.bf16.mxu0 %v1941
    %2314 = vmatpush1.bf16.msra.mxu0 %v1940
    %2315 = vmatprep.subr.bf16.mxu0 %v1949
    %2316 = vmatpush1.bf16.msra.mxu0 %v1948
    %2317 = vmatprep.subr.bf16.mxu0 %v1957
    %2318 = vmatpush1.bf16.msra.mxu0 %v1956
    %2319 = vmatprep.subr.bf16.mxu0 %v1965
    %2320 = vmatpush1.bf16.msra.mxu0 %v1964
    %2321 = vmatprep.subr.bf16.mxu0 %v1973
    %2322 = vmatpush1.bf16.msra.mxu0 %v1972
    %2323 = vmatprep.subr.bf16.mxu0 %v1981
    %2324 = vmatpush1.bf16.msra.mxu0 %v1980
    %2325 = vmatprep.subr.bf16.mxu0 %v1989
    %2326 = vmatpush1.bf16.msra.mxu0 %v1988
    %2327 = vmatprep.subr.bf16.mxu0 %v1997
    %2328 = vmatpush1.bf16.msra.mxu0 %v1996
    %2329 = vmatprep.subr.bf16.mxu0 %v2005
    %2330 = vmatpush1.bf16.msra.mxu0 %v2004
    %2331 = vmatprep.subr.bf16.mxu0 %v2013
    %2332 = vmatpush1.bf16.msra.mxu0 %v2012
    %2333 = vmatprep.subr.bf16.mxu0 %v2021
    %2334 = vmatpush1.bf16.msra.mxu0 %v2020
    %2335 = vmatprep.subr.bf16.mxu0 %v2029
    %2336 = vmatpush1.bf16.msra.mxu0 %v2028
    %2337 = vmatprep.subr.bf16.mxu0 %v2037
    %2338 = vmatpush1.bf16.msra.mxu0 %v2036
    %2339 = vmatprep.subr.bf16.mxu0 %v2045
    %2340 = vmatpush1.bf16.msra.mxu0 %v2044
    %2341 = vmatprep.subr.bf16.mxu0 %v2053
    %2342 = vmatpush1.bf16.msra.mxu0 %v2052
    %2343 = vmatprep.mubr.bf16.mxu0 0
    %2344 = vmatmul.mubr.bf16.gmra.mrb[0].mxu0 0
    %v2345 = vpop.f32.mrb[0].mxu0
    %v2346 = vadd.f32 0.0, %v2345
    %v2347 = vpop.f32.mrb[0].mxu0
    %v2348 = vadd.f32 0.0, %v2347
    %v2349 = vpop.f32.mrb[0].mxu0
    %v2350 = vadd.f32 0.0, %v2349
    %v2351 = vpop.f32.mrb[0].mxu0
    %v2352 = vadd.f32 0.0, %v2351
    %2353 = vdwg.mxu0
    %v2354 = vadd.f32 %v1526, %v2217
    %v2355 = vadd.f32 %v1527, %v2219
    %v2356 = vadd.f32 %v1528, %v2260
    %v2357 = vadd.f32 %v1529, %v2262
    %v2358 = vadd.f32 %v1530, %v2303
    %v2359 = vadd.f32 %v1531, %v2305
    %v2360 = vadd.f32 %v1532, %v2346
    %v2361 = vadd.f32 %v1533, %v2348
    %v2362 = vadd.f32 %v1534, %v2221
    %v2363 = vadd.f32 %v1535, %v2223
    %v2364 = vadd.f32 %v1536, %v2264
    %v2365 = vadd.f32 %v1537, %v2266
    %v2366 = vadd.f32 %v1538, %v2307
    %v2367 = vadd.f32 %v1539, %v2309
    %v2368 = vadd.f32 %v1540, %v2350
    %v2369 = vadd.f32 %v1541, %v2352
    %v2370 = vxor.u32 %v2354, 2147483648
    %v2371 = vxor.u32 %v2355, 2147483648
    %v2372 = vxor.u32 %v2362, 2147483648
    %v2373 = vxor.u32 %v2363, 2147483648
    %v2374 = vmul.f32 %v2370, 1.442695
    %v2375 = vpow.pop %v2374
    %v2376 = vmul.f32 %v2371, 1.442695
    %v2377 = vpow.pop %v2376
    %v2378 = vmul.f32 %v2372, 1.442695
    %v2379 = vpow.pop %v2378
    %v2380 = vmul.f32 %v2373, 1.442695
    %v2381 = vpow.pop %v2380
    %v2382 = vadd.f32 %v2375, 1.0
    %v2383 = vadd.f32 %v2377, 1.0
    %v2384 = vadd.f32 %v2379, 1.0
    %v2385 = vadd.f32 %v2381, 1.0
    %v2386 = vrcp.pop %v2382
    %v2387 = vmul.f32 1.0, %v2386
    %v2388 = vrcp.pop %v2383
    %v2389 = vmul.f32 1.0, %v2388
    %v2390 = vrcp.pop %v2384
    %v2391 = vmul.f32 1.0, %v2390
    %v2392 = vrcp.pop %v2385
    %v2393 = vmul.f32 1.0, %v2392
    %v2394 = vxor.u32 %v2356, 2147483648
    %v2395 = vxor.u32 %v2357, 2147483648
    %v2396 = vxor.u32 %v2364, 2147483648
    %v2397 = vxor.u32 %v2365, 2147483648
    %v2398 = vmul.f32 %v2394, 1.442695
    %v2399 = vpow.pop %v2398
    %v2400 = vmul.f32 %v2395, 1.442695
    %v2401 = vpow.pop %v2400
    %v2402 = vmul.f32 %v2396, 1.442695
    %v2403 = vpow.pop %v2402
    %v2404 = vmul.f32 %v2397, 1.442695
    %v2405 = vpow.pop %v2404
    %v2406 = vadd.f32 %v2399, 1.0
    %v2407 = vadd.f32 %v2401, 1.0
    %v2408 = vadd.f32 %v2403, 1.0
    %v2409 = vadd.f32 %v2405, 1.0
    %v2410 = vrcp.pop %v2406
    %v2411 = vmul.f32 1.0, %v2410
    %v2412 = vrcp.pop %v2407
    %v2413 = vmul.f32 1.0, %v2412
    %v2414 = vrcp.pop %v2408
    %v2415 = vmul.f32 1.0, %v2414
    %v2416 = vrcp.pop %v2409
    %v2417 = vmul.f32 1.0, %v2416
    %v2418 = vtanh.pop %v2358
    %v2419 = vtanh.pop %v2359
    %v2420 = vtanh.pop %v2366
    %v2421 = vtanh.pop %v2367
    %v2422 = vxor.u32 %v2360, 2147483648
    %v2423 = vxor.u32 %v2361, 2147483648
    %v2424 = vxor.u32 %v2368, 2147483648
    %v2425 = vxor.u32 %v2369, 2147483648
    %v2426 = vmul.f32 %v2422, 1.442695
    %v2427 = vpow.pop %v2426
    %v2428 = vmul.f32 %v2423, 1.442695
    %v2429 = vpow.pop %v2428
    %v2430 = vmul.f32 %v2424, 1.442695
    %v2431 = vpow.pop %v2430
    %v2432 = vmul.f32 %v2425, 1.442695
    %v2433 = vpow.pop %v2432
    %v2434 = vadd.f32 %v2427, 1.0
    %v2435 = vadd.f32 %v2429, 1.0
    %v2436 = vadd.f32 %v2431, 1.0
    %v2437 = vadd.f32 %v2433, 1.0
    %v2438 = vrcp.pop %v2434
    %v2439 = vmul.f32 1.0, %v2438
    %v2440 = vrcp.pop %v2435
    %v2441 = vmul.f32 1.0, %v2440
    %v2442 = vrcp.pop %v2436
    %v2443 = vmul.f32 1.0, %v2442
    %v2444 = vrcp.pop %v2437
    %v2445 = vmul.f32 1.0, %v2444
    %v2446 = vmul.f32 %v2411, 0.0
    %v2447 = vmul.f32 %v2413, 0.0
    %v2448 = vmul.f32 %v2415, 0.0
    %v2449 = vmul.f32 %v2417, 0.0
    %v2450 = vmul.f32 %v2387, %v2418
    %v2451 = vmul.f32 %v2389, %v2419
    %v2452 = vmul.f32 %v2391, %v2420
    %v2453 = vmul.f32 %v2393, %v2421
    %v2454 = vadd.f32 %v2446, %v2450
    %v2455 = vadd.f32 %v2447, %v2451
    %v2456 = vadd.f32 %v2448, %v2452
    %v2457 = vadd.f32 %v2449, %v2453
    %v2458 = vtanh.pop %v2454
    %v2459 = vtanh.pop %v2455
    %v2460 = vtanh.pop %v2456
    %v2461 = vtanh.pop %v2457
    %v2462 = vmul.f32 %v2439, %v2458
    %v2463 = vmul.f32 %v2441, %v2459
    %v2464 = vmul.f32 %v2443, %v2460
    %v2465 = vmul.f32 %v2445, %v2461
    %v2466 = vpack.c.bf16 %v2464, %v2462
    %v2467 = vpack.c.bf16 %v2465, %v2463
    %v2468 = vld [vmem:[#allocation2 + $0x40] sm:$0xff]
    %v2469 = vld [vmem:[#allocation2 + $0x48] sm:$0xff]
    %v2470 = vld [vmem:[#allocation2 + $0x50] sm:$0xff]
    %v2471 = vld [vmem:[#allocation2 + $0x58] sm:$0xff]
    %v2472 = vld [vmem:[#allocation2 + $0x60] sm:$0xff]
    %v2473 = vld [vmem:[#allocation2 + $0x68] sm:$0xff]
    %v2474 = vld [vmem:[#allocation2 + $0x70] sm:$0xff]
    %v2475 = vld [vmem:[#allocation2 + $0x78] sm:$0xff]
    %v2476 = vunpack.c.l.bf16 %v2468
    %v2477 = vunpack.c.l.bf16 %v2469
    %v2478 = vunpack.c.l.bf16 %v2470
    %v2479 = vunpack.c.l.bf16 %v2471
    %v2480 = vunpack.c.l.bf16 %v2472
    %v2481 = vunpack.c.l.bf16 %v2473
    %v2482 = vunpack.c.l.bf16 %v2474
    %v2483 = vunpack.c.l.bf16 %v2475
    %v2484 = vunpack.c.h.bf16 %v2468
    %v2485 = vunpack.c.h.bf16 %v2469
    %v2486 = vunpack.c.h.bf16 %v2470
    %v2487 = vunpack.c.h.bf16 %v2471
    %v2488 = vunpack.c.h.bf16 %v2472
    %v2489 = vunpack.c.h.bf16 %v2473
    %v2490 = vunpack.c.h.bf16 %v2474
    %v2491 = vunpack.c.h.bf16 %v2475
    %2492 = vmatprep.subr.bf16.mxu0 %v1927
    %2493 = vmatpush1.bf16.msra.mxu0 %v1926
    %2494 = vmatprep.subr.bf16.mxu0 %v1935
    %2495 = vmatpush1.bf16.msra.mxu0 %v1934
    %2496 = vmatprep.subr.bf16.mxu0 %v1943
    %2497 = vmatpush1.bf16.msra.mxu0 %v1942
    %2498 = vmatprep.subr.bf16.mxu0 %v1951
    %2499 = vmatpush1.bf16.msra.mxu0 %v1950
    %2500 = vmatprep.subr.bf16.mxu0 %v1959
    %2501 = vmatpush1.bf16.msra.mxu0 %v1958
    %2502 = vmatprep.subr.bf16.mxu0 %v1967
    %2503 = vmatpush1.bf16.msra.mxu0 %v1966
    %2504 = vmatprep.subr.bf16.mxu0 %v1975
    %2505 = vmatpush1.bf16.msra.mxu0 %v1974
    %2506 = vmatprep.subr.bf16.mxu0 %v1983
    %2507 = vmatpush1.bf16.msra.mxu0 %v1982
    %2508 = vmatprep.subr.bf16.mxu0 %v1991
    %2509 = vmatpush1.bf16.msra.mxu0 %v1990
    %2510 = vmatprep.subr.bf16.mxu0 %v1999
    %2511 = vmatpush1.bf16.msra.mxu0 %v1998
    %2512 = vmatprep.subr.bf16.mxu0 %v2007
    %2513 = vmatpush1.bf16.msra.mxu0 %v2006
    %2514 = vmatprep.subr.bf16.mxu0 %v2015
    %2515 = vmatpush1.bf16.msra.mxu0 %v2014
    %2516 = vmatprep.subr.bf16.mxu0 %v2023
    %2517 = vmatpush1.bf16.msra.mxu0 %v2022
    %2518 = vmatprep.subr.bf16.mxu0 %v2031
    %2519 = vmatpush1.bf16.msra.mxu0 %v2030
    %2520 = vmatprep.subr.bf16.mxu0 %v2039
    %2521 = vmatpush1.bf16.msra.mxu0 %v2038
    %2522 = vmatprep.subr.bf16.mxu0 %v2047
    %2523 = vmatpush1.bf16.msra.mxu0 %v2046
    %2524 = vmatprep.mubr.bf16.mxu0 %v2467
    %2525 = vmatmul.mubr.bf16.gmra.mrb[0].mxu0 %v2466
    %v2526 = vpop.f32.mrb[0].mxu0
    %v2527 = vadd.f32 0.0, %v2526
    %v2528 = vpop.f32.mrb[0].mxu0
    %v2529 = vadd.f32 0.0, %v2528
    %v2530 = vpop.f32.mrb[0].mxu0
    %v2531 = vadd.f32 0.0, %v2530
    %v2532 = vpop.f32.mrb[0].mxu0
    %v2533 = vadd.f32 0.0, %v2532
    %2534 = vdwg.mxu0
    %2535 = vmatprep.subr.bf16.mxu0 %v1929
    %2536 = vmatpush1.bf16.msra.mxu0 %v1928
    %2537 = vmatprep.subr.bf16.mxu0 %v1937
    %2538 = vmatpush1.bf16.msra.mxu0 %v1936
    %2539 = vmatprep.subr.bf16.mxu0 %v1945
    %2540 = vmatpush1.bf16.msra.mxu0 %v1944
    %2541 = vmatprep.subr.bf16.mxu0 %v1953
    %2542 = vmatpush1.bf16.msra.mxu0 %v1952
    %2543 = vmatprep.subr.bf16.mxu0 %v1961
    %2544 = vmatpush1.bf16.msra.mxu0 %v1960
    %2545 = vmatprep.subr.bf16.mxu0 %v1969
    %2546 = vmatpush1.bf16.msra.mxu0 %v1968
    %2547 = vmatprep.subr.bf16.mxu0 %v1977
    %2548 = vmatpush1.bf16.msra.mxu0 %v1976
    %2549 = vmatprep.subr.bf16.mxu0 %v1985
    %2550 = vmatpush1.bf16.msra.mxu0 %v1984
    %2551 = vmatprep.subr.bf16.mxu0 %v1993
    %2552 = vmatpush1.bf16.msra.mxu0 %v1992
    %2553 = vmatprep.subr.bf16.mxu0 %v2001
    %2554 = vmatpush1.bf16.msra.mxu0 %v2000
    %2555 = vmatprep.subr.bf16.mxu0 %v2009
    %2556 = vmatpush1.bf16.msra.mxu0 %v2008
    %2557 = vmatprep.subr.bf16.mxu0 %v2017
    %2558 = vmatpush1.bf16.msra.mxu0 %v2016
    %2559 = vmatprep.subr.bf16.mxu0 %v2025
    %2560 = vmatpush1.bf16.msra.mxu0 %v2024
    %2561 = vmatprep.subr.bf16.mxu0 %v2033
    %2562 = vmatpush1.bf16.msra.mxu0 %v2032
    %2563 = vmatprep.subr.bf16.mxu0 %v2041
    %2564 = vmatpush1.bf16.msra.mxu0 %v2040
    %2565 = vmatprep.subr.bf16.mxu0 %v2049
    %2566 = vmatpush1.bf16.msra.mxu0 %v2048
    %2567 = vmatprep.mubr.bf16.mxu0 %v2467
    %2568 = vmatmul.mubr.bf16.gmra.mrb[0].mxu0 %v2466
    %v2569 = vpop.f32.mrb[0].mxu0
    %v2570 = vadd.f32 0.0, %v2569
    %v2571 = vpop.f32.mrb[0].mxu0
    %v2572 = vadd.f32 0.0, %v2571
    %v2573 = vpop.f32.mrb[0].mxu0
    %v2574 = vadd.f32 0.0, %v2573
    %v2575 = vpop.f32.mrb[0].mxu0
    %v2576 = vadd.f32 0.0, %v2575
    %2577 = vdwg.mxu0
    %2578 = vmatprep.subr.bf16.mxu0 %v1931
    %2579 = vmatpush1.bf16.msra.mxu0 %v1930
    %2580 = vmatprep.subr.bf16.mxu0 %v1939
    %2581 = vmatpush1.bf16.msra.mxu0 %v1938
    %2582 = vmatprep.subr.bf16.mxu0 %v1947
    %2583 = vmatpush1.bf16.msra.mxu0 %v1946
    %2584 = vmatprep.subr.bf16.mxu0 %v1955
    %2585 = vmatpush1.bf16.msra.mxu0 %v1954
    %2586 = vmatprep.subr.bf16.mxu0 %v1963
    %2587 = vmatpush1.bf16.msra.mxu0 %v1962
    %2588 = vmatprep.subr.bf16.mxu0 %v1971
    %2589 = vmatpush1.bf16.msra.mxu0 %v1970
    %2590 = vmatprep.subr.bf16.mxu0 %v1979
    %2591 = vmatpush1.bf16.msra.mxu0 %v1978
    %2592 = vmatprep.subr.bf16.mxu0 %v1987
    %2593 = vmatpush1.bf16.msra.mxu0 %v1986
    %2594 = vmatprep.subr.bf16.mxu0 %v1995
    %2595 = vmatpush1.bf16.msra.mxu0 %v1994
    %2596 = vmatprep.subr.bf16.mxu0 %v2003
    %2597 = vmatpush1.bf16.msra.mxu0 %v2002
    %2598 = vmatprep.subr.bf16.mxu0 %v2011
    %2599 = vmatpush1.bf16.msra.mxu0 %v2010
    %2600 = vmatprep.subr.bf16.mxu0 %v2019
    %2601 = vmatpush1.bf16.msra.mxu0 %v2018
    %2602 = vmatprep.subr.bf16.mxu0 %v2027
    %2603 = vmatpush1.bf16.msra.mxu0 %v2026
    %2604 = vmatprep.subr.bf16.mxu0 %v2035
    %2605 = vmatpush1.bf16.msra.mxu0 %v2034
    %2606 = vmatprep.subr.bf16.mxu0 %v2043
    %2607 = vmatpush1.bf16.msra.mxu0 %v2042
    %2608 = vmatprep.subr.bf16.mxu0 %v2051
    %2609 = vmatpush1.bf16.msra.mxu0 %v2050
    %2610 = vmatprep.mubr.bf16.mxu0 %v2467
    %2611 = vmatmul.mubr.bf16.gmra.mrb[0].mxu0 %v2466
    %v2612 = vpop.f32.mrb[0].mxu0
    %v2613 = vadd.f32 0.0, %v2612
    %v2614 = vpop.f32.mrb[0].mxu0
    %v2615 = vadd.f32 0.0, %v2614
    %v2616 = vpop.f32.mrb[0].mxu0
    %v2617 = vadd.f32 0.0, %v2616
    %v2618 = vpop.f32.mrb[0].mxu0
    %v2619 = vadd.f32 0.0, %v2618
    %2620 = vdwg.mxu0
    %2621 = vmatprep.subr.bf16.mxu0 %v1933
    %2622 = vmatpush1.bf16.msra.mxu0 %v1932
    %2623 = vmatprep.subr.bf16.mxu0 %v1941
    %2624 = vmatpush1.bf16.msra.mxu0 %v1940
    %2625 = vmatprep.subr.bf16.mxu0 %v1949
    %2626 = vmatpush1.bf16.msra.mxu0 %v1948
    %2627 = vmatprep.subr.bf16.mxu0 %v1957
    %2628 = vmatpush1.bf16.msra.mxu0 %v1956
    %2629 = vmatprep.subr.bf16.mxu0 %v1965
    %2630 = vmatpush1.bf16.msra.mxu0 %v1964
    %2631 = vmatprep.subr.bf16.mxu0 %v1973
    %2632 = vmatpush1.bf16.msra.mxu0 %v1972
    %2633 = vmatprep.subr.bf16.mxu0 %v1981
    %2634 = vmatpush1.bf16.msra.mxu0 %v1980
    %2635 = vmatprep.subr.bf16.mxu0 %v1989
    %2636 = vmatpush1.bf16.msra.mxu0 %v1988
    %2637 = vmatprep.subr.bf16.mxu0 %v1997
    %2638 = vmatpush1.bf16.msra.mxu0 %v1996
    %2639 = vmatprep.subr.bf16.mxu0 %v2005
    %2640 = vmatpush1.bf16.msra.mxu0 %v2004
    %2641 = vmatprep.subr.bf16.mxu0 %v2013
    %2642 = vmatpush1.bf16.msra.mxu0 %v2012
    %2643 = vmatprep.subr.bf16.mxu0 %v2021
    %2644 = vmatpush1.bf16.msra.mxu0 %v2020
    %2645 = vmatprep.subr.bf16.mxu0 %v2029
    %2646 = vmatpush1.bf16.msra.mxu0 %v2028
    %2647 = vmatprep.subr.bf16.mxu0 %v2037
    %2648 = vmatpush1.bf16.msra.mxu0 %v2036
    %2649 = vmatprep.subr.bf16.mxu0 %v2045
    %2650 = vmatpush1.bf16.msra.mxu0 %v2044
    %2651 = vmatprep.subr.bf16.mxu0 %v2053
    %2652 = vmatpush1.bf16.msra.mxu0 %v2052
    %2653 = vmatprep.mubr.bf16.mxu0 %v2467
    %2654 = vmatmul.mubr.bf16.gmra.mrb[0].mxu0 %v2466
    %v2655 = vpop.f32.mrb[0].mxu0
    %v2656 = vadd.f32 0.0, %v2655
    %v2657 = vpop.f32.mrb[0].mxu0
    %v2658 = vadd.f32 0.0, %v2657
    %v2659 = vpop.f32.mrb[0].mxu0
    %v2660 = vadd.f32 0.0, %v2659
    %v2661 = vpop.f32.mrb[0].mxu0
    %v2662 = vadd.f32 0.0, %v2661
    %2663 = vdwg.mxu0
    %v2664 = vadd.f32 %v2476, %v2527
    %v2665 = vadd.f32 %v2477, %v2529
    %v2666 = vadd.f32 %v2478, %v2570
    %v2667 = vadd.f32 %v2479, %v2572
    %v2668 = vadd.f32 %v2480, %v2613
    %v2669 = vadd.f32 %v2481, %v2615
    %v2670 = vadd.f32 %v2482, %v2656
    %v2671 = vadd.f32 %v2483, %v2658
    %v2672 = vadd.f32 %v2484, %v2531
    %v2673 = vadd.f32 %v2485, %v2533
    %v2674 = vadd.f32 %v2486, %v2574
    %v2675 = vadd.f32 %v2487, %v2576
    %v2676 = vadd.f32 %v2488, %v2617
    %v2677 = vadd.f32 %v2489, %v2619
    %v2678 = vadd.f32 %v2490, %v2660
    %v2679 = vadd.f32 %v2491, %v2662
    %v2680 = vxor.u32 %v2664, 2147483648
    %v2681 = vxor.u32 %v2665, 2147483648
    %v2682 = vxor.u32 %v2672, 2147483648
    %v2683 = vxor.u32 %v2673, 2147483648
    %v2684 = vmul.f32 %v2680, 1.442695
    %v2685 = vpow.pop %v2684
    %v2686 = vmul.f32 %v2681, 1.442695
    %v2687 = vpow.pop %v2686
    %v2688 = vmul.f32 %v2682, 1.442695
    %v2689 = vpow.pop %v2688
    %v2690 = vmul.f32 %v2683, 1.442695
    %v2691 = vpow.pop %v2690
    %v2692 = vadd.f32 %v2685, 1.0
    %v2693 = vadd.f32 %v2687, 1.0
    %v2694 = vadd.f32 %v2689, 1.0
    %v2695 = vadd.f32 %v2691, 1.0
    %v2696 = vrcp.pop %v2692
    %v2697 = vmul.f32 1.0, %v2696
    %v2698 = vrcp.pop %v2693
    %v2699 = vmul.f32 1.0, %v2698
    %v2700 = vrcp.pop %v2694
    %v2701 = vmul.f32 1.0, %v2700
    %v2702 = vrcp.pop %v2695
    %v2703 = vmul.f32 1.0, %v2702
    %v2704 = vxor.u32 %v2666, 2147483648
    %v2705 = vxor.u32 %v2667, 2147483648
    %v2706 = vxor.u32 %v2674, 2147483648
    %v2707 = vxor.u32 %v2675, 2147483648
    %v2708 = vmul.f32 %v2704, 1.442695
    %v2709 = vpow.pop %v2708
    %v2710 = vmul.f32 %v2705, 1.442695
    %v2711 = vpow.pop %v2710
    %v2712 = vmul.f32 %v2706, 1.442695
    %v2713 = vpow.pop %v2712
    %v2714 = vmul.f32 %v2707, 1.442695
    %v2715 = vpow.pop %v2714
    %v2716 = vadd.f32 %v2709, 1.0
    %v2717 = vadd.f32 %v2711, 1.0
    %v2718 = vadd.f32 %v2713, 1.0
    %v2719 = vadd.f32 %v2715, 1.0
    %v2720 = vrcp.pop %v2716
    %v2721 = vmul.f32 1.0, %v2720
    %v2722 = vrcp.pop %v2717
    %v2723 = vmul.f32 1.0, %v2722
    %v2724 = vrcp.pop %v2718
    %v2725 = vmul.f32 1.0, %v2724
    %v2726 = vrcp.pop %v2719
    %v2727 = vmul.f32 1.0, %v2726
    %v2728 = vtanh.pop %v2668
    %v2729 = vtanh.pop %v2669
    %v2730 = vtanh.pop %v2676
    %v2731 = vtanh.pop %v2677
    %v2732 = vxor.u32 %v2670, 2147483648
    %v2733 = vxor.u32 %v2671, 2147483648
    %v2734 = vxor.u32 %v2678, 2147483648
    %v2735 = vxor.u32 %v2679, 2147483648
    %v2736 = vmul.f32 %v2732, 1.442695
    %v2737 = vpow.pop %v2736
    %v2738 = vmul.f32 %v2733, 1.442695
    %v2739 = vpow.pop %v2738
    %v2740 = vmul.f32 %v2734, 1.442695
    %v2741 = vpow.pop %v2740
    %v2742 = vmul.f32 %v2735, 1.442695
    %v2743 = vpow.pop %v2742
    %v2744 = vadd.f32 %v2737, 1.0
    %v2745 = vadd.f32 %v2739, 1.0
    %v2746 = vadd.f32 %v2741, 1.0
    %v2747 = vadd.f32 %v2743, 1.0
    %v2748 = vrcp.pop %v2744
    %v2749 = vmul.f32 1.0, %v2748
    %v2750 = vrcp.pop %v2745
    %v2751 = vmul.f32 1.0, %v2750
    %v2752 = vrcp.pop %v2746
    %v2753 = vmul.f32 1.0, %v2752
    %v2754 = vrcp.pop %v2747
    %v2755 = vmul.f32 1.0, %v2754
    %v2756 = vmul.f32 %v2721, %v2454
    %v2757 = vmul.f32 %v2723, %v2455
    %v2758 = vmul.f32 %v2725, %v2456
    %v2759 = vmul.f32 %v2727, %v2457
    %v2760 = vmul.f32 %v2697, %v2728
    %v2761 = vmul.f32 %v2699, %v2729
    %v2762 = vmul.f32 %v2701, %v2730
    %v2763 = vmul.f32 %v2703, %v2731
    %v2764 = vadd.f32 %v2756, %v2760
    %v2765 = vadd.f32 %v2757, %v2761
    %v2766 = vadd.f32 %v2758, %v2762
    %v2767 = vadd.f32 %v2759, %v2763
    %v2768 = vtanh.pop %v2764
    %v2769 = vtanh.pop %v2765
    %v2770 = vtanh.pop %v2766
    %v2771 = vtanh.pop %v2767
    %v2772 = vmul.f32 %v2749, %v2768
    %v2773 = vmul.f32 %v2751, %v2769
    %v2774 = vmul.f32 %v2753, %v2770
    %v2775 = vmul.f32 %v2755, %v2771
    %v2777 = vlaneseq
    %v2778 = vshrl.u32 %v2777, 7
    %v2779 = vsub.s32 0, %v2778
    %v2780 = vrot.slane %v1517, %v2779
    %v2781 = vlaneseq
    %v2782 = vshrl.u32 %v2781, 7
    %v2783 = vsub.s32 1, %v2782
    %v2784 = vrot.slane %v1517, %v2783
    %v2785 = vlaneseq
    %v2786 = vshrl.u32 %v2785, 7
    %v2787 = vsub.s32 2, %v2786
    %v2788 = vrot.slane %v1517, %v2787
    %v2789 = vlaneseq
    %v2790 = vshrl.u32 %v2789, 7
    %v2791 = vsub.s32 3, %v2790
    %v2792 = vrot.slane %v1517, %v2791
    %v2793 = vlaneseq
    %v2794 = vshrl.u32 %v2793, 7
    %v2795 = vsub.s32 4, %v2794
    %v2796 = vrot.slane %v1517, %v2795
    %v2797 = vlaneseq
    %v2798 = vshrl.u32 %v2797, 7
    %v2799 = vsub.s32 5, %v2798
    %v2800 = vrot.slane %v1517, %v2799
    %v2801 = vlaneseq
    %v2802 = vshrl.u32 %v2801, 7
    %v2803 = vsub.s32 6, %v2802
    %v2804 = vrot.slane %v1517, %v2803
    %v2805 = vlaneseq
    %v2806 = vshrl.u32 %v2805, 7
    %v2807 = vsub.s32 7, %v2806
    %v2808 = vrot.slane %v1517, %v2807
    %v3073 = vunpack.c.l.b16 %v1261
    %v3074 = vunpack.c.h.b16 %v1261
    %v3075 = vunpack.c.l.b16 %v1262
    %v3076 = vunpack.c.h.b16 %v1262
    %v3077 = vunpack.c.l.b16 %v1263
    %v3078 = vunpack.c.h.b16 %v1263
    %v3079 = vunpack.c.l.b16 %v1264
    %v3080 = vunpack.c.h.b16 %v1264
    %v3081 = vunpack.c.l.b16 %v1265
    %v3082 = vunpack.c.h.b16 %v1265
    %v3083 = vunpack.c.l.b16 %v1266
    %v3084 = vunpack.c.h.b16 %v1266
    %v3085 = vunpack.c.l.b16 %v1267
    %v3086 = vunpack.c.h.b16 %v1267
    %v3087 = vunpack.c.l.b16 %v1268
    %v3088 = vunpack.c.h.b16 %v1268
    %v3089 = vunpack.c.l.b16 %v1269
    %v3090 = vunpack.c.h.b16 %v1269
    %v3091 = vunpack.c.l.b16 %v1270
    %v3092 = vunpack.c.h.b16 %v1270
    %v3093 = vunpack.c.l.b16 %v1271
    %v3094 = vunpack.c.h.b16 %v1271
    %v3095 = vunpack.c.l.b16 %v1272
    %v3096 = vunpack.c.h.b16 %v1272
    %v3097 = vunpack.c.l.b16 %v1273
    %v3098 = vunpack.c.h.b16 %v1273
    %v3099 = vunpack.c.l.b16 %v1274
    %v3100 = vunpack.c.h.b16 %v1274
    %v3101 = vunpack.c.l.b16 %v1275
    %v3102 = vunpack.c.h.b16 %v1275
    %v3103 = vunpack.c.l.b16 %v1276
    %v3104 = vunpack.c.h.b16 %v1276
    %v3105 = vunpack.c.l.b16 %v1277
    %v3106 = vunpack.c.h.b16 %v1277
    %v3107 = vunpack.c.l.b16 %v1278
    %v3108 = vunpack.c.h.b16 %v1278
    %v3109 = vunpack.c.l.b16 %v1279
    %v3110 = vunpack.c.h.b16 %v1279
    %v3111 = vunpack.c.l.b16 %v1280
    %v3112 = vunpack.c.h.b16 %v1280
    %v3113 = vunpack.c.l.b16 %v1281
    %v3114 = vunpack.c.h.b16 %v1281
    %v3115 = vunpack.c.l.b16 %v1282
    %v3116 = vunpack.c.h.b16 %v1282
    %v3117 = vunpack.c.l.b16 %v1283
    %v3118 = vunpack.c.h.b16 %v1283
    %v3119 = vunpack.c.l.b16 %v1284
    %v3120 = vunpack.c.h.b16 %v1284
    %v3121 = vunpack.c.l.b16 %v1285
    %v3122 = vunpack.c.h.b16 %v1285
    %v3123 = vunpack.c.l.b16 %v1286
    %v3124 = vunpack.c.h.b16 %v1286
    %v3125 = vunpack.c.l.b16 %v1287
    %v3126 = vunpack.c.h.b16 %v1287
    %v3127 = vunpack.c.l.b16 %v1288
    %v3128 = vunpack.c.h.b16 %v1288
    %v3129 = vunpack.c.l.b16 %v1289
    %v3130 = vunpack.c.h.b16 %v1289
    %v3131 = vunpack.c.l.b16 %v1290
    %v3132 = vunpack.c.h.b16 %v1290
    %v3133 = vunpack.c.l.b16 %v1291
    %v3134 = vunpack.c.h.b16 %v1291
    %v3135 = vunpack.c.l.b16 %v1292
    %v3136 = vunpack.c.h.b16 %v1292
    %v3137 = vunpack.c.l.b16 %v1293
    %v3138 = vunpack.c.h.b16 %v1293
    %v3139 = vunpack.c.l.b16 %v1294
    %v3140 = vunpack.c.h.b16 %v1294
    %v3141 = vunpack.c.l.b16 %v1295
    %v3142 = vunpack.c.h.b16 %v1295
    %v3143 = vunpack.c.l.b16 %v1296
    %v3144 = vunpack.c.h.b16 %v1296
    %v3145 = vunpack.c.l.b16 %v1297
    %v3146 = vunpack.c.h.b16 %v1297
    %v3147 = vunpack.c.l.b16 %v1298
    %v3148 = vunpack.c.h.b16 %v1298
    %v3149 = vunpack.c.l.b16 %v1299
    %v3150 = vunpack.c.h.b16 %v1299
    %v3151 = vunpack.c.l.b16 %v1300
    %v3152 = vunpack.c.h.b16 %v1300
    %v3153 = vunpack.c.l.b16 %v1301
    %v3154 = vunpack.c.h.b16 %v1301
    %v3155 = vunpack.c.l.b16 %v1302
    %v3156 = vunpack.c.h.b16 %v1302
    %v3157 = vunpack.c.l.b16 %v1303
    %v3158 = vunpack.c.h.b16 %v1303
    %v3159 = vunpack.c.l.b16 %v1304
    %v3160 = vunpack.c.h.b16 %v1304
    %v3161 = vunpack.c.l.b16 %v1305
    %v3162 = vunpack.c.h.b16 %v1305
    %v3163 = vunpack.c.l.b16 %v1306
    %v3164 = vunpack.c.h.b16 %v1306
    %v3165 = vunpack.c.l.b16 %v1307
    %v3166 = vunpack.c.h.b16 %v1307
    %v3167 = vunpack.c.l.b16 %v1308
    %v3168 = vunpack.c.h.b16 %v1308
    %v3169 = vunpack.c.l.b16 %v1309
    %v3170 = vunpack.c.h.b16 %v1309
    %v3171 = vunpack.c.l.b16 %v1310
    %v3172 = vunpack.c.h.b16 %v1310
    %v3173 = vunpack.c.l.b16 %v1311
    %v3174 = vunpack.c.h.b16 %v1311
    %v3175 = vunpack.c.l.b16 %v1312
    %v3176 = vunpack.c.h.b16 %v1312
    %v3177 = vunpack.c.l.b16 %v1313
    %v3178 = vunpack.c.h.b16 %v1313
    %v3179 = vunpack.c.l.b16 %v1314
    %v3180 = vunpack.c.h.b16 %v1314
    %v3181 = vunpack.c.l.b16 %v1315
    %v3182 = vunpack.c.h.b16 %v1315
    %v3183 = vunpack.c.l.b16 %v1316
    %v3184 = vunpack.c.h.b16 %v1316
    %v3185 = vunpack.c.l.b16 %v1317
    %v3186 = vunpack.c.h.b16 %v1317
    %v3187 = vunpack.c.l.b16 %v1318
    %v3188 = vunpack.c.h.b16 %v1318
    %v3189 = vunpack.c.l.b16 %v1319
    %v3190 = vunpack.c.h.b16 %v1319
    %v3191 = vunpack.c.l.b16 %v1320
    %v3192 = vunpack.c.h.b16 %v1320
    %v3193 = vunpack.c.l.b16 %v1321
    %v3194 = vunpack.c.h.b16 %v1321
    %v3195 = vunpack.c.l.b16 %v1322
    %v3196 = vunpack.c.h.b16 %v1322
    %v3197 = vunpack.c.l.b16 %v1323
    %v3198 = vunpack.c.h.b16 %v1323
    %v3199 = vunpack.c.l.b16 %v1324
    %v3200 = vunpack.c.h.b16 %v1324
    %v3201 = vunpack.c.l.b16 %v1325
    %v3202 = vunpack.c.h.b16 %v1325
    %v3203 = vunpack.c.l.b16 %v1326
    %v3204 = vunpack.c.h.b16 %v1326
    %v3205 = vunpack.c.l.b16 %v1327
    %v3206 = vunpack.c.h.b16 %v1327
    %v3207 = vunpack.c.l.b16 %v1328
    %v3208 = vunpack.c.h.b16 %v1328
    %v3209 = vunpack.c.l.b16 %v1329
    %v3210 = vunpack.c.h.b16 %v1329
    %v3211 = vunpack.c.l.b16 %v1330
    %v3212 = vunpack.c.h.b16 %v1330
    %v3213 = vunpack.c.l.b16 %v1331
    %v3214 = vunpack.c.h.b16 %v1331
    %v3215 = vunpack.c.l.b16 %v1332
    %v3216 = vunpack.c.h.b16 %v1332
    %v3217 = vunpack.c.l.b16 %v1333
    %v3218 = vunpack.c.h.b16 %v1333
    %v3219 = vunpack.c.l.b16 %v1334
    %v3220 = vunpack.c.h.b16 %v1334
    %v3221 = vunpack.c.l.b16 %v1335
    %v3222 = vunpack.c.h.b16 %v1335
    %v3223 = vunpack.c.l.b16 %v1336
    %v3224 = vunpack.c.h.b16 %v1336
    %v3225 = vunpack.c.l.b16 %v1337
    %v3226 = vunpack.c.h.b16 %v1337
    %v3227 = vunpack.c.l.b16 %v1338
    %v3228 = vunpack.c.h.b16 %v1338
    %v3229 = vunpack.c.l.b16 %v1339
    %v3230 = vunpack.c.h.b16 %v1339
    %v3231 = vunpack.c.l.b16 %v1340
    %v3232 = vunpack.c.h.b16 %v1340
    %v3233 = vunpack.c.l.b16 %v1341
    %v3234 = vunpack.c.h.b16 %v1341
    %v3235 = vunpack.c.l.b16 %v1342
    %v3236 = vunpack.c.h.b16 %v1342
    %v3237 = vunpack.c.l.b16 %v1343
    %v3238 = vunpack.c.h.b16 %v1343
    %v3239 = vunpack.c.l.b16 %v1344
    %v3240 = vunpack.c.h.b16 %v1344
    %v3241 = vunpack.c.l.b16 %v1345
    %v3242 = vunpack.c.h.b16 %v1345
    %v3243 = vunpack.c.l.b16 %v1346
    %v3244 = vunpack.c.h.b16 %v1346
    %v3245 = vunpack.c.l.b16 %v1347
    %v3246 = vunpack.c.h.b16 %v1347
    %v3247 = vunpack.c.l.b16 %v1348
    %v3248 = vunpack.c.h.b16 %v1348
    %v3249 = vunpack.c.l.b16 %v1349
    %v3250 = vunpack.c.h.b16 %v1349
    %v3251 = vunpack.c.l.b16 %v1350
    %v3252 = vunpack.c.h.b16 %v1350
    %v3253 = vunpack.c.l.b16 %v1351
    %v3254 = vunpack.c.h.b16 %v1351
    %v3255 = vunpack.c.l.b16 %v1352
    %v3256 = vunpack.c.h.b16 %v1352
    %v3257 = vunpack.c.l.b16 %v1353
    %v3258 = vunpack.c.h.b16 %v1353
    %v3259 = vunpack.c.l.b16 %v1354
    %v3260 = vunpack.c.h.b16 %v1354
    %v3261 = vunpack.c.l.b16 %v1355
    %v3262 = vunpack.c.h.b16 %v1355
    %v3263 = vunpack.c.l.b16 %v1356
    %v3264 = vunpack.c.h.b16 %v1356
    %v3265 = vunpack.c.l.b16 %v1357
    %v3266 = vunpack.c.h.b16 %v1357
    %v3267 = vunpack.c.l.b16 %v1358
    %v3268 = vunpack.c.h.b16 %v1358
    %v3269 = vunpack.c.l.b16 %v1359
    %v3270 = vunpack.c.h.b16 %v1359
    %v3271 = vunpack.c.l.b16 %v1360
    %v3272 = vunpack.c.h.b16 %v1360
    %v3273 = vunpack.c.l.b16 %v1361
    %v3274 = vunpack.c.h.b16 %v1361
    %v3275 = vunpack.c.l.b16 %v1362
    %v3276 = vunpack.c.h.b16 %v1362
    %v3277 = vunpack.c.l.b16 %v1363
    %v3278 = vunpack.c.h.b16 %v1363
    %v3279 = vunpack.c.l.b16 %v1364
    %v3280 = vunpack.c.h.b16 %v1364
    %v3281 = vunpack.c.l.b16 %v1365
    %v3282 = vunpack.c.h.b16 %v1365
    %v3283 = vunpack.c.l.b16 %v1366
    %v3284 = vunpack.c.h.b16 %v1366
    %v3285 = vunpack.c.l.b16 %v1367
    %v3286 = vunpack.c.h.b16 %v1367
    %v3287 = vunpack.c.l.b16 %v1368
    %v3288 = vunpack.c.h.b16 %v1368
    %v3289 = vunpack.c.l.b16 %v1369
    %v3290 = vunpack.c.h.b16 %v1369
    %v3291 = vunpack.c.l.b16 %v1370
    %v3292 = vunpack.c.h.b16 %v1370
    %v3293 = vunpack.c.l.b16 %v1371
    %v3294 = vunpack.c.h.b16 %v1371
    %v3295 = vunpack.c.l.b16 %v1372
    %v3296 = vunpack.c.h.b16 %v1372
    %v3297 = vunpack.c.l.b16 %v1373
    %v3298 = vunpack.c.h.b16 %v1373
    %v3299 = vunpack.c.l.b16 %v1374
    %v3300 = vunpack.c.h.b16 %v1374
    %v3301 = vunpack.c.l.b16 %v1375
    %v3302 = vunpack.c.h.b16 %v1375
    %v3303 = vunpack.c.l.b16 %v1376
    %v3304 = vunpack.c.h.b16 %v1376
    %v3305 = vunpack.c.l.b16 %v1377
    %v3306 = vunpack.c.h.b16 %v1377
    %v3307 = vunpack.c.l.b16 %v1378
    %v3308 = vunpack.c.h.b16 %v1378
    %v3309 = vunpack.c.l.b16 %v1379
    %v3310 = vunpack.c.h.b16 %v1379
    %v3311 = vunpack.c.l.b16 %v1380
    %v3312 = vunpack.c.h.b16 %v1380
    %v3313 = vunpack.c.l.b16 %v1381
    %v3314 = vunpack.c.h.b16 %v1381
    %v3315 = vunpack.c.l.b16 %v1382
    %v3316 = vunpack.c.h.b16 %v1382
    %v3317 = vunpack.c.l.b16 %v1383
    %v3318 = vunpack.c.h.b16 %v1383
    %v3319 = vunpack.c.l.b16 %v1384
    %v3320 = vunpack.c.h.b16 %v1384
    %v3321 = vunpack.c.l.b16 %v1385
    %v3322 = vunpack.c.h.b16 %v1385
    %v3323 = vunpack.c.l.b16 %v1386
    %v3324 = vunpack.c.h.b16 %v1386
    %v3325 = vunpack.c.l.b16 %v1387
    %v3326 = vunpack.c.h.b16 %v1387
    %v3327 = vunpack.c.l.b16 %v1388
    %v3328 = vunpack.c.h.b16 %v1388
    %v3329 = vunpack.c.l.b16 %v1389
    %v3330 = vunpack.c.h.b16 %v1389
    %v3331 = vunpack.c.l.b16 %v1390
    %v3332 = vunpack.c.h.b16 %v1390
    %v3333 = vunpack.c.l.b16 %v1391
    %v3334 = vunpack.c.h.b16 %v1391
    %v3335 = vunpack.c.l.b16 %v1392
    %v3336 = vunpack.c.h.b16 %v1392
    %v3337 = vunpack.c.l.b16 %v1393
    %v3338 = vunpack.c.h.b16 %v1393
    %v3339 = vunpack.c.l.b16 %v1394
    %v3340 = vunpack.c.h.b16 %v1394
    %v3341 = vunpack.c.l.b16 %v1395
    %v3342 = vunpack.c.h.b16 %v1395
    %v3343 = vunpack.c.l.b16 %v1396
    %v3344 = vunpack.c.h.b16 %v1396
    %v3345 = vunpack.c.l.b16 %v1397
    %v3346 = vunpack.c.h.b16 %v1397
    %v3347 = vunpack.c.l.b16 %v1398
    %v3348 = vunpack.c.h.b16 %v1398
    %v3349 = vunpack.c.l.b16 %v1399
    %v3350 = vunpack.c.h.b16 %v1399
    %v3351 = vunpack.c.l.b16 %v1400
    %v3352 = vunpack.c.h.b16 %v1400
    %v3353 = vunpack.c.l.b16 %v1401
    %v3354 = vunpack.c.h.b16 %v1401
    %v3355 = vunpack.c.l.b16 %v1402
    %v3356 = vunpack.c.h.b16 %v1402
    %v3357 = vunpack.c.l.b16 %v1403
    %v3358 = vunpack.c.h.b16 %v1403
    %v3359 = vunpack.c.l.b16 %v1404
    %v3360 = vunpack.c.h.b16 %v1404
    %v3361 = vunpack.c.l.b16 %v1405
    %v3362 = vunpack.c.h.b16 %v1405
    %v3363 = vunpack.c.l.b16 %v1406
    %v3364 = vunpack.c.h.b16 %v1406
    %v3365 = vunpack.c.l.b16 %v1407
    %v3366 = vunpack.c.h.b16 %v1407
    %v3367 = vunpack.c.l.b16 %v1408
    %v3368 = vunpack.c.h.b16 %v1408
    %v3369 = vunpack.c.l.b16 %v1409
    %v3370 = vunpack.c.h.b16 %v1409
    %v3371 = vunpack.c.l.b16 %v1410
    %v3372 = vunpack.c.h.b16 %v1410
    %v3373 = vunpack.c.l.b16 %v1411
    %v3374 = vunpack.c.h.b16 %v1411
    %v3375 = vunpack.c.l.b16 %v1412
    %v3376 = vunpack.c.h.b16 %v1412
    %v3377 = vunpack.c.l.b16 %v1413
    %v3378 = vunpack.c.h.b16 %v1413
    %v3379 = vunpack.c.l.b16 %v1414
    %v3380 = vunpack.c.h.b16 %v1414
    %v3381 = vunpack.c.l.b16 %v1415
    %v3382 = vunpack.c.h.b16 %v1415
    %v3383 = vunpack.c.l.b16 %v1416
    %v3384 = vunpack.c.h.b16 %v1416
    %v3385 = vunpack.c.l.b16 %v1417
    %v3386 = vunpack.c.h.b16 %v1417
    %v3387 = vunpack.c.l.b16 %v1418
    %v3388 = vunpack.c.h.b16 %v1418
    %v3389 = vunpack.c.l.b16 %v1419
    %v3390 = vunpack.c.h.b16 %v1419
    %v3391 = vunpack.c.l.b16 %v1420
    %v3392 = vunpack.c.h.b16 %v1420
    %v3393 = vunpack.c.l.b16 %v1421
    %v3394 = vunpack.c.h.b16 %v1421
    %v3395 = vunpack.c.l.b16 %v1422
    %v3396 = vunpack.c.h.b16 %v1422
    %v3397 = vunpack.c.l.b16 %v1423
    %v3398 = vunpack.c.h.b16 %v1423
    %v3399 = vunpack.c.l.b16 %v1424
    %v3400 = vunpack.c.h.b16 %v1424
    %v3401 = vunpack.c.l.b16 %v1425
    %v3402 = vunpack.c.h.b16 %v1425
    %v3403 = vunpack.c.l.b16 %v1426
    %v3404 = vunpack.c.h.b16 %v1426
    %v3405 = vunpack.c.l.b16 %v1427
    %v3406 = vunpack.c.h.b16 %v1427
    %v3407 = vunpack.c.l.b16 %v1428
    %v3408 = vunpack.c.h.b16 %v1428
    %v3409 = vunpack.c.l.b16 %v1429
    %v3410 = vunpack.c.h.b16 %v1429
    %v3411 = vunpack.c.l.b16 %v1430
    %v3412 = vunpack.c.h.b16 %v1430
    %v3413 = vunpack.c.l.b16 %v1431
    %v3414 = vunpack.c.h.b16 %v1431
    %v3415 = vunpack.c.l.b16 %v1432
    %v3416 = vunpack.c.h.b16 %v1432
    %v3417 = vunpack.c.l.b16 %v1433
    %v3418 = vunpack.c.h.b16 %v1433
    %v3419 = vunpack.c.l.b16 %v1434
    %v3420 = vunpack.c.h.b16 %v1434
    %v3421 = vunpack.c.l.b16 %v1435
    %v3422 = vunpack.c.h.b16 %v1435
    %v3423 = vunpack.c.l.b16 %v1436
    %v3424 = vunpack.c.h.b16 %v1436
    %v3425 = vunpack.c.l.b16 %v1437
    %v3426 = vunpack.c.h.b16 %v1437
    %v3427 = vunpack.c.l.b16 %v1438
    %v3428 = vunpack.c.h.b16 %v1438
    %v3429 = vunpack.c.l.b16 %v1439
    %v3430 = vunpack.c.h.b16 %v1439
    %v3431 = vunpack.c.l.b16 %v1440
    %v3432 = vunpack.c.h.b16 %v1440
    %v3433 = vunpack.c.l.b16 %v1441
    %v3434 = vunpack.c.h.b16 %v1441
    %v3435 = vunpack.c.l.b16 %v1442
    %v3436 = vunpack.c.h.b16 %v1442
    %v3437 = vunpack.c.l.b16 %v1443
    %v3438 = vunpack.c.h.b16 %v1443
    %v3439 = vunpack.c.l.b16 %v1444
    %v3440 = vunpack.c.h.b16 %v1444
    %v3441 = vunpack.c.l.b16 %v1445
    %v3442 = vunpack.c.h.b16 %v1445
    %v3443 = vunpack.c.l.b16 %v1446
    %v3444 = vunpack.c.h.b16 %v1446
    %v3445 = vunpack.c.l.b16 %v1447
    %v3446 = vunpack.c.h.b16 %v1447
    %v3447 = vunpack.c.l.b16 %v1448
    %v3448 = vunpack.c.h.b16 %v1448
    %v3449 = vunpack.c.l.b16 %v1449
    %v3450 = vunpack.c.h.b16 %v1449
    %v3451 = vunpack.c.l.b16 %v1450
    %v3452 = vunpack.c.h.b16 %v1450
    %v3453 = vunpack.c.l.b16 %v1451
    %v3454 = vunpack.c.h.b16 %v1451
    %v3455 = vunpack.c.l.b16 %v1452
    %v3456 = vunpack.c.h.b16 %v1452
    %v3457 = vunpack.c.l.b16 %v1453
    %v3458 = vunpack.c.h.b16 %v1453
    %v3459 = vunpack.c.l.b16 %v1454
    %v3460 = vunpack.c.h.b16 %v1454
    %v3461 = vunpack.c.l.b16 %v1455
    %v3462 = vunpack.c.h.b16 %v1455
    %v3463 = vunpack.c.l.b16 %v1456
    %v3464 = vunpack.c.h.b16 %v1456
    %v3465 = vunpack.c.l.b16 %v1457
    %v3466 = vunpack.c.h.b16 %v1457
    %v3467 = vunpack.c.l.b16 %v1458
    %v3468 = vunpack.c.h.b16 %v1458
    %v3469 = vunpack.c.l.b16 %v1459
    %v3470 = vunpack.c.h.b16 %v1459
    %v3471 = vunpack.c.l.b16 %v1460
    %v3472 = vunpack.c.h.b16 %v1460
    %v3473 = vunpack.c.l.b16 %v1461
    %v3474 = vunpack.c.h.b16 %v1461
    %v3475 = vunpack.c.l.b16 %v1462
    %v3476 = vunpack.c.h.b16 %v1462
    %v3477 = vunpack.c.l.b16 %v1463
    %v3478 = vunpack.c.h.b16 %v1463
    %v3479 = vunpack.c.l.b16 %v1464
    %v3480 = vunpack.c.h.b16 %v1464
    %v3481 = vunpack.c.l.b16 %v1465
    %v3482 = vunpack.c.h.b16 %v1465
    %v3483 = vunpack.c.l.b16 %v1466
    %v3484 = vunpack.c.h.b16 %v1466
    %v3485 = vunpack.c.l.b16 %v1467
    %v3486 = vunpack.c.h.b16 %v1467
    %v3487 = vunpack.c.l.b16 %v1468
    %v3488 = vunpack.c.h.b16 %v1468
    %v3489 = vunpack.c.l.b16 %v1469
    %v3490 = vunpack.c.h.b16 %v1469
    %v3491 = vunpack.c.l.b16 %v1470
    %v3492 = vunpack.c.h.b16 %v1470
    %v3493 = vunpack.c.l.b16 %v1471
    %v3494 = vunpack.c.h.b16 %v1471
    %v3495 = vunpack.c.l.b16 %v1472
    %v3496 = vunpack.c.h.b16 %v1472
    %v3497 = vunpack.c.l.b16 %v1473
    %v3498 = vunpack.c.h.b16 %v1473
    %v3499 = vunpack.c.l.b16 %v1474
    %v3500 = vunpack.c.h.b16 %v1474
    %v3501 = vunpack.c.l.b16 %v1475
    %v3502 = vunpack.c.h.b16 %v1475
    %v3503 = vunpack.c.l.b16 %v1476
    %v3504 = vunpack.c.h.b16 %v1476
    %v3505 = vunpack.c.l.b16 %v1477
    %v3506 = vunpack.c.h.b16 %v1477
    %v3507 = vunpack.c.l.b16 %v1478
    %v3508 = vunpack.c.h.b16 %v1478
    %v3509 = vunpack.c.l.b16 %v1479
    %v3510 = vunpack.c.h.b16 %v1479
    %v3511 = vunpack.c.l.b16 %v1480
    %v3512 = vunpack.c.h.b16 %v1480
    %v3513 = vunpack.c.l.b16 %v1481
    %v3514 = vunpack.c.h.b16 %v1481
    %v3515 = vunpack.c.l.b16 %v1482
    %v3516 = vunpack.c.h.b16 %v1482
    %v3517 = vunpack.c.l.b16 %v1483
    %v3518 = vunpack.c.h.b16 %v1483
    %v3519 = vunpack.c.l.b16 %v1484
    %v3520 = vunpack.c.h.b16 %v1484
    %v3521 = vunpack.c.l.b16 %v1485
    %v3522 = vunpack.c.h.b16 %v1485
    %v3523 = vunpack.c.l.b16 %v1486
    %v3524 = vunpack.c.h.b16 %v1486
    %v3525 = vunpack.c.l.b16 %v1487
    %v3526 = vunpack.c.h.b16 %v1487
    %v3527 = vunpack.c.l.b16 %v1488
    %v3528 = vunpack.c.h.b16 %v1488
    %v3529 = vunpack.c.l.b16 %v1489
    %v3530 = vunpack.c.h.b16 %v1489
    %v3531 = vunpack.c.l.b16 %v1490
    %v3532 = vunpack.c.h.b16 %v1490
    %v3533 = vunpack.c.l.b16 %v1491
    %v3534 = vunpack.c.h.b16 %v1491
    %v3535 = vunpack.c.l.b16 %v1492
    %v3536 = vunpack.c.h.b16 %v1492
    %v3537 = vunpack.c.l.b16 %v1493
    %v3538 = vunpack.c.h.b16 %v1493
    %v3539 = vunpack.c.l.b16 %v1494
    %v3540 = vunpack.c.h.b16 %v1494
    %v3541 = vunpack.c.l.b16 %v1495
    %v3542 = vunpack.c.h.b16 %v1495
    %v3543 = vunpack.c.l.b16 %v1496
    %v3544 = vunpack.c.h.b16 %v1496
    %v3545 = vunpack.c.l.b16 %v1497
    %v3546 = vunpack.c.h.b16 %v1497
    %v3547 = vunpack.c.l.b16 %v1498
    %v3548 = vunpack.c.h.b16 %v1498
    %v3549 = vunpack.c.l.b16 %v1499
    %v3550 = vunpack.c.h.b16 %v1499
    %v3551 = vunpack.c.l.b16 %v1500
    %v3552 = vunpack.c.h.b16 %v1500
    %v3553 = vunpack.c.l.b16 %v1501
    %v3554 = vunpack.c.h.b16 %v1501
    %v3555 = vunpack.c.l.b16 %v1502
    %v3556 = vunpack.c.h.b16 %v1502
    %v3557 = vunpack.c.l.b16 %v1503
    %v3558 = vunpack.c.h.b16 %v1503
    %v3559 = vunpack.c.l.b16 %v1504
    %v3560 = vunpack.c.h.b16 %v1504
    %v3561 = vunpack.c.l.b16 %v1505
    %v3562 = vunpack.c.h.b16 %v1505
    %v3563 = vunpack.c.l.b16 %v1506
    %v3564 = vunpack.c.h.b16 %v1506
    %v3565 = vunpack.c.l.b16 %v1507
    %v3566 = vunpack.c.h.b16 %v1507
    %v3567 = vunpack.c.l.b16 %v1508
    %v3568 = vunpack.c.h.b16 %v1508
    %v3569 = vunpack.c.l.b16 %v1509
    %v3570 = vunpack.c.h.b16 %v1509
    %v3571 = vunpack.c.l.b16 %v1510
    %v3572 = vunpack.c.h.b16 %v1510
    %v3573 = vunpack.c.l.b16 %v1511
    %v3574 = vunpack.c.h.b16 %v1511
    %v3575 = vunpack.c.l.b16 %v1512
    %v3576 = vunpack.c.h.b16 %v1512
    %v3577 = vunpack.c.l.b16 %v1513
    %v3578 = vunpack.c.h.b16 %v1513
    %v3579 = vunpack.c.l.b16 %v1514
    %v3580 = vunpack.c.h.b16 %v1514
    %v3581 = vunpack.c.l.b16 %v1515
    %v3582 = vunpack.c.h.b16 %v1515
    %v3583 = vunpack.c.l.b16 %v1516
    %v3584 = vunpack.c.h.b16 %v1516
    %v3585 = vpack.c.b16 %v3081, %v3073
    %v3586 = vpack.c.b16 %v3082, %v3074
    %v3587 = vpack.c.b16 %v3083, %v3075
    %v3588 = vpack.c.b16 %v3084, %v3076
    %v3589 = vpack.c.b16 %v3085, %v3077
    %v3590 = vpack.c.b16 %v3086, %v3078
    %v3591 = vpack.c.b16 %v3087, %v3079
    %v3592 = vpack.c.b16 %v3088, %v3080
    %v3593 = vpack.c.b16 %v3097, %v3089
    %v3594 = vpack.c.b16 %v3098, %v3090
    %v3595 = vpack.c.b16 %v3099, %v3091
    %v3596 = vpack.c.b16 %v3100, %v3092
    %v3597 = vpack.c.b16 %v3101, %v3093
    %v3598 = vpack.c.b16 %v3102, %v3094
    %v3599 = vpack.c.b16 %v3103, %v3095
    %v3600 = vpack.c.b16 %v3104, %v3096
    %v3601 = vpack.c.b16 %v3113, %v3105
    %v3602 = vpack.c.b16 %v3114, %v3106
    %v3603 = vpack.c.b16 %v3115, %v3107
    %v3604 = vpack.c.b16 %v3116, %v3108
    %v3605 = vpack.c.b16 %v3117, %v3109
    %v3606 = vpack.c.b16 %v3118, %v3110
    %v3607 = vpack.c.b16 %v3119, %v3111
    %v3608 = vpack.c.b16 %v3120, %v3112
    %v3609 = vpack.c.b16 %v3129, %v3121
    %v3610 = vpack.c.b16 %v3130, %v3122
    %v3611 = vpack.c.b16 %v3131, %v3123
    %v3612 = vpack.c.b16 %v3132, %v3124
    %v3613 = vpack.c.b16 %v3133, %v3125
    %v3614 = vpack.c.b16 %v3134, %v3126
    %v3615 = vpack.c.b16 %v3135, %v3127
    %v3616 = vpack.c.b16 %v3136, %v3128
    %v3617 = vpack.c.b16 %v3145, %v3137
    %v3618 = vpack.c.b16 %v3146, %v3138
    %v3619 = vpack.c.b16 %v3147, %v3139
    %v3620 = vpack.c.b16 %v3148, %v3140
    %v3621 = vpack.c.b16 %v3149, %v3141
    %v3622 = vpack.c.b16 %v3150, %v3142
    %v3623 = vpack.c.b16 %v3151, %v3143
    %v3624 = vpack.c.b16 %v3152, %v3144
    %v3625 = vpack.c.b16 %v3161, %v3153
    %v3626 = vpack.c.b16 %v3162, %v3154
    %v3627 = vpack.c.b16 %v3163, %v3155
    %v3628 = vpack.c.b16 %v3164, %v3156
    %v3629 = vpack.c.b16 %v3165, %v3157
    %v3630 = vpack.c.b16 %v3166, %v3158
    %v3631 = vpack.c.b16 %v3167, %v3159
    %v3632 = vpack.c.b16 %v3168, %v3160
    %v3633 = vpack.c.b16 %v3177, %v3169
    %v3634 = vpack.c.b16 %v3178, %v3170
    %v3635 = vpack.c.b16 %v3179, %v3171
    %v3636 = vpack.c.b16 %v3180, %v3172
    %v3637 = vpack.c.b16 %v3181, %v3173
    %v3638 = vpack.c.b16 %v3182, %v3174
    %v3639 = vpack.c.b16 %v3183, %v3175
    %v3640 = vpack.c.b16 %v3184, %v3176
    %v3641 = vpack.c.b16 %v3193, %v3185
    %v3642 = vpack.c.b16 %v3194, %v3186
    %v3643 = vpack.c.b16 %v3195, %v3187
    %v3644 = vpack.c.b16 %v3196, %v3188
    %v3645 = vpack.c.b16 %v3197, %v3189
    %v3646 = vpack.c.b16 %v3198, %v3190
    %v3647 = vpack.c.b16 %v3199, %v3191
    %v3648 = vpack.c.b16 %v3200, %v3192
    %v3649 = vpack.c.b16 %v3209, %v3201
    %v3650 = vpack.c.b16 %v3210, %v3202
    %v3651 = vpack.c.b16 %v3211, %v3203
    %v3652 = vpack.c.b16 %v3212, %v3204
    %v3653 = vpack.c.b16 %v3213, %v3205
    %v3654 = vpack.c.b16 %v3214, %v3206
    %v3655 = vpack.c.b16 %v3215, %v3207
    %v3656 = vpack.c.b16 %v3216, %v3208
    %v3657 = vpack.c.b16 %v3225, %v3217
    %v3658 = vpack.c.b16 %v3226, %v3218
    %v3659 = vpack.c.b16 %v3227, %v3219
    %v3660 = vpack.c.b16 %v3228, %v3220
    %v3661 = vpack.c.b16 %v3229, %v3221
    %v3662 = vpack.c.b16 %v3230, %v3222
    %v3663 = vpack.c.b16 %v3231, %v3223
    %v3664 = vpack.c.b16 %v3232, %v3224
    %v3665 = vpack.c.b16 %v3241, %v3233
    %v3666 = vpack.c.b16 %v3242, %v3234
    %v3667 = vpack.c.b16 %v3243, %v3235
    %v3668 = vpack.c.b16 %v3244, %v3236
    %v3669 = vpack.c.b16 %v3245, %v3237
    %v3670 = vpack.c.b16 %v3246, %v3238
    %v3671 = vpack.c.b16 %v3247, %v3239
    %v3672 = vpack.c.b16 %v3248, %v3240
    %v3673 = vpack.c.b16 %v3257, %v3249
    %v3674 = vpack.c.b16 %v3258, %v3250
    %v3675 = vpack.c.b16 %v3259, %v3251
    %v3676 = vpack.c.b16 %v3260, %v3252
    %v3677 = vpack.c.b16 %v3261, %v3253
    %v3678 = vpack.c.b16 %v3262, %v3254
    %v3679 = vpack.c.b16 %v3263, %v3255
    %v3680 = vpack.c.b16 %v3264, %v3256
    %v3681 = vpack.c.b16 %v3273, %v3265
    %v3682 = vpack.c.b16 %v3274, %v3266
    %v3683 = vpack.c.b16 %v3275, %v3267
    %v3684 = vpack.c.b16 %v3276, %v3268
    %v3685 = vpack.c.b16 %v3277, %v3269
    %v3686 = vpack.c.b16 %v3278, %v3270
    %v3687 = vpack.c.b16 %v3279, %v3271
    %v3688 = vpack.c.b16 %v3280, %v3272
    %v3689 = vpack.c.b16 %v3289, %v3281
    %v3690 = vpack.c.b16 %v3290, %v3282
    %v3691 = vpack.c.b16 %v3291, %v3283
    %v3692 = vpack.c.b16 %v3292, %v3284
    %v3693 = vpack.c.b16 %v3293, %v3285
    %v3694 = vpack.c.b16 %v3294, %v3286
    %v3695 = vpack.c.b16 %v3295, %v3287
    %v3696 = vpack.c.b16 %v3296, %v3288
    %v3697 = vpack.c.b16 %v3305, %v3297
    %v3698 = vpack.c.b16 %v3306, %v3298
    %v3699 = vpack.c.b16 %v3307, %v3299
    %v3700 = vpack.c.b16 %v3308, %v3300
    %v3701 = vpack.c.b16 %v3309, %v3301
    %v3702 = vpack.c.b16 %v3310, %v3302
    %v3703 = vpack.c.b16 %v3311, %v3303
    %v3704 = vpack.c.b16 %v3312, %v3304
    %v3705 = vpack.c.b16 %v3321, %v3313
    %v3706 = vpack.c.b16 %v3322, %v3314
    %v3707 = vpack.c.b16 %v3323, %v3315
    %v3708 = vpack.c.b16 %v3324, %v3316
    %v3709 = vpack.c.b16 %v3325, %v3317
    %v3710 = vpack.c.b16 %v3326, %v3318
    %v3711 = vpack.c.b16 %v3327, %v3319
    %v3712 = vpack.c.b16 %v3328, %v3320
    %v3713 = vpack.c.b16 %v3337, %v3329
    %v3714 = vpack.c.b16 %v3338, %v3330
    %v3715 = vpack.c.b16 %v3339, %v3331
    %v3716 = vpack.c.b16 %v3340, %v3332
    %v3717 = vpack.c.b16 %v3341, %v3333
    %v3718 = vpack.c.b16 %v3342, %v3334
    %v3719 = vpack.c.b16 %v3343, %v3335
    %v3720 = vpack.c.b16 %v3344, %v3336
    %v3721 = vpack.c.b16 %v3353, %v3345
    %v3722 = vpack.c.b16 %v3354, %v3346
    %v3723 = vpack.c.b16 %v3355, %v3347
    %v3724 = vpack.c.b16 %v3356, %v3348
    %v3725 = vpack.c.b16 %v3357, %v3349
    %v3726 = vpack.c.b16 %v3358, %v3350
    %v3727 = vpack.c.b16 %v3359, %v3351
    %v3728 = vpack.c.b16 %v3360, %v3352
    %v3729 = vpack.c.b16 %v3369, %v3361
    %v3730 = vpack.c.b16 %v3370, %v3362
    %v3731 = vpack.c.b16 %v3371, %v3363
    %v3732 = vpack.c.b16 %v3372, %v3364
    %v3733 = vpack.c.b16 %v3373, %v3365
    %v3734 = vpack.c.b16 %v3374, %v3366
    %v3735 = vpack.c.b16 %v3375, %v3367
    %v3736 = vpack.c.b16 %v3376, %v3368
    %v3737 = vpack.c.b16 %v3385, %v3377
    %v3738 = vpack.c.b16 %v3386, %v3378
    %v3739 = vpack.c.b16 %v3387, %v3379
    %v3740 = vpack.c.b16 %v3388, %v3380
    %v3741 = vpack.c.b16 %v3389, %v3381
    %v3742 = vpack.c.b16 %v3390, %v3382
    %v3743 = vpack.c.b16 %v3391, %v3383
    %v3744 = vpack.c.b16 %v3392, %v3384
    %v3745 = vpack.c.b16 %v3401, %v3393
    %v3746 = vpack.c.b16 %v3402, %v3394
    %v3747 = vpack.c.b16 %v3403, %v3395
    %v3748 = vpack.c.b16 %v3404, %v3396
    %v3749 = vpack.c.b16 %v3405, %v3397
    %v3750 = vpack.c.b16 %v3406, %v3398
    %v3751 = vpack.c.b16 %v3407, %v3399
    %v3752 = vpack.c.b16 %v3408, %v3400
    %v3753 = vpack.c.b16 %v3417, %v3409
    %v3754 = vpack.c.b16 %v3418, %v3410
    %v3755 = vpack.c.b16 %v3419, %v3411
    %v3756 = vpack.c.b16 %v3420, %v3412
    %v3757 = vpack.c.b16 %v3421, %v3413
    %v3758 = vpack.c.b16 %v3422, %v3414
    %v3759 = vpack.c.b16 %v3423, %v3415
    %v3760 = vpack.c.b16 %v3424, %v3416
    %v3761 = vpack.c.b16 %v3433, %v3425
    %v3762 = vpack.c.b16 %v3434, %v3426
    %v3763 = vpack.c.b16 %v3435, %v3427
    %v3764 = vpack.c.b16 %v3436, %v3428
    %v3765 = vpack.c.b16 %v3437, %v3429
    %v3766 = vpack.c.b16 %v3438, %v3430
    %v3767 = vpack.c.b16 %v3439, %v3431
    %v3768 = vpack.c.b16 %v3440, %v3432
    %v3769 = vpack.c.b16 %v3449, %v3441
    %v3770 = vpack.c.b16 %v3450, %v3442
    %v3771 = vpack.c.b16 %v3451, %v3443
    %v3772 = vpack.c.b16 %v3452, %v3444
    %v3773 = vpack.c.b16 %v3453, %v3445
    %v3774 = vpack.c.b16 %v3454, %v3446
    %v3775 = vpack.c.b16 %v3455, %v3447
    %v3776 = vpack.c.b16 %v3456, %v3448
    %v3777 = vpack.c.b16 %v3465, %v3457
    %v3778 = vpack.c.b16 %v3466, %v3458
    %v3779 = vpack.c.b16 %v3467, %v3459
    %v3780 = vpack.c.b16 %v3468, %v3460
    %v3781 = vpack.c.b16 %v3469, %v3461
    %v3782 = vpack.c.b16 %v3470, %v3462
    %v3783 = vpack.c.b16 %v3471, %v3463
    %v3784 = vpack.c.b16 %v3472, %v3464
    %v3785 = vpack.c.b16 %v3481, %v3473
    %v3786 = vpack.c.b16 %v3482, %v3474
    %v3787 = vpack.c.b16 %v3483, %v3475
    %v3788 = vpack.c.b16 %v3484, %v3476
    %v3789 = vpack.c.b16 %v3485, %v3477
    %v3790 = vpack.c.b16 %v3486, %v3478
    %v3791 = vpack.c.b16 %v3487, %v3479
    %v3792 = vpack.c.b16 %v3488, %v3480
    %v3793 = vpack.c.b16 %v3497, %v3489
    %v3794 = vpack.c.b16 %v3498, %v3490
    %v3795 = vpack.c.b16 %v3499, %v3491
    %v3796 = vpack.c.b16 %v3500, %v3492
    %v3797 = vpack.c.b16 %v3501, %v3493
    %v3798 = vpack.c.b16 %v3502, %v3494
    %v3799 = vpack.c.b16 %v3503, %v3495
    %v3800 = vpack.c.b16 %v3504, %v3496
    %v3801 = vpack.c.b16 %v3513, %v3505
    %v3802 = vpack.c.b16 %v3514, %v3506
    %v3803 = vpack.c.b16 %v3515, %v3507
    %v3804 = vpack.c.b16 %v3516, %v3508
    %v3805 = vpack.c.b16 %v3517, %v3509
    %v3806 = vpack.c.b16 %v3518, %v3510
    %v3807 = vpack.c.b16 %v3519, %v3511
    %v3808 = vpack.c.b16 %v3520, %v3512
    %v3809 = vpack.c.b16 %v3529, %v3521
    %v3810 = vpack.c.b16 %v3530, %v3522
    %v3811 = vpack.c.b16 %v3531, %v3523
    %v3812 = vpack.c.b16 %v3532, %v3524
    %v3813 = vpack.c.b16 %v3533, %v3525
    %v3814 = vpack.c.b16 %v3534, %v3526
    %v3815 = vpack.c.b16 %v3535, %v3527
    %v3816 = vpack.c.b16 %v3536, %v3528
    %v3817 = vpack.c.b16 %v3545, %v3537
    %v3818 = vpack.c.b16 %v3546, %v3538
    %v3819 = vpack.c.b16 %v3547, %v3539
    %v3820 = vpack.c.b16 %v3548, %v3540
    %v3821 = vpack.c.b16 %v3549, %v3541
    %v3822 = vpack.c.b16 %v3550, %v3542
    %v3823 = vpack.c.b16 %v3551, %v3543
    %v3824 = vpack.c.b16 %v3552, %v3544
    %v3825 = vpack.c.b16 %v3561, %v3553
    %v3826 = vpack.c.b16 %v3562, %v3554
    %v3827 = vpack.c.b16 %v3563, %v3555
    %v3828 = vpack.c.b16 %v3564, %v3556
    %v3829 = vpack.c.b16 %v3565, %v3557
    %v3830 = vpack.c.b16 %v3566, %v3558
    %v3831 = vpack.c.b16 %v3567, %v3559
    %v3832 = vpack.c.b16 %v3568, %v3560
    %v3833 = vpack.c.b16 %v3577, %v3569
    %v3834 = vpack.c.b16 %v3578, %v3570
    %v3835 = vpack.c.b16 %v3579, %v3571
    %v3836 = vpack.c.b16 %v3580, %v3572
    %v3837 = vpack.c.b16 %v3581, %v3573
    %v3838 = vpack.c.b16 %v3582, %v3574
    %v3839 = vpack.c.b16 %v3583, %v3575
    %v3840 = vpack.c.b16 %v3584, %v3576
    %4097 = vmatprep.subr.bf16.mxu0 %v3586
    %4098 = vmatpush1.bf16.msra.mxu0 %v3585
    %4099 = vmatprep.subr.bf16.mxu0 %v3594
    %4100 = vmatpush1.bf16.msra.mxu0 %v3593
    %4101 = vmatprep.subr.bf16.mxu0 %v3602
    %4102 = vmatpush1.bf16.msra.mxu0 %v3601
    %4103 = vmatprep.subr.bf16.mxu0 %v3610
    %4104 = vmatpush1.bf16.msra.mxu0 %v3609
    %4105 = vmatprep.subr.bf16.mxu0 %v3618
    %4106 = vmatpush1.bf16.msra.mxu0 %v3617
    %4107 = vmatprep.subr.bf16.mxu0 %v3626
    %4108 = vmatpush1.bf16.msra.mxu0 %v3625
    %4109 = vmatprep.subr.bf16.mxu0 %v3634
    %4110 = vmatpush1.bf16.msra.mxu0 %v3633
    %4111 = vmatprep.subr.bf16.mxu0 %v3642
    %4112 = vmatpush1.bf16.msra.mxu0 %v3641
    %4113 = vmatprep.subr.bf16.mxu0 %v3650
    %4114 = vmatpush1.bf16.msra.mxu0 %v3649
    %4115 = vmatprep.subr.bf16.mxu0 %v3658
    %4116 = vmatpush1.bf16.msra.mxu0 %v3657
    %4117 = vmatprep.subr.bf16.mxu0 %v3666
    %4118 = vmatpush1.bf16.msra.mxu0 %v3665
    %4119 = vmatprep.subr.bf16.mxu0 %v3674
    %4120 = vmatpush1.bf16.msra.mxu0 %v3673
    %4121 = vmatprep.subr.bf16.mxu0 %v3682
    %4122 = vmatpush1.bf16.msra.mxu0 %v3681
    %4123 = vmatprep.subr.bf16.mxu0 %v3690
    %4124 = vmatpush1.bf16.msra.mxu0 %v3689
    %4125 = vmatprep.subr.bf16.mxu0 %v3698
    %4126 = vmatpush1.bf16.msra.mxu0 %v3697
    %4127 = vmatprep.subr.bf16.mxu0 %v3706
    %4128 = vmatpush1.bf16.msra.mxu0 %v3705
    %4129 = vmatprep.mubr.bf16.mxu0 %v2467
    %4130 = vmatmul.mubr.bf16.gmra.mrb[0].mxu0 %v2466
    %v4131 = vpop.f32.mrb[0].mxu0
    %v4132 = vadd.f32 %v2780, %v4131
    %v4133 = vpop.f32.mrb[0].mxu0
    %v4134 = vadd.f32 %v2784, %v4133
    %v4135 = vpop.f32.mrb[0].mxu0
    %v4136 = vadd.f32 %v2780, %v4135
    %v4137 = vpop.f32.mrb[0].mxu0
    %v4138 = vadd.f32 %v2784, %v4137
    %4139 = vdwg.mxu0
    %4140 = vmatprep.subr.bf16.mxu0 %v3714
    %4141 = vmatpush1.bf16.msra.mxu0 %v3713
    %4142 = vmatprep.subr.bf16.mxu0 %v3722
    %4143 = vmatpush1.bf16.msra.mxu0 %v3721
    %4144 = vmatprep.subr.bf16.mxu0 %v3730
    %4145 = vmatpush1.bf16.msra.mxu0 %v3729
    %4146 = vmatprep.subr.bf16.mxu0 %v3738
    %4147 = vmatpush1.bf16.msra.mxu0 %v3737
    %4148 = vmatprep.subr.bf16.mxu0 %v3746
    %4149 = vmatpush1.bf16.msra.mxu0 %v3745
    %4150 = vmatprep.subr.bf16.mxu0 %v3754
    %4151 = vmatpush1.bf16.msra.mxu0 %v3753
    %4152 = vmatprep.subr.bf16.mxu0 %v3762
    %4153 = vmatpush1.bf16.msra.mxu0 %v3761
    %4154 = vmatprep.subr.bf16.mxu0 %v3770
    %4155 = vmatpush1.bf16.msra.mxu0 %v3769
    %4156 = vmatprep.subr.bf16.mxu0 %v3778
    %4157 = vmatpush1.bf16.msra.mxu0 %v3777
    %4158 = vmatprep.subr.bf16.mxu0 %v3786
    %4159 = vmatpush1.bf16.msra.mxu0 %v3785
    %4160 = vmatprep.subr.bf16.mxu0 %v3794
    %4161 = vmatpush1.bf16.msra.mxu0 %v3793
    %4162 = vmatprep.subr.bf16.mxu0 %v3802
    %4163 = vmatpush1.bf16.msra.mxu0 %v3801
    %4164 = vmatprep.subr.bf16.mxu0 %v3810
    %4165 = vmatpush1.bf16.msra.mxu0 %v3809
    %4166 = vmatprep.subr.bf16.mxu0 %v3818
    %4167 = vmatpush1.bf16.msra.mxu0 %v3817
    %4168 = vmatprep.subr.bf16.mxu0 %v3826
    %4169 = vmatpush1.bf16.msra.mxu0 %v3825
    %4170 = vmatprep.subr.bf16.mxu0 %v3834
    %4171 = vmatpush1.bf16.msra.mxu0 %v3833
    %4172 = vmatprep.mubr.bf16.mxu0 0
    %4173 = vmatmul.mubr.bf16.gmra.mrb[0].mxu0 0
    %v4174 = vpop.f32.mrb[0].mxu0
    %v4175 = vadd.f32 %v4132, %v4174
    %v4176 = vpop.f32.mrb[0].mxu0
    %v4177 = vadd.f32 %v4134, %v4176
    %v4178 = vpop.f32.mrb[0].mxu0
    %v4179 = vadd.f32 %v4136, %v4178
    %v4180 = vpop.f32.mrb[0].mxu0
    %v4181 = vadd.f32 %v4138, %v4180
    %4182 = vdwg.mxu0
    %4183 = vmatprep.subr.bf16.mxu0 %v3588
    %4184 = vmatpush1.bf16.msra.mxu0 %v3587
    %4185 = vmatprep.subr.bf16.mxu0 %v3596
    %4186 = vmatpush1.bf16.msra.mxu0 %v3595
    %4187 = vmatprep.subr.bf16.mxu0 %v3604
    %4188 = vmatpush1.bf16.msra.mxu0 %v3603
    %4189 = vmatprep.subr.bf16.mxu0 %v3612
    %4190 = vmatpush1.bf16.msra.mxu0 %v3611
    %4191 = vmatprep.subr.bf16.mxu0 %v3620
    %4192 = vmatpush1.bf16.msra.mxu0 %v3619
    %4193 = vmatprep.subr.bf16.mxu0 %v3628
    %4194 = vmatpush1.bf16.msra.mxu0 %v3627
    %4195 = vmatprep.subr.bf16.mxu0 %v3636
    %4196 = vmatpush1.bf16.msra.mxu0 %v3635
    %4197 = vmatprep.subr.bf16.mxu0 %v3644
    %4198 = vmatpush1.bf16.msra.mxu0 %v3643
    %4199 = vmatprep.subr.bf16.mxu0 %v3652
    %4200 = vmatpush1.bf16.msra.mxu0 %v3651
    %4201 = vmatprep.subr.bf16.mxu0 %v3660
    %4202 = vmatpush1.bf16.msra.mxu0 %v3659
    %4203 = vmatprep.subr.bf16.mxu0 %v3668
    %4204 = vmatpush1.bf16.msra.mxu0 %v3667
    %4205 = vmatprep.subr.bf16.mxu0 %v3676
    %4206 = vmatpush1.bf16.msra.mxu0 %v3675
    %4207 = vmatprep.subr.bf16.mxu0 %v3684
    %4208 = vmatpush1.bf16.msra.mxu0 %v3683
    %4209 = vmatprep.subr.bf16.mxu0 %v3692
    %4210 = vmatpush1.bf16.msra.mxu0 %v3691
    %4211 = vmatprep.subr.bf16.mxu0 %v3700
    %4212 = vmatpush1.bf16.msra.mxu0 %v3699
    %4213 = vmatprep.subr.bf16.mxu0 %v3708
    %4214 = vmatpush1.bf16.msra.mxu0 %v3707
    %4215 = vmatprep.mubr.bf16.mxu0 %v2467
    %4216 = vmatmul.mubr.bf16.gmra.mrb[0].mxu0 %v2466
    %v4217 = vpop.f32.mrb[0].mxu0
    %v4218 = vadd.f32 %v2788, %v4217
    %v4219 = vpop.f32.mrb[0].mxu0
    %v4220 = vadd.f32 %v2792, %v4219
    %v4221 = vpop.f32.mrb[0].mxu0
    %v4222 = vadd.f32 %v2788, %v4221
    %v4223 = vpop.f32.mrb[0].mxu0
    %v4224 = vadd.f32 %v2792, %v4223
    %4225 = vdwg.mxu0
    %4226 = vmatprep.subr.bf16.mxu0 %v3716
    %4227 = vmatpush1.bf16.msra.mxu0 %v3715
    %4228 = vmatprep.subr.bf16.mxu0 %v3724
    %4229 = vmatpush1.bf16.msra.mxu0 %v3723
    %4230 = vmatprep.subr.bf16.mxu0 %v3732
    %4231 = vmatpush1.bf16.msra.mxu0 %v3731
    %4232 = vmatprep.subr.bf16.mxu0 %v3740
    %4233 = vmatpush1.bf16.msra.mxu0 %v3739
    %4234 = vmatprep.subr.bf16.mxu0 %v3748
    %4235 = vmatpush1.bf16.msra.mxu0 %v3747
    %4236 = vmatprep.subr.bf16.mxu0 %v3756
    %4237 = vmatpush1.bf16.msra.mxu0 %v3755
    %4238 = vmatprep.subr.bf16.mxu0 %v3764
    %4239 = vmatpush1.bf16.msra.mxu0 %v3763
    %4240 = vmatprep.subr.bf16.mxu0 %v3772
    %4241 = vmatpush1.bf16.msra.mxu0 %v3771
    %4242 = vmatprep.subr.bf16.mxu0 %v3780
    %4243 = vmatpush1.bf16.msra.mxu0 %v3779
    %4244 = vmatprep.subr.bf16.mxu0 %v3788
    %4245 = vmatpush1.bf16.msra.mxu0 %v3787
    %4246 = vmatprep.subr.bf16.mxu0 %v3796
    %4247 = vmatpush1.bf16.msra.mxu0 %v3795
    %4248 = vmatprep.subr.bf16.mxu0 %v3804
    %4249 = vmatpush1.bf16.msra.mxu0 %v3803
    %4250 = vmatprep.subr.bf16.mxu0 %v3812
    %4251 = vmatpush1.bf16.msra.mxu0 %v3811
    %4252 = vmatprep.subr.bf16.mxu0 %v3820
    %4253 = vmatpush1.bf16.msra.mxu0 %v3819
    %4254 = vmatprep.subr.bf16.mxu0 %v3828
    %4255 = vmatpush1.bf16.msra.mxu0 %v3827
    %4256 = vmatprep.subr.bf16.mxu0 %v3836
    %4257 = vmatpush1.bf16.msra.mxu0 %v3835
    %4258 = vmatprep.mubr.bf16.mxu0 0
    %4259 = vmatmul.mubr.bf16.gmra.mrb[0].mxu0 0
    %v4260 = vpop.f32.mrb[0].mxu0
    %v4261 = vadd.f32 %v4218, %v4260
    %v4262 = vpop.f32.mrb[0].mxu0
    %v4263 = vadd.f32 %v4220, %v4262
    %v4264 = vpop.f32.mrb[0].mxu0
    %v4265 = vadd.f32 %v4222, %v4264
    %v4266 = vpop.f32.mrb[0].mxu0
    %v4267 = vadd.f32 %v4224, %v4266
    %4268 = vdwg.mxu0
    %4269 = vmatprep.subr.bf16.mxu0 %v3590
    %4270 = vmatpush1.bf16.msra.mxu0 %v3589
    %4271 = vmatprep.subr.bf16.mxu0 %v3598
    %4272 = vmatpush1.bf16.msra.mxu0 %v3597
    %4273 = vmatprep.subr.bf16.mxu0 %v3606
    %4274 = vmatpush1.bf16.msra.mxu0 %v3605
    %4275 = vmatprep.subr.bf16.mxu0 %v3614
    %4276 = vmatpush1.bf16.msra.mxu0 %v3613
    %4277 = vmatprep.subr.bf16.mxu0 %v3622
    %4278 = vmatpush1.bf16.msra.mxu0 %v3621
    %4279 = vmatprep.subr.bf16.mxu0 %v3630
    %4280 = vmatpush1.bf16.msra.mxu0 %v3629
    %4281 = vmatprep.subr.bf16.mxu0 %v3638
    %4282 = vmatpush1.bf16.msra.mxu0 %v3637
    %4283 = vmatprep.subr.bf16.mxu0 %v3646
    %4284 = vmatpush1.bf16.msra.mxu0 %v3645
    %4285 = vmatprep.subr.bf16.mxu0 %v3654
    %4286 = vmatpush1.bf16.msra.mxu0 %v3653
    %4287 = vmatprep.subr.bf16.mxu0 %v3662
    %4288 = vmatpush1.bf16.msra.mxu0 %v3661
    %4289 = vmatprep.subr.bf16.mxu0 %v3670
    %4290 = vmatpush1.bf16.msra.mxu0 %v3669
    %4291 = vmatprep.subr.bf16.mxu0 %v3678
    %4292 = vmatpush1.bf16.msra.mxu0 %v3677
    %4293 = vmatprep.subr.bf16.mxu0 %v3686
    %4294 = vmatpush1.bf16.msra.mxu0 %v3685
    %4295 = vmatprep.subr.bf16.mxu0 %v3694
    %4296 = vmatpush1.bf16.msra.mxu0 %v3693
    %4297 = vmatprep.subr.bf16.mxu0 %v3702
    %4298 = vmatpush1.bf16.msra.mxu0 %v3701
    %4299 = vmatprep.subr.bf16.mxu0 %v3710
    %4300 = vmatpush1.bf16.msra.mxu0 %v3709
    %4301 = vmatprep.mubr.bf16.mxu0 %v2467
    %4302 = vmatmul.mubr.bf16.gmra.mrb[0].mxu0 %v2466
    %v4303 = vpop.f32.mrb[0].mxu0
    %v4304 = vadd.f32 %v2796, %v4303
    %v4305 = vpop.f32.mrb[0].mxu0
    %v4306 = vadd.f32 %v2800, %v4305
    %v4307 = vpop.f32.mrb[0].mxu0
    %v4308 = vadd.f32 %v2796, %v4307
    %v4309 = vpop.f32.mrb[0].mxu0
    %v4310 = vadd.f32 %v2800, %v4309
    %4311 = vdwg.mxu0
    %4312 = vmatprep.subr.bf16.mxu0 %v3718
    %4313 = vmatpush1.bf16.msra.mxu0 %v3717
    %4314 = vmatprep.subr.bf16.mxu0 %v3726
    %4315 = vmatpush1.bf16.msra.mxu0 %v3725
    %4316 = vmatprep.subr.bf16.mxu0 %v3734
    %4317 = vmatpush1.bf16.msra.mxu0 %v3733
    %4318 = vmatprep.subr.bf16.mxu0 %v3742
    %4319 = vmatpush1.bf16.msra.mxu0 %v3741
    %4320 = vmatprep.subr.bf16.mxu0 %v3750
    %4321 = vmatpush1.bf16.msra.mxu0 %v3749
    %4322 = vmatprep.subr.bf16.mxu0 %v3758
    %4323 = vmatpush1.bf16.msra.mxu0 %v3757
    %4324 = vmatprep.subr.bf16.mxu0 %v3766
    %4325 = vmatpush1.bf16.msra.mxu0 %v3765
    %4326 = vmatprep.subr.bf16.mxu0 %v3774
    %4327 = vmatpush1.bf16.msra.mxu0 %v3773
    %4328 = vmatprep.subr.bf16.mxu0 %v3782
    %4329 = vmatpush1.bf16.msra.mxu0 %v3781
    %4330 = vmatprep.subr.bf16.mxu0 %v3790
    %4331 = vmatpush1.bf16.msra.mxu0 %v3789
    %4332 = vmatprep.subr.bf16.mxu0 %v3798
    %4333 = vmatpush1.bf16.msra.mxu0 %v3797
    %4334 = vmatprep.subr.bf16.mxu0 %v3806
    %4335 = vmatpush1.bf16.msra.mxu0 %v3805
    %4336 = vmatprep.subr.bf16.mxu0 %v3814
    %4337 = vmatpush1.bf16.msra.mxu0 %v3813
    %4338 = vmatprep.subr.bf16.mxu0 %v3822
    %4339 = vmatpush1.bf16.msra.mxu0 %v3821
    %4340 = vmatprep.subr.bf16.mxu0 %v3830
    %4341 = vmatpush1.bf16.msra.mxu0 %v3829
    %4342 = vmatprep.subr.bf16.mxu0 %v3838
    %4343 = vmatpush1.bf16.msra.mxu0 %v3837
    %4344 = vmatprep.mubr.bf16.mxu0 0
    %4345 = vmatmul.mubr.bf16.gmra.mrb[0].mxu0 0
    %v4346 = vpop.f32.mrb[0].mxu0
    %v4347 = vadd.f32 %v4304, %v4346
    %v4348 = vpop.f32.mrb[0].mxu0
    %v4349 = vadd.f32 %v4306, %v4348
    %v4350 = vpop.f32.mrb[0].mxu0
    %v4351 = vadd.f32 %v4308, %v4350
    %v4352 = vpop.f32.mrb[0].mxu0
    %v4353 = vadd.f32 %v4310, %v4352
    %4354 = vdwg.mxu0
    %4355 = vmatprep.subr.bf16.mxu0 %v3592
    %4356 = vmatpush1.bf16.msra.mxu0 %v3591
    %4357 = vmatprep.subr.bf16.mxu0 %v3600
    %4358 = vmatpush1.bf16.msra.mxu0 %v3599
    %4359 = vmatprep.subr.bf16.mxu0 %v3608
    %4360 = vmatpush1.bf16.msra.mxu0 %v3607
    %4361 = vmatprep.subr.bf16.mxu0 %v3616
    %4362 = vmatpush1.bf16.msra.mxu0 %v3615
    %4363 = vmatprep.subr.bf16.mxu0 %v3624
    %4364 = vmatpush1.bf16.msra.mxu0 %v3623
    %4365 = vmatprep.subr.bf16.mxu0 %v3632
    %4366 = vmatpush1.bf16.msra.mxu0 %v3631
    %4367 = vmatprep.subr.bf16.mxu0 %v3640
    %4368 = vmatpush1.bf16.msra.mxu0 %v3639
    %4369 = vmatprep.subr.bf16.mxu0 %v3648
    %4370 = vmatpush1.bf16.msra.mxu0 %v3647
    %4371 = vmatprep.subr.bf16.mxu0 %v3656
    %4372 = vmatpush1.bf16.msra.mxu0 %v3655
    %4373 = vmatprep.subr.bf16.mxu0 %v3664
    %4374 = vmatpush1.bf16.msra.mxu0 %v3663
    %4375 = vmatprep.subr.bf16.mxu0 %v3672
    %4376 = vmatpush1.bf16.msra.mxu0 %v3671
    %4377 = vmatprep.subr.bf16.mxu0 %v3680
    %4378 = vmatpush1.bf16.msra.mxu0 %v3679
    %4379 = vmatprep.subr.bf16.mxu0 %v3688
    %4380 = vmatpush1.bf16.msra.mxu0 %v3687
    %4381 = vmatprep.subr.bf16.mxu0 %v3696
    %4382 = vmatpush1.bf16.msra.mxu0 %v3695
    %4383 = vmatprep.subr.bf16.mxu0 %v3704
    %4384 = vmatpush1.bf16.msra.mxu0 %v3703
    %4385 = vmatprep.subr.bf16.mxu0 %v3712
    %4386 = vmatpush1.bf16.msra.mxu0 %v3711
    %4387 = vmatprep.mubr.bf16.mxu0 %v2467
    %4388 = vmatmul.mubr.bf16.gmra.mrb[0].mxu0 %v2466
    %v4389 = vpop.f32.mrb[0].mxu0
    %v4390 = vadd.f32 %v2804, %v4389
    %v4391 = vpop.f32.mrb[0].mxu0
    %v4392 = vadd.f32 %v2808, %v4391
    %v4393 = vpop.f32.mrb[0].mxu0
    %v4394 = vadd.f32 %v2804, %v4393
    %v4395 = vpop.f32.mrb[0].mxu0
    %v4396 = vadd.f32 %v2808, %v4395
    %4397 = vdwg.mxu0
    %4398 = vmatprep.subr.bf16.mxu0 %v3720
    %4399 = vmatpush1.bf16.msra.mxu0 %v3719
    %4400 = vmatprep.subr.bf16.mxu0 %v3728
    %4401 = vmatpush1.bf16.msra.mxu0 %v3727
    %4402 = vmatprep.subr.bf16.mxu0 %v3736
    %4403 = vmatpush1.bf16.msra.mxu0 %v3735
    %4404 = vmatprep.subr.bf16.mxu0 %v3744
    %4405 = vmatpush1.bf16.msra.mxu0 %v3743
    %4406 = vmatprep.subr.bf16.mxu0 %v3752
    %4407 = vmatpush1.bf16.msra.mxu0 %v3751
    %4408 = vmatprep.subr.bf16.mxu0 %v3760
    %4409 = vmatpush1.bf16.msra.mxu0 %v3759
    %4410 = vmatprep.subr.bf16.mxu0 %v3768
    %4411 = vmatpush1.bf16.msra.mxu0 %v3767
    %4412 = vmatprep.subr.bf16.mxu0 %v3776
    %4413 = vmatpush1.bf16.msra.mxu0 %v3775
    %4414 = vmatprep.subr.bf16.mxu0 %v3784
    %4415 = vmatpush1.bf16.msra.mxu0 %v3783
    %4416 = vmatprep.subr.bf16.mxu0 %v3792
    %4417 = vmatpush1.bf16.msra.mxu0 %v3791
    %4418 = vmatprep.subr.bf16.mxu0 %v3800
    %4419 = vmatpush1.bf16.msra.mxu0 %v3799
    %4420 = vmatprep.subr.bf16.mxu0 %v3808
    %4421 = vmatpush1.bf16.msra.mxu0 %v3807
    %4422 = vmatprep.subr.bf16.mxu0 %v3816
    %4423 = vmatpush1.bf16.msra.mxu0 %v3815
    %4424 = vmatprep.subr.bf16.mxu0 %v3824
    %4425 = vmatpush1.bf16.msra.mxu0 %v3823
    %4426 = vmatprep.subr.bf16.mxu0 %v3832
    %4427 = vmatpush1.bf16.msra.mxu0 %v3831
    %4428 = vmatprep.subr.bf16.mxu0 %v3840
    %4429 = vmatpush1.bf16.msra.mxu0 %v3839
    %4430 = vmatprep.mubr.bf16.mxu0 0
    %4431 = vmatmul.mubr.bf16.gmra.mrb[0].mxu0 0
    %v4432 = vpop.f32.mrb[0].mxu0
    %v4433 = vadd.f32 %v4390, %v4432
    %v4434 = vpop.f32.mrb[0].mxu0
    %v4435 = vadd.f32 %v4392, %v4434
    %v4436 = vpop.f32.mrb[0].mxu0
    %v4437 = vadd.f32 %v4394, %v4436
    %v4438 = vpop.f32.mrb[0].mxu0
    %v4439 = vadd.f32 %v4396, %v4438
    %4440 = vdwg.mxu0
    %v4441 = vxor.u32 %v4175, 2147483648
    %v4442 = vxor.u32 %v4177, 2147483648
    %v4443 = vxor.u32 %v4179, 2147483648
    %v4444 = vxor.u32 %v4181, 2147483648
    %v4445 = vmul.f32 %v4441, 1.442695
    %v4446 = vpow.pop %v4445
    %v4447 = vmul.f32 %v4442, 1.442695
    %v4448 = vpow.pop %v4447
    %v4449 = vmul.f32 %v4443, 1.442695
    %v4450 = vpow.pop %v4449
    %v4451 = vmul.f32 %v4444, 1.442695
    %v4452 = vpow.pop %v4451
    %v4453 = vadd.f32 %v4446, 1.0
    %v4454 = vadd.f32 %v4448, 1.0
    %v4455 = vadd.f32 %v4450, 1.0
    %v4456 = vadd.f32 %v4452, 1.0
    %v4457 = vrcp.pop %v4453
    %v4458 = vmul.f32 1.0, %v4457
    %v4459 = vrcp.pop %v4454
    %v4460 = vmul.f32 1.0, %v4459
    %v4461 = vrcp.pop %v4455
    %v4462 = vmul.f32 1.0, %v4461
    %v4463 = vrcp.pop %v4456
    %v4464 = vmul.f32 1.0, %v4463
    %v4465 = vxor.u32 %v4261, 2147483648
    %v4466 = vxor.u32 %v4263, 2147483648
    %v4467 = vxor.u32 %v4265, 2147483648
    %v4468 = vxor.u32 %v4267, 2147483648
    %v4469 = vmul.f32 %v4465, 1.442695
    %v4470 = vpow.pop %v4469
    %v4471 = vmul.f32 %v4466, 1.442695
    %v4472 = vpow.pop %v4471
    %v4473 = vmul.f32 %v4467, 1.442695
    %v4474 = vpow.pop %v4473
    %v4475 = vmul.f32 %v4468, 1.442695
    %v4476 = vpow.pop %v4475
    %v4477 = vadd.f32 %v4470, 1.0
    %v4478 = vadd.f32 %v4472, 1.0
    %v4479 = vadd.f32 %v4474, 1.0
    %v4480 = vadd.f32 %v4476, 1.0
    %v4481 = vrcp.pop %v4477
    %v4482 = vmul.f32 1.0, %v4481
    %v4483 = vrcp.pop %v4478
    %v4484 = vmul.f32 1.0, %v4483
    %v4485 = vrcp.pop %v4479
    %v4486 = vmul.f32 1.0, %v4485
    %v4487 = vrcp.pop %v4480
    %v4488 = vmul.f32 1.0, %v4487
    %v4489 = vtanh.pop %v4347
    %v4490 = vtanh.pop %v4349
    %v4491 = vtanh.pop %v4351
    %v4492 = vtanh.pop %v4353
    %v4493 = vxor.u32 %v4433, 2147483648
    %v4494 = vxor.u32 %v4435, 2147483648
    %v4495 = vxor.u32 %v4437, 2147483648
    %v4496 = vxor.u32 %v4439, 2147483648
    %v4497 = vmul.f32 %v4493, 1.442695
    %v4498 = vpow.pop %v4497
    %v4499 = vmul.f32 %v4494, 1.442695
    %v4500 = vpow.pop %v4499
    %v4501 = vmul.f32 %v4495, 1.442695
    %v4502 = vpow.pop %v4501
    %v4503 = vmul.f32 %v4496, 1.442695
    %v4504 = vpow.pop %v4503
    %v4505 = vadd.f32 %v4498, 1.0
    %v4506 = vadd.f32 %v4500, 1.0
    %v4507 = vadd.f32 %v4502, 1.0
    %v4508 = vadd.f32 %v4504, 1.0
    %v4509 = vrcp.pop %v4505
    %v4510 = vmul.f32 1.0, %v4509
    %v4511 = vrcp.pop %v4506
    %v4512 = vmul.f32 1.0, %v4511
    %v4513 = vrcp.pop %v4507
    %v4514 = vmul.f32 1.0, %v4513
    %v4515 = vrcp.pop %v4508
    %v4516 = vmul.f32 1.0, %v4515
    %v4517 = vmul.f32 %v4482, 0.0
    %v4518 = vmul.f32 %v4484, 0.0
    %v4519 = vmul.f32 %v4486, 0.0
    %v4520 = vmul.f32 %v4488, 0.0
    %v4521 = vmul.f32 %v4458, %v4489
    %v4522 = vmul.f32 %v4460, %v4490
    %v4523 = vmul.f32 %v4462, %v4491
    %v4524 = vmul.f32 %v4464, %v4492
    %v4525 = vadd.f32 %v4517, %v4521
    %v4526 = vadd.f32 %v4518, %v4522
    %v4527 = vadd.f32 %v4519, %v4523
    %v4528 = vadd.f32 %v4520, %v4524
    %v4529 = vtanh.pop %v4525
    %v4530 = vtanh.pop %v4526
    %v4531 = vtanh.pop %v4527
    %v4532 = vtanh.pop %v4528
    %v4533 = vmul.f32 %v4510, %v4529
    %v4534 = vmul.f32 %v4512, %v4530
    %v4535 = vmul.f32 %v4514, %v4531
    %v4536 = vmul.f32 %v4516, %v4532
    %v4537 = vsub.s32 %v61, 1
    %v4538 = vsub.s32 %v62, 1
    %vm4539 = vcmp.eq.s32.totalorder %v4537, 0
    %vm4540 = vcmp.eq.s32.totalorder %v4538, 0
    %v4541 = vsel %vm4539, 1, 0
    %v4542 = vsel %vm4540, 1, 0
    %4543 = vset.pattern.permute.xlu0 0
    %4544 = vperm.xlu0 %4543, %v4541
    %v4545 = vpop.permute.xlu0 %4544
    %4546 = vset.pattern.permute.xlu0 0
    %4547 = vperm.xlu0 %4546, %v4542
    %v4548 = vpop.permute.xlu0 %4547
    %vm4549 = vcmp.eq.s32.totalorder %v4545, 1
    %vm4550 = vcmp.eq.s32.totalorder %v4548, 1
    %v4551 = vsel %vm4549, %v4533, 0.0
    %v4552 = vsel %vm4549, %v4534, 0.0
    %v4553 = vsel %vm4550, %v4535, 0.0
    %v4554 = vsel %vm4550, %v4536, 0.0
    %v4555 = vpack.c.bf16 %v2774, %v2772
    %v4556 = vpack.c.bf16 %v2775, %v2773
    %v4557 = vld [vmem:[#allocation2 + $0x80] sm:$0xff]
    %v4558 = vld [vmem:[#allocation2 + $0x88] sm:$0xff]
    %v4559 = vld [vmem:[#allocation2 + $0x90] sm:$0xff]
    %v4560 = vld [vmem:[#allocation2 + $0x98] sm:$0xff]
    %v4561 = vld [vmem:[#allocation2 + $0xa0] sm:$0xff]
    %v4562 = vld [vmem:[#allocation2 + $0xa8] sm:$0xff]
    %v4563 = vld [vmem:[#allocation2 + $0xb0] sm:$0xff]
    %v4564 = vld [vmem:[#allocation2 + $0xb8] sm:$0xff]
    %v4565 = vunpack.c.l.bf16 %v4557
    %v4566 = vunpack.c.l.bf16 %v4558
    %v4567 = vunpack.c.l.bf16 %v4559
    %v4568 = vunpack.c.l.bf16 %v4560
    %v4569 = vunpack.c.l.bf16 %v4561
    %v4570 = vunpack.c.l.bf16 %v4562
    %v4571 = vunpack.c.l.bf16 %v4563
    %v4572 = vunpack.c.l.bf16 %v4564
    %v4573 = vunpack.c.h.bf16 %v4557
    %v4574 = vunpack.c.h.bf16 %v4558
    %v4575 = vunpack.c.h.bf16 %v4559
    %v4576 = vunpack.c.h.bf16 %v4560
    %v4577 = vunpack.c.h.bf16 %v4561
    %v4578 = vunpack.c.h.bf16 %v4562
    %v4579 = vunpack.c.h.bf16 %v4563
    %v4580 = vunpack.c.h.bf16 %v4564
    %4581 = vmatprep.subr.bf16.mxu0 %v1927
    %4582 = vmatpush1.bf16.msra.mxu0 %v1926
    %4583 = vmatprep.subr.bf16.mxu0 %v1935
    %4584 = vmatpush1.bf16.msra.mxu0 %v1934
    %4585 = vmatprep.subr.bf16.mxu0 %v1943
    %4586 = vmatpush1.bf16.msra.mxu0 %v1942
    %4587 = vmatprep.subr.bf16.mxu0 %v1951
    %4588 = vmatpush1.bf16.msra.mxu0 %v1950
    %4589 = vmatprep.subr.bf16.mxu0 %v1959
    %4590 = vmatpush1.bf16.msra.mxu0 %v1958
    %4591 = vmatprep.subr.bf16.mxu0 %v1967
    %4592 = vmatpush1.bf16.msra.mxu0 %v1966
    %4593 = vmatprep.subr.bf16.mxu0 %v1975
    %4594 = vmatpush1.bf16.msra.mxu0 %v1974
    %4595 = vmatprep.subr.bf16.mxu0 %v1983
    %4596 = vmatpush1.bf16.msra.mxu0 %v1982
    %4597 = vmatprep.subr.bf16.mxu0 %v1991
    %4598 = vmatpush1.bf16.msra.mxu0 %v1990
    %4599 = vmatprep.subr.bf16.mxu0 %v1999
    %4600 = vmatpush1.bf16.msra.mxu0 %v1998
    %4601 = vmatprep.subr.bf16.mxu0 %v2007
    %4602 = vmatpush1.bf16.msra.mxu0 %v2006
    %4603 = vmatprep.subr.bf16.mxu0 %v2015
    %4604 = vmatpush1.bf16.msra.mxu0 %v2014
    %4605 = vmatprep.subr.bf16.mxu0 %v2023
    %4606 = vmatpush1.bf16.msra.mxu0 %v2022
    %4607 = vmatprep.subr.bf16.mxu0 %v2031
    %4608 = vmatpush1.bf16.msra.mxu0 %v2030
    %4609 = vmatprep.subr.bf16.mxu0 %v2039
    %4610 = vmatpush1.bf16.msra.mxu0 %v2038
    %4611 = vmatprep.subr.bf16.mxu0 %v2047
    %4612 = vmatpush1.bf16.msra.mxu0 %v2046
    %4613 = vmatprep.mubr.bf16.mxu0 %v4556
    %4614 = vmatmul.mubr.bf16.gmra.mrb[0].mxu0 %v4555
    %v4615 = vpop.f32.mrb[0].mxu0
    %v4616 = vadd.f32 0.0, %v4615
    %v4617 = vpop.f32.mrb[0].mxu0
    %v4618 = vadd.f32 0.0, %v4617
    %v4619 = vpop.f32.mrb[0].mxu0
    %v4620 = vadd.f32 0.0, %v4619
    %v4621 = vpop.f32.mrb[0].mxu0
    %v4622 = vadd.f32 0.0, %v4621
    %4623 = vdwg.mxu0
    %4624 = vmatprep.subr.bf16.mxu0 %v1929
    %4625 = vmatpush1.bf16.msra.mxu0 %v1928
    %4626 = vmatprep.subr.bf16.mxu0 %v1937
    %4627 = vmatpush1.bf16.msra.mxu0 %v1936
    %4628 = vmatprep.subr.bf16.mxu0 %v1945
    %4629 = vmatpush1.bf16.msra.mxu0 %v1944
    %4630 = vmatprep.subr.bf16.mxu0 %v1953
    %4631 = vmatpush1.bf16.msra.mxu0 %v1952
    %4632 = vmatprep.subr.bf16.mxu0 %v1961
    %4633 = vmatpush1.bf16.msra.mxu0 %v1960
    %4634 = vmatprep.subr.bf16.mxu0 %v1969
    %4635 = vmatpush1.bf16.msra.mxu0 %v1968
    %4636 = vmatprep.subr.bf16.mxu0 %v1977
    %4637 = vmatpush1.bf16.msra.mxu0 %v1976
    %4638 = vmatprep.subr.bf16.mxu0 %v1985
    %4639 = vmatpush1.bf16.msra.mxu0 %v1984
    %4640 = vmatprep.subr.bf16.mxu0 %v1993
    %4641 = vmatpush1.bf16.msra.mxu0 %v1992
    %4642 = vmatprep.subr.bf16.mxu0 %v2001
    %4643 = vmatpush1.bf16.msra.mxu0 %v2000
    %4644 = vmatprep.subr.bf16.mxu0 %v2009
    %4645 = vmatpush1.bf16.msra.mxu0 %v2008
    %4646 = vmatprep.subr.bf16.mxu0 %v2017
    %4647 = vmatpush1.bf16.msra.mxu0 %v2016
    %4648 = vmatprep.subr.bf16.mxu0 %v2025
    %4649 = vmatpush1.bf16.msra.mxu0 %v2024
    %4650 = vmatprep.subr.bf16.mxu0 %v2033
    %4651 = vmatpush1.bf16.msra.mxu0 %v2032
    %4652 = vmatprep.subr.bf16.mxu0 %v2041
    %4653 = vmatpush1.bf16.msra.mxu0 %v2040
    %4654 = vmatprep.subr.bf16.mxu0 %v2049
    %4655 = vmatpush1.bf16.msra.mxu0 %v2048
    %4656 = vmatprep.mubr.bf16.mxu0 %v4556
    %4657 = vmatmul.mubr.bf16.gmra.mrb[0].mxu0 %v4555
    %v4658 = vpop.f32.mrb[0].mxu0
    %v4659 = vadd.f32 0.0, %v4658
    %v4660 = vpop.f32.mrb[0].mxu0
    %v4661 = vadd.f32 0.0, %v4660
    %v4662 = vpop.f32.mrb[0].mxu0
    %v4663 = vadd.f32 0.0, %v4662
    %v4664 = vpop.f32.mrb[0].mxu0
    %v4665 = vadd.f32 0.0, %v4664
    %4666 = vdwg.mxu0
    %4667 = vmatprep.subr.bf16.mxu0 %v1931
    %4668 = vmatpush1.bf16.msra.mxu0 %v1930
    %4669 = vmatprep.subr.bf16.mxu0 %v1939
    %4670 = vmatpush1.bf16.msra.mxu0 %v1938
    %4671 = vmatprep.subr.bf16.mxu0 %v1947
    %4672 = vmatpush1.bf16.msra.mxu0 %v1946
    %4673 = vmatprep.subr.bf16.mxu0 %v1955
    %4674 = vmatpush1.bf16.msra.mxu0 %v1954
    %4675 = vmatprep.subr.bf16.mxu0 %v1963
    %4676 = vmatpush1.bf16.msra.mxu0 %v1962
    %4677 = vmatprep.subr.bf16.mxu0 %v1971
    %4678 = vmatpush1.bf16.msra.mxu0 %v1970
    %4679 = vmatprep.subr.bf16.mxu0 %v1979
    %4680 = vmatpush1.bf16.msra.mxu0 %v1978
    %4681 = vmatprep.subr.bf16.mxu0 %v1987
    %4682 = vmatpush1.bf16.msra.mxu0 %v1986
    %4683 = vmatprep.subr.bf16.mxu0 %v1995
    %4684 = vmatpush1.bf16.msra.mxu0 %v1994
    %4685 = vmatprep.subr.bf16.mxu0 %v2003
    %4686 = vmatpush1.bf16.msra.mxu0 %v2002
    %4687 = vmatprep.subr.bf16.mxu0 %v2011
    %4688 = vmatpush1.bf16.msra.mxu0 %v2010
    %4689 = vmatprep.subr.bf16.mxu0 %v2019
    %4690 = vmatpush1.bf16.msra.mxu0 %v2018
    %4691 = vmatprep.subr.bf16.mxu0 %v2027
    %4692 = vmatpush1.bf16.msra.mxu0 %v2026
    %4693 = vmatprep.subr.bf16.mxu0 %v2035
    %4694 = vmatpush1.bf16.msra.mxu0 %v2034
    %4695 = vmatprep.subr.bf16.mxu0 %v2043
    %4696 = vmatpush1.bf16.msra.mxu0 %v2042
    %4697 = vmatprep.subr.bf16.mxu0 %v2051
    %4698 = vmatpush1.bf16.msra.mxu0 %v2050
    %4699 = vmatprep.mubr.bf16.mxu0 %v4556
    %4700 = vmatmul.mubr.bf16.gmra.mrb[0].mxu0 %v4555
    %v4701 = vpop.f32.mrb[0].mxu0
    %v4702 = vadd.f32 0.0, %v4701
    %v4703 = vpop.f32.mrb[0].mxu0
    %v4704 = vadd.f32 0.0, %v4703
    %v4705 = vpop.f32.mrb[0].mxu0
    %v4706 = vadd.f32 0.0, %v4705
    %v4707 = vpop.f32.mrb[0].mxu0
    %v4708 = vadd.f32 0.0, %v4707
    %4709 = vdwg.mxu0
    %4710 = vmatprep.subr.bf16.mxu0 %v1933
    %4711 = vmatpush1.bf16.msra.mxu0 %v1932
    %4712 = vmatprep.subr.bf16.mxu0 %v1941
    %4713 = vmatpush1.bf16.msra.mxu0 %v1940
    %4714 = vmatprep.subr.bf16.mxu0 %v1949
    %4715 = vmatpush1.bf16.msra.mxu0 %v1948
    %4716 = vmatprep.subr.bf16.mxu0 %v1957
    %4717 = vmatpush1.bf16.msra.mxu0 %v1956
    %4718 = vmatprep.subr.bf16.mxu0 %v1965
    %4719 = vmatpush1.bf16.msra.mxu0 %v1964
    %4720 = vmatprep.subr.bf16.mxu0 %v1973
    %4721 = vmatpush1.bf16.msra.mxu0 %v1972
    %4722 = vmatprep.subr.bf16.mxu0 %v1981
    %4723 = vmatpush1.bf16.msra.mxu0 %v1980
    %4724 = vmatprep.subr.bf16.mxu0 %v1989
    %4725 = vmatpush1.bf16.msra.mxu0 %v1988
    %4726 = vmatprep.subr.bf16.mxu0 %v1997
    %4727 = vmatpush1.bf16.msra.mxu0 %v1996
    %4728 = vmatprep.subr.bf16.mxu0 %v2005
    %4729 = vmatpush1.bf16.msra.mxu0 %v2004
    %4730 = vmatprep.subr.bf16.mxu0 %v2013
    %4731 = vmatpush1.bf16.msra.mxu0 %v2012
    %4732 = vmatprep.subr.bf16.mxu0 %v2021
    %4733 = vmatpush1.bf16.msra.mxu0 %v2020
    %4734 = vmatprep.subr.bf16.mxu0 %v2029
    %4735 = vmatpush1.bf16.msra.mxu0 %v2028
    %4736 = vmatprep.subr.bf16.mxu0 %v2037
    %4737 = vmatpush1.bf16.msra.mxu0 %v2036
    %4738 = vmatprep.subr.bf16.mxu0 %v2045
    %4739 = vmatpush1.bf16.msra.mxu0 %v2044
    %4740 = vmatprep.subr.bf16.mxu0 %v2053
    %4741 = vmatpush1.bf16.msra.mxu0 %v2052
    %4742 = vmatprep.mubr.bf16.mxu0 %v4556
    %4743 = vmatmul.mubr.bf16.gmra.mrb[0].mxu0 %v4555
    %v4744 = vpop.f32.mrb[0].mxu0
    %v4745 = vadd.f32 0.0, %v4744
    %v4746 = vpop.f32.mrb[0].mxu0
    %v4747 = vadd.f32 0.0, %v4746
    %v4748 = vpop.f32.mrb[0].mxu0
    %v4749 = vadd.f32 0.0, %v4748
    %v4750 = vpop.f32.mrb[0].mxu0
    %v4751 = vadd.f32 0.0, %v4750
    %4752 = vdwg.mxu0
    %v4753 = vadd.f32 %v4565, %v4616
    %v4754 = vadd.f32 %v4566, %v4618
    %v4755 = vadd.f32 %v4567, %v4659
    %v4756 = vadd.f32 %v4568, %v4661
    %v4757 = vadd.f32 %v4569, %v4702
    %v4758 = vadd.f32 %v4570, %v4704
    %v4759 = vadd.f32 %v4571, %v4745
    %v4760 = vadd.f32 %v4572, %v4747
    %v4761 = vadd.f32 %v4573, %v4620
    %v4762 = vadd.f32 %v4574, %v4622
    %v4763 = vadd.f32 %v4575, %v4663
    %v4764 = vadd.f32 %v4576, %v4665
    %v4765 = vadd.f32 %v4577, %v4706
    %v4766 = vadd.f32 %v4578, %v4708
    %v4767 = vadd.f32 %v4579, %v4749
    %v4768 = vadd.f32 %v4580, %v4751
    %v4769 = vxor.u32 %v4753, 2147483648
    %v4770 = vxor.u32 %v4754, 2147483648
    %v4771 = vxor.u32 %v4761, 2147483648
    %v4772 = vxor.u32 %v4762, 2147483648
    %v4773 = vmul.f32 %v4769, 1.442695
    %v4774 = vpow.pop %v4773
    %v4775 = vmul.f32 %v4770, 1.442695
    %v4776 = vpow.pop %v4775
    %v4777 = vmul.f32 %v4771, 1.442695
    %v4778 = vpow.pop %v4777
    %v4779 = vmul.f32 %v4772, 1.442695
    %v4780 = vpow.pop %v4779
    %v4781 = vadd.f32 %v4774, 1.0
    %v4782 = vadd.f32 %v4776, 1.0
    %v4783 = vadd.f32 %v4778, 1.0
    %v4784 = vadd.f32 %v4780, 1.0
    %v4785 = vrcp.pop %v4781
    %v4786 = vmul.f32 1.0, %v4785
    %v4787 = vrcp.pop %v4782
    %v4788 = vmul.f32 1.0, %v4787
    %v4789 = vrcp.pop %v4783
    %v4790 = vmul.f32 1.0, %v4789
    %v4791 = vrcp.pop %v4784
    %v4792 = vmul.f32 1.0, %v4791
    %v4793 = vxor.u32 %v4755, 2147483648
    %v4794 = vxor.u32 %v4756, 2147483648
    %v4795 = vxor.u32 %v4763, 2147483648
    %v4796 = vxor.u32 %v4764, 2147483648
    %v4797 = vmul.f32 %v4793, 1.442695
    %v4798 = vpow.pop %v4797
    %v4799 = vmul.f32 %v4794, 1.442695
    %v4800 = vpow.pop %v4799
    %v4801 = vmul.f32 %v4795, 1.442695
    %v4802 = vpow.pop %v4801
    %v4803 = vmul.f32 %v4796, 1.442695
    %v4804 = vpow.pop %v4803
    %v4805 = vadd.f32 %v4798, 1.0
    %v4806 = vadd.f32 %v4800, 1.0
    %v4807 = vadd.f32 %v4802, 1.0
    %v4808 = vadd.f32 %v4804, 1.0
    %v4809 = vrcp.pop %v4805
    %v4810 = vmul.f32 1.0, %v4809
    %v4811 = vrcp.pop %v4806
    %v4812 = vmul.f32 1.0, %v4811
    %v4813 = vrcp.pop %v4807
    %v4814 = vmul.f32 1.0, %v4813
    %v4815 = vrcp.pop %v4808
    %v4816 = vmul.f32 1.0, %v4815
    %v4817 = vtanh.pop %v4757
    %v4818 = vtanh.pop %v4758
    %v4819 = vtanh.pop %v4765
    %v4820 = vtanh.pop %v4766
    %v4821 = vxor.u32 %v4759, 2147483648
    %v4822 = vxor.u32 %v4760, 2147483648
    %v4823 = vxor.u32 %v4767, 2147483648
    %v4824 = vxor.u32 %v4768, 2147483648
    %v4825 = vmul.f32 %v4821, 1.442695
    %v4826 = vpow.pop %v4825
    %v4827 = vmul.f32 %v4822, 1.442695
    %v4828 = vpow.pop %v4827
    %v4829 = vmul.f32 %v4823, 1.442695
    %v4830 = vpow.pop %v4829
    %v4831 = vmul.f32 %v4824, 1.442695
    %v4832 = vpow.pop %v4831
    %v4833 = vadd.f32 %v4826, 1.0
    %v4834 = vadd.f32 %v4828, 1.0
    %v4835 = vadd.f32 %v4830, 1.0
    %v4836 = vadd.f32 %v4832, 1.0
    %v4837 = vrcp.pop %v4833
    %v4838 = vmul.f32 1.0, %v4837
    %v4839 = vrcp.pop %v4834
    %v4840 = vmul.f32 1.0, %v4839
    %v4841 = vrcp.pop %v4835
    %v4842 = vmul.f32 1.0, %v4841
    %v4843 = vrcp.pop %v4836
    %v4844 = vmul.f32 1.0, %v4843
    %v4845 = vmul.f32 %v4810, %v2764
    %v4846 = vmul.f32 %v4812, %v2765
    %v4847 = vmul.f32 %v4814, %v2766
    %v4848 = vmul.f32 %v4816, %v2767
    %v4849 = vmul.f32 %v4786, %v4817
    %v4850 = vmul.f32 %v4788, %v4818
    %v4851 = vmul.f32 %v4790, %v4819
    %v4852 = vmul.f32 %v4792, %v4820
    %v4853 = vadd.f32 %v4845, %v4849
    %v4854 = vadd.f32 %v4846, %v4850
    %v4855 = vadd.f32 %v4847, %v4851
    %v4856 = vadd.f32 %v4848, %v4852
    %v4857 = vtanh.pop %v4853
    %v4858 = vtanh.pop %v4854
    %v4859 = vtanh.pop %v4855
    %v4860 = vtanh.pop %v4856
    %v4861 = vmul.f32 %v4838, %v4857
    %v4862 = vmul.f32 %v4840, %v4858
    %v4863 = vmul.f32 %v4842, %v4859
    %v4864 = vmul.f32 %v4844, %v4860
    %v4865 = vpack.c.bf16 %v4535, %v4533
    %v4866 = vpack.c.bf16 %v4536, %v4534
    %4867 = vmatprep.subr.bf16.mxu0 %v3586
    %4868 = vmatpush1.bf16.msra.mxu0 %v3585
    %4869 = vmatprep.subr.bf16.mxu0 %v3594
    %4870 = vmatpush1.bf16.msra.mxu0 %v3593
    %4871 = vmatprep.subr.bf16.mxu0 %v3602
    %4872 = vmatpush1.bf16.msra.mxu0 %v3601
    %4873 = vmatprep.subr.bf16.mxu0 %v3610
    %4874 = vmatpush1.bf16.msra.mxu0 %v3609
    %4875 = vmatprep.subr.bf16.mxu0 %v3618
    %4876 = vmatpush1.bf16.msra.mxu0 %v3617
    %4877 = vmatprep.subr.bf16.mxu0 %v3626
    %4878 = vmatpush1.bf16.msra.mxu0 %v3625
    %4879 = vmatprep.subr.bf16.mxu0 %v3634
    %4880 = vmatpush1.bf16.msra.mxu0 %v3633
    %4881 = vmatprep.subr.bf16.mxu0 %v3642
    %4882 = vmatpush1.bf16.msra.mxu0 %v3641
    %4883 = vmatprep.subr.bf16.mxu0 %v3650
    %4884 = vmatpush1.bf16.msra.mxu0 %v3649
    %4885 = vmatprep.subr.bf16.mxu0 %v3658
    %4886 = vmatpush1.bf16.msra.mxu0 %v3657
    %4887 = vmatprep.subr.bf16.mxu0 %v3666
    %4888 = vmatpush1.bf16.msra.mxu0 %v3665
    %4889 = vmatprep.subr.bf16.mxu0 %v3674
    %4890 = vmatpush1.bf16.msra.mxu0 %v3673
    %4891 = vmatprep.subr.bf16.mxu0 %v3682
    %4892 = vmatpush1.bf16.msra.mxu0 %v3681
    %4893 = vmatprep.subr.bf16.mxu0 %v3690
    %4894 = vmatpush1.bf16.msra.mxu0 %v3689
    %4895 = vmatprep.subr.bf16.mxu0 %v3698
    %4896 = vmatpush1.bf16.msra.mxu0 %v3697
    %4897 = vmatprep.subr.bf16.mxu0 %v3706
    %4898 = vmatpush1.bf16.msra.mxu0 %v3705
    %4899 = vmatprep.mubr.bf16.mxu0 %v4556
    %4900 = vmatmul.mubr.bf16.gmra.mrb[0].mxu0 %v4555
    %v4901 = vpop.f32.mrb[0].mxu0
    %v4902 = vadd.f32 %v2780, %v4901
    %v4903 = vpop.f32.mrb[0].mxu0
    %v4904 = vadd.f32 %v2784, %v4903
    %v4905 = vpop.f32.mrb[0].mxu0
    %v4906 = vadd.f32 %v2780, %v4905
    %v4907 = vpop.f32.mrb[0].mxu0
    %v4908 = vadd.f32 %v2784, %v4907
    %4909 = vdwg.mxu0
    %4910 = vmatprep.subr.bf16.mxu0 %v3714
    %4911 = vmatpush1.bf16.msra.mxu0 %v3713
    %4912 = vmatprep.subr.bf16.mxu0 %v3722
    %4913 = vmatpush1.bf16.msra.mxu0 %v3721
    %4914 = vmatprep.subr.bf16.mxu0 %v3730
    %4915 = vmatpush1.bf16.msra.mxu0 %v3729
    %4916 = vmatprep.subr.bf16.mxu0 %v3738
    %4917 = vmatpush1.bf16.msra.mxu0 %v3737
    %4918 = vmatprep.subr.bf16.mxu0 %v3746
    %4919 = vmatpush1.bf16.msra.mxu0 %v3745
    %4920 = vmatprep.subr.bf16.mxu0 %v3754
    %4921 = vmatpush1.bf16.msra.mxu0 %v3753
    %4922 = vmatprep.subr.bf16.mxu0 %v3762
    %4923 = vmatpush1.bf16.msra.mxu0 %v3761
    %4924 = vmatprep.subr.bf16.mxu0 %v3770
    %4925 = vmatpush1.bf16.msra.mxu0 %v3769
    %4926 = vmatprep.subr.bf16.mxu0 %v3778
    %4927 = vmatpush1.bf16.msra.mxu0 %v3777
    %4928 = vmatprep.subr.bf16.mxu0 %v3786
    %4929 = vmatpush1.bf16.msra.mxu0 %v3785
    %4930 = vmatprep.subr.bf16.mxu0 %v3794
    %4931 = vmatpush1.bf16.msra.mxu0 %v3793
    %4932 = vmatprep.subr.bf16.mxu0 %v3802
    %4933 = vmatpush1.bf16.msra.mxu0 %v3801
    %4934 = vmatprep.subr.bf16.mxu0 %v3810
    %4935 = vmatpush1.bf16.msra.mxu0 %v3809
    %4936 = vmatprep.subr.bf16.mxu0 %v3818
    %4937 = vmatpush1.bf16.msra.mxu0 %v3817
    %4938 = vmatprep.subr.bf16.mxu0 %v3826
    %4939 = vmatpush1.bf16.msra.mxu0 %v3825
    %4940 = vmatprep.subr.bf16.mxu0 %v3834
    %4941 = vmatpush1.bf16.msra.mxu0 %v3833
    %4942 = vmatprep.mubr.bf16.mxu0 %v4866
    %4943 = vmatmul.mubr.bf16.gmra.mrb[0].mxu0 %v4865
    %v4944 = vpop.f32.mrb[0].mxu0
    %v4945 = vadd.f32 %v4902, %v4944
    %v4946 = vpop.f32.mrb[0].mxu0
    %v4947 = vadd.f32 %v4904, %v4946
    %v4948 = vpop.f32.mrb[0].mxu0
    %v4949 = vadd.f32 %v4906, %v4948
    %v4950 = vpop.f32.mrb[0].mxu0
    %v4951 = vadd.f32 %v4908, %v4950
    %4952 = vdwg.mxu0
    %4953 = vmatprep.subr.bf16.mxu0 %v3588
    %4954 = vmatpush1.bf16.msra.mxu0 %v3587
    %4955 = vmatprep.subr.bf16.mxu0 %v3596
    %4956 = vmatpush1.bf16.msra.mxu0 %v3595
    %4957 = vmatprep.subr.bf16.mxu0 %v3604
    %4958 = vmatpush1.bf16.msra.mxu0 %v3603
    %4959 = vmatprep.subr.bf16.mxu0 %v3612
    %4960 = vmatpush1.bf16.msra.mxu0 %v3611
    %4961 = vmatprep.subr.bf16.mxu0 %v3620
    %4962 = vmatpush1.bf16.msra.mxu0 %v3619
    %4963 = vmatprep.subr.bf16.mxu0 %v3628
    %4964 = vmatpush1.bf16.msra.mxu0 %v3627
    %4965 = vmatprep.subr.bf16.mxu0 %v3636
    %4966 = vmatpush1.bf16.msra.mxu0 %v3635
    %4967 = vmatprep.subr.bf16.mxu0 %v3644
    %4968 = vmatpush1.bf16.msra.mxu0 %v3643
    %4969 = vmatprep.subr.bf16.mxu0 %v3652
    %4970 = vmatpush1.bf16.msra.mxu0 %v3651
    %4971 = vmatprep.subr.bf16.mxu0 %v3660
    %4972 = vmatpush1.bf16.msra.mxu0 %v3659
    %4973 = vmatprep.subr.bf16.mxu0 %v3668
    %4974 = vmatpush1.bf16.msra.mxu0 %v3667
    %4975 = vmatprep.subr.bf16.mxu0 %v3676
    %4976 = vmatpush1.bf16.msra.mxu0 %v3675
    %4977 = vmatprep.subr.bf16.mxu0 %v3684
    %4978 = vmatpush1.bf16.msra.mxu0 %v3683
    %4979 = vmatprep.subr.bf16.mxu0 %v3692
    %4980 = vmatpush1.bf16.msra.mxu0 %v3691
    %4981 = vmatprep.subr.bf16.mxu0 %v3700
    %4982 = vmatpush1.bf16.msra.mxu0 %v3699
    %4983 = vmatprep.subr.bf16.mxu0 %v3708
    %4984 = vmatpush1.bf16.msra.mxu0 %v3707
    %4985 = vmatprep.mubr.bf16.mxu0 %v4556
    %4986 = vmatmul.mubr.bf16.gmra.mrb[0].mxu0 %v4555
    %v4987 = vpop.f32.mrb[0].mxu0
    %v4988 = vadd.f32 %v2788, %v4987
    %v4989 = vpop.f32.mrb[0].mxu0
    %v4990 = vadd.f32 %v2792, %v4989
    %v4991 = vpop.f32.mrb[0].mxu0
    %v4992 = vadd.f32 %v2788, %v4991
    %v4993 = vpop.f32.mrb[0].mxu0
    %v4994 = vadd.f32 %v2792, %v4993
    %4995 = vdwg.mxu0
    %4996 = vmatprep.subr.bf16.mxu0 %v3716
    %4997 = vmatpush1.bf16.msra.mxu0 %v3715
    %4998 = vmatprep.subr.bf16.mxu0 %v3724
    %4999 = vmatpush1.bf16.msra.mxu0 %v3723
    %5000 = vmatprep.subr.bf16.mxu0 %v3732
    %5001 = vmatpush1.bf16.msra.mxu0 %v3731
    %5002 = vmatprep.subr.bf16.mxu0 %v3740
    %5003 = vmatpush1.bf16.msra.mxu0 %v3739
    %5004 = vmatprep.subr.bf16.mxu0 %v3748
    %5005 = vmatpush1.bf16.msra.mxu0 %v3747
    %5006 = vmatprep.subr.bf16.mxu0 %v3756
    %5007 = vmatpush1.bf16.msra.mxu0 %v3755
    %5008 = vmatprep.subr.bf16.mxu0 %v3764
    %5009 = vmatpush1.bf16.msra.mxu0 %v3763
    %5010 = vmatprep.subr.bf16.mxu0 %v3772
    %5011 = vmatpush1.bf16.msra.mxu0 %v3771
    %5012 = vmatprep.subr.bf16.mxu0 %v3780
    %5013 = vmatpush1.bf16.msra.mxu0 %v3779
    %5014 = vmatprep.subr.bf16.mxu0 %v3788
    %5015 = vmatpush1.bf16.msra.mxu0 %v3787
    %5016 = vmatprep.subr.bf16.mxu0 %v3796
    %5017 = vmatpush1.bf16.msra.mxu0 %v3795
    %5018 = vmatprep.subr.bf16.mxu0 %v3804
    %5019 = vmatpush1.bf16.msra.mxu0 %v3803
    %5020 = vmatprep.subr.bf16.mxu0 %v3812
    %5021 = vmatpush1.bf16.msra.mxu0 %v3811
    %5022 = vmatprep.subr.bf16.mxu0 %v3820
    %5023 = vmatpush1.bf16.msra.mxu0 %v3819
    %5024 = vmatprep.subr.bf16.mxu0 %v3828
    %5025 = vmatpush1.bf16.msra.mxu0 %v3827
    %5026 = vmatprep.subr.bf16.mxu0 %v3836
    %5027 = vmatpush1.bf16.msra.mxu0 %v3835
    %5028 = vmatprep.mubr.bf16.mxu0 %v4866
    %5029 = vmatmul.mubr.bf16.gmra.mrb[0].mxu0 %v4865
    %v5030 = vpop.f32.mrb[0].mxu0
    %v5031 = vadd.f32 %v4988, %v5030
    %v5032 = vpop.f32.mrb[0].mxu0
    %v5033 = vadd.f32 %v4990, %v5032
    %v5034 = vpop.f32.mrb[0].mxu0
    %v5035 = vadd.f32 %v4992, %v5034
    %v5036 = vpop.f32.mrb[0].mxu0
    %v5037 = vadd.f32 %v4994, %v5036
    %5038 = vdwg.mxu0
    %5039 = vmatprep.subr.bf16.mxu0 %v3590
    %5040 = vmatpush1.bf16.msra.mxu0 %v3589
    %5041 = vmatprep.subr.bf16.mxu0 %v3598
    %5042 = vmatpush1.bf16.msra.mxu0 %v3597
    %5043 = vmatprep.subr.bf16.mxu0 %v3606
    %5044 = vmatpush1.bf16.msra.mxu0 %v3605
    %5045 = vmatprep.subr.bf16.mxu0 %v3614
    %5046 = vmatpush1.bf16.msra.mxu0 %v3613
    %5047 = vmatprep.subr.bf16.mxu0 %v3622
    %5048 = vmatpush1.bf16.msra.mxu0 %v3621
    %5049 = vmatprep.subr.bf16.mxu0 %v3630
    %5050 = vmatpush1.bf16.msra.mxu0 %v3629
    %5051 = vmatprep.subr.bf16.mxu0 %v3638
    %5052 = vmatpush1.bf16.msra.mxu0 %v3637
    %5053 = vmatprep.subr.bf16.mxu0 %v3646
    %5054 = vmatpush1.bf16.msra.mxu0 %v3645
    %5055 = vmatprep.subr.bf16.mxu0 %v3654
    %5056 = vmatpush1.bf16.msra.mxu0 %v3653
    %5057 = vmatprep.subr.bf16.mxu0 %v3662
    %5058 = vmatpush1.bf16.msra.mxu0 %v3661
    %5059 = vmatprep.subr.bf16.mxu0 %v3670
    %5060 = vmatpush1.bf16.msra.mxu0 %v3669
    %5061 = vmatprep.subr.bf16.mxu0 %v3678
    %5062 = vmatpush1.bf16.msra.mxu0 %v3677
    %5063 = vmatprep.subr.bf16.mxu0 %v3686
    %5064 = vmatpush1.bf16.msra.mxu0 %v3685
    %5065 = vmatprep.subr.bf16.mxu0 %v3694
    %5066 = vmatpush1.bf16.msra.mxu0 %v3693
    %5067 = vmatprep.subr.bf16.mxu0 %v3702
    %5068 = vmatpush1.bf16.msra.mxu0 %v3701
    %5069 = vmatprep.subr.bf16.mxu0 %v3710
    %5070 = vmatpush1.bf16.msra.mxu0 %v3709
    %5071 = vmatprep.mubr.bf16.mxu0 %v4556
    %5072 = vmatmul.mubr.bf16.gmra.mrb[0].mxu0 %v4555
    %v5073 = vpop.f32.mrb[0].mxu0
    %v5074 = vadd.f32 %v2796, %v5073
    %v5075 = vpop.f32.mrb[0].mxu0
    %v5076 = vadd.f32 %v2800, %v5075
    %v5077 = vpop.f32.mrb[0].mxu0
    %v5078 = vadd.f32 %v2796, %v5077
    %v5079 = vpop.f32.mrb[0].mxu0
    %v5080 = vadd.f32 %v2800, %v5079
    %5081 = vdwg.mxu0
    %5082 = vmatprep.subr.bf16.mxu0 %v3718
    %5083 = vmatpush1.bf16.msra.mxu0 %v3717
    %5084 = vmatprep.subr.bf16.mxu0 %v3726
    %5085 = vmatpush1.bf16.msra.mxu0 %v3725
    %5086 = vmatprep.subr.bf16.mxu0 %v3734
    %5087 = vmatpush1.bf16.msra.mxu0 %v3733
    %5088 = vmatprep.subr.bf16.mxu0 %v3742
    %5089 = vmatpush1.bf16.msra.mxu0 %v3741
    %5090 = vmatprep.subr.bf16.mxu0 %v3750
    %5091 = vmatpush1.bf16.msra.mxu0 %v3749
    %5092 = vmatprep.subr.bf16.mxu0 %v3758
    %5093 = vmatpush1.bf16.msra.mxu0 %v3757
    %5094 = vmatprep.subr.bf16.mxu0 %v3766
    %5095 = vmatpush1.bf16.msra.mxu0 %v3765
    %5096 = vmatprep.subr.bf16.mxu0 %v3774
    %5097 = vmatpush1.bf16.msra.mxu0 %v3773
    %5098 = vmatprep.subr.bf16.mxu0 %v3782
    %5099 = vmatpush1.bf16.msra.mxu0 %v3781
    %5100 = vmatprep.subr.bf16.mxu0 %v3790
    %5101 = vmatpush1.bf16.msra.mxu0 %v3789
    %5102 = vmatprep.subr.bf16.mxu0 %v3798
    %5103 = vmatpush1.bf16.msra.mxu0 %v3797
    %5104 = vmatprep.subr.bf16.mxu0 %v3806
    %5105 = vmatpush1.bf16.msra.mxu0 %v3805
    %5106 = vmatprep.subr.bf16.mxu0 %v3814
    %5107 = vmatpush1.bf16.msra.mxu0 %v3813
    %5108 = vmatprep.subr.bf16.mxu0 %v3822
    %5109 = vmatpush1.bf16.msra.mxu0 %v3821
    %5110 = vmatprep.subr.bf16.mxu0 %v3830
    %5111 = vmatpush1.bf16.msra.mxu0 %v3829
    %5112 = vmatprep.subr.bf16.mxu0 %v3838
    %5113 = vmatpush1.bf16.msra.mxu0 %v3837
    %5114 = vmatprep.mubr.bf16.mxu0 %v4866
    %5115 = vmatmul.mubr.bf16.gmra.mrb[0].mxu0 %v4865
    %v5116 = vpop.f32.mrb[0].mxu0
    %v5117 = vadd.f32 %v5074, %v5116
    %v5118 = vpop.f32.mrb[0].mxu0
    %v5119 = vadd.f32 %v5076, %v5118
    %v5120 = vpop.f32.mrb[0].mxu0
    %v5121 = vadd.f32 %v5078, %v5120
    %v5122 = vpop.f32.mrb[0].mxu0
    %v5123 = vadd.f32 %v5080, %v5122
    %5124 = vdwg.mxu0
    %5125 = vmatprep.subr.bf16.mxu0 %v3592
    %5126 = vmatpush1.bf16.msra.mxu0 %v3591
    %5127 = vmatprep.subr.bf16.mxu0 %v3600
    %5128 = vmatpush1.bf16.msra.mxu0 %v3599
    %5129 = vmatprep.subr.bf16.mxu0 %v3608
    %5130 = vmatpush1.bf16.msra.mxu0 %v3607
    %5131 = vmatprep.subr.bf16.mxu0 %v3616
    %5132 = vmatpush1.bf16.msra.mxu0 %v3615
    %5133 = vmatprep.subr.bf16.mxu0 %v3624
    %5134 = vmatpush1.bf16.msra.mxu0 %v3623
    %5135 = vmatprep.subr.bf16.mxu0 %v3632
    %5136 = vmatpush1.bf16.msra.mxu0 %v3631
    %5137 = vmatprep.subr.bf16.mxu0 %v3640
    %5138 = vmatpush1.bf16.msra.mxu0 %v3639
    %5139 = vmatprep.subr.bf16.mxu0 %v3648
    %5140 = vmatpush1.bf16.msra.mxu0 %v3647
    %5141 = vmatprep.subr.bf16.mxu0 %v3656
    %5142 = vmatpush1.bf16.msra.mxu0 %v3655
    %5143 = vmatprep.subr.bf16.mxu0 %v3664
    %5144 = vmatpush1.bf16.msra.mxu0 %v3663
    %5145 = vmatprep.subr.bf16.mxu0 %v3672
    %5146 = vmatpush1.bf16.msra.mxu0 %v3671
    %5147 = vmatprep.subr.bf16.mxu0 %v3680
    %5148 = vmatpush1.bf16.msra.mxu0 %v3679
    %5149 = vmatprep.subr.bf16.mxu0 %v3688
    %5150 = vmatpush1.bf16.msra.mxu0 %v3687
    %5151 = vmatprep.subr.bf16.mxu0 %v3696
    %5152 = vmatpush1.bf16.msra.mxu0 %v3695
    %5153 = vmatprep.subr.bf16.mxu0 %v3704
    %5154 = vmatpush1.bf16.msra.mxu0 %v3703
    %5155 = vmatprep.subr.bf16.mxu0 %v3712
    %5156 = vmatpush1.bf16.msra.mxu0 %v3711
    %5157 = vmatprep.mubr.bf16.mxu0 %v4556
    %5158 = vmatmul.mubr.bf16.gmra.mrb[0].mxu0 %v4555
    %v5159 = vpop.f32.mrb[0].mxu0
    %v5160 = vadd.f32 %v2804, %v5159
    %v5161 = vpop.f32.mrb[0].mxu0
    %v5162 = vadd.f32 %v2808, %v5161
    %v5163 = vpop.f32.mrb[0].mxu0
    %v5164 = vadd.f32 %v2804, %v5163
    %v5165 = vpop.f32.mrb[0].mxu0
    %v5166 = vadd.f32 %v2808, %v5165
    %5167 = vdwg.mxu0
    %5168 = vmatprep.subr.bf16.mxu0 %v3720
    %5169 = vmatpush1.bf16.msra.mxu0 %v3719
    %5170 = vmatprep.subr.bf16.mxu0 %v3728
    %5171 = vmatpush1.bf16.msra.mxu0 %v3727
    %5172 = vmatprep.subr.bf16.mxu0 %v3736
    %5173 = vmatpush1.bf16.msra.mxu0 %v3735
    %5174 = vmatprep.subr.bf16.mxu0 %v3744
    %5175 = vmatpush1.bf16.msra.mxu0 %v3743
    %5176 = vmatprep.subr.bf16.mxu0 %v3752
    %5177 = vmatpush1.bf16.msra.mxu0 %v3751
    %5178 = vmatprep.subr.bf16.mxu0 %v3760
    %5179 = vmatpush1.bf16.msra.mxu0 %v3759
    %5180 = vmatprep.subr.bf16.mxu0 %v3768
    %5181 = vmatpush1.bf16.msra.mxu0 %v3767
    %5182 = vmatprep.subr.bf16.mxu0 %v3776
    %5183 = vmatpush1.bf16.msra.mxu0 %v3775
    %5184 = vmatprep.subr.bf16.mxu0 %v3784
    %5185 = vmatpush1.bf16.msra.mxu0 %v3783
    %5186 = vmatprep.subr.bf16.mxu0 %v3792
    %5187 = vmatpush1.bf16.msra.mxu0 %v3791
    %5188 = vmatprep.subr.bf16.mxu0 %v3800
    %5189 = vmatpush1.bf16.msra.mxu0 %v3799
    %5190 = vmatprep.subr.bf16.mxu0 %v3808
    %5191 = vmatpush1.bf16.msra.mxu0 %v3807
    %5192 = vmatprep.subr.bf16.mxu0 %v3816
    %5193 = vmatpush1.bf16.msra.mxu0 %v3815
    %5194 = vmatprep.subr.bf16.mxu0 %v3824
    %5195 = vmatpush1.bf16.msra.mxu0 %v3823
    %5196 = vmatprep.subr.bf16.mxu0 %v3832
    %5197 = vmatpush1.bf16.msra.mxu0 %v3831
    %5198 = vmatprep.subr.bf16.mxu0 %v3840
    %5199 = vmatpush1.bf16.msra.mxu0 %v3839
    %5200 = vmatprep.mubr.bf16.mxu0 %v4866
    %5201 = vmatmul.mubr.bf16.gmra.mrb[0].mxu0 %v4865
    %v5202 = vpop.f32.mrb[0].mxu0
    %v5203 = vadd.f32 %v5160, %v5202
    %v5204 = vpop.f32.mrb[0].mxu0
    %v5205 = vadd.f32 %v5162, %v5204
    %v5206 = vpop.f32.mrb[0].mxu0
    %v5207 = vadd.f32 %v5164, %v5206
    %v5208 = vpop.f32.mrb[0].mxu0
    %v5209 = vadd.f32 %v5166, %v5208
    %5210 = vdwg.mxu0
    %v5211 = vxor.u32 %v4945, 2147483648
    %v5212 = vxor.u32 %v4947, 2147483648
    %v5213 = vxor.u32 %v4949, 2147483648
    %v5214 = vxor.u32 %v4951, 2147483648
    %v5215 = vmul.f32 %v5211, 1.442695
    %v5216 = vpow.pop %v5215
    %v5217 = vmul.f32 %v5212, 1.442695
    %v5218 = vpow.pop %v5217
    %v5219 = vmul.f32 %v5213, 1.442695
    %v5220 = vpow.pop %v5219
    %v5221 = vmul.f32 %v5214, 1.442695
    %v5222 = vpow.pop %v5221
    %v5223 = vadd.f32 %v5216, 1.0
    %v5224 = vadd.f32 %v5218, 1.0
    %v5225 = vadd.f32 %v5220, 1.0
    %v5226 = vadd.f32 %v5222, 1.0
    %v5227 = vrcp.pop %v5223
    %v5228 = vmul.f32 1.0, %v5227
    %v5229 = vrcp.pop %v5224
    %v5230 = vmul.f32 1.0, %v5229
    %v5231 = vrcp.pop %v5225
    %v5232 = vmul.f32 1.0, %v5231
    %v5233 = vrcp.pop %v5226
    %v5234 = vmul.f32 1.0, %v5233
    %v5235 = vxor.u32 %v5031, 2147483648
    %v5236 = vxor.u32 %v5033, 2147483648
    %v5237 = vxor.u32 %v5035, 2147483648
    %v5238 = vxor.u32 %v5037, 2147483648
    %v5239 = vmul.f32 %v5235, 1.442695
    %v5240 = vpow.pop %v5239
    %v5241 = vmul.f32 %v5236, 1.442695
    %v5242 = vpow.pop %v5241
    %v5243 = vmul.f32 %v5237, 1.442695
    %v5244 = vpow.pop %v5243
    %v5245 = vmul.f32 %v5238, 1.442695
    %v5246 = vpow.pop %v5245
    %v5247 = vadd.f32 %v5240, 1.0
    %v5248 = vadd.f32 %v5242, 1.0
    %v5249 = vadd.f32 %v5244, 1.0
    %v5250 = vadd.f32 %v5246, 1.0
    %v5251 = vrcp.pop %v5247
    %v5252 = vmul.f32 1.0, %v5251
    %v5253 = vrcp.pop %v5248
    %v5254 = vmul.f32 1.0, %v5253
    %v5255 = vrcp.pop %v5249
    %v5256 = vmul.f32 1.0, %v5255
    %v5257 = vrcp.pop %v5250
    %v5258 = vmul.f32 1.0, %v5257
    %v5259 = vtanh.pop %v5117
    %v5260 = vtanh.pop %v5119
    %v5261 = vtanh.pop %v5121
    %v5262 = vtanh.pop %v5123
    %v5263 = vxor.u32 %v5203, 2147483648
    %v5264 = vxor.u32 %v5205, 2147483648
    %v5265 = vxor.u32 %v5207, 2147483648
    %v5266 = vxor.u32 %v5209, 2147483648
    %v5267 = vmul.f32 %v5263, 1.442695
    %v5268 = vpow.pop %v5267
    %v5269 = vmul.f32 %v5264, 1.442695
    %v5270 = vpow.pop %v5269
    %v5271 = vmul.f32 %v5265, 1.442695
    %v5272 = vpow.pop %v5271
    %v5273 = vmul.f32 %v5266, 1.442695
    %v5274 = vpow.pop %v5273
    %v5275 = vadd.f32 %v5268, 1.0
    %v5276 = vadd.f32 %v5270, 1.0
    %v5277 = vadd.f32 %v5272, 1.0
    %v5278 = vadd.f32 %v5274, 1.0
    %v5279 = vrcp.pop %v5275
    %v5280 = vmul.f32 1.0, %v5279
    %v5281 = vrcp.pop %v5276
    %v5282 = vmul.f32 1.0, %v5281
    %v5283 = vrcp.pop %v5277
    %v5284 = vmul.f32 1.0, %v5283
    %v5285 = vrcp.pop %v5278
    %v5286 = vmul.f32 1.0, %v5285
    %v5287 = vmul.f32 %v5252, %v4525
    %v5288 = vmul.f32 %v5254, %v4526
    %v5289 = vmul.f32 %v5256, %v4527
    %v5290 = vmul.f32 %v5258, %v4528
    %v5291 = vmul.f32 %v5228, %v5259
    %v5292 = vmul.f32 %v5230, %v5260
    %v5293 = vmul.f32 %v5232, %v5261
    %v5294 = vmul.f32 %v5234, %v5262
    %v5295 = vadd.f32 %v5287, %v5291
    %v5296 = vadd.f32 %v5288, %v5292
    %v5297 = vadd.f32 %v5289, %v5293
    %v5298 = vadd.f32 %v5290, %v5294
    %v5299 = vtanh.pop %v5295
    %v5300 = vtanh.pop %v5296
    %v5301 = vtanh.pop %v5297
    %v5302 = vtanh.pop %v5298
    %v5303 = vmul.f32 %v5280, %v5299
    %v5304 = vmul.f32 %v5282, %v5300
    %v5305 = vmul.f32 %v5284, %v5301
    %v5306 = vmul.f32 %v5286, %v5302
    %vm5307 = vcmp.eq.s32.totalorder %v4537, 1
    %vm5308 = vcmp.eq.s32.totalorder %v4538, 1
    %v5309 = vsel %vm5307, 1, 0
    %v5310 = vsel %vm5308, 1, 0
    %5311 = vset.pattern.permute.xlu0 0
    %5312 = vperm.xlu0 %5311, %v5309
    %v5313 = vpop.permute.xlu0 %5312
    %5314 = vset.pattern.permute.xlu0 0
    %5315 = vperm.xlu0 %5314, %v5310
    %v5316 = vpop.permute.xlu0 %5315
    %vm5317 = vcmp.eq.s32.totalorder %v5313, 1
    %vm5318 = vcmp.eq.s32.totalorder %v5316, 1
    %v5319 = vsel %vm5317, %v5303, %v4551
    %v5320 = vsel %vm5317, %v5304, %v4552
    %v5321 = vsel %vm5318, %v5305, %v4553
    %v5322 = vsel %vm5318, %v5306, %v4554
    %v5323 = vpack.c.bf16 %v4863, %v4861
    %v5324 = vpack.c.bf16 %v4864, %v4862
    %v5325 = vld [vmem:[#allocation2 + $0xc0] sm:$0xff]
    %v5326 = vld [vmem:[#allocation2 + $0xc8] sm:$0xff]
    %v5327 = vld [vmem:[#allocation2 + $0xd0] sm:$0xff]
    %v5328 = vld [vmem:[#allocation2 + $0xd8] sm:$0xff]
    %v5329 = vld [vmem:[#allocation2 + $0xe0] sm:$0xff]
    %v5330 = vld [vmem:[#allocation2 + $0xe8] sm:$0xff]
    %v5331 = vld [vmem:[#allocation2 + $0xf0] sm:$0xff]
    %v5332 = vld [vmem:[#allocation2 + $0xf8] sm:$0xff]
    %v5333 = vunpack.c.l.bf16 %v5325
    %v5334 = vunpack.c.l.bf16 %v5326
    %v5335 = vunpack.c.l.bf16 %v5327
    %v5336 = vunpack.c.l.bf16 %v5328
    %v5337 = vunpack.c.l.bf16 %v5329
    %v5338 = vunpack.c.l.bf16 %v5330
    %v5339 = vunpack.c.l.bf16 %v5331
    %v5340 = vunpack.c.l.bf16 %v5332
    %v5341 = vunpack.c.h.bf16 %v5325
    %v5342 = vunpack.c.h.bf16 %v5326
    %v5343 = vunpack.c.h.bf16 %v5327
    %v5344 = vunpack.c.h.bf16 %v5328
    %v5345 = vunpack.c.h.bf16 %v5329
    %v5346 = vunpack.c.h.bf16 %v5330
    %v5347 = vunpack.c.h.bf16 %v5331
    %v5348 = vunpack.c.h.bf16 %v5332
    %5349 = vmatprep.subr.bf16.mxu0 %v1927
    %5350 = vmatpush1.bf16.msra.mxu0 %v1926
    %5351 = vmatprep.subr.bf16.mxu0 %v1935
    %5352 = vmatpush1.bf16.msra.mxu0 %v1934
    %5353 = vmatprep.subr.bf16.mxu0 %v1943
    %5354 = vmatpush1.bf16.msra.mxu0 %v1942
    %5355 = vmatprep.subr.bf16.mxu0 %v1951
    %5356 = vmatpush1.bf16.msra.mxu0 %v1950
    %5357 = vmatprep.subr.bf16.mxu0 %v1959
    %5358 = vmatpush1.bf16.msra.mxu0 %v1958
    %5359 = vmatprep.subr.bf16.mxu0 %v1967
    %5360 = vmatpush1.bf16.msra.mxu0 %v1966
    %5361 = vmatprep.subr.bf16.mxu0 %v1975
    %5362 = vmatpush1.bf16.msra.mxu0 %v1974
    %5363 = vmatprep.subr.bf16.mxu0 %v1983
    %5364 = vmatpush1.bf16.msra.mxu0 %v1982
    %5365 = vmatprep.subr.bf16.mxu0 %v1991
    %5366 = vmatpush1.bf16.msra.mxu0 %v1990
    %5367 = vmatprep.subr.bf16.mxu0 %v1999
    %5368 = vmatpush1.bf16.msra.mxu0 %v1998
    %5369 = vmatprep.subr.bf16.mxu0 %v2007
    %5370 = vmatpush1.bf16.msra.mxu0 %v2006
    %5371 = vmatprep.subr.bf16.mxu0 %v2015
    %5372 = vmatpush1.bf16.msra.mxu0 %v2014
    %5373 = vmatprep.subr.bf16.mxu0 %v2023
    %5374 = vmatpush1.bf16.msra.mxu0 %v2022
    %5375 = vmatprep.subr.bf16.mxu0 %v2031
    %5376 = vmatpush1.bf16.msra.mxu0 %v2030
    %5377 = vmatprep.subr.bf16.mxu0 %v2039
    %5378 = vmatpush1.bf16.msra.mxu0 %v2038
    %5379 = vmatprep.subr.bf16.mxu0 %v2047
    %5380 = vmatpush1.bf16.msra.mxu0 %v2046
    %5381 = vmatprep.mubr.bf16.mxu0 %v5324
    %5382 = vmatmul.mubr.bf16.gmra.mrb[0].mxu0 %v5323
    %v5383 = vpop.f32.mrb[0].mxu0
    %v5384 = vadd.f32 0.0, %v5383
    %v5385 = vpop.f32.mrb[0].mxu0
    %v5386 = vadd.f32 0.0, %v5385
    %v5387 = vpop.f32.mrb[0].mxu0
    %v5388 = vadd.f32 0.0, %v5387
    %v5389 = vpop.f32.mrb[0].mxu0
    %v5390 = vadd.f32 0.0, %v5389
    %5391 = vdwg.mxu0
    %5392 = vmatprep.subr.bf16.mxu0 %v1929
    %5393 = vmatpush1.bf16.msra.mxu0 %v1928
    %5394 = vmatprep.subr.bf16.mxu0 %v1937
    %5395 = vmatpush1.bf16.msra.mxu0 %v1936
    %5396 = vmatprep.subr.bf16.mxu0 %v1945
    %5397 = vmatpush1.bf16.msra.mxu0 %v1944
    %5398 = vmatprep.subr.bf16.mxu0 %v1953
    %5399 = vmatpush1.bf16.msra.mxu0 %v1952
    %5400 = vmatprep.subr.bf16.mxu0 %v1961
    %5401 = vmatpush1.bf16.msra.mxu0 %v1960
    %5402 = vmatprep.subr.bf16.mxu0 %v1969
    %5403 = vmatpush1.bf16.msra.mxu0 %v1968
    %5404 = vmatprep.subr.bf16.mxu0 %v1977
    %5405 = vmatpush1.bf16.msra.mxu0 %v1976
    %5406 = vmatprep.subr.bf16.mxu0 %v1985
    %5407 = vmatpush1.bf16.msra.mxu0 %v1984
    %5408 = vmatprep.subr.bf16.mxu0 %v1993
    %5409 = vmatpush1.bf16.msra.mxu0 %v1992
    %5410 = vmatprep.subr.bf16.mxu0 %v2001
    %5411 = vmatpush1.bf16.msra.mxu0 %v2000
    %5412 = vmatprep.subr.bf16.mxu0 %v2009
    %5413 = vmatpush1.bf16.msra.mxu0 %v2008
    %5414 = vmatprep.subr.bf16.mxu0 %v2017
    %5415 = vmatpush1.bf16.msra.mxu0 %v2016
    %5416 = vmatprep.subr.bf16.mxu0 %v2025
    %5417 = vmatpush1.bf16.msra.mxu0 %v2024
    %5418 = vmatprep.subr.bf16.mxu0 %v2033
    %5419 = vmatpush1.bf16.msra.mxu0 %v2032
    %5420 = vmatprep.subr.bf16.mxu0 %v2041
    %5421 = vmatpush1.bf16.msra.mxu0 %v2040
    %5422 = vmatprep.subr.bf16.mxu0 %v2049
    %5423 = vmatpush1.bf16.msra.mxu0 %v2048
    %5424 = vmatprep.mubr.bf16.mxu0 %v5324
    %5425 = vmatmul.mubr.bf16.gmra.mrb[0].mxu0 %v5323
    %v5426 = vpop.f32.mrb[0].mxu0
    %v5427 = vadd.f32 0.0, %v5426
    %v5428 = vpop.f32.mrb[0].mxu0
    %v5429 = vadd.f32 0.0, %v5428
    %v5430 = vpop.f32.mrb[0].mxu0
    %v5431 = vadd.f32 0.0, %v5430
    %v5432 = vpop.f32.mrb[0].mxu0
    %v5433 = vadd.f32 0.0, %v5432
    %5434 = vdwg.mxu0
    %5435 = vmatprep.subr.bf16.mxu0 %v1931
    %5436 = vmatpush1.bf16.msra.mxu0 %v1930
    %5437 = vmatprep.subr.bf16.mxu0 %v1939
    %5438 = vmatpush1.bf16.msra.mxu0 %v1938
    %5439 = vmatprep.subr.bf16.mxu0 %v1947
    %5440 = vmatpush1.bf16.msra.mxu0 %v1946
    %5441 = vmatprep.subr.bf16.mxu0 %v1955
    %5442 = vmatpush1.bf16.msra.mxu0 %v1954
    %5443 = vmatprep.subr.bf16.mxu0 %v1963
    %5444 = vmatpush1.bf16.msra.mxu0 %v1962
    %5445 = vmatprep.subr.bf16.mxu0 %v1971
    %5446 = vmatpush1.bf16.msra.mxu0 %v1970
    %5447 = vmatprep.subr.bf16.mxu0 %v1979
    %5448 = vmatpush1.bf16.msra.mxu0 %v1978
    %5449 = vmatprep.subr.bf16.mxu0 %v1987
    %5450 = vmatpush1.bf16.msra.mxu0 %v1986
    %5451 = vmatprep.subr.bf16.mxu0 %v1995
    %5452 = vmatpush1.bf16.msra.mxu0 %v1994
    %5453 = vmatprep.subr.bf16.mxu0 %v2003
    %5454 = vmatpush1.bf16.msra.mxu0 %v2002
    %5455 = vmatprep.subr.bf16.mxu0 %v2011
    %5456 = vmatpush1.bf16.msra.mxu0 %v2010
    %5457 = vmatprep.subr.bf16.mxu0 %v2019
    %5458 = vmatpush1.bf16.msra.mxu0 %v2018
    %5459 = vmatprep.subr.bf16.mxu0 %v2027
    %5460 = vmatpush1.bf16.msra.mxu0 %v2026
    %5461 = vmatprep.subr.bf16.mxu0 %v2035
    %5462 = vmatpush1.bf16.msra.mxu0 %v2034
    %5463 = vmatprep.subr.bf16.mxu0 %v2043
    %5464 = vmatpush1.bf16.msra.mxu0 %v2042
    %5465 = vmatprep.subr.bf16.mxu0 %v2051
    %5466 = vmatpush1.bf16.msra.mxu0 %v2050
    %5467 = vmatprep.mubr.bf16.mxu0 %v5324
    %5468 = vmatmul.mubr.bf16.gmra.mrb[0].mxu0 %v5323
    %v5469 = vpop.f32.mrb[0].mxu0
    %v5470 = vadd.f32 0.0, %v5469
    %v5471 = vpop.f32.mrb[0].mxu0
    %v5472 = vadd.f32 0.0, %v5471
    %v5473 = vpop.f32.mrb[0].mxu0
    %v5474 = vadd.f32 0.0, %v5473
    %v5475 = vpop.f32.mrb[0].mxu0
    %v5476 = vadd.f32 0.0, %v5475
    %5477 = vdwg.mxu0
    %5478 = vmatprep.subr.bf16.mxu0 %v1933
    %5479 = vmatpush1.bf16.msra.mxu0 %v1932
    %5480 = vmatprep.subr.bf16.mxu0 %v1941
    %5481 = vmatpush1.bf16.msra.mxu0 %v1940
    %5482 = vmatprep.subr.bf16.mxu0 %v1949
    %5483 = vmatpush1.bf16.msra.mxu0 %v1948
    %5484 = vmatprep.subr.bf16.mxu0 %v1957
    %5485 = vmatpush1.bf16.msra.mxu0 %v1956
    %5486 = vmatprep.subr.bf16.mxu0 %v1965
    %5487 = vmatpush1.bf16.msra.mxu0 %v1964
    %5488 = vmatprep.subr.bf16.mxu0 %v1973
    %5489 = vmatpush1.bf16.msra.mxu0 %v1972
    %5490 = vmatprep.subr.bf16.mxu0 %v1981
    %5491 = vmatpush1.bf16.msra.mxu0 %v1980
    %5492 = vmatprep.subr.bf16.mxu0 %v1989
    %5493 = vmatpush1.bf16.msra.mxu0 %v1988
    %5494 = vmatprep.subr.bf16.mxu0 %v1997
    %5495 = vmatpush1.bf16.msra.mxu0 %v1996
    %5496 = vmatprep.subr.bf16.mxu0 %v2005
    %5497 = vmatpush1.bf16.msra.mxu0 %v2004
    %5498 = vmatprep.subr.bf16.mxu0 %v2013
    %5499 = vmatpush1.bf16.msra.mxu0 %v2012
    %5500 = vmatprep.subr.bf16.mxu0 %v2021
    %5501 = vmatpush1.bf16.msra.mxu0 %v2020
    %5502 = vmatprep.subr.bf16.mxu0 %v2029
    %5503 = vmatpush1.bf16.msra.mxu0 %v2028
    %5504 = vmatprep.subr.bf16.mxu0 %v2037
    %5505 = vmatpush1.bf16.msra.mxu0 %v2036
    %5506 = vmatprep.subr.bf16.mxu0 %v2045
    %5507 = vmatpush1.bf16.msra.mxu0 %v2044
    %5508 = vmatprep.subr.bf16.mxu0 %v2053
    %5509 = vmatpush1.bf16.msra.mxu0 %v2052
    %5510 = vmatprep.mubr.bf16.mxu0 %v5324
    %5511 = vmatmul.mubr.bf16.gmra.mrb[0].mxu0 %v5323
    %v5512 = vpop.f32.mrb[0].mxu0
    %v5513 = vadd.f32 0.0, %v5512
    %v5514 = vpop.f32.mrb[0].mxu0
    %v5515 = vadd.f32 0.0, %v5514
    %v5516 = vpop.f32.mrb[0].mxu0
    %v5517 = vadd.f32 0.0, %v5516
    %v5518 = vpop.f32.mrb[0].mxu0
    %v5519 = vadd.f32 0.0, %v5518
    %5520 = vdwg.mxu0
    %v5521 = vadd.f32 %v5333, %v5384
    %v5522 = vadd.f32 %v5334, %v5386
    %v5523 = vadd.f32 %v5335, %v5427
    %v5524 = vadd.f32 %v5336, %v5429
    %v5525 = vadd.f32 %v5337, %v5470
    %v5526 = vadd.f32 %v5338, %v5472
    %v5527 = vadd.f32 %v5339, %v5513
    %v5528 = vadd.f32 %v5340, %v5515
    %v5529 = vadd.f32 %v5341, %v5388
    %v5530 = vadd.f32 %v5342, %v5390
    %v5531 = vadd.f32 %v5343, %v5431
    %v5532 = vadd.f32 %v5344, %v5433
    %v5533 = vadd.f32 %v5345, %v5474
    %v5534 = vadd.f32 %v5346, %v5476
    %v5535 = vadd.f32 %v5347, %v5517
    %v5536 = vadd.f32 %v5348, %v5519
    %v5537 = vxor.u32 %v5521, 2147483648
    %v5538 = vxor.u32 %v5522, 2147483648
    %v5539 = vxor.u32 %v5529, 2147483648
    %v5540 = vxor.u32 %v5530, 2147483648
    %v5541 = vmul.f32 %v5537, 1.442695
    %v5542 = vpow.pop %v5541
    %v5543 = vmul.f32 %v5538, 1.442695
    %v5544 = vpow.pop %v5543
    %v5545 = vmul.f32 %v5539, 1.442695
    %v5546 = vpow.pop %v5545
    %v5547 = vmul.f32 %v5540, 1.442695
    %v5548 = vpow.pop %v5547
    %v5549 = vadd.f32 %v5542, 1.0
    %v5550 = vadd.f32 %v5544, 1.0
    %v5551 = vadd.f32 %v5546, 1.0
    %v5552 = vadd.f32 %v5548, 1.0
    %v5553 = vrcp.pop %v5549
    %v5554 = vmul.f32 1.0, %v5553
    %v5555 = vrcp.pop %v5550
    %v5556 = vmul.f32 1.0, %v5555
    %v5557 = vrcp.pop %v5551
    %v5558 = vmul.f32 1.0, %v5557
    %v5559 = vrcp.pop %v5552
    %v5560 = vmul.f32 1.0, %v5559
    %v5561 = vxor.u32 %v5523, 2147483648
    %v5562 = vxor.u32 %v5524, 2147483648
    %v5563 = vxor.u32 %v5531, 2147483648
    %v5564 = vxor.u32 %v5532, 2147483648
    %v5565 = vmul.f32 %v5561, 1.442695
    %v5566 = vpow.pop %v5565
    %v5567 = vmul.f32 %v5562, 1.442695
    %v5568 = vpow.pop %v5567
    %v5569 = vmul.f32 %v5563, 1.442695
    %v5570 = vpow.pop %v5569
    %v5571 = vmul.f32 %v5564, 1.442695
    %v5572 = vpow.pop %v5571
    %v5573 = vadd.f32 %v5566, 1.0
    %v5574 = vadd.f32 %v5568, 1.0
    %v5575 = vadd.f32 %v5570, 1.0
    %v5576 = vadd.f32 %v5572, 1.0
    %v5577 = vrcp.pop %v5573
    %v5578 = vmul.f32 1.0, %v5577
    %v5579 = vrcp.pop %v5574
    %v5580 = vmul.f32 1.0, %v5579
    %v5581 = vrcp.pop %v5575
    %v5582 = vmul.f32 1.0, %v5581
    %v5583 = vrcp.pop %v5576
    %v5584 = vmul.f32 1.0, %v5583
    %v5585 = vtanh.pop %v5525
    %v5586 = vtanh.pop %v5526
    %v5587 = vtanh.pop %v5533
    %v5588 = vtanh.pop %v5534
    %v5589 = vxor.u32 %v5527, 2147483648
    %v5590 = vxor.u32 %v5528, 2147483648
    %v5591 = vxor.u32 %v5535, 2147483648
    %v5592 = vxor.u32 %v5536, 2147483648
    %v5593 = vmul.f32 %v5589, 1.442695
    %v5594 = vpow.pop %v5593
    %v5595 = vmul.f32 %v5590, 1.442695
    %v5596 = vpow.pop %v5595
    %v5597 = vmul.f32 %v5591, 1.442695
    %v5598 = vpow.pop %v5597
    %v5599 = vmul.f32 %v5592, 1.442695
    %v5600 = vpow.pop %v5599
    %v5601 = vadd.f32 %v5594, 1.0
    %v5602 = vadd.f32 %v5596, 1.0
    %v5603 = vadd.f32 %v5598, 1.0
    %v5604 = vadd.f32 %v5600, 1.0
    %v5605 = vrcp.pop %v5601
    %v5606 = vmul.f32 1.0, %v5605
    %v5607 = vrcp.pop %v5602
    %v5608 = vmul.f32 1.0, %v5607
    %v5609 = vrcp.pop %v5603
    %v5610 = vmul.f32 1.0, %v5609
    %v5611 = vrcp.pop %v5604
    %v5612 = vmul.f32 1.0, %v5611
    %v5613 = vmul.f32 %v5578, %v4853
    %v5614 = vmul.f32 %v5580, %v4854
    %v5615 = vmul.f32 %v5582, %v4855
    %v5616 = vmul.f32 %v5584, %v4856
    %v5617 = vmul.f32 %v5554, %v5585
    %v5618 = vmul.f32 %v5556, %v5586
    %v5619 = vmul.f32 %v5558, %v5587
    %v5620 = vmul.f32 %v5560, %v5588
    %v5621 = vadd.f32 %v5613, %v5617
    %v5622 = vadd.f32 %v5614, %v5618
    %v5623 = vadd.f32 %v5615, %v5619
    %v5624 = vadd.f32 %v5616, %v5620
    %v5625 = vtanh.pop %v5621
    %v5626 = vtanh.pop %v5622
    %v5627 = vtanh.pop %v5623
    %v5628 = vtanh.pop %v5624
    %v5629 = vmul.f32 %v5606, %v5625
    %v5630 = vmul.f32 %v5608, %v5626
    %v5631 = vmul.f32 %v5610, %v5627
    %v5632 = vmul.f32 %v5612, %v5628
    %v5633 = vpack.c.bf16 %v5305, %v5303
    %v5634 = vpack.c.bf16 %v5306, %v5304
    %5635 = vmatprep.subr.bf16.mxu0 %v3586
    %5636 = vmatpush1.bf16.msra.mxu0 %v3585
    %5637 = vmatprep.subr.bf16.mxu0 %v3594
    %5638 = vmatpush1.bf16.msra.mxu0 %v3593
    %5639 = vmatprep.subr.bf16.mxu0 %v3602
    %5640 = vmatpush1.bf16.msra.mxu0 %v3601
    %5641 = vmatprep.subr.bf16.mxu0 %v3610
    %5642 = vmatpush1.bf16.msra.mxu0 %v3609
    %5643 = vmatprep.subr.bf16.mxu0 %v3618
    %5644 = vmatpush1.bf16.msra.mxu0 %v3617
    %5645 = vmatprep.subr.bf16.mxu0 %v3626
    %5646 = vmatpush1.bf16.msra.mxu0 %v3625
    %5647 = vmatprep.subr.bf16.mxu0 %v3634
    %5648 = vmatpush1.bf16.msra.mxu0 %v3633
    %5649 = vmatprep.subr.bf16.mxu0 %v3642
    %5650 = vmatpush1.bf16.msra.mxu0 %v3641
    %5651 = vmatprep.subr.bf16.mxu0 %v3650
    %5652 = vmatpush1.bf16.msra.mxu0 %v3649
    %5653 = vmatprep.subr.bf16.mxu0 %v3658
    %5654 = vmatpush1.bf16.msra.mxu0 %v3657
    %5655 = vmatprep.subr.bf16.mxu0 %v3666
    %5656 = vmatpush1.bf16.msra.mxu0 %v3665
    %5657 = vmatprep.subr.bf16.mxu0 %v3674
    %5658 = vmatpush1.bf16.msra.mxu0 %v3673
    %5659 = vmatprep.subr.bf16.mxu0 %v3682
    %5660 = vmatpush1.bf16.msra.mxu0 %v3681
    %5661 = vmatprep.subr.bf16.mxu0 %v3690
    %5662 = vmatpush1.bf16.msra.mxu0 %v3689
    %5663 = vmatprep.subr.bf16.mxu0 %v3698
    %5664 = vmatpush1.bf16.msra.mxu0 %v3697
    %5665 = vmatprep.subr.bf16.mxu0 %v3706
    %5666 = vmatpush1.bf16.msra.mxu0 %v3705
    %5667 = vmatprep.mubr.bf16.mxu0 %v5324
    %5668 = vmatmul.mubr.bf16.gmra.mrb[0].mxu0 %v5323
    %v5669 = vpop.f32.mrb[0].mxu0
    %v5670 = vadd.f32 %v2780, %v5669
    %v5671 = vpop.f32.mrb[0].mxu0
    %v5672 = vadd.f32 %v2784, %v5671
    %v5673 = vpop.f32.mrb[0].mxu0
    %v5674 = vadd.f32 %v2780, %v5673
    %v5675 = vpop.f32.mrb[0].mxu0
    %v5676 = vadd.f32 %v2784, %v5675
    %5677 = vdwg.mxu0
    %5678 = vmatprep.subr.bf16.mxu0 %v3714
    %5679 = vmatpush1.bf16.msra.mxu0 %v3713
    %5680 = vmatprep.subr.bf16.mxu0 %v3722
    %5681 = vmatpush1.bf16.msra.mxu0 %v3721
    %5682 = vmatprep.subr.bf16.mxu0 %v3730
    %5683 = vmatpush1.bf16.msra.mxu0 %v3729
    %5684 = vmatprep.subr.bf16.mxu0 %v3738
    %5685 = vmatpush1.bf16.msra.mxu0 %v3737
    %5686 = vmatprep.subr.bf16.mxu0 %v3746
    %5687 = vmatpush1.bf16.msra.mxu0 %v3745
    %5688 = vmatprep.subr.bf16.mxu0 %v3754
    %5689 = vmatpush1.bf16.msra.mxu0 %v3753
    %5690 = vmatprep.subr.bf16.mxu0 %v3762
    %5691 = vmatpush1.bf16.msra.mxu0 %v3761
    %5692 = vmatprep.subr.bf16.mxu0 %v3770
    %5693 = vmatpush1.bf16.msra.mxu0 %v3769
    %5694 = vmatprep.subr.bf16.mxu0 %v3778
    %5695 = vmatpush1.bf16.msra.mxu0 %v3777
    %5696 = vmatprep.subr.bf16.mxu0 %v3786
    %5697 = vmatpush1.bf16.msra.mxu0 %v3785
    %5698 = vmatprep.subr.bf16.mxu0 %v3794
    %5699 = vmatpush1.bf16.msra.mxu0 %v3793
    %5700 = vmatprep.subr.bf16.mxu0 %v3802
    %5701 = vmatpush1.bf16.msra.mxu0 %v3801
    %5702 = vmatprep.subr.bf16.mxu0 %v3810
    %5703 = vmatpush1.bf16.msra.mxu0 %v3809
    %5704 = vmatprep.subr.bf16.mxu0 %v3818
    %5705 = vmatpush1.bf16.msra.mxu0 %v3817
    %5706 = vmatprep.subr.bf16.mxu0 %v3826
    %5707 = vmatpush1.bf16.msra.mxu0 %v3825
    %5708 = vmatprep.subr.bf16.mxu0 %v3834
    %5709 = vmatpush1.bf16.msra.mxu0 %v3833
    %5710 = vmatprep.mubr.bf16.mxu0 %v5634
    %5711 = vmatmul.mubr.bf16.gmra.mrb[0].mxu0 %v5633
    %v5712 = vpop.f32.mrb[0].mxu0
    %v5713 = vadd.f32 %v5670, %v5712
    %v5714 = vpop.f32.mrb[0].mxu0
    %v5715 = vadd.f32 %v5672, %v5714
    %v5716 = vpop.f32.mrb[0].mxu0
    %v5717 = vadd.f32 %v5674, %v5716
    %v5718 = vpop.f32.mrb[0].mxu0
    %v5719 = vadd.f32 %v5676, %v5718
    %5720 = vdwg.mxu0
    %5721 = vmatprep.subr.bf16.mxu0 %v3588
    %5722 = vmatpush1.bf16.msra.mxu0 %v3587
    %5723 = vmatprep.subr.bf16.mxu0 %v3596
    %5724 = vmatpush1.bf16.msra.mxu0 %v3595
    %5725 = vmatprep.subr.bf16.mxu0 %v3604
    %5726 = vmatpush1.bf16.msra.mxu0 %v3603
    %5727 = vmatprep.subr.bf16.mxu0 %v3612
    %5728 = vmatpush1.bf16.msra.mxu0 %v3611
    %5729 = vmatprep.subr.bf16.mxu0 %v3620
    %5730 = vmatpush1.bf16.msra.mxu0 %v3619
    %5731 = vmatprep.subr.bf16.mxu0 %v3628
    %5732 = vmatpush1.bf16.msra.mxu0 %v3627
    %5733 = vmatprep.subr.bf16.mxu0 %v3636
    %5734 = vmatpush1.bf16.msra.mxu0 %v3635
    %5735 = vmatprep.subr.bf16.mxu0 %v3644
    %5736 = vmatpush1.bf16.msra.mxu0 %v3643
    %5737 = vmatprep.subr.bf16.mxu0 %v3652
    %5738 = vmatpush1.bf16.msra.mxu0 %v3651
    %5739 = vmatprep.subr.bf16.mxu0 %v3660
    %5740 = vmatpush1.bf16.msra.mxu0 %v3659
    %5741 = vmatprep.subr.bf16.mxu0 %v3668
    %5742 = vmatpush1.bf16.msra.mxu0 %v3667
    %5743 = vmatprep.subr.bf16.mxu0 %v3676
    %5744 = vmatpush1.bf16.msra.mxu0 %v3675
    %5745 = vmatprep.subr.bf16.mxu0 %v3684
    %5746 = vmatpush1.bf16.msra.mxu0 %v3683
    %5747 = vmatprep.subr.bf16.mxu0 %v3692
    %5748 = vmatpush1.bf16.msra.mxu0 %v3691
    %5749 = vmatprep.subr.bf16.mxu0 %v3700
    %5750 = vmatpush1.bf16.msra.mxu0 %v3699
    %5751 = vmatprep.subr.bf16.mxu0 %v3708
    %5752 = vmatpush1.bf16.msra.mxu0 %v3707
    %5753 = vmatprep.mubr.bf16.mxu0 %v5324
    %5754 = vmatmul.mubr.bf16.gmra.mrb[0].mxu0 %v5323
    %v5755 = vpop.f32.mrb[0].mxu0
    %v5756 = vadd.f32 %v2788, %v5755
    %v5757 = vpop.f32.mrb[0].mxu0
    %v5758 = vadd.f32 %v2792, %v5757
    %v5759 = vpop.f32.mrb[0].mxu0
    %v5760 = vadd.f32 %v2788, %v5759
    %v5761 = vpop.f32.mrb[0].mxu0
    %v5762 = vadd.f32 %v2792, %v5761
    %5763 = vdwg.mxu0
    %5764 = vmatprep.subr.bf16.mxu0 %v3716
    %5765 = vmatpush1.bf16.msra.mxu0 %v3715
    %5766 = vmatprep.subr.bf16.mxu0 %v3724
    %5767 = vmatpush1.bf16.msra.mxu0 %v3723
    %5768 = vmatprep.subr.bf16.mxu0 %v3732
    %5769 = vmatpush1.bf16.msra.mxu0 %v3731
    %5770 = vmatprep.subr.bf16.mxu0 %v3740
    %5771 = vmatpush1.bf16.msra.mxu0 %v3739
    %5772 = vmatprep.subr.bf16.mxu0 %v3748
    %5773 = vmatpush1.bf16.msra.mxu0 %v3747
    %5774 = vmatprep.subr.bf16.mxu0 %v3756
    %5775 = vmatpush1.bf16.msra.mxu0 %v3755
    %5776 = vmatprep.subr.bf16.mxu0 %v3764
    %5777 = vmatpush1.bf16.msra.mxu0 %v3763
    %5778 = vmatprep.subr.bf16.mxu0 %v3772
    %5779 = vmatpush1.bf16.msra.mxu0 %v3771
    %5780 = vmatprep.subr.bf16.mxu0 %v3780
    %5781 = vmatpush1.bf16.msra.mxu0 %v3779
    %5782 = vmatprep.subr.bf16.mxu0 %v3788
    %5783 = vmatpush1.bf16.msra.mxu0 %v3787
    %5784 = vmatprep.subr.bf16.mxu0 %v3796
    %5785 = vmatpush1.bf16.msra.mxu0 %v3795
    %5786 = vmatprep.subr.bf16.mxu0 %v3804
    %5787 = vmatpush1.bf16.msra.mxu0 %v3803
    %5788 = vmatprep.subr.bf16.mxu0 %v3812
    %5789 = vmatpush1.bf16.msra.mxu0 %v3811
    %5790 = vmatprep.subr.bf16.mxu0 %v3820
    %5791 = vmatpush1.bf16.msra.mxu0 %v3819
    %5792 = vmatprep.subr.bf16.mxu0 %v3828
    %5793 = vmatpush1.bf16.msra.mxu0 %v3827
    %5794 = vmatprep.subr.bf16.mxu0 %v3836
    %5795 = vmatpush1.bf16.msra.mxu0 %v3835
    %5796 = vmatprep.mubr.bf16.mxu0 %v5634
    %5797 = vmatmul.mubr.bf16.gmra.mrb[0].mxu0 %v5633
    %v5798 = vpop.f32.mrb[0].mxu0
    %v5799 = vadd.f32 %v5756, %v5798
    %v5800 = vpop.f32.mrb[0].mxu0
    %v5801 = vadd.f32 %v5758, %v5800
    %v5802 = vpop.f32.mrb[0].mxu0
    %v5803 = vadd.f32 %v5760, %v5802
    %v5804 = vpop.f32.mrb[0].mxu0
    %v5805 = vadd.f32 %v5762, %v5804
    %5806 = vdwg.mxu0
    %5807 = vmatprep.subr.bf16.mxu0 %v3590
    %5808 = vmatpush1.bf16.msra.mxu0 %v3589
    %5809 = vmatprep.subr.bf16.mxu0 %v3598
    %5810 = vmatpush1.bf16.msra.mxu0 %v3597
    %5811 = vmatprep.subr.bf16.mxu0 %v3606
    %5812 = vmatpush1.bf16.msra.mxu0 %v3605
    %5813 = vmatprep.subr.bf16.mxu0 %v3614
    %5814 = vmatpush1.bf16.msra.mxu0 %v3613
    %5815 = vmatprep.subr.bf16.mxu0 %v3622
    %5816 = vmatpush1.bf16.msra.mxu0 %v3621
    %5817 = vmatprep.subr.bf16.mxu0 %v3630
    %5818 = vmatpush1.bf16.msra.mxu0 %v3629
    %5819 = vmatprep.subr.bf16.mxu0 %v3638
    %5820 = vmatpush1.bf16.msra.mxu0 %v3637
    %5821 = vmatprep.subr.bf16.mxu0 %v3646
    %5822 = vmatpush1.bf16.msra.mxu0 %v3645
    %5823 = vmatprep.subr.bf16.mxu0 %v3654
    %5824 = vmatpush1.bf16.msra.mxu0 %v3653
    %5825 = vmatprep.subr.bf16.mxu0 %v3662
    %5826 = vmatpush1.bf16.msra.mxu0 %v3661
    %5827 = vmatprep.subr.bf16.mxu0 %v3670
    %5828 = vmatpush1.bf16.msra.mxu0 %v3669
    %5829 = vmatprep.subr.bf16.mxu0 %v3678
    %5830 = vmatpush1.bf16.msra.mxu0 %v3677
    %5831 = vmatprep.subr.bf16.mxu0 %v3686
    %5832 = vmatpush1.bf16.msra.mxu0 %v3685
    %5833 = vmatprep.subr.bf16.mxu0 %v3694
    %5834 = vmatpush1.bf16.msra.mxu0 %v3693
    %5835 = vmatprep.subr.bf16.mxu0 %v3702
    %5836 = vmatpush1.bf16.msra.mxu0 %v3701
    %5837 = vmatprep.subr.bf16.mxu0 %v3710
    %5838 = vmatpush1.bf16.msra.mxu0 %v3709
    %5839 = vmatprep.mubr.bf16.mxu0 %v5324
    %5840 = vmatmul.mubr.bf16.gmra.mrb[0].mxu0 %v5323
    %v5841 = vpop.f32.mrb[0].mxu0
    %v5842 = vadd.f32 %v2796, %v5841
    %v5843 = vpop.f32.mrb[0].mxu0
    %v5844 = vadd.f32 %v2800, %v5843
    %v5845 = vpop.f32.mrb[0].mxu0
    %v5846 = vadd.f32 %v2796, %v5845
    %v5847 = vpop.f32.mrb[0].mxu0
    %v5848 = vadd.f32 %v2800, %v5847
    %5849 = vdwg.mxu0
    %5850 = vmatprep.subr.bf16.mxu0 %v3718
    %5851 = vmatpush1.bf16.msra.mxu0 %v3717
    %5852 = vmatprep.subr.bf16.mxu0 %v3726
    %5853 = vmatpush1.bf16.msra.mxu0 %v3725
    %5854 = vmatprep.subr.bf16.mxu0 %v3734
    %5855 = vmatpush1.bf16.msra.mxu0 %v3733
    %5856 = vmatprep.subr.bf16.mxu0 %v3742
    %5857 = vmatpush1.bf16.msra.mxu0 %v3741
    %5858 = vmatprep.subr.bf16.mxu0 %v3750
    %5859 = vmatpush1.bf16.msra.mxu0 %v3749
    %5860 = vmatprep.subr.bf16.mxu0 %v3758
    %5861 = vmatpush1.bf16.msra.mxu0 %v3757
    %5862 = vmatprep.subr.bf16.mxu0 %v3766
    %5863 = vmatpush1.bf16.msra.mxu0 %v3765
    %5864 = vmatprep.subr.bf16.mxu0 %v3774
    %5865 = vmatpush1.bf16.msra.mxu0 %v3773
    %5866 = vmatprep.subr.bf16.mxu0 %v3782
    %5867 = vmatpush1.bf16.msra.mxu0 %v3781
    %5868 = vmatprep.subr.bf16.mxu0 %v3790
    %5869 = vmatpush1.bf16.msra.mxu0 %v3789
    %5870 = vmatprep.subr.bf16.mxu0 %v3798
    %5871 = vmatpush1.bf16.msra.mxu0 %v3797
    %5872 = vmatprep.subr.bf16.mxu0 %v3806
    %5873 = vmatpush1.bf16.msra.mxu0 %v3805
    %5874 = vmatprep.subr.bf16.mxu0 %v3814
    %5875 = vmatpush1.bf16.msra.mxu0 %v3813
    %5876 = vmatprep.subr.bf16.mxu0 %v3822
    %5877 = vmatpush1.bf16.msra.mxu0 %v3821
    %5878 = vmatprep.subr.bf16.mxu0 %v3830
    %5879 = vmatpush1.bf16.msra.mxu0 %v3829
    %5880 = vmatprep.subr.bf16.mxu0 %v3838
    %5881 = vmatpush1.bf16.msra.mxu0 %v3837
    %5882 = vmatprep.mubr.bf16.mxu0 %v5634
    %5883 = vmatmul.mubr.bf16.gmra.mrb[0].mxu0 %v5633
    %v5884 = vpop.f32.mrb[0].mxu0
    %v5885 = vadd.f32 %v5842, %v5884
    %v5886 = vpop.f32.mrb[0].mxu0
    %v5887 = vadd.f32 %v5844, %v5886
    %v5888 = vpop.f32.mrb[0].mxu0
    %v5889 = vadd.f32 %v5846, %v5888
    %v5890 = vpop.f32.mrb[0].mxu0
    %v5891 = vadd.f32 %v5848, %v5890
    %5892 = vdwg.mxu0
    %5893 = vmatprep.subr.bf16.mxu0 %v3592
    %5894 = vmatpush1.bf16.msra.mxu0 %v3591
    %5895 = vmatprep.subr.bf16.mxu0 %v3600
    %5896 = vmatpush1.bf16.msra.mxu0 %v3599
    %5897 = vmatprep.subr.bf16.mxu0 %v3608
    %5898 = vmatpush1.bf16.msra.mxu0 %v3607
    %5899 = vmatprep.subr.bf16.mxu0 %v3616
    %5900 = vmatpush1.bf16.msra.mxu0 %v3615
    %5901 = vmatprep.subr.bf16.mxu0 %v3624
    %5902 = vmatpush1.bf16.msra.mxu0 %v3623
    %5903 = vmatprep.subr.bf16.mxu0 %v3632
    %5904 = vmatpush1.bf16.msra.mxu0 %v3631
    %5905 = vmatprep.subr.bf16.mxu0 %v3640
    %5906 = vmatpush1.bf16.msra.mxu0 %v3639
    %5907 = vmatprep.subr.bf16.mxu0 %v3648
    %5908 = vmatpush1.bf16.msra.mxu0 %v3647
    %5909 = vmatprep.subr.bf16.mxu0 %v3656
    %5910 = vmatpush1.bf16.msra.mxu0 %v3655
    %5911 = vmatprep.subr.bf16.mxu0 %v3664
    %5912 = vmatpush1.bf16.msra.mxu0 %v3663
    %5913 = vmatprep.subr.bf16.mxu0 %v3672
    %5914 = vmatpush1.bf16.msra.mxu0 %v3671
    %5915 = vmatprep.subr.bf16.mxu0 %v3680
    %5916 = vmatpush1.bf16.msra.mxu0 %v3679
    %5917 = vmatprep.subr.bf16.mxu0 %v3688
    %5918 = vmatpush1.bf16.msra.mxu0 %v3687
    %5919 = vmatprep.subr.bf16.mxu0 %v3696
    %5920 = vmatpush1.bf16.msra.mxu0 %v3695
    %5921 = vmatprep.subr.bf16.mxu0 %v3704
    %5922 = vmatpush1.bf16.msra.mxu0 %v3703
    %5923 = vmatprep.subr.bf16.mxu0 %v3712
    %5924 = vmatpush1.bf16.msra.mxu0 %v3711
    %5925 = vmatprep.mubr.bf16.mxu0 %v5324
    %5926 = vmatmul.mubr.bf16.gmra.mrb[0].mxu0 %v5323
    %v5927 = vpop.f32.mrb[0].mxu0
    %v5928 = vadd.f32 %v2804, %v5927
    %v5929 = vpop.f32.mrb[0].mxu0
    %v5930 = vadd.f32 %v2808, %v5929
    %v5931 = vpop.f32.mrb[0].mxu0
    %v5932 = vadd.f32 %v2804, %v5931
    %v5933 = vpop.f32.mrb[0].mxu0
    %v5934 = vadd.f32 %v2808, %v5933
    %5935 = vdwg.mxu0
    %5936 = vmatprep.subr.bf16.mxu0 %v3720
    %5937 = vmatpush1.bf16.msra.mxu0 %v3719
    %5938 = vmatprep.subr.bf16.mxu0 %v3728
    %5939 = vmatpush1.bf16.msra.mxu0 %v3727
    %5940 = vmatprep.subr.bf16.mxu0 %v3736
    %5941 = vmatpush1.bf16.msra.mxu0 %v3735
    %5942 = vmatprep.subr.bf16.mxu0 %v3744
    %5943 = vmatpush1.bf16.msra.mxu0 %v3743
    %5944 = vmatprep.subr.bf16.mxu0 %v3752
    %5945 = vmatpush1.bf16.msra.mxu0 %v3751
    %5946 = vmatprep.subr.bf16.mxu0 %v3760
    %5947 = vmatpush1.bf16.msra.mxu0 %v3759
    %5948 = vmatprep.subr.bf16.mxu0 %v3768
    %5949 = vmatpush1.bf16.msra.mxu0 %v3767
    %5950 = vmatprep.subr.bf16.mxu0 %v3776
    %5951 = vmatpush1.bf16.msra.mxu0 %v3775
    %5952 = vmatprep.subr.bf16.mxu0 %v3784
    %5953 = vmatpush1.bf16.msra.mxu0 %v3783
    %5954 = vmatprep.subr.bf16.mxu0 %v3792
    %5955 = vmatpush1.bf16.msra.mxu0 %v3791
    %5956 = vmatprep.subr.bf16.mxu0 %v3800
    %5957 = vmatpush1.bf16.msra.mxu0 %v3799
    %5958 = vmatprep.subr.bf16.mxu0 %v3808
    %5959 = vmatpush1.bf16.msra.mxu0 %v3807
    %5960 = vmatprep.subr.bf16.mxu0 %v3816
    %5961 = vmatpush1.bf16.msra.mxu0 %v3815
    %5962 = vmatprep.subr.bf16.mxu0 %v3824
    %5963 = vmatpush1.bf16.msra.mxu0 %v3823
    %5964 = vmatprep.subr.bf16.mxu0 %v3832
    %5965 = vmatpush1.bf16.msra.mxu0 %v3831
    %5966 = vmatprep.subr.bf16.mxu0 %v3840
    %5967 = vmatpush1.bf16.msra.mxu0 %v3839
    %5968 = vmatprep.mubr.bf16.mxu0 %v5634
    %5969 = vmatmul.mubr.bf16.gmra.mrb[0].mxu0 %v5633
    %v5970 = vpop.f32.mrb[0].mxu0
    %v5971 = vadd.f32 %v5928, %v5970
    %v5972 = vpop.f32.mrb[0].mxu0
    %v5973 = vadd.f32 %v5930, %v5972
    %v5974 = vpop.f32.mrb[0].mxu0
    %v5975 = vadd.f32 %v5932, %v5974
    %v5976 = vpop.f32.mrb[0].mxu0
    %v5977 = vadd.f32 %v5934, %v5976
    %5978 = vdwg.mxu0
    %v5979 = vxor.u32 %v5713, 2147483648
    %v5980 = vxor.u32 %v5715, 2147483648
    %v5981 = vxor.u32 %v5717, 2147483648
    %v5982 = vxor.u32 %v5719, 2147483648
    %v5983 = vmul.f32 %v5979, 1.442695
    %v5984 = vpow.pop %v5983
    %v5985 = vmul.f32 %v5980, 1.442695
    %v5986 = vpow.pop %v5985
    %v5987 = vmul.f32 %v5981, 1.442695
    %v5988 = vpow.pop %v5987
    %v5989 = vmul.f32 %v5982, 1.442695
    %v5990 = vpow.pop %v5989
    %v5991 = vadd.f32 %v5984, 1.0
    %v5992 = vadd.f32 %v5986, 1.0
    %v5993 = vadd.f32 %v5988, 1.0
    %v5994 = vadd.f32 %v5990, 1.0
    %v5995 = vrcp.pop %v5991
    %v5996 = vmul.f32 1.0, %v5995
    %v5997 = vrcp.pop %v5992
    %v5998 = vmul.f32 1.0, %v5997
    %v5999 = vrcp.pop %v5993
    %v6000 = vmul.f32 1.0, %v5999
    %v6001 = vrcp.pop %v5994
    %v6002 = vmul.f32 1.0, %v6001
    %v6003 = vxor.u32 %v5799, 2147483648
    %v6004 = vxor.u32 %v5801, 2147483648
    %v6005 = vxor.u32 %v5803, 2147483648
    %v6006 = vxor.u32 %v5805, 2147483648
    %v6007 = vmul.f32 %v6003, 1.442695
    %v6008 = vpow.pop %v6007
    %v6009 = vmul.f32 %v6004, 1.442695
    %v6010 = vpow.pop %v6009
    %v6011 = vmul.f32 %v6005, 1.442695
    %v6012 = vpow.pop %v6011
    %v6013 = vmul.f32 %v6006, 1.442695
    %v6014 = vpow.pop %v6013
    %v6015 = vadd.f32 %v6008, 1.0
    %v6016 = vadd.f32 %v6010, 1.0
    %v6017 = vadd.f32 %v6012, 1.0
    %v6018 = vadd.f32 %v6014, 1.0
    %v6019 = vrcp.pop %v6015
    %v6020 = vmul.f32 1.0, %v6019
    %v6021 = vrcp.pop %v6016
    %v6022 = vmul.f32 1.0, %v6021
    %v6023 = vrcp.pop %v6017
    %v6024 = vmul.f32 1.0, %v6023
    %v6025 = vrcp.pop %v6018
    %v6026 = vmul.f32 1.0, %v6025
    %v6027 = vtanh.pop %v5885
    %v6028 = vtanh.pop %v5887
    %v6029 = vtanh.pop %v5889
    %v6030 = vtanh.pop %v5891
    %v6031 = vxor.u32 %v5971, 2147483648
    %v6032 = vxor.u32 %v5973, 2147483648
    %v6033 = vxor.u32 %v5975, 2147483648
    %v6034 = vxor.u32 %v5977, 2147483648
    %v6035 = vmul.f32 %v6031, 1.442695
    %v6036 = vpow.pop %v6035
    %v6037 = vmul.f32 %v6032, 1.442695
    %v6038 = vpow.pop %v6037
    %v6039 = vmul.f32 %v6033, 1.442695
    %v6040 = vpow.pop %v6039
    %v6041 = vmul.f32 %v6034, 1.442695
    %v6042 = vpow.pop %v6041
    %v6043 = vadd.f32 %v6036, 1.0
    %v6044 = vadd.f32 %v6038, 1.0
    %v6045 = vadd.f32 %v6040, 1.0
    %v6046 = vadd.f32 %v6042, 1.0
    %v6047 = vrcp.pop %v6043
    %v6048 = vmul.f32 1.0, %v6047
    %v6049 = vrcp.pop %v6044
    %v6050 = vmul.f32 1.0, %v6049
    %v6051 = vrcp.pop %v6045
    %v6052 = vmul.f32 1.0, %v6051
    %v6053 = vrcp.pop %v6046
    %v6054 = vmul.f32 1.0, %v6053
    %v6055 = vmul.f32 %v6020, %v5295
    %v6056 = vmul.f32 %v6022, %v5296
    %v6057 = vmul.f32 %v6024, %v5297
    %v6058 = vmul.f32 %v6026, %v5298
    %v6059 = vmul.f32 %v5996, %v6027
    %v6060 = vmul.f32 %v5998, %v6028
    %v6061 = vmul.f32 %v6000, %v6029
    %v6062 = vmul.f32 %v6002, %v6030
    %v6063 = vadd.f32 %v6055, %v6059
    %v6064 = vadd.f32 %v6056, %v6060
    %v6065 = vadd.f32 %v6057, %v6061
    %v6066 = vadd.f32 %v6058, %v6062
    %v6067 = vtanh.pop %v6063
    %v6068 = vtanh.pop %v6064
    %v6069 = vtanh.pop %v6065
    %v6070 = vtanh.pop %v6066
    %v6071 = vmul.f32 %v6048, %v6067
    %v6072 = vmul.f32 %v6050, %v6068
    %v6073 = vmul.f32 %v6052, %v6069
    %v6074 = vmul.f32 %v6054, %v6070
    %vm6075 = vcmp.eq.s32.totalorder %v4537, 2
    %vm6076 = vcmp.eq.s32.totalorder %v4538, 2
    %v6077 = vsel %vm6075, 1, 0
    %v6078 = vsel %vm6076, 1, 0
    %6079 = vset.pattern.permute.xlu0 0
    %6080 = vperm.xlu0 %6079, %v6077
    %v6081 = vpop.permute.xlu0 %6080
    %6082 = vset.pattern.permute.xlu0 0
    %6083 = vperm.xlu0 %6082, %v6078
    %v6084 = vpop.permute.xlu0 %6083
    %vm6085 = vcmp.eq.s32.totalorder %v6081, 1
    %vm6086 = vcmp.eq.s32.totalorder %v6084, 1
    %v6087 = vsel %vm6085, %v6071, %v5319
    %v6088 = vsel %vm6085, %v6072, %v5320
    %v6089 = vsel %vm6086, %v6073, %v5321
    %v6090 = vsel %vm6086, %v6074, %v5322
    %v6091 = vpack.c.bf16 %v5631, %v5629
    %v6092 = vpack.c.bf16 %v5632, %v5630
    %v6093 = vld [vmem:[#allocation2 + $0x100] sm:$0xff]
    %v6094 = vld [vmem:[#allocation2 + $0x108] sm:$0xff]
    %v6095 = vld [vmem:[#allocation2 + $0x110] sm:$0xff]
    %v6096 = vld [vmem:[#allocation2 + $0x118] sm:$0xff]
    %v6097 = vld [vmem:[#allocation2 + $0x120] sm:$0xff]
    %v6098 = vld [vmem:[#allocation2 + $0x128] sm:$0xff]
    %v6099 = vld [vmem:[#allocation2 + $0x130] sm:$0xff]
    %v6100 = vld [vmem:[#allocation2 + $0x138] sm:$0xff]
    %v6101 = vunpack.c.l.bf16 %v6093
    %v6102 = vunpack.c.l.bf16 %v6094
    %v6103 = vunpack.c.l.bf16 %v6095
    %v6104 = vunpack.c.l.bf16 %v6096
    %v6105 = vunpack.c.l.bf16 %v6097
    %v6106 = vunpack.c.l.bf16 %v6098
    %v6107 = vunpack.c.l.bf16 %v6099
    %v6108 = vunpack.c.l.bf16 %v6100
    %v6109 = vunpack.c.h.bf16 %v6093
    %v6110 = vunpack.c.h.bf16 %v6094
    %v6111 = vunpack.c.h.bf16 %v6095
    %v6112 = vunpack.c.h.bf16 %v6096
    %v6113 = vunpack.c.h.bf16 %v6097
    %v6114 = vunpack.c.h.bf16 %v6098
    %v6115 = vunpack.c.h.bf16 %v6099
    %v6116 = vunpack.c.h.bf16 %v6100
    %6117 = vmatprep.subr.bf16.mxu0 %v1927
    %6118 = vmatpush1.bf16.msra.mxu0 %v1926
    %6119 = vmatprep.subr.bf16.mxu0 %v1935
    %6120 = vmatpush1.bf16.msra.mxu0 %v1934
    %6121 = vmatprep.subr.bf16.mxu0 %v1943
    %6122 = vmatpush1.bf16.msra.mxu0 %v1942
    %6123 = vmatprep.subr.bf16.mxu0 %v1951
    %6124 = vmatpush1.bf16.msra.mxu0 %v1950
    %6125 = vmatprep.subr.bf16.mxu0 %v1959
    %6126 = vmatpush1.bf16.msra.mxu0 %v1958
    %6127 = vmatprep.subr.bf16.mxu0 %v1967
    %6128 = vmatpush1.bf16.msra.mxu0 %v1966
    %6129 = vmatprep.subr.bf16.mxu0 %v1975
    %6130 = vmatpush1.bf16.msra.mxu0 %v1974
    %6131 = vmatprep.subr.bf16.mxu0 %v1983
    %6132 = vmatpush1.bf16.msra.mxu0 %v1982
    %6133 = vmatprep.subr.bf16.mxu0 %v1991
    %6134 = vmatpush1.bf16.msra.mxu0 %v1990
    %6135 = vmatprep.subr.bf16.mxu0 %v1999
    %6136 = vmatpush1.bf16.msra.mxu0 %v1998
    %6137 = vmatprep.subr.bf16.mxu0 %v2007
    %6138 = vmatpush1.bf16.msra.mxu0 %v2006
    %6139 = vmatprep.subr.bf16.mxu0 %v2015
    %6140 = vmatpush1.bf16.msra.mxu0 %v2014
    %6141 = vmatprep.subr.bf16.mxu0 %v2023
    %6142 = vmatpush1.bf16.msra.mxu0 %v2022
    %6143 = vmatprep.subr.bf16.mxu0 %v2031
    %6144 = vmatpush1.bf16.msra.mxu0 %v2030
    %6145 = vmatprep.subr.bf16.mxu0 %v2039
    %6146 = vmatpush1.bf16.msra.mxu0 %v2038
    %6147 = vmatprep.subr.bf16.mxu0 %v2047
    %6148 = vmatpush1.bf16.msra.mxu0 %v2046
    %6149 = vmatprep.mubr.bf16.mxu0 %v6092
    %6150 = vmatmul.mubr.bf16.gmra.mrb[0].mxu0 %v6091
    %v6151 = vpop.f32.mrb[0].mxu0
    %v6152 = vadd.f32 0.0, %v6151
    %v6153 = vpop.f32.mrb[0].mxu0
    %v6154 = vadd.f32 0.0, %v6153
    %v6155 = vpop.f32.mrb[0].mxu0
    %v6156 = vadd.f32 0.0, %v6155
    %v6157 = vpop.f32.mrb[0].mxu0
    %v6158 = vadd.f32 0.0, %v6157
    %6159 = vdwg.mxu0
    %6160 = vmatprep.subr.bf16.mxu0 %v1929
    %6161 = vmatpush1.bf16.msra.mxu0 %v1928
    %6162 = vmatprep.subr.bf16.mxu0 %v1937
    %6163 = vmatpush1.bf16.msra.mxu0 %v1936
    %6164 = vmatprep.subr.bf16.mxu0 %v1945
    %6165 = vmatpush1.bf16.msra.mxu0 %v1944
    %6166 = vmatprep.subr.bf16.mxu0 %v1953
    %6167 = vmatpush1.bf16.msra.mxu0 %v1952
    %6168 = vmatprep.subr.bf16.mxu0 %v1961
    %6169 = vmatpush1.bf16.msra.mxu0 %v1960
    %6170 = vmatprep.subr.bf16.mxu0 %v1969
    %6171 = vmatpush1.bf16.msra.mxu0 %v1968
    %6172 = vmatprep.subr.bf16.mxu0 %v1977
    %6173 = vmatpush1.bf16.msra.mxu0 %v1976
    %6174 = vmatprep.subr.bf16.mxu0 %v1985
    %6175 = vmatpush1.bf16.msra.mxu0 %v1984
    %6176 = vmatprep.subr.bf16.mxu0 %v1993
    %6177 = vmatpush1.bf16.msra.mxu0 %v1992
    %6178 = vmatprep.subr.bf16.mxu0 %v2001
    %6179 = vmatpush1.bf16.msra.mxu0 %v2000
    %6180 = vmatprep.subr.bf16.mxu0 %v2009
    %6181 = vmatpush1.bf16.msra.mxu0 %v2008
    %6182 = vmatprep.subr.bf16.mxu0 %v2017
    %6183 = vmatpush1.bf16.msra.mxu0 %v2016
    %6184 = vmatprep.subr.bf16.mxu0 %v2025
    %6185 = vmatpush1.bf16.msra.mxu0 %v2024
    %6186 = vmatprep.subr.bf16.mxu0 %v2033
    %6187 = vmatpush1.bf16.msra.mxu0 %v2032
    %6188 = vmatprep.subr.bf16.mxu0 %v2041
    %6189 = vmatpush1.bf16.msra.mxu0 %v2040
    %6190 = vmatprep.subr.bf16.mxu0 %v2049
    %6191 = vmatpush1.bf16.msra.mxu0 %v2048
    %6192 = vmatprep.mubr.bf16.mxu0 %v6092
    %6193 = vmatmul.mubr.bf16.gmra.mrb[0].mxu0 %v6091
    %v6194 = vpop.f32.mrb[0].mxu0
    %v6195 = vadd.f32 0.0, %v6194
    %v6196 = vpop.f32.mrb[0].mxu0
    %v6197 = vadd.f32 0.0, %v6196
    %v6198 = vpop.f32.mrb[0].mxu0
    %v6199 = vadd.f32 0.0, %v6198
    %v6200 = vpop.f32.mrb[0].mxu0
    %v6201 = vadd.f32 0.0, %v6200
    %6202 = vdwg.mxu0
    %6203 = vmatprep.subr.bf16.mxu0 %v1931
    %6204 = vmatpush1.bf16.msra.mxu0 %v1930
    %6205 = vmatprep.subr.bf16.mxu0 %v1939
    %6206 = vmatpush1.bf16.msra.mxu0 %v1938
    %6207 = vmatprep.subr.bf16.mxu0 %v1947
    %6208 = vmatpush1.bf16.msra.mxu0 %v1946
    %6209 = vmatprep.subr.bf16.mxu0 %v1955
    %6210 = vmatpush1.bf16.msra.mxu0 %v1954
    %6211 = vmatprep.subr.bf16.mxu0 %v1963
    %6212 = vmatpush1.bf16.msra.mxu0 %v1962
    %6213 = vmatprep.subr.bf16.mxu0 %v1971
    %6214 = vmatpush1.bf16.msra.mxu0 %v1970
    %6215 = vmatprep.subr.bf16.mxu0 %v1979
    %6216 = vmatpush1.bf16.msra.mxu0 %v1978
    %6217 = vmatprep.subr.bf16.mxu0 %v1987
    %6218 = vmatpush1.bf16.msra.mxu0 %v1986
    %6219 = vmatprep.subr.bf16.mxu0 %v1995
    %6220 = vmatpush1.bf16.msra.mxu0 %v1994
    %6221 = vmatprep.subr.bf16.mxu0 %v2003
    %6222 = vmatpush1.bf16.msra.mxu0 %v2002
    %6223 = vmatprep.subr.bf16.mxu0 %v2011
    %6224 = vmatpush1.bf16.msra.mxu0 %v2010
    %6225 = vmatprep.subr.bf16.mxu0 %v2019
    %6226 = vmatpush1.bf16.msra.mxu0 %v2018
    %6227 = vmatprep.subr.bf16.mxu0 %v2027
    %6228 = vmatpush1.bf16.msra.mxu0 %v2026
    %6229 = vmatprep.subr.bf16.mxu0 %v2035
    %6230 = vmatpush1.bf16.msra.mxu0 %v2034
    %6231 = vmatprep.subr.bf16.mxu0 %v2043
    %6232 = vmatpush1.bf16.msra.mxu0 %v2042
    %6233 = vmatprep.subr.bf16.mxu0 %v2051
    %6234 = vmatpush1.bf16.msra.mxu0 %v2050
    %6235 = vmatprep.mubr.bf16.mxu0 %v6092
    %6236 = vmatmul.mubr.bf16.gmra.mrb[0].mxu0 %v6091
    %v6237 = vpop.f32.mrb[0].mxu0
    %v6238 = vadd.f32 0.0, %v6237
    %v6239 = vpop.f32.mrb[0].mxu0
    %v6240 = vadd.f32 0.0, %v6239
    %v6241 = vpop.f32.mrb[0].mxu0
    %v6242 = vadd.f32 0.0, %v6241
    %v6243 = vpop.f32.mrb[0].mxu0
    %v6244 = vadd.f32 0.0, %v6243
    %6245 = vdwg.mxu0
    %6246 = vmatprep.subr.bf16.mxu0 %v1933
    %6247 = vmatpush1.bf16.msra.mxu0 %v1932
    %6248 = vmatprep.subr.bf16.mxu0 %v1941
    %6249 = vmatpush1.bf16.msra.mxu0 %v1940
    %6250 = vmatprep.subr.bf16.mxu0 %v1949
    %6251 = vmatpush1.bf16.msra.mxu0 %v1948
    %6252 = vmatprep.subr.bf16.mxu0 %v1957
    %6253 = vmatpush1.bf16.msra.mxu0 %v1956
    %6254 = vmatprep.subr.bf16.mxu0 %v1965
    %6255 = vmatpush1.bf16.msra.mxu0 %v1964
    %6256 = vmatprep.subr.bf16.mxu0 %v1973
    %6257 = vmatpush1.bf16.msra.mxu0 %v1972
    %6258 = vmatprep.subr.bf16.mxu0 %v1981
    %6259 = vmatpush1.bf16.msra.mxu0 %v1980
    %6260 = vmatprep.subr.bf16.mxu0 %v1989
    %6261 = vmatpush1.bf16.msra.mxu0 %v1988
    %6262 = vmatprep.subr.bf16.mxu0 %v1997
    %6263 = vmatpush1.bf16.msra.mxu0 %v1996
    %6264 = vmatprep.subr.bf16.mxu0 %v2005
    %6265 = vmatpush1.bf16.msra.mxu0 %v2004
    %6266 = vmatprep.subr.bf16.mxu0 %v2013
    %6267 = vmatpush1.bf16.msra.mxu0 %v2012
    %6268 = vmatprep.subr.bf16.mxu0 %v2021
    %6269 = vmatpush1.bf16.msra.mxu0 %v2020
    %6270 = vmatprep.subr.bf16.mxu0 %v2029
    %6271 = vmatpush1.bf16.msra.mxu0 %v2028
    %6272 = vmatprep.subr.bf16.mxu0 %v2037
    %6273 = vmatpush1.bf16.msra.mxu0 %v2036
    %6274 = vmatprep.subr.bf16.mxu0 %v2045
    %6275 = vmatpush1.bf16.msra.mxu0 %v2044
    %6276 = vmatprep.subr.bf16.mxu0 %v2053
    %6277 = vmatpush1.bf16.msra.mxu0 %v2052
    %6278 = vmatprep.mubr.bf16.mxu0 %v6092
    %6279 = vmatmul.mubr.bf16.gmra.mrb[0].mxu0 %v6091
    %v6280 = vpop.f32.mrb[0].mxu0
    %v6281 = vadd.f32 0.0, %v6280
    %v6282 = vpop.f32.mrb[0].mxu0
    %v6283 = vadd.f32 0.0, %v6282
    %v6284 = vpop.f32.mrb[0].mxu0
    %v6285 = vadd.f32 0.0, %v6284
    %v6286 = vpop.f32.mrb[0].mxu0
    %v6287 = vadd.f32 0.0, %v6286
    %6288 = vdwg.mxu0
    %v6289 = vadd.f32 %v6101, %v6152
    %v6290 = vadd.f32 %v6102, %v6154
    %v6291 = vadd.f32 %v6103, %v6195
    %v6292 = vadd.f32 %v6104, %v6197
    %v6293 = vadd.f32 %v6105, %v6238
    %v6294 = vadd.f32 %v6106, %v6240
    %v6295 = vadd.f32 %v6107, %v6281
    %v6296 = vadd.f32 %v6108, %v6283
    %v6297 = vadd.f32 %v6109, %v6156
    %v6298 = vadd.f32 %v6110, %v6158
    %v6299 = vadd.f32 %v6111, %v6199
    %v6300 = vadd.f32 %v6112, %v6201
    %v6301 = vadd.f32 %v6113, %v6242
    %v6302 = vadd.f32 %v6114, %v6244
    %v6303 = vadd.f32 %v6115, %v6285
    %v6304 = vadd.f32 %v6116, %v6287
    %v6305 = vxor.u32 %v6289, 2147483648
    %v6306 = vxor.u32 %v6290, 2147483648
    %v6307 = vxor.u32 %v6297, 2147483648
    %v6308 = vxor.u32 %v6298, 2147483648
    %v6309 = vmul.f32 %v6305, 1.442695
    %v6310 = vpow.pop %v6309
    %v6311 = vmul.f32 %v6306, 1.442695
    %v6312 = vpow.pop %v6311
    %v6313 = vmul.f32 %v6307, 1.442695
    %v6314 = vpow.pop %v6313
    %v6315 = vmul.f32 %v6308, 1.442695
    %v6316 = vpow.pop %v6315
    %v6317 = vadd.f32 %v6310, 1.0
    %v6318 = vadd.f32 %v6312, 1.0
    %v6319 = vadd.f32 %v6314, 1.0
    %v6320 = vadd.f32 %v6316, 1.0
    %v6321 = vrcp.pop %v6317
    %v6322 = vmul.f32 1.0, %v6321
    %v6323 = vrcp.pop %v6318
    %v6324 = vmul.f32 1.0, %v6323
    %v6325 = vrcp.pop %v6319
    %v6326 = vmul.f32 1.0, %v6325
    %v6327 = vrcp.pop %v6320
    %v6328 = vmul.f32 1.0, %v6327
    %v6329 = vxor.u32 %v6291, 2147483648
    %v6330 = vxor.u32 %v6292, 2147483648
    %v6331 = vxor.u32 %v6299, 2147483648
    %v6332 = vxor.u32 %v6300, 2147483648
    %v6333 = vmul.f32 %v6329, 1.442695
    %v6334 = vpow.pop %v6333
    %v6335 = vmul.f32 %v6330, 1.442695
    %v6336 = vpow.pop %v6335
    %v6337 = vmul.f32 %v6331, 1.442695
    %v6338 = vpow.pop %v6337
    %v6339 = vmul.f32 %v6332, 1.442695
    %v6340 = vpow.pop %v6339
    %v6341 = vadd.f32 %v6334, 1.0
    %v6342 = vadd.f32 %v6336, 1.0
    %v6343 = vadd.f32 %v6338, 1.0
    %v6344 = vadd.f32 %v6340, 1.0
    %v6345 = vrcp.pop %v6341
    %v6346 = vmul.f32 1.0, %v6345
    %v6347 = vrcp.pop %v6342
    %v6348 = vmul.f32 1.0, %v6347
    %v6349 = vrcp.pop %v6343
    %v6350 = vmul.f32 1.0, %v6349
    %v6351 = vrcp.pop %v6344
    %v6352 = vmul.f32 1.0, %v6351
    %v6353 = vtanh.pop %v6293
    %v6354 = vtanh.pop %v6294
    %v6355 = vtanh.pop %v6301
    %v6356 = vtanh.pop %v6302
    %v6357 = vxor.u32 %v6295, 2147483648
    %v6358 = vxor.u32 %v6296, 2147483648
    %v6359 = vxor.u32 %v6303, 2147483648
    %v6360 = vxor.u32 %v6304, 2147483648
    %v6361 = vmul.f32 %v6357, 1.442695
    %v6362 = vpow.pop %v6361
    %v6363 = vmul.f32 %v6358, 1.442695
    %v6364 = vpow.pop %v6363
    %v6365 = vmul.f32 %v6359, 1.442695
    %v6366 = vpow.pop %v6365
    %v6367 = vmul.f32 %v6360, 1.442695
    %v6368 = vpow.pop %v6367
    %v6369 = vadd.f32 %v6362, 1.0
    %v6370 = vadd.f32 %v6364, 1.0
    %v6371 = vadd.f32 %v6366, 1.0
    %v6372 = vadd.f32 %v6368, 1.0
    %v6373 = vrcp.pop %v6369
    %v6374 = vmul.f32 1.0, %v6373
    %v6375 = vrcp.pop %v6370
    %v6376 = vmul.f32 1.0, %v6375
    %v6377 = vrcp.pop %v6371
    %v6378 = vmul.f32 1.0, %v6377
    %v6379 = vrcp.pop %v6372
    %v6380 = vmul.f32 1.0, %v6379
    %v6381 = vmul.f32 %v6346, %v5621
    %v6382 = vmul.f32 %v6348, %v5622
    %v6383 = vmul.f32 %v6350, %v5623
    %v6384 = vmul.f32 %v6352, %v5624
    %v6385 = vmul.f32 %v6322, %v6353
    %v6386 = vmul.f32 %v6324, %v6354
    %v6387 = vmul.f32 %v6326, %v6355
    %v6388 = vmul.f32 %v6328, %v6356
    %v6389 = vadd.f32 %v6381, %v6385
    %v6390 = vadd.f32 %v6382, %v6386
    %v6391 = vadd.f32 %v6383, %v6387
    %v6392 = vadd.f32 %v6384, %v6388
    %v6393 = vtanh.pop %v6389
    %v6394 = vtanh.pop %v6390
    %v6395 = vtanh.pop %v6391
    %v6396 = vtanh.pop %v6392
    %v6397 = vmul.f32 %v6374, %v6393
    %v6398 = vmul.f32 %v6376, %v6394
    %v6399 = vmul.f32 %v6378, %v6395
    %v6400 = vmul.f32 %v6380, %v6396
    %v6401 = vpack.c.bf16 %v6073, %v6071
    %v6402 = vpack.c.bf16 %v6074, %v6072
    %6403 = vmatprep.subr.bf16.mxu0 %v3586
    %6404 = vmatpush1.bf16.msra.mxu0 %v3585
    %6405 = vmatprep.subr.bf16.mxu0 %v3594
    %6406 = vmatpush1.bf16.msra.mxu0 %v3593
    %6407 = vmatprep.subr.bf16.mxu0 %v3602
    %6408 = vmatpush1.bf16.msra.mxu0 %v3601
    %6409 = vmatprep.subr.bf16.mxu0 %v3610
    %6410 = vmatpush1.bf16.msra.mxu0 %v3609
    %6411 = vmatprep.subr.bf16.mxu0 %v3618
    %6412 = vmatpush1.bf16.msra.mxu0 %v3617
    %6413 = vmatprep.subr.bf16.mxu0 %v3626
    %6414 = vmatpush1.bf16.msra.mxu0 %v3625
    %6415 = vmatprep.subr.bf16.mxu0 %v3634
    %6416 = vmatpush1.bf16.msra.mxu0 %v3633
    %6417 = vmatprep.subr.bf16.mxu0 %v3642
    %6418 = vmatpush1.bf16.msra.mxu0 %v3641
    %6419 = vmatprep.subr.bf16.mxu0 %v3650
    %6420 = vmatpush1.bf16.msra.mxu0 %v3649
    %6421 = vmatprep.subr.bf16.mxu0 %v3658
    %6422 = vmatpush1.bf16.msra.mxu0 %v3657
    %6423 = vmatprep.subr.bf16.mxu0 %v3666
    %6424 = vmatpush1.bf16.msra.mxu0 %v3665
    %6425 = vmatprep.subr.bf16.mxu0 %v3674
    %6426 = vmatpush1.bf16.msra.mxu0 %v3673
    %6427 = vmatprep.subr.bf16.mxu0 %v3682
    %6428 = vmatpush1.bf16.msra.mxu0 %v3681
    %6429 = vmatprep.subr.bf16.mxu0 %v3690
    %6430 = vmatpush1.bf16.msra.mxu0 %v3689
    %6431 = vmatprep.subr.bf16.mxu0 %v3698
    %6432 = vmatpush1.bf16.msra.mxu0 %v3697
    %6433 = vmatprep.subr.bf16.mxu0 %v3706
    %6434 = vmatpush1.bf16.msra.mxu0 %v3705
    %6435 = vmatprep.mubr.bf16.mxu0 %v6092
    %6436 = vmatmul.mubr.bf16.gmra.mrb[0].mxu0 %v6091
    %v6437 = vpop.f32.mrb[0].mxu0
    %v6438 = vadd.f32 %v2780, %v6437
    %v6439 = vpop.f32.mrb[0].mxu0
    %v6440 = vadd.f32 %v2784, %v6439
    %v6441 = vpop.f32.mrb[0].mxu0
    %v6442 = vadd.f32 %v2780, %v6441
    %v6443 = vpop.f32.mrb[0].mxu0
    %v6444 = vadd.f32 %v2784, %v6443
    %6445 = vdwg.mxu0
    %6446 = vmatprep.subr.bf16.mxu0 %v3714
    %6447 = vmatpush1.bf16.msra.mxu0 %v3713
    %6448 = vmatprep.subr.bf16.mxu0 %v3722
    %6449 = vmatpush1.bf16.msra.mxu0 %v3721
    %6450 = vmatprep.subr.bf16.mxu0 %v3730
    %6451 = vmatpush1.bf16.msra.mxu0 %v3729
    %6452 = vmatprep.subr.bf16.mxu0 %v3738
    %6453 = vmatpush1.bf16.msra.mxu0 %v3737
    %6454 = vmatprep.subr.bf16.mxu0 %v3746
    %6455 = vmatpush1.bf16.msra.mxu0 %v3745
    %6456 = vmatprep.subr.bf16.mxu0 %v3754
    %6457 = vmatpush1.bf16.msra.mxu0 %v3753
    %6458 = vmatprep.subr.bf16.mxu0 %v3762
    %6459 = vmatpush1.bf16.msra.mxu0 %v3761
    %6460 = vmatprep.subr.bf16.mxu0 %v3770
    %6461 = vmatpush1.bf16.msra.mxu0 %v3769
    %6462 = vmatprep.subr.bf16.mxu0 %v3778
    %6463 = vmatpush1.bf16.msra.mxu0 %v3777
    %6464 = vmatprep.subr.bf16.mxu0 %v3786
    %6465 = vmatpush1.bf16.msra.mxu0 %v3785
    %6466 = vmatprep.subr.bf16.mxu0 %v3794
    %6467 = vmatpush1.bf16.msra.mxu0 %v3793
    %6468 = vmatprep.subr.bf16.mxu0 %v3802
    %6469 = vmatpush1.bf16.msra.mxu0 %v3801
    %6470 = vmatprep.subr.bf16.mxu0 %v3810
    %6471 = vmatpush1.bf16.msra.mxu0 %v3809
    %6472 = vmatprep.subr.bf16.mxu0 %v3818
    %6473 = vmatpush1.bf16.msra.mxu0 %v3817
    %6474 = vmatprep.subr.bf16.mxu0 %v3826
    %6475 = vmatpush1.bf16.msra.mxu0 %v3825
    %6476 = vmatprep.subr.bf16.mxu0 %v3834
    %6477 = vmatpush1.bf16.msra.mxu0 %v3833
    %6478 = vmatprep.mubr.bf16.mxu0 %v6402
    %6479 = vmatmul.mubr.bf16.gmra.mrb[0].mxu0 %v6401
    %v6480 = vpop.f32.mrb[0].mxu0
    %v6481 = vadd.f32 %v6438, %v6480
    %v6482 = vpop.f32.mrb[0].mxu0
    %v6483 = vadd.f32 %v6440, %v6482
    %v6484 = vpop.f32.mrb[0].mxu0
    %v6485 = vadd.f32 %v6442, %v6484
    %v6486 = vpop.f32.mrb[0].mxu0
    %v6487 = vadd.f32 %v6444, %v6486
    %6488 = vdwg.mxu0
    %6489 = vmatprep.subr.bf16.mxu0 %v3588
    %6490 = vmatpush1.bf16.msra.mxu0 %v3587
    %6491 = vmatprep.subr.bf16.mxu0 %v3596
    %6492 = vmatpush1.bf16.msra.mxu0 %v3595
    %6493 = vmatprep.subr.bf16.mxu0 %v3604
    %6494 = vmatpush1.bf16.msra.mxu0 %v3603
    %6495 = vmatprep.subr.bf16.mxu0 %v3612
    %6496 = vmatpush1.bf16.msra.mxu0 %v3611
    %6497 = vmatprep.subr.bf16.mxu0 %v3620
    %6498 = vmatpush1.bf16.msra.mxu0 %v3619
    %6499 = vmatprep.subr.bf16.mxu0 %v3628
    %6500 = vmatpush1.bf16.msra.mxu0 %v3627
    %6501 = vmatprep.subr.bf16.mxu0 %v3636
    %6502 = vmatpush1.bf16.msra.mxu0 %v3635
    %6503 = vmatprep.subr.bf16.mxu0 %v3644
    %6504 = vmatpush1.bf16.msra.mxu0 %v3643
    %6505 = vmatprep.subr.bf16.mxu0 %v3652
    %6506 = vmatpush1.bf16.msra.mxu0 %v3651
    %6507 = vmatprep.subr.bf16.mxu0 %v3660
    %6508 = vmatpush1.bf16.msra.mxu0 %v3659
    %6509 = vmatprep.subr.bf16.mxu0 %v3668
    %6510 = vmatpush1.bf16.msra.mxu0 %v3667
    %6511 = vmatprep.subr.bf16.mxu0 %v3676
    %6512 = vmatpush1.bf16.msra.mxu0 %v3675
    %6513 = vmatprep.subr.bf16.mxu0 %v3684
    %6514 = vmatpush1.bf16.msra.mxu0 %v3683
    %6515 = vmatprep.subr.bf16.mxu0 %v3692
    %6516 = vmatpush1.bf16.msra.mxu0 %v3691
    %6517 = vmatprep.subr.bf16.mxu0 %v3700
    %6518 = vmatpush1.bf16.msra.mxu0 %v3699
    %6519 = vmatprep.subr.bf16.mxu0 %v3708
    %6520 = vmatpush1.bf16.msra.mxu0 %v3707
    %6521 = vmatprep.mubr.bf16.mxu0 %v6092
    %6522 = vmatmul.mubr.bf16.gmra.mrb[0].mxu0 %v6091
    %v6523 = vpop.f32.mrb[0].mxu0
    %v6524 = vadd.f32 %v2788, %v6523
    %v6525 = vpop.f32.mrb[0].mxu0
    %v6526 = vadd.f32 %v2792, %v6525
    %v6527 = vpop.f32.mrb[0].mxu0
    %v6528 = vadd.f32 %v2788, %v6527
    %v6529 = vpop.f32.mrb[0].mxu0
    %v6530 = vadd.f32 %v2792, %v6529
    %6531 = vdwg.mxu0
    %6532 = vmatprep.subr.bf16.mxu0 %v3716
    %6533 = vmatpush1.bf16.msra.mxu0 %v3715
    %6534 = vmatprep.subr.bf16.mxu0 %v3724
    %6535 = vmatpush1.bf16.msra.mxu0 %v3723
    %6536 = vmatprep.subr.bf16.mxu0 %v3732
    %6537 = vmatpush1.bf16.msra.mxu0 %v3731
    %6538 = vmatprep.subr.bf16.mxu0 %v3740
    %6539 = vmatpush1.bf16.msra.mxu0 %v3739
    %6540 = vmatprep.subr.bf16.mxu0 %v3748
    %6541 = vmatpush1.bf16.msra.mxu0 %v3747
    %6542 = vmatprep.subr.bf16.mxu0 %v3756
    %6543 = vmatpush1.bf16.msra.mxu0 %v3755
    %6544 = vmatprep.subr.bf16.mxu0 %v3764
    %6545 = vmatpush1.bf16.msra.mxu0 %v3763
    %6546 = vmatprep.subr.bf16.mxu0 %v3772
    %6547 = vmatpush1.bf16.msra.mxu0 %v3771
    %6548 = vmatprep.subr.bf16.mxu0 %v3780
    %6549 = vmatpush1.bf16.msra.mxu0 %v3779
    %6550 = vmatprep.subr.bf16.mxu0 %v3788
    %6551 = vmatpush1.bf16.msra.mxu0 %v3787
    %6552 = vmatprep.subr.bf16.mxu0 %v3796
    %6553 = vmatpush1.bf16.msra.mxu0 %v3795
    %6554 = vmatprep.subr.bf16.mxu0 %v3804
    %6555 = vmatpush1.bf16.msra.mxu0 %v3803
    %6556 = vmatprep.subr.bf16.mxu0 %v3812
    %6557 = vmatpush1.bf16.msra.mxu0 %v3811
    %6558 = vmatprep.subr.bf16.mxu0 %v3820
    %6559 = vmatpush1.bf16.msra.mxu0 %v3819
    %6560 = vmatprep.subr.bf16.mxu0 %v3828
    %6561 = vmatpush1.bf16.msra.mxu0 %v3827
    %6562 = vmatprep.subr.bf16.mxu0 %v3836
    %6563 = vmatpush1.bf16.msra.mxu0 %v3835
    %6564 = vmatprep.mubr.bf16.mxu0 %v6402
    %6565 = vmatmul.mubr.bf16.gmra.mrb[0].mxu0 %v6401
    %v6566 = vpop.f32.mrb[0].mxu0
    %v6567 = vadd.f32 %v6524, %v6566
    %v6568 = vpop.f32.mrb[0].mxu0
    %v6569 = vadd.f32 %v6526, %v6568
    %v6570 = vpop.f32.mrb[0].mxu0
    %v6571 = vadd.f32 %v6528, %v6570
    %v6572 = vpop.f32.mrb[0].mxu0
    %v6573 = vadd.f32 %v6530, %v6572
    %6574 = vdwg.mxu0
    %6575 = vmatprep.subr.bf16.mxu0 %v3590
    %6576 = vmatpush1.bf16.msra.mxu0 %v3589
    %6577 = vmatprep.subr.bf16.mxu0 %v3598
    %6578 = vmatpush1.bf16.msra.mxu0 %v3597
    %6579 = vmatprep.subr.bf16.mxu0 %v3606
    %6580 = vmatpush1.bf16.msra.mxu0 %v3605
    %6581 = vmatprep.subr.bf16.mxu0 %v3614
    %6582 = vmatpush1.bf16.msra.mxu0 %v3613
    %6583 = vmatprep.subr.bf16.mxu0 %v3622
    %6584 = vmatpush1.bf16.msra.mxu0 %v3621
    %6585 = vmatprep.subr.bf16.mxu0 %v3630
    %6586 = vmatpush1.bf16.msra.mxu0 %v3629
    %6587 = vmatprep.subr.bf16.mxu0 %v3638
    %6588 = vmatpush1.bf16.msra.mxu0 %v3637
    %6589 = vmatprep.subr.bf16.mxu0 %v3646
    %6590 = vmatpush1.bf16.msra.mxu0 %v3645
    %6591 = vmatprep.subr.bf16.mxu0 %v3654
    %6592 = vmatpush1.bf16.msra.mxu0 %v3653
    %6593 = vmatprep.subr.bf16.mxu0 %v3662
    %6594 = vmatpush1.bf16.msra.mxu0 %v3661
    %6595 = vmatprep.subr.bf16.mxu0 %v3670
    %6596 = vmatpush1.bf16.msra.mxu0 %v3669
    %6597 = vmatprep.subr.bf16.mxu0 %v3678
    %6598 = vmatpush1.bf16.msra.mxu0 %v3677
    %6599 = vmatprep.subr.bf16.mxu0 %v3686
    %6600 = vmatpush1.bf16.msra.mxu0 %v3685
    %6601 = vmatprep.subr.bf16.mxu0 %v3694
    %6602 = vmatpush1.bf16.msra.mxu0 %v3693
    %6603 = vmatprep.subr.bf16.mxu0 %v3702
    %6604 = vmatpush1.bf16.msra.mxu0 %v3701
    %6605 = vmatprep.subr.bf16.mxu0 %v3710
    %6606 = vmatpush1.bf16.msra.mxu0 %v3709
    %6607 = vmatprep.mubr.bf16.mxu0 %v6092
    %6608 = vmatmul.mubr.bf16.gmra.mrb[0].mxu0 %v6091
    %v6609 = vpop.f32.mrb[0].mxu0
    %v6610 = vadd.f32 %v2796, %v6609
    %v6611 = vpop.f32.mrb[0].mxu0
    %v6612 = vadd.f32 %v2800, %v6611
    %v6613 = vpop.f32.mrb[0].mxu0
    %v6614 = vadd.f32 %v2796, %v6613
    %v6615 = vpop.f32.mrb[0].mxu0
    %v6616 = vadd.f32 %v2800, %v6615
    %6617 = vdwg.mxu0
    %6618 = vmatprep.subr.bf16.mxu0 %v3718
    %6619 = vmatpush1.bf16.msra.mxu0 %v3717
    %6620 = vmatprep.subr.bf16.mxu0 %v3726
    %6621 = vmatpush1.bf16.msra.mxu0 %v3725
    %6622 = vmatprep.subr.bf16.mxu0 %v3734
    %6623 = vmatpush1.bf16.msra.mxu0 %v3733
    %6624 = vmatprep.subr.bf16.mxu0 %v3742
    %6625 = vmatpush1.bf16.msra.mxu0 %v3741
    %6626 = vmatprep.subr.bf16.mxu0 %v3750
    %6627 = vmatpush1.bf16.msra.mxu0 %v3749
    %6628 = vmatprep.subr.bf16.mxu0 %v3758
    %6629 = vmatpush1.bf16.msra.mxu0 %v3757
    %6630 = vmatprep.subr.bf16.mxu0 %v3766
    %6631 = vmatpush1.bf16.msra.mxu0 %v3765
    %6632 = vmatprep.subr.bf16.mxu0 %v3774
    %6633 = vmatpush1.bf16.msra.mxu0 %v3773
    %6634 = vmatprep.subr.bf16.mxu0 %v3782
    %6635 = vmatpush1.bf16.msra.mxu0 %v3781
    %6636 = vmatprep.subr.bf16.mxu0 %v3790
    %6637 = vmatpush1.bf16.msra.mxu0 %v3789
    %6638 = vmatprep.subr.bf16.mxu0 %v3798
    %6639 = vmatpush1.bf16.msra.mxu0 %v3797
    %6640 = vmatprep.subr.bf16.mxu0 %v3806
    %6641 = vmatpush1.bf16.msra.mxu0 %v3805
    %6642 = vmatprep.subr.bf16.mxu0 %v3814
    %6643 = vmatpush1.bf16.msra.mxu0 %v3813
    %6644 = vmatprep.subr.bf16.mxu0 %v3822
    %6645 = vmatpush1.bf16.msra.mxu0 %v3821
    %6646 = vmatprep.subr.bf16.mxu0 %v3830
    %6647 = vmatpush1.bf16.msra.mxu0 %v3829
    %6648 = vmatprep.subr.bf16.mxu0 %v3838
    %6649 = vmatpush1.bf16.msra.mxu0 %v3837
    %6650 = vmatprep.mubr.bf16.mxu0 %v6402
    %6651 = vmatmul.mubr.bf16.gmra.mrb[0].mxu0 %v6401
    %v6652 = vpop.f32.mrb[0].mxu0
    %v6653 = vadd.f32 %v6610, %v6652
    %v6654 = vpop.f32.mrb[0].mxu0
    %v6655 = vadd.f32 %v6612, %v6654
    %v6656 = vpop.f32.mrb[0].mxu0
    %v6657 = vadd.f32 %v6614, %v6656
    %v6658 = vpop.f32.mrb[0].mxu0
    %v6659 = vadd.f32 %v6616, %v6658
    %6660 = vdwg.mxu0
    %6661 = vmatprep.subr.bf16.mxu0 %v3592
    %6662 = vmatpush1.bf16.msra.mxu0 %v3591
    %6663 = vmatprep.subr.bf16.mxu0 %v3600
    %6664 = vmatpush1.bf16.msra.mxu0 %v3599
    %6665 = vmatprep.subr.bf16.mxu0 %v3608
    %6666 = vmatpush1.bf16.msra.mxu0 %v3607
    %6667 = vmatprep.subr.bf16.mxu0 %v3616
    %6668 = vmatpush1.bf16.msra.mxu0 %v3615
    %6669 = vmatprep.subr.bf16.mxu0 %v3624
    %6670 = vmatpush1.bf16.msra.mxu0 %v3623
    %6671 = vmatprep.subr.bf16.mxu0 %v3632
    %6672 = vmatpush1.bf16.msra.mxu0 %v3631
    %6673 = vmatprep.subr.bf16.mxu0 %v3640
    %6674 = vmatpush1.bf16.msra.mxu0 %v3639
    %6675 = vmatprep.subr.bf16.mxu0 %v3648
    %6676 = vmatpush1.bf16.msra.mxu0 %v3647
    %6677 = vmatprep.subr.bf16.mxu0 %v3656
    %6678 = vmatpush1.bf16.msra.mxu0 %v3655
    %6679 = vmatprep.subr.bf16.mxu0 %v3664
    %6680 = vmatpush1.bf16.msra.mxu0 %v3663
    %6681 = vmatprep.subr.bf16.mxu0 %v3672
    %6682 = vmatpush1.bf16.msra.mxu0 %v3671
    %6683 = vmatprep.subr.bf16.mxu0 %v3680
    %6684 = vmatpush1.bf16.msra.mxu0 %v3679
    %6685 = vmatprep.subr.bf16.mxu0 %v3688
    %6686 = vmatpush1.bf16.msra.mxu0 %v3687
    %6687 = vmatprep.subr.bf16.mxu0 %v3696
    %6688 = vmatpush1.bf16.msra.mxu0 %v3695
    %6689 = vmatprep.subr.bf16.mxu0 %v3704
    %6690 = vmatpush1.bf16.msra.mxu0 %v3703
    %6691 = vmatprep.subr.bf16.mxu0 %v3712
    %6692 = vmatpush1.bf16.msra.mxu0 %v3711
    %6693 = vmatprep.mubr.bf16.mxu0 %v6092
    %6694 = vmatmul.mubr.bf16.gmra.mrb[0].mxu0 %v6091
    %v6695 = vpop.f32.mrb[0].mxu0
    %v6696 = vadd.f32 %v2804, %v6695
    %v6697 = vpop.f32.mrb[0].mxu0
    %v6698 = vadd.f32 %v2808, %v6697
    %v6699 = vpop.f32.mrb[0].mxu0
    %v6700 = vadd.f32 %v2804, %v6699
    %v6701 = vpop.f32.mrb[0].mxu0
    %v6702 = vadd.f32 %v2808, %v6701
    %6703 = vdwg.mxu0
    %6704 = vmatprep.subr.bf16.mxu0 %v3720
    %6705 = vmatpush1.bf16.msra.mxu0 %v3719
    %6706 = vmatprep.subr.bf16.mxu0 %v3728
    %6707 = vmatpush1.bf16.msra.mxu0 %v3727
    %6708 = vmatprep.subr.bf16.mxu0 %v3736
    %6709 = vmatpush1.bf16.msra.mxu0 %v3735
    %6710 = vmatprep.subr.bf16.mxu0 %v3744
    %6711 = vmatpush1.bf16.msra.mxu0 %v3743
    %6712 = vmatprep.subr.bf16.mxu0 %v3752
    %6713 = vmatpush1.bf16.msra.mxu0 %v3751
    %6714 = vmatprep.subr.bf16.mxu0 %v3760
    %6715 = vmatpush1.bf16.msra.mxu0 %v3759
    %6716 = vmatprep.subr.bf16.mxu0 %v3768
    %6717 = vmatpush1.bf16.msra.mxu0 %v3767
    %6718 = vmatprep.subr.bf16.mxu0 %v3776
    %6719 = vmatpush1.bf16.msra.mxu0 %v3775
    %6720 = vmatprep.subr.bf16.mxu0 %v3784
    %6721 = vmatpush1.bf16.msra.mxu0 %v3783
    %6722 = vmatprep.subr.bf16.mxu0 %v3792
    %6723 = vmatpush1.bf16.msra.mxu0 %v3791
    %6724 = vmatprep.subr.bf16.mxu0 %v3800
    %6725 = vmatpush1.bf16.msra.mxu0 %v3799
    %6726 = vmatprep.subr.bf16.mxu0 %v3808
    %6727 = vmatpush1.bf16.msra.mxu0 %v3807
    %6728 = vmatprep.subr.bf16.mxu0 %v3816
    %6729 = vmatpush1.bf16.msra.mxu0 %v3815
    %6730 = vmatprep.subr.bf16.mxu0 %v3824
    %6731 = vmatpush1.bf16.msra.mxu0 %v3823
    %6732 = vmatprep.subr.bf16.mxu0 %v3832
    %6733 = vmatpush1.bf16.msra.mxu0 %v3831
    %6734 = vmatprep.subr.bf16.mxu0 %v3840
    %6735 = vmatpush1.bf16.msra.mxu0 %v3839
    %6736 = vmatprep.mubr.bf16.mxu0 %v6402
    %6737 = vmatmul.mubr.bf16.gmra.mrb[0].mxu0 %v6401
    %v6738 = vpop.f32.mrb[0].mxu0
    %v6739 = vadd.f32 %v6696, %v6738
    %v6740 = vpop.f32.mrb[0].mxu0
    %v6741 = vadd.f32 %v6698, %v6740
    %v6742 = vpop.f32.mrb[0].mxu0
    %v6743 = vadd.f32 %v6700, %v6742
    %v6744 = vpop.f32.mrb[0].mxu0
    %v6745 = vadd.f32 %v6702, %v6744
    %6746 = vdwg.mxu0
    %v6747 = vxor.u32 %v6481, 2147483648
    %v6748 = vxor.u32 %v6483, 2147483648
    %v6749 = vxor.u32 %v6485, 2147483648
    %v6750 = vxor.u32 %v6487, 2147483648
    %v6751 = vmul.f32 %v6747, 1.442695
    %v6752 = vpow.pop %v6751
    %v6753 = vmul.f32 %v6748, 1.442695
    %v6754 = vpow.pop %v6753
    %v6755 = vmul.f32 %v6749, 1.442695
    %v6756 = vpow.pop %v6755
    %v6757 = vmul.f32 %v6750, 1.442695
    %v6758 = vpow.pop %v6757
    %v6759 = vadd.f32 %v6752, 1.0
    %v6760 = vadd.f32 %v6754, 1.0
    %v6761 = vadd.f32 %v6756, 1.0
    %v6762 = vadd.f32 %v6758, 1.0
    %v6763 = vrcp.pop %v6759
    %v6764 = vmul.f32 1.0, %v6763
    %v6765 = vrcp.pop %v6760
    %v6766 = vmul.f32 1.0, %v6765
    %v6767 = vrcp.pop %v6761
    %v6768 = vmul.f32 1.0, %v6767
    %v6769 = vrcp.pop %v6762
    %v6770 = vmul.f32 1.0, %v6769
    %v6771 = vxor.u32 %v6567, 2147483648
    %v6772 = vxor.u32 %v6569, 2147483648
    %v6773 = vxor.u32 %v6571, 2147483648
    %v6774 = vxor.u32 %v6573, 2147483648
    %v6775 = vmul.f32 %v6771, 1.442695
    %v6776 = vpow.pop %v6775
    %v6777 = vmul.f32 %v6772, 1.442695
    %v6778 = vpow.pop %v6777
    %v6779 = vmul.f32 %v6773, 1.442695
    %v6780 = vpow.pop %v6779
    %v6781 = vmul.f32 %v6774, 1.442695
    %v6782 = vpow.pop %v6781
    %v6783 = vadd.f32 %v6776, 1.0
    %v6784 = vadd.f32 %v6778, 1.0
    %v6785 = vadd.f32 %v6780, 1.0
    %v6786 = vadd.f32 %v6782, 1.0
    %v6787 = vrcp.pop %v6783
    %v6788 = vmul.f32 1.0, %v6787
    %v6789 = vrcp.pop %v6784
    %v6790 = vmul.f32 1.0, %v6789
    %v6791 = vrcp.pop %v6785
    %v6792 = vmul.f32 1.0, %v6791
    %v6793 = vrcp.pop %v6786
    %v6794 = vmul.f32 1.0, %v6793
    %v6795 = vtanh.pop %v6653
    %v6796 = vtanh.pop %v6655
    %v6797 = vtanh.pop %v6657
    %v6798 = vtanh.pop %v6659
    %v6799 = vxor.u32 %v6739, 2147483648
    %v6800 = vxor.u32 %v6741, 2147483648
    %v6801 = vxor.u32 %v6743, 2147483648
    %v6802 = vxor.u32 %v6745, 2147483648
    %v6803 = vmul.f32 %v6799, 1.442695
    %v6804 = vpow.pop %v6803
    %v6805 = vmul.f32 %v6800, 1.442695
    %v6806 = vpow.pop %v6805
    %v6807 = vmul.f32 %v6801, 1.442695
    %v6808 = vpow.pop %v6807
    %v6809 = vmul.f32 %v6802, 1.442695
    %v6810 = vpow.pop %v6809
    %v6811 = vadd.f32 %v6804, 1.0
    %v6812 = vadd.f32 %v6806, 1.0
    %v6813 = vadd.f32 %v6808, 1.0
    %v6814 = vadd.f32 %v6810, 1.0
    %v6815 = vrcp.pop %v6811
    %v6816 = vmul.f32 1.0, %v6815
    %v6817 = vrcp.pop %v6812
    %v6818 = vmul.f32 1.0, %v6817
    %v6819 = vrcp.pop %v6813
    %v6820 = vmul.f32 1.0, %v6819
    %v6821 = vrcp.pop %v6814
    %v6822 = vmul.f32 1.0, %v6821
    %v6823 = vmul.f32 %v6788, %v6063
    %v6824 = vmul.f32 %v6790, %v6064
    %v6825 = vmul.f32 %v6792, %v6065
    %v6826 = vmul.f32 %v6794, %v6066
    %v6827 = vmul.f32 %v6764, %v6795
    %v6828 = vmul.f32 %v6766, %v6796
    %v6829 = vmul.f32 %v6768, %v6797
    %v6830 = vmul.f32 %v6770, %v6798
    %v6831 = vadd.f32 %v6823, %v6827
    %v6832 = vadd.f32 %v6824, %v6828
    %v6833 = vadd.f32 %v6825, %v6829
    %v6834 = vadd.f32 %v6826, %v6830
    %v6835 = vtanh.pop %v6831
    %v6836 = vtanh.pop %v6832
    %v6837 = vtanh.pop %v6833
    %v6838 = vtanh.pop %v6834
    %v6839 = vmul.f32 %v6816, %v6835
    %v6840 = vmul.f32 %v6818, %v6836
    %v6841 = vmul.f32 %v6820, %v6837
    %v6842 = vmul.f32 %v6822, %v6838
    %vm6843 = vcmp.eq.s32.totalorder %v4537, 3
    %vm6844 = vcmp.eq.s32.totalorder %v4538, 3
    %v6845 = vsel %vm6843, 1, 0
    %v6846 = vsel %vm6844, 1, 0
    %6847 = vset.pattern.permute.xlu0 0
    %6848 = vperm.xlu0 %6847, %v6845
    %v6849 = vpop.permute.xlu0 %6848
    %6850 = vset.pattern.permute.xlu0 0
    %6851 = vperm.xlu0 %6850, %v6846
    %v6852 = vpop.permute.xlu0 %6851
    %vm6853 = vcmp.eq.s32.totalorder %v6849, 1
    %vm6854 = vcmp.eq.s32.totalorder %v6852, 1
    %v6855 = vsel %vm6853, %v6839, %v6087
    %v6856 = vsel %vm6853, %v6840, %v6088
    %v6857 = vsel %vm6854, %v6841, %v6089
    %v6858 = vsel %vm6854, %v6842, %v6090
    %v6859 = vpack.c.bf16 %v6399, %v6397
    %v6860 = vpack.c.bf16 %v6400, %v6398
    %v6861 = vld [vmem:[#allocation2 + $0x140] sm:$0xff]
    %v6862 = vld [vmem:[#allocation2 + $0x148] sm:$0xff]
    %v6863 = vld [vmem:[#allocation2 + $0x150] sm:$0xff]
    %v6864 = vld [vmem:[#allocation2 + $0x158] sm:$0xff]
    %v6865 = vld [vmem:[#allocation2 + $0x160] sm:$0xff]
    %v6866 = vld [vmem:[#allocation2 + $0x168] sm:$0xff]
    %v6867 = vld [vmem:[#allocation2 + $0x170] sm:$0xff]
    %v6868 = vld [vmem:[#allocation2 + $0x178] sm:$0xff]
    %v6869 = vunpack.c.l.bf16 %v6861
    %v6870 = vunpack.c.l.bf16 %v6862
    %v6871 = vunpack.c.l.bf16 %v6863
    %v6872 = vunpack.c.l.bf16 %v6864
    %v6873 = vunpack.c.l.bf16 %v6865
    %v6874 = vunpack.c.l.bf16 %v6866
    %v6875 = vunpack.c.l.bf16 %v6867
    %v6876 = vunpack.c.l.bf16 %v6868
    %v6877 = vunpack.c.h.bf16 %v6861
    %v6878 = vunpack.c.h.bf16 %v6862
    %v6879 = vunpack.c.h.bf16 %v6863
    %v6880 = vunpack.c.h.bf16 %v6864
    %v6881 = vunpack.c.h.bf16 %v6865
    %v6882 = vunpack.c.h.bf16 %v6866
    %v6883 = vunpack.c.h.bf16 %v6867
    %v6884 = vunpack.c.h.bf16 %v6868
    %6885 = vmatprep.subr.bf16.mxu0 %v1927
    %6886 = vmatpush1.bf16.msra.mxu0 %v1926
    %6887 = vmatprep.subr.bf16.mxu0 %v1935
    %6888 = vmatpush1.bf16.msra.mxu0 %v1934
    %6889 = vmatprep.subr.bf16.mxu0 %v1943
    %6890 = vmatpush1.bf16.msra.mxu0 %v1942
    %6891 = vmatprep.subr.bf16.mxu0 %v1951
    %6892 = vmatpush1.bf16.msra.mxu0 %v1950
    %6893 = vmatprep.subr.bf16.mxu0 %v1959
    %6894 = vmatpush1.bf16.msra.mxu0 %v1958
    %6895 = vmatprep.subr.bf16.mxu0 %v1967
    %6896 = vmatpush1.bf16.msra.mxu0 %v1966
    %6897 = vmatprep.subr.bf16.mxu0 %v1975
    %6898 = vmatpush1.bf16.msra.mxu0 %v1974
    %6899 = vmatprep.subr.bf16.mxu0 %v1983
    %6900 = vmatpush1.bf16.msra.mxu0 %v1982
    %6901 = vmatprep.subr.bf16.mxu0 %v1991
    %6902 = vmatpush1.bf16.msra.mxu0 %v1990
    %6903 = vmatprep.subr.bf16.mxu0 %v1999
    %6904 = vmatpush1.bf16.msra.mxu0 %v1998
    %6905 = vmatprep.subr.bf16.mxu0 %v2007
    %6906 = vmatpush1.bf16.msra.mxu0 %v2006
    %6907 = vmatprep.subr.bf16.mxu0 %v2015
    %6908 = vmatpush1.bf16.msra.mxu0 %v2014
    %6909 = vmatprep.subr.bf16.mxu0 %v2023
    %6910 = vmatpush1.bf16.msra.mxu0 %v2022
    %6911 = vmatprep.subr.bf16.mxu0 %v2031
    %6912 = vmatpush1.bf16.msra.mxu0 %v2030
    %6913 = vmatprep.subr.bf16.mxu0 %v2039
    %6914 = vmatpush1.bf16.msra.mxu0 %v2038
    %6915 = vmatprep.subr.bf16.mxu0 %v2047
    %6916 = vmatpush1.bf16.msra.mxu0 %v2046
    %6917 = vmatprep.mubr.bf16.mxu0 %v6860
    %6918 = vmatmul.mubr.bf16.gmra.mrb[0].mxu0 %v6859
    %v6919 = vpop.f32.mrb[0].mxu0
    %v6920 = vadd.f32 0.0, %v6919
    %v6921 = vpop.f32.mrb[0].mxu0
    %v6922 = vadd.f32 0.0, %v6921
    %v6923 = vpop.f32.mrb[0].mxu0
    %v6924 = vadd.f32 0.0, %v6923
    %v6925 = vpop.f32.mrb[0].mxu0
    %v6926 = vadd.f32 0.0, %v6925
    %6927 = vdwg.mxu0
    %6928 = vmatprep.subr.bf16.mxu0 %v1929
    %6929 = vmatpush1.bf16.msra.mxu0 %v1928
    %6930 = vmatprep.subr.bf16.mxu0 %v1937
    %6931 = vmatpush1.bf16.msra.mxu0 %v1936
    %6932 = vmatprep.subr.bf16.mxu0 %v1945
    %6933 = vmatpush1.bf16.msra.mxu0 %v1944
    %6934 = vmatprep.subr.bf16.mxu0 %v1953
    %6935 = vmatpush1.bf16.msra.mxu0 %v1952
    %6936 = vmatprep.subr.bf16.mxu0 %v1961
    %6937 = vmatpush1.bf16.msra.mxu0 %v1960
    %6938 = vmatprep.subr.bf16.mxu0 %v1969
    %6939 = vmatpush1.bf16.msra.mxu0 %v1968
    %6940 = vmatprep.subr.bf16.mxu0 %v1977
    %6941 = vmatpush1.bf16.msra.mxu0 %v1976
    %6942 = vmatprep.subr.bf16.mxu0 %v1985
    %6943 = vmatpush1.bf16.msra.mxu0 %v1984
    %6944 = vmatprep.subr.bf16.mxu0 %v1993
    %6945 = vmatpush1.bf16.msra.mxu0 %v1992
    %6946 = vmatprep.subr.bf16.mxu0 %v2001
    %6947 = vmatpush1.bf16.msra.mxu0 %v2000
    %6948 = vmatprep.subr.bf16.mxu0 %v2009
    %6949 = vmatpush1.bf16.msra.mxu0 %v2008
    %6950 = vmatprep.subr.bf16.mxu0 %v2017
    %6951 = vmatpush1.bf16.msra.mxu0 %v2016
    %6952 = vmatprep.subr.bf16.mxu0 %v2025
    %6953 = vmatpush1.bf16.msra.mxu0 %v2024
    %6954 = vmatprep.subr.bf16.mxu0 %v2033
    %6955 = vmatpush1.bf16.msra.mxu0 %v2032
    %6956 = vmatprep.subr.bf16.mxu0 %v2041
    %6957 = vmatpush1.bf16.msra.mxu0 %v2040
    %6958 = vmatprep.subr.bf16.mxu0 %v2049
    %6959 = vmatpush1.bf16.msra.mxu0 %v2048
    %6960 = vmatprep.mubr.bf16.mxu0 %v6860
    %6961 = vmatmul.mubr.bf16.gmra.mrb[0].mxu0 %v6859
    %v6962 = vpop.f32.mrb[0].mxu0
    %v6963 = vadd.f32 0.0, %v6962
    %v6964 = vpop.f32.mrb[0].mxu0
    %v6965 = vadd.f32 0.0, %v6964
    %v6966 = vpop.f32.mrb[0].mxu0
    %v6967 = vadd.f32 0.0, %v6966
    %v6968 = vpop.f32.mrb[0].mxu0
    %v6969 = vadd.f32 0.0, %v6968
    %6970 = vdwg.mxu0
    %6971 = vmatprep.subr.bf16.mxu0 %v1931
    %6972 = vmatpush1.bf16.msra.mxu0 %v1930
    %6973 = vmatprep.subr.bf16.mxu0 %v1939
    %6974 = vmatpush1.bf16.msra.mxu0 %v1938
    %6975 = vmatprep.subr.bf16.mxu0 %v1947
    %6976 = vmatpush1.bf16.msra.mxu0 %v1946
    %6977 = vmatprep.subr.bf16.mxu0 %v1955
    %6978 = vmatpush1.bf16.msra.mxu0 %v1954
    %6979 = vmatprep.subr.bf16.mxu0 %v1963
    %6980 = vmatpush1.bf16.msra.mxu0 %v1962
    %6981 = vmatprep.subr.bf16.mxu0 %v1971
    %6982 = vmatpush1.bf16.msra.mxu0 %v1970
    %6983 = vmatprep.subr.bf16.mxu0 %v1979
    %6984 = vmatpush1.bf16.msra.mxu0 %v1978
    %6985 = vmatprep.subr.bf16.mxu0 %v1987
    %6986 = vmatpush1.bf16.msra.mxu0 %v1986
    %6987 = vmatprep.subr.bf16.mxu0 %v1995
    %6988 = vmatpush1.bf16.msra.mxu0 %v1994
    %6989 = vmatprep.subr.bf16.mxu0 %v2003
    %6990 = vmatpush1.bf16.msra.mxu0 %v2002
    %6991 = vmatprep.subr.bf16.mxu0 %v2011
    %6992 = vmatpush1.bf16.msra.mxu0 %v2010
    %6993 = vmatprep.subr.bf16.mxu0 %v2019
    %6994 = vmatpush1.bf16.msra.mxu0 %v2018
    %6995 = vmatprep.subr.bf16.mxu0 %v2027
    %6996 = vmatpush1.bf16.msra.mxu0 %v2026
    %6997 = vmatprep.subr.bf16.mxu0 %v2035
    %6998 = vmatpush1.bf16.msra.mxu0 %v2034
    %6999 = vmatprep.subr.bf16.mxu0 %v2043
    %7000 = vmatpush1.bf16.msra.mxu0 %v2042
    %7001 = vmatprep.subr.bf16.mxu0 %v2051
    %7002 = vmatpush1.bf16.msra.mxu0 %v2050
    %7003 = vmatprep.mubr.bf16.mxu0 %v6860
    %7004 = vmatmul.mubr.bf16.gmra.mrb[0].mxu0 %v6859
    %v7005 = vpop.f32.mrb[0].mxu0
    %v7006 = vadd.f32 0.0, %v7005
    %v7007 = vpop.f32.mrb[0].mxu0
    %v7008 = vadd.f32 0.0, %v7007
    %v7009 = vpop.f32.mrb[0].mxu0
    %v7010 = vadd.f32 0.0, %v7009
    %v7011 = vpop.f32.mrb[0].mxu0
    %v7012 = vadd.f32 0.0, %v7011
    %7013 = vdwg.mxu0
    %7014 = vmatprep.subr.bf16.mxu0 %v1933
    %7015 = vmatpush1.bf16.msra.mxu0 %v1932
    %7016 = vmatprep.subr.bf16.mxu0 %v1941
    %7017 = vmatpush1.bf16.msra.mxu0 %v1940
    %7018 = vmatprep.subr.bf16.mxu0 %v1949
    %7019 = vmatpush1.bf16.msra.mxu0 %v1948
    %7020 = vmatprep.subr.bf16.mxu0 %v1957
    %7021 = vmatpush1.bf16.msra.mxu0 %v1956
    %7022 = vmatprep.subr.bf16.mxu0 %v1965
    %7023 = vmatpush1.bf16.msra.mxu0 %v1964
    %7024 = vmatprep.subr.bf16.mxu0 %v1973
    %7025 = vmatpush1.bf16.msra.mxu0 %v1972
    %7026 = vmatprep.subr.bf16.mxu0 %v1981
    %7027 = vmatpush1.bf16.msra.mxu0 %v1980
    %7028 = vmatprep.subr.bf16.mxu0 %v1989
    %7029 = vmatpush1.bf16.msra.mxu0 %v1988
    %7030 = vmatprep.subr.bf16.mxu0 %v1997
    %7031 = vmatpush1.bf16.msra.mxu0 %v1996
    %7032 = vmatprep.subr.bf16.mxu0 %v2005
    %7033 = vmatpush1.bf16.msra.mxu0 %v2004
    %7034 = vmatprep.subr.bf16.mxu0 %v2013
    %7035 = vmatpush1.bf16.msra.mxu0 %v2012
    %7036 = vmatprep.subr.bf16.mxu0 %v2021
    %7037 = vmatpush1.bf16.msra.mxu0 %v2020
    %7038 = vmatprep.subr.bf16.mxu0 %v2029
    %7039 = vmatpush1.bf16.msra.mxu0 %v2028
    %7040 = vmatprep.subr.bf16.mxu0 %v2037
    %7041 = vmatpush1.bf16.msra.mxu0 %v2036
    %7042 = vmatprep.subr.bf16.mxu0 %v2045
    %7043 = vmatpush1.bf16.msra.mxu0 %v2044
    %7044 = vmatprep.subr.bf16.mxu0 %v2053
    %7045 = vmatpush1.bf16.msra.mxu0 %v2052
    %7046 = vmatprep.mubr.bf16.mxu0 %v6860
    %7047 = vmatmul.mubr.bf16.gmra.mrb[0].mxu0 %v6859
    %v7048 = vpop.f32.mrb[0].mxu0
    %v7049 = vadd.f32 0.0, %v7048
    %v7050 = vpop.f32.mrb[0].mxu0
    %v7051 = vadd.f32 0.0, %v7050
    %v7052 = vpop.f32.mrb[0].mxu0
    %v7053 = vadd.f32 0.0, %v7052
    %v7054 = vpop.f32.mrb[0].mxu0
    %v7055 = vadd.f32 0.0, %v7054
    %7056 = vdwg.mxu0
    %v7057 = vadd.f32 %v6869, %v6920
    %v7058 = vadd.f32 %v6870, %v6922
    %v7059 = vadd.f32 %v6871, %v6963
    %v7060 = vadd.f32 %v6872, %v6965
    %v7061 = vadd.f32 %v6873, %v7006
    %v7062 = vadd.f32 %v6874, %v7008
    %v7063 = vadd.f32 %v6875, %v7049
    %v7064 = vadd.f32 %v6876, %v7051
    %v7065 = vadd.f32 %v6877, %v6924
    %v7066 = vadd.f32 %v6878, %v6926
    %v7067 = vadd.f32 %v6879, %v6967
    %v7068 = vadd.f32 %v6880, %v6969
    %v7069 = vadd.f32 %v6881, %v7010
    %v7070 = vadd.f32 %v6882, %v7012
    %v7071 = vadd.f32 %v6883, %v7053
    %v7072 = vadd.f32 %v6884, %v7055
    %v7073 = vxor.u32 %v7057, 2147483648
    %v7074 = vxor.u32 %v7058, 2147483648
    %v7075 = vxor.u32 %v7065, 2147483648
    %v7076 = vxor.u32 %v7066, 2147483648
    %v7077 = vmul.f32 %v7073, 1.442695
    %v7078 = vpow.pop %v7077
    %v7079 = vmul.f32 %v7074, 1.442695
    %v7080 = vpow.pop %v7079
    %v7081 = vmul.f32 %v7075, 1.442695
    %v7082 = vpow.pop %v7081
    %v7083 = vmul.f32 %v7076, 1.442695
    %v7084 = vpow.pop %v7083
    %v7085 = vadd.f32 %v7078, 1.0
    %v7086 = vadd.f32 %v7080, 1.0
    %v7087 = vadd.f32 %v7082, 1.0
    %v7088 = vadd.f32 %v7084, 1.0
    %v7089 = vrcp.pop %v7085
    %v7090 = vmul.f32 1.0, %v7089
    %v7091 = vrcp.pop %v7086
    %v7092 = vmul.f32 1.0, %v7091
    %v7093 = vrcp.pop %v7087
    %v7094 = vmul.f32 1.0, %v7093
    %v7095 = vrcp.pop %v7088
    %v7096 = vmul.f32 1.0, %v7095
    %v7097 = vxor.u32 %v7059, 2147483648
    %v7098 = vxor.u32 %v7060, 2147483648
    %v7099 = vxor.u32 %v7067, 2147483648
    %v7100 = vxor.u32 %v7068, 2147483648
    %v7101 = vmul.f32 %v7097, 1.442695
    %v7102 = vpow.pop %v7101
    %v7103 = vmul.f32 %v7098, 1.442695
    %v7104 = vpow.pop %v7103
    %v7105 = vmul.f32 %v7099, 1.442695
    %v7106 = vpow.pop %v7105
    %v7107 = vmul.f32 %v7100, 1.442695
    %v7108 = vpow.pop %v7107
    %v7109 = vadd.f32 %v7102, 1.0
    %v7110 = vadd.f32 %v7104, 1.0
    %v7111 = vadd.f32 %v7106, 1.0
    %v7112 = vadd.f32 %v7108, 1.0
    %v7113 = vrcp.pop %v7109
    %v7114 = vmul.f32 1.0, %v7113
    %v7115 = vrcp.pop %v7110
    %v7116 = vmul.f32 1.0, %v7115
    %v7117 = vrcp.pop %v7111
    %v7118 = vmul.f32 1.0, %v7117
    %v7119 = vrcp.pop %v7112
    %v7120 = vmul.f32 1.0, %v7119
    %v7121 = vtanh.pop %v7061
    %v7122 = vtanh.pop %v7062
    %v7123 = vtanh.pop %v7069
    %v7124 = vtanh.pop %v7070
    %v7125 = vxor.u32 %v7063, 2147483648
    %v7126 = vxor.u32 %v7064, 2147483648
    %v7127 = vxor.u32 %v7071, 2147483648
    %v7128 = vxor.u32 %v7072, 2147483648
    %v7129 = vmul.f32 %v7125, 1.442695
    %v7130 = vpow.pop %v7129
    %v7131 = vmul.f32 %v7126, 1.442695
    %v7132 = vpow.pop %v7131
    %v7133 = vmul.f32 %v7127, 1.442695
    %v7134 = vpow.pop %v7133
    %v7135 = vmul.f32 %v7128, 1.442695
    %v7136 = vpow.pop %v7135
    %v7137 = vadd.f32 %v7130, 1.0
    %v7138 = vadd.f32 %v7132, 1.0
    %v7139 = vadd.f32 %v7134, 1.0
    %v7140 = vadd.f32 %v7136, 1.0
    %v7141 = vrcp.pop %v7137
    %v7142 = vmul.f32 1.0, %v7141
    %v7143 = vrcp.pop %v7138
    %v7144 = vmul.f32 1.0, %v7143
    %v7145 = vrcp.pop %v7139
    %v7146 = vmul.f32 1.0, %v7145
    %v7147 = vrcp.pop %v7140
    %v7148 = vmul.f32 1.0, %v7147
    %v7149 = vmul.f32 %v7114, %v6389
    %v7150 = vmul.f32 %v7116, %v6390
    %v7151 = vmul.f32 %v7118, %v6391
    %v7152 = vmul.f32 %v7120, %v6392
    %v7153 = vmul.f32 %v7090, %v7121
    %v7154 = vmul.f32 %v7092, %v7122
    %v7155 = vmul.f32 %v7094, %v7123
    %v7156 = vmul.f32 %v7096, %v7124
    %v7157 = vadd.f32 %v7149, %v7153
    %v7158 = vadd.f32 %v7150, %v7154
    %v7159 = vadd.f32 %v7151, %v7155
    %v7160 = vadd.f32 %v7152, %v7156
    %v7161 = vtanh.pop %v7157
    %v7162 = vtanh.pop %v7158
    %v7163 = vtanh.pop %v7159
    %v7164 = vtanh.pop %v7160
    %v7165 = vmul.f32 %v7142, %v7161
    %v7166 = vmul.f32 %v7144, %v7162
    %v7167 = vmul.f32 %v7146, %v7163
    %v7168 = vmul.f32 %v7148, %v7164
    %v7169 = vpack.c.bf16 %v6841, %v6839
    %v7170 = vpack.c.bf16 %v6842, %v6840
    %7171 = vmatprep.subr.bf16.mxu0 %v3586
    %7172 = vmatpush1.bf16.msra.mxu0 %v3585
    %7173 = vmatprep.subr.bf16.mxu0 %v3594
    %7174 = vmatpush1.bf16.msra.mxu0 %v3593
    %7175 = vmatprep.subr.bf16.mxu0 %v3602
    %7176 = vmatpush1.bf16.msra.mxu0 %v3601
    %7177 = vmatprep.subr.bf16.mxu0 %v3610
    %7178 = vmatpush1.bf16.msra.mxu0 %v3609
    %7179 = vmatprep.subr.bf16.mxu0 %v3618
    %7180 = vmatpush1.bf16.msra.mxu0 %v3617
    %7181 = vmatprep.subr.bf16.mxu0 %v3626
    %7182 = vmatpush1.bf16.msra.mxu0 %v3625
    %7183 = vmatprep.subr.bf16.mxu0 %v3634
    %7184 = vmatpush1.bf16.msra.mxu0 %v3633
    %7185 = vmatprep.subr.bf16.mxu0 %v3642
    %7186 = vmatpush1.bf16.msra.mxu0 %v3641
    %7187 = vmatprep.subr.bf16.mxu0 %v3650
    %7188 = vmatpush1.bf16.msra.mxu0 %v3649
    %7189 = vmatprep.subr.bf16.mxu0 %v3658
    %7190 = vmatpush1.bf16.msra.mxu0 %v3657
    %7191 = vmatprep.subr.bf16.mxu0 %v3666
    %7192 = vmatpush1.bf16.msra.mxu0 %v3665
    %7193 = vmatprep.subr.bf16.mxu0 %v3674
    %7194 = vmatpush1.bf16.msra.mxu0 %v3673
    %7195 = vmatprep.subr.bf16.mxu0 %v3682
    %7196 = vmatpush1.bf16.msra.mxu0 %v3681
    %7197 = vmatprep.subr.bf16.mxu0 %v3690
    %7198 = vmatpush1.bf16.msra.mxu0 %v3689
    %7199 = vmatprep.subr.bf16.mxu0 %v3698
    %7200 = vmatpush1.bf16.msra.mxu0 %v3697
    %7201 = vmatprep.subr.bf16.mxu0 %v3706
    %7202 = vmatpush1.bf16.msra.mxu0 %v3705
    %7203 = vmatprep.mubr.bf16.mxu0 %v6860
    %7204 = vmatmul.mubr.bf16.gmra.mrb[0].mxu0 %v6859
    %v7205 = vpop.f32.mrb[0].mxu0
    %v7206 = vadd.f32 %v2780, %v7205
    %v7207 = vpop.f32.mrb[0].mxu0
    %v7208 = vadd.f32 %v2784, %v7207
    %v7209 = vpop.f32.mrb[0].mxu0
    %v7210 = vadd.f32 %v2780, %v7209
    %v7211 = vpop.f32.mrb[0].mxu0
    %v7212 = vadd.f32 %v2784, %v7211
    %7213 = vdwg.mxu0
    %7214 = vmatprep.subr.bf16.mxu0 %v3714
    %7215 = vmatpush1.bf16.msra.mxu0 %v3713
    %7216 = vmatprep.subr.bf16.mxu0 %v3722
    %7217 = vmatpush1.bf16.msra.mxu0 %v3721
    %7218 = vmatprep.subr.bf16.mxu0 %v3730
    %7219 = vmatpush1.bf16.msra.mxu0 %v3729
    %7220 = vmatprep.subr.bf16.mxu0 %v3738
    %7221 = vmatpush1.bf16.msra.mxu0 %v3737
    %7222 = vmatprep.subr.bf16.mxu0 %v3746
    %7223 = vmatpush1.bf16.msra.mxu0 %v3745
    %7224 = vmatprep.subr.bf16.mxu0 %v3754
    %7225 = vmatpush1.bf16.msra.mxu0 %v3753
    %7226 = vmatprep.subr.bf16.mxu0 %v3762
    %7227 = vmatpush1.bf16.msra.mxu0 %v3761
    %7228 = vmatprep.subr.bf16.mxu0 %v3770
    %7229 = vmatpush1.bf16.msra.mxu0 %v3769
    %7230 = vmatprep.subr.bf16.mxu0 %v3778
    %7231 = vmatpush1.bf16.msra.mxu0 %v3777
    %7232 = vmatprep.subr.bf16.mxu0 %v3786
    %7233 = vmatpush1.bf16.msra.mxu0 %v3785
    %7234 = vmatprep.subr.bf16.mxu0 %v3794
    %7235 = vmatpush1.bf16.msra.mxu0 %v3793
    %7236 = vmatprep.subr.bf16.mxu0 %v3802
    %7237 = vmatpush1.bf16.msra.mxu0 %v3801
    %7238 = vmatprep.subr.bf16.mxu0 %v3810
    %7239 = vmatpush1.bf16.msra.mxu0 %v3809
    %7240 = vmatprep.subr.bf16.mxu0 %v3818
    %7241 = vmatpush1.bf16.msra.mxu0 %v3817
    %7242 = vmatprep.subr.bf16.mxu0 %v3826
    %7243 = vmatpush1.bf16.msra.mxu0 %v3825
    %7244 = vmatprep.subr.bf16.mxu0 %v3834
    %7245 = vmatpush1.bf16.msra.mxu0 %v3833
    %7246 = vmatprep.mubr.bf16.mxu0 %v7170
    %7247 = vmatmul.mubr.bf16.gmra.mrb[0].mxu0 %v7169
    %v7248 = vpop.f32.mrb[0].mxu0
    %v7249 = vadd.f32 %v7206, %v7248
    %v7250 = vpop.f32.mrb[0].mxu0
    %v7251 = vadd.f32 %v7208, %v7250
    %v7252 = vpop.f32.mrb[0].mxu0
    %v7253 = vadd.f32 %v7210, %v7252
    %v7254 = vpop.f32.mrb[0].mxu0
    %v7255 = vadd.f32 %v7212, %v7254
    %7256 = vdwg.mxu0
    %7257 = vmatprep.subr.bf16.mxu0 %v3588
    %7258 = vmatpush1.bf16.msra.mxu0 %v3587
    %7259 = vmatprep.subr.bf16.mxu0 %v3596
    %7260 = vmatpush1.bf16.msra.mxu0 %v3595
    %7261 = vmatprep.subr.bf16.mxu0 %v3604
    %7262 = vmatpush1.bf16.msra.mxu0 %v3603
    %7263 = vmatprep.subr.bf16.mxu0 %v3612
    %7264 = vmatpush1.bf16.msra.mxu0 %v3611
    %7265 = vmatprep.subr.bf16.mxu0 %v3620
    %7266 = vmatpush1.bf16.msra.mxu0 %v3619
    %7267 = vmatprep.subr.bf16.mxu0 %v3628
    %7268 = vmatpush1.bf16.msra.mxu0 %v3627
    %7269 = vmatprep.subr.bf16.mxu0 %v3636
    %7270 = vmatpush1.bf16.msra.mxu0 %v3635
    %7271 = vmatprep.subr.bf16.mxu0 %v3644
    %7272 = vmatpush1.bf16.msra.mxu0 %v3643
    %7273 = vmatprep.subr.bf16.mxu0 %v3652
    %7274 = vmatpush1.bf16.msra.mxu0 %v3651
    %7275 = vmatprep.subr.bf16.mxu0 %v3660
    %7276 = vmatpush1.bf16.msra.mxu0 %v3659
    %7277 = vmatprep.subr.bf16.mxu0 %v3668
    %7278 = vmatpush1.bf16.msra.mxu0 %v3667
    %7279 = vmatprep.subr.bf16.mxu0 %v3676
    %7280 = vmatpush1.bf16.msra.mxu0 %v3675
    %7281 = vmatprep.subr.bf16.mxu0 %v3684
    %7282 = vmatpush1.bf16.msra.mxu0 %v3683
    %7283 = vmatprep.subr.bf16.mxu0 %v3692
    %7284 = vmatpush1.bf16.msra.mxu0 %v3691
    %7285 = vmatprep.subr.bf16.mxu0 %v3700
    %7286 = vmatpush1.bf16.msra.mxu0 %v3699
    %7287 = vmatprep.subr.bf16.mxu0 %v3708
    %7288 = vmatpush1.bf16.msra.mxu0 %v3707
    %7289 = vmatprep.mubr.bf16.mxu0 %v6860
    %7290 = vmatmul.mubr.bf16.gmra.mrb[0].mxu0 %v6859
    %v7291 = vpop.f32.mrb[0].mxu0
    %v7292 = vadd.f32 %v2788, %v7291
    %v7293 = vpop.f32.mrb[0].mxu0
    %v7294 = vadd.f32 %v2792, %v7293
    %v7295 = vpop.f32.mrb[0].mxu0
    %v7296 = vadd.f32 %v2788, %v7295
    %v7297 = vpop.f32.mrb[0].mxu0
    %v7298 = vadd.f32 %v2792, %v7297
    %7299 = vdwg.mxu0
    %7300 = vmatprep.subr.bf16.mxu0 %v3716
    %7301 = vmatpush1.bf16.msra.mxu0 %v3715
    %7302 = vmatprep.subr.bf16.mxu0 %v3724
    %7303 = vmatpush1.bf16.msra.mxu0 %v3723
    %7304 = vmatprep.subr.bf16.mxu0 %v3732
    %7305 = vmatpush1.bf16.msra.mxu0 %v3731
    %7306 = vmatprep.subr.bf16.mxu0 %v3740
    %7307 = vmatpush1.bf16.msra.mxu0 %v3739
    %7308 = vmatprep.subr.bf16.mxu0 %v3748
    %7309 = vmatpush1.bf16.msra.mxu0 %v3747
    %7310 = vmatprep.subr.bf16.mxu0 %v3756
    %7311 = vmatpush1.bf16.msra.mxu0 %v3755
    %7312 = vmatprep.subr.bf16.mxu0 %v3764
    %7313 = vmatpush1.bf16.msra.mxu0 %v3763
    %7314 = vmatprep.subr.bf16.mxu0 %v3772
    %7315 = vmatpush1.bf16.msra.mxu0 %v3771
    %7316 = vmatprep.subr.bf16.mxu0 %v3780
    %7317 = vmatpush1.bf16.msra.mxu0 %v3779
    %7318 = vmatprep.subr.bf16.mxu0 %v3788
    %7319 = vmatpush1.bf16.msra.mxu0 %v3787
    %7320 = vmatprep.subr.bf16.mxu0 %v3796
    %7321 = vmatpush1.bf16.msra.mxu0 %v3795
    %7322 = vmatprep.subr.bf16.mxu0 %v3804
    %7323 = vmatpush1.bf16.msra.mxu0 %v3803
    %7324 = vmatprep.subr.bf16.mxu0 %v3812
    %7325 = vmatpush1.bf16.msra.mxu0 %v3811
    %7326 = vmatprep.subr.bf16.mxu0 %v3820
    %7327 = vmatpush1.bf16.msra.mxu0 %v3819
    %7328 = vmatprep.subr.bf16.mxu0 %v3828
    %7329 = vmatpush1.bf16.msra.mxu0 %v3827
    %7330 = vmatprep.subr.bf16.mxu0 %v3836
    %7331 = vmatpush1.bf16.msra.mxu0 %v3835
    %7332 = vmatprep.mubr.bf16.mxu0 %v7170
    %7333 = vmatmul.mubr.bf16.gmra.mrb[0].mxu0 %v7169
    %v7334 = vpop.f32.mrb[0].mxu0
    %v7335 = vadd.f32 %v7292, %v7334
    %v7336 = vpop.f32.mrb[0].mxu0
    %v7337 = vadd.f32 %v7294, %v7336
    %v7338 = vpop.f32.mrb[0].mxu0
    %v7339 = vadd.f32 %v7296, %v7338
    %v7340 = vpop.f32.mrb[0].mxu0
    %v7341 = vadd.f32 %v7298, %v7340
    %7342 = vdwg.mxu0
    %7343 = vmatprep.subr.bf16.mxu0 %v3590
    %7344 = vmatpush1.bf16.msra.mxu0 %v3589
    %7345 = vmatprep.subr.bf16.mxu0 %v3598
    %7346 = vmatpush1.bf16.msra.mxu0 %v3597
    %7347 = vmatprep.subr.bf16.mxu0 %v3606
    %7348 = vmatpush1.bf16.msra.mxu0 %v3605
    %7349 = vmatprep.subr.bf16.mxu0 %v3614
    %7350 = vmatpush1.bf16.msra.mxu0 %v3613
    %7351 = vmatprep.subr.bf16.mxu0 %v3622
    %7352 = vmatpush1.bf16.msra.mxu0 %v3621
    %7353 = vmatprep.subr.bf16.mxu0 %v3630
    %7354 = vmatpush1.bf16.msra.mxu0 %v3629
    %7355 = vmatprep.subr.bf16.mxu0 %v3638
    %7356 = vmatpush1.bf16.msra.mxu0 %v3637
    %7357 = vmatprep.subr.bf16.mxu0 %v3646
    %7358 = vmatpush1.bf16.msra.mxu0 %v3645
    %7359 = vmatprep.subr.bf16.mxu0 %v3654
    %7360 = vmatpush1.bf16.msra.mxu0 %v3653
    %7361 = vmatprep.subr.bf16.mxu0 %v3662
    %7362 = vmatpush1.bf16.msra.mxu0 %v3661
    %7363 = vmatprep.subr.bf16.mxu0 %v3670
    %7364 = vmatpush1.bf16.msra.mxu0 %v3669
    %7365 = vmatprep.subr.bf16.mxu0 %v3678
    %7366 = vmatpush1.bf16.msra.mxu0 %v3677
    %7367 = vmatprep.subr.bf16.mxu0 %v3686
    %7368 = vmatpush1.bf16.msra.mxu0 %v3685
    %7369 = vmatprep.subr.bf16.mxu0 %v3694
    %7370 = vmatpush1.bf16.msra.mxu0 %v3693
    %7371 = vmatprep.subr.bf16.mxu0 %v3702
    %7372 = vmatpush1.bf16.msra.mxu0 %v3701
    %7373 = vmatprep.subr.bf16.mxu0 %v3710
    %7374 = vmatpush1.bf16.msra.mxu0 %v3709
    %7375 = vmatprep.mubr.bf16.mxu0 %v6860
    %7376 = vmatmul.mubr.bf16.gmra.mrb[0].mxu0 %v6859
    %v7377 = vpop.f32.mrb[0].mxu0
    %v7378 = vadd.f32 %v2796, %v7377
    %v7379 = vpop.f32.mrb[0].mxu0
    %v7380 = vadd.f32 %v2800, %v7379
    %v7381 = vpop.f32.mrb[0].mxu0
    %v7382 = vadd.f32 %v2796, %v7381
    %v7383 = vpop.f32.mrb[0].mxu0
    %v7384 = vadd.f32 %v2800, %v7383
    %7385 = vdwg.mxu0
    %7386 = vmatprep.subr.bf16.mxu0 %v3718
    %7387 = vmatpush1.bf16.msra.mxu0 %v3717
    %7388 = vmatprep.subr.bf16.mxu0 %v3726
    %7389 = vmatpush1.bf16.msra.mxu0 %v3725
    %7390 = vmatprep.subr.bf16.mxu0 %v3734
    %7391 = vmatpush1.bf16.msra.mxu0 %v3733
    %7392 = vmatprep.subr.bf16.mxu0 %v3742
    %7393 = vmatpush1.bf16.msra.mxu0 %v3741
    %7394 = vmatprep.subr.bf16.mxu0 %v3750
    %7395 = vmatpush1.bf16.msra.mxu0 %v3749
    %7396 = vmatprep.subr.bf16.mxu0 %v3758
    %7397 = vmatpush1.bf16.msra.mxu0 %v3757
    %7398 = vmatprep.subr.bf16.mxu0 %v3766
    %7399 = vmatpush1.bf16.msra.mxu0 %v3765
    %7400 = vmatprep.subr.bf16.mxu0 %v3774
    %7401 = vmatpush1.bf16.msra.mxu0 %v3773
    %7402 = vmatprep.subr.bf16.mxu0 %v3782
    %7403 = vmatpush1.bf16.msra.mxu0 %v3781
    %7404 = vmatprep.subr.bf16.mxu0 %v3790
    %7405 = vmatpush1.bf16.msra.mxu0 %v3789
    %7406 = vmatprep.subr.bf16.mxu0 %v3798
    %7407 = vmatpush1.bf16.msra.mxu0 %v3797
    %7408 = vmatprep.subr.bf16.mxu0 %v3806
    %7409 = vmatpush1.bf16.msra.mxu0 %v3805
    %7410 = vmatprep.subr.bf16.mxu0 %v3814
    %7411 = vmatpush1.bf16.msra.mxu0 %v3813
    %7412 = vmatprep.subr.bf16.mxu0 %v3822
    %7413 = vmatpush1.bf16.msra.mxu0 %v3821
    %7414 = vmatprep.subr.bf16.mxu0 %v3830
    %7415 = vmatpush1.bf16.msra.mxu0 %v3829
    %7416 = vmatprep.subr.bf16.mxu0 %v3838
    %7417 = vmatpush1.bf16.msra.mxu0 %v3837
    %7418 = vmatprep.mubr.bf16.mxu0 %v7170
    %7419 = vmatmul.mubr.bf16.gmra.mrb[0].mxu0 %v7169
    %v7420 = vpop.f32.mrb[0].mxu0
    %v7421 = vadd.f32 %v7378, %v7420
    %v7422 = vpop.f32.mrb[0].mxu0
    %v7423 = vadd.f32 %v7380, %v7422
    %v7424 = vpop.f32.mrb[0].mxu0
    %v7425 = vadd.f32 %v7382, %v7424
    %v7426 = vpop.f32.mrb[0].mxu0
    %v7427 = vadd.f32 %v7384, %v7426
    %7428 = vdwg.mxu0
    %7429 = vmatprep.subr.bf16.mxu0 %v3592
    %7430 = vmatpush1.bf16.msra.mxu0 %v3591
    %7431 = vmatprep.subr.bf16.mxu0 %v3600
    %7432 = vmatpush1.bf16.msra.mxu0 %v3599
    %7433 = vmatprep.subr.bf16.mxu0 %v3608
    %7434 = vmatpush1.bf16.msra.mxu0 %v3607
    %7435 = vmatprep.subr.bf16.mxu0 %v3616
    %7436 = vmatpush1.bf16.msra.mxu0 %v3615
    %7437 = vmatprep.subr.bf16.mxu0 %v3624
    %7438 = vmatpush1.bf16.msra.mxu0 %v3623
    %7439 = vmatprep.subr.bf16.mxu0 %v3632
    %7440 = vmatpush1.bf16.msra.mxu0 %v3631
    %7441 = vmatprep.subr.bf16.mxu0 %v3640
    %7442 = vmatpush1.bf16.msra.mxu0 %v3639
    %7443 = vmatprep.subr.bf16.mxu0 %v3648
    %7444 = vmatpush1.bf16.msra.mxu0 %v3647
    %7445 = vmatprep.subr.bf16.mxu0 %v3656
    %7446 = vmatpush1.bf16.msra.mxu0 %v3655
    %7447 = vmatprep.subr.bf16.mxu0 %v3664
    %7448 = vmatpush1.bf16.msra.mxu0 %v3663
    %7449 = vmatprep.subr.bf16.mxu0 %v3672
    %7450 = vmatpush1.bf16.msra.mxu0 %v3671
    %7451 = vmatprep.subr.bf16.mxu0 %v3680
    %7452 = vmatpush1.bf16.msra.mxu0 %v3679
    %7453 = vmatprep.subr.bf16.mxu0 %v3688
    %7454 = vmatpush1.bf16.msra.mxu0 %v3687
    %7455 = vmatprep.subr.bf16.mxu0 %v3696
    %7456 = vmatpush1.bf16.msra.mxu0 %v3695
    %7457 = vmatprep.subr.bf16.mxu0 %v3704
    %7458 = vmatpush1.bf16.msra.mxu0 %v3703
    %7459 = vmatprep.subr.bf16.mxu0 %v3712
    %7460 = vmatpush1.bf16.msra.mxu0 %v3711
    %7461 = vmatprep.mubr.bf16.mxu0 %v6860
    %7462 = vmatmul.mubr.bf16.gmra.mrb[0].mxu0 %v6859
    %v7463 = vpop.f32.mrb[0].mxu0
    %v7464 = vadd.f32 %v2804, %v7463
    %v7465 = vpop.f32.mrb[0].mxu0
    %v7466 = vadd.f32 %v2808, %v7465
    %v7467 = vpop.f32.mrb[0].mxu0
    %v7468 = vadd.f32 %v2804, %v7467
    %v7469 = vpop.f32.mrb[0].mxu0
    %v7470 = vadd.f32 %v2808, %v7469
    %7471 = vdwg.mxu0
    %7472 = vmatprep.subr.bf16.mxu0 %v3720
    %7473 = vmatpush1.bf16.msra.mxu0 %v3719
    %7474 = vmatprep.subr.bf16.mxu0 %v3728
    %7475 = vmatpush1.bf16.msra.mxu0 %v3727
    %7476 = vmatprep.subr.bf16.mxu0 %v3736
    %7477 = vmatpush1.bf16.msra.mxu0 %v3735
    %7478 = vmatprep.subr.bf16.mxu0 %v3744
    %7479 = vmatpush1.bf16.msra.mxu0 %v3743
    %7480 = vmatprep.subr.bf16.mxu0 %v3752
    %7481 = vmatpush1.bf16.msra.mxu0 %v3751
    %7482 = vmatprep.subr.bf16.mxu0 %v3760
    %7483 = vmatpush1.bf16.msra.mxu0 %v3759
    %7484 = vmatprep.subr.bf16.mxu0 %v3768
    %7485 = vmatpush1.bf16.msra.mxu0 %v3767
    %7486 = vmatprep.subr.bf16.mxu0 %v3776
    %7487 = vmatpush1.bf16.msra.mxu0 %v3775
    %7488 = vmatprep.subr.bf16.mxu0 %v3784
    %7489 = vmatpush1.bf16.msra.mxu0 %v3783
    %7490 = vmatprep.subr.bf16.mxu0 %v3792
    %7491 = vmatpush1.bf16.msra.mxu0 %v3791
    %7492 = vmatprep.subr.bf16.mxu0 %v3800
    %7493 = vmatpush1.bf16.msra.mxu0 %v3799
    %7494 = vmatprep.subr.bf16.mxu0 %v3808
    %7495 = vmatpush1.bf16.msra.mxu0 %v3807
    %7496 = vmatprep.subr.bf16.mxu0 %v3816
    %7497 = vmatpush1.bf16.msra.mxu0 %v3815
    %7498 = vmatprep.subr.bf16.mxu0 %v3824
    %7499 = vmatpush1.bf16.msra.mxu0 %v3823
    %7500 = vmatprep.subr.bf16.mxu0 %v3832
    %7501 = vmatpush1.bf16.msra.mxu0 %v3831
    %7502 = vmatprep.subr.bf16.mxu0 %v3840
    %7503 = vmatpush1.bf16.msra.mxu0 %v3839
    %7504 = vmatprep.mubr.bf16.mxu0 %v7170
    %7505 = vmatmul.mubr.bf16.gmra.mrb[0].mxu0 %v7169
    %v7506 = vpop.f32.mrb[0].mxu0
    %v7507 = vadd.f32 %v7464, %v7506
    %v7508 = vpop.f32.mrb[0].mxu0
    %v7509 = vadd.f32 %v7466, %v7508
    %v7510 = vpop.f32.mrb[0].mxu0
    %v7511 = vadd.f32 %v7468, %v7510
    %v7512 = vpop.f32.mrb[0].mxu0
    %v7513 = vadd.f32 %v7470, %v7512
    %7514 = vdwg.mxu0
    %v7515 = vxor.u32 %v7249, 2147483648
    %v7516 = vxor.u32 %v7251, 2147483648
    %v7517 = vxor.u32 %v7253, 2147483648
    %v7518 = vxor.u32 %v7255, 2147483648
    %v7519 = vmul.f32 %v7515, 1.442695
    %v7520 = vpow.pop %v7519
    %v7521 = vmul.f32 %v7516, 1.442695
    %v7522 = vpow.pop %v7521
    %v7523 = vmul.f32 %v7517, 1.442695
    %v7524 = vpow.pop %v7523
    %v7525 = vmul.f32 %v7518, 1.442695
    %v7526 = vpow.pop %v7525
    %v7527 = vadd.f32 %v7520, 1.0
    %v7528 = vadd.f32 %v7522, 1.0
    %v7529 = vadd.f32 %v7524, 1.0
    %v7530 = vadd.f32 %v7526, 1.0
    %v7531 = vrcp.pop %v7527
    %v7532 = vmul.f32 1.0, %v7531
    %v7533 = vrcp.pop %v7528
    %v7534 = vmul.f32 1.0, %v7533
    %v7535 = vrcp.pop %v7529
    %v7536 = vmul.f32 1.0, %v7535
    %v7537 = vrcp.pop %v7530
    %v7538 = vmul.f32 1.0, %v7537
    %v7539 = vxor.u32 %v7335, 2147483648
    %v7540 = vxor.u32 %v7337, 2147483648
    %v7541 = vxor.u32 %v7339, 2147483648
    %v7542 = vxor.u32 %v7341, 2147483648
    %v7543 = vmul.f32 %v7539, 1.442695
    %v7544 = vpow.pop %v7543
    %v7545 = vmul.f32 %v7540, 1.442695
    %v7546 = vpow.pop %v7545
    %v7547 = vmul.f32 %v7541, 1.442695
    %v7548 = vpow.pop %v7547
    %v7549 = vmul.f32 %v7542, 1.442695
    %v7550 = vpow.pop %v7549
    %v7551 = vadd.f32 %v7544, 1.0
    %v7552 = vadd.f32 %v7546, 1.0
    %v7553 = vadd.f32 %v7548, 1.0
    %v7554 = vadd.f32 %v7550, 1.0
    %v7555 = vrcp.pop %v7551
    %v7556 = vmul.f32 1.0, %v7555
    %v7557 = vrcp.pop %v7552
    %v7558 = vmul.f32 1.0, %v7557
    %v7559 = vrcp.pop %v7553
    %v7560 = vmul.f32 1.0, %v7559
    %v7561 = vrcp.pop %v7554
    %v7562 = vmul.f32 1.0, %v7561
    %v7563 = vtanh.pop %v7421
    %v7564 = vtanh.pop %v7423
    %v7565 = vtanh.pop %v7425
    %v7566 = vtanh.pop %v7427
    %v7567 = vxor.u32 %v7507, 2147483648
    %v7568 = vxor.u32 %v7509, 2147483648
    %v7569 = vxor.u32 %v7511, 2147483648
    %v7570 = vxor.u32 %v7513, 2147483648
    %v7571 = vmul.f32 %v7567, 1.442695
    %v7572 = vpow.pop %v7571
    %v7573 = vmul.f32 %v7568, 1.442695
    %v7574 = vpow.pop %v7573
    %v7575 = vmul.f32 %v7569, 1.442695
    %v7576 = vpow.pop %v7575
    %v7577 = vmul.f32 %v7570, 1.442695
    %v7578 = vpow.pop %v7577
    %v7579 = vadd.f32 %v7572, 1.0
    %v7580 = vadd.f32 %v7574, 1.0
    %v7581 = vadd.f32 %v7576, 1.0
    %v7582 = vadd.f32 %v7578, 1.0
    %v7583 = vrcp.pop %v7579
    %v7584 = vmul.f32 1.0, %v7583
    %v7585 = vrcp.pop %v7580
    %v7586 = vmul.f32 1.0, %v7585
    %v7587 = vrcp.pop %v7581
    %v7588 = vmul.f32 1.0, %v7587
    %v7589 = vrcp.pop %v7582
    %v7590 = vmul.f32 1.0, %v7589
    %v7591 = vmul.f32 %v7556, %v6831
    %v7592 = vmul.f32 %v7558, %v6832
    %v7593 = vmul.f32 %v7560, %v6833
    %v7594 = vmul.f32 %v7562, %v6834
    %v7595 = vmul.f32 %v7532, %v7563
    %v7596 = vmul.f32 %v7534, %v7564
    %v7597 = vmul.f32 %v7536, %v7565
    %v7598 = vmul.f32 %v7538, %v7566
    %v7599 = vadd.f32 %v7591, %v7595
    %v7600 = vadd.f32 %v7592, %v7596
    %v7601 = vadd.f32 %v7593, %v7597
    %v7602 = vadd.f32 %v7594, %v7598
    %v7603 = vtanh.pop %v7599
    %v7604 = vtanh.pop %v7600
    %v7605 = vtanh.pop %v7601
    %v7606 = vtanh.pop %v7602
    %v7607 = vmul.f32 %v7584, %v7603
    %v7608 = vmul.f32 %v7586, %v7604
    %v7609 = vmul.f32 %v7588, %v7605
    %v7610 = vmul.f32 %v7590, %v7606
    %vm7611 = vcmp.eq.s32.totalorder %v4537, 4
    %vm7612 = vcmp.eq.s32.totalorder %v4538, 4
    %v7613 = vsel %vm7611, 1, 0
    %v7614 = vsel %vm7612, 1, 0
    %7615 = vset.pattern.permute.xlu0 0
    %7616 = vperm.xlu0 %7615, %v7613
    %v7617 = vpop.permute.xlu0 %7616
    %7618 = vset.pattern.permute.xlu0 0
    %7619 = vperm.xlu0 %7618, %v7614
    %v7620 = vpop.permute.xlu0 %7619
    %vm7621 = vcmp.eq.s32.totalorder %v7617, 1
    %vm7622 = vcmp.eq.s32.totalorder %v7620, 1
    %v7623 = vsel %vm7621, %v7607, %v6855
    %v7624 = vsel %vm7621, %v7608, %v6856
    %v7625 = vsel %vm7622, %v7609, %v6857
    %v7626 = vsel %vm7622, %v7610, %v6858
    %v7627 = vpack.c.bf16 %v7167, %v7165
    %v7628 = vpack.c.bf16 %v7168, %v7166
    %v7629 = vld [vmem:[#allocation2 + $0x180] sm:$0xff]
    %v7630 = vld [vmem:[#allocation2 + $0x188] sm:$0xff]
    %v7631 = vld [vmem:[#allocation2 + $0x190] sm:$0xff]
    %v7632 = vld [vmem:[#allocation2 + $0x198] sm:$0xff]
    %v7633 = vld [vmem:[#allocation2 + $0x1a0] sm:$0xff]
    %v7634 = vld [vmem:[#allocation2 + $0x1a8] sm:$0xff]
    %v7635 = vld [vmem:[#allocation2 + $0x1b0] sm:$0xff]
    %v7636 = vld [vmem:[#allocation2 + $0x1b8] sm:$0xff]
    %v7637 = vunpack.c.l.bf16 %v7629
    %v7638 = vunpack.c.l.bf16 %v7630
    %v7639 = vunpack.c.l.bf16 %v7631
    %v7640 = vunpack.c.l.bf16 %v7632
    %v7641 = vunpack.c.l.bf16 %v7633
    %v7642 = vunpack.c.l.bf16 %v7634
    %v7643 = vunpack.c.l.bf16 %v7635
    %v7644 = vunpack.c.l.bf16 %v7636
    %v7645 = vunpack.c.h.bf16 %v7629
    %v7646 = vunpack.c.h.bf16 %v7630
    %v7647 = vunpack.c.h.bf16 %v7631
    %v7648 = vunpack.c.h.bf16 %v7632
    %v7649 = vunpack.c.h.bf16 %v7633
    %v7650 = vunpack.c.h.bf16 %v7634
    %v7651 = vunpack.c.h.bf16 %v7635
    %v7652 = vunpack.c.h.bf16 %v7636
    %7653 = vmatprep.subr.bf16.mxu0 %v1927
    %7654 = vmatpush1.bf16.msra.mxu0 %v1926
    %7655 = vmatprep.subr.bf16.mxu0 %v1935
    %7656 = vmatpush1.bf16.msra.mxu0 %v1934
    %7657 = vmatprep.subr.bf16.mxu0 %v1943
    %7658 = vmatpush1.bf16.msra.mxu0 %v1942
    %7659 = vmatprep.subr.bf16.mxu0 %v1951
    %7660 = vmatpush1.bf16.msra.mxu0 %v1950
    %7661 = vmatprep.subr.bf16.mxu0 %v1959
    %7662 = vmatpush1.bf16.msra.mxu0 %v1958
    %7663 = vmatprep.subr.bf16.mxu0 %v1967
    %7664 = vmatpush1.bf16.msra.mxu0 %v1966
    %7665 = vmatprep.subr.bf16.mxu0 %v1975
    %7666 = vmatpush1.bf16.msra.mxu0 %v1974
    %7667 = vmatprep.subr.bf16.mxu0 %v1983
    %7668 = vmatpush1.bf16.msra.mxu0 %v1982
    %7669 = vmatprep.subr.bf16.mxu0 %v1991
    %7670 = vmatpush1.bf16.msra.mxu0 %v1990
    %7671 = vmatprep.subr.bf16.mxu0 %v1999
    %7672 = vmatpush1.bf16.msra.mxu0 %v1998
    %7673 = vmatprep.subr.bf16.mxu0 %v2007
    %7674 = vmatpush1.bf16.msra.mxu0 %v2006
    %7675 = vmatprep.subr.bf16.mxu0 %v2015
    %7676 = vmatpush1.bf16.msra.mxu0 %v2014
    %7677 = vmatprep.subr.bf16.mxu0 %v2023
    %7678 = vmatpush1.bf16.msra.mxu0 %v2022
    %7679 = vmatprep.subr.bf16.mxu0 %v2031
    %7680 = vmatpush1.bf16.msra.mxu0 %v2030
    %7681 = vmatprep.subr.bf16.mxu0 %v2039
    %7682 = vmatpush1.bf16.msra.mxu0 %v2038
    %7683 = vmatprep.subr.bf16.mxu0 %v2047
    %7684 = vmatpush1.bf16.msra.mxu0 %v2046
    %7685 = vmatprep.mubr.bf16.mxu0 %v7628
    %7686 = vmatmul.mubr.bf16.gmra.mrb[0].mxu0 %v7627
    %v7687 = vpop.f32.mrb[0].mxu0
    %v7688 = vadd.f32 0.0, %v7687
    %v7689 = vpop.f32.mrb[0].mxu0
    %v7690 = vadd.f32 0.0, %v7689
    %v7691 = vpop.f32.mrb[0].mxu0
    %v7692 = vadd.f32 0.0, %v7691
    %v7693 = vpop.f32.mrb[0].mxu0
    %v7694 = vadd.f32 0.0, %v7693
    %7695 = vdwg.mxu0
    %7696 = vmatprep.subr.bf16.mxu0 %v1929
    %7697 = vmatpush1.bf16.msra.mxu0 %v1928
    %7698 = vmatprep.subr.bf16.mxu0 %v1937
    %7699 = vmatpush1.bf16.msra.mxu0 %v1936
    %7700 = vmatprep.subr.bf16.mxu0 %v1945
    %7701 = vmatpush1.bf16.msra.mxu0 %v1944
    %7702 = vmatprep.subr.bf16.mxu0 %v1953
    %7703 = vmatpush1.bf16.msra.mxu0 %v1952
    %7704 = vmatprep.subr.bf16.mxu0 %v1961
    %7705 = vmatpush1.bf16.msra.mxu0 %v1960
    %7706 = vmatprep.subr.bf16.mxu0 %v1969
    %7707 = vmatpush1.bf16.msra.mxu0 %v1968
    %7708 = vmatprep.subr.bf16.mxu0 %v1977
    %7709 = vmatpush1.bf16.msra.mxu0 %v1976
    %7710 = vmatprep.subr.bf16.mxu0 %v1985
    %7711 = vmatpush1.bf16.msra.mxu0 %v1984
    %7712 = vmatprep.subr.bf16.mxu0 %v1993
    %7713 = vmatpush1.bf16.msra.mxu0 %v1992
    %7714 = vmatprep.subr.bf16.mxu0 %v2001
    %7715 = vmatpush1.bf16.msra.mxu0 %v2000
    %7716 = vmatprep.subr.bf16.mxu0 %v2009
    %7717 = vmatpush1.bf16.msra.mxu0 %v2008
    %7718 = vmatprep.subr.bf16.mxu0 %v2017
    %7719 = vmatpush1.bf16.msra.mxu0 %v2016
    %7720 = vmatprep.subr.bf16.mxu0 %v2025
    %7721 = vmatpush1.bf16.msra.mxu0 %v2024
    %7722 = vmatprep.subr.bf16.mxu0 %v2033
    %7723 = vmatpush1.bf16.msra.mxu0 %v2032
    %7724 = vmatprep.subr.bf16.mxu0 %v2041
    %7725 = vmatpush1.bf16.msra.mxu0 %v2040
    %7726 = vmatprep.subr.bf16.mxu0 %v2049
    %7727 = vmatpush1.bf16.msra.mxu0 %v2048
    %7728 = vmatprep.mubr.bf16.mxu0 %v7628
    %7729 = vmatmul.mubr.bf16.gmra.mrb[0].mxu0 %v7627
    %v7730 = vpop.f32.mrb[0].mxu0
    %v7731 = vadd.f32 0.0, %v7730
    %v7732 = vpop.f32.mrb[0].mxu0
    %v7733 = vadd.f32 0.0, %v7732
    %v7734 = vpop.f32.mrb[0].mxu0
    %v7735 = vadd.f32 0.0, %v7734
    %v7736 = vpop.f32.mrb[0].mxu0
    %v7737 = vadd.f32 0.0, %v7736
    %7738 = vdwg.mxu0
    %7739 = vmatprep.subr.bf16.mxu0 %v1931
    %7740 = vmatpush1.bf16.msra.mxu0 %v1930
    %7741 = vmatprep.subr.bf16.mxu0 %v1939
    %7742 = vmatpush1.bf16.msra.mxu0 %v1938
    %7743 = vmatprep.subr.bf16.mxu0 %v1947
    %7744 = vmatpush1.bf16.msra.mxu0 %v1946
    %7745 = vmatprep.subr.bf16.mxu0 %v1955
    %7746 = vmatpush1.bf16.msra.mxu0 %v1954
    %7747 = vmatprep.subr.bf16.mxu0 %v1963
    %7748 = vmatpush1.bf16.msra.mxu0 %v1962
    %7749 = vmatprep.subr.bf16.mxu0 %v1971
    %7750 = vmatpush1.bf16.msra.mxu0 %v1970
    %7751 = vmatprep.subr.bf16.mxu0 %v1979
    %7752 = vmatpush1.bf16.msra.mxu0 %v1978
    %7753 = vmatprep.subr.bf16.mxu0 %v1987
    %7754 = vmatpush1.bf16.msra.mxu0 %v1986
    %7755 = vmatprep.subr.bf16.mxu0 %v1995
    %7756 = vmatpush1.bf16.msra.mxu0 %v1994
    %7757 = vmatprep.subr.bf16.mxu0 %v2003
    %7758 = vmatpush1.bf16.msra.mxu0 %v2002
    %7759 = vmatprep.subr.bf16.mxu0 %v2011
    %7760 = vmatpush1.bf16.msra.mxu0 %v2010
    %7761 = vmatprep.subr.bf16.mxu0 %v2019
    %7762 = vmatpush1.bf16.msra.mxu0 %v2018
    %7763 = vmatprep.subr.bf16.mxu0 %v2027
    %7764 = vmatpush1.bf16.msra.mxu0 %v2026
    %7765 = vmatprep.subr.bf16.mxu0 %v2035
    %7766 = vmatpush1.bf16.msra.mxu0 %v2034
    %7767 = vmatprep.subr.bf16.mxu0 %v2043
    %7768 = vmatpush1.bf16.msra.mxu0 %v2042
    %7769 = vmatprep.subr.bf16.mxu0 %v2051
    %7770 = vmatpush1.bf16.msra.mxu0 %v2050
    %7771 = vmatprep.mubr.bf16.mxu0 %v7628
    %7772 = vmatmul.mubr.bf16.gmra.mrb[0].mxu0 %v7627
    %v7773 = vpop.f32.mrb[0].mxu0
    %v7774 = vadd.f32 0.0, %v7773
    %v7775 = vpop.f32.mrb[0].mxu0
    %v7776 = vadd.f32 0.0, %v7775
    %v7777 = vpop.f32.mrb[0].mxu0
    %v7778 = vadd.f32 0.0, %v7777
    %v7779 = vpop.f32.mrb[0].mxu0
    %v7780 = vadd.f32 0.0, %v7779
    %7781 = vdwg.mxu0
    %7782 = vmatprep.subr.bf16.mxu0 %v1933
    %7783 = vmatpush1.bf16.msra.mxu0 %v1932
    %7784 = vmatprep.subr.bf16.mxu0 %v1941
    %7785 = vmatpush1.bf16.msra.mxu0 %v1940
    %7786 = vmatprep.subr.bf16.mxu0 %v1949
    %7787 = vmatpush1.bf16.msra.mxu0 %v1948
    %7788 = vmatprep.subr.bf16.mxu0 %v1957
    %7789 = vmatpush1.bf16.msra.mxu0 %v1956
    %7790 = vmatprep.subr.bf16.mxu0 %v1965
    %7791 = vmatpush1.bf16.msra.mxu0 %v1964
    %7792 = vmatprep.subr.bf16.mxu0 %v1973
    %7793 = vmatpush1.bf16.msra.mxu0 %v1972
    %7794 = vmatprep.subr.bf16.mxu0 %v1981
    %7795 = vmatpush1.bf16.msra.mxu0 %v1980
    %7796 = vmatprep.subr.bf16.mxu0 %v1989
    %7797 = vmatpush1.bf16.msra.mxu0 %v1988
    %7798 = vmatprep.subr.bf16.mxu0 %v1997
    %7799 = vmatpush1.bf16.msra.mxu0 %v1996
    %7800 = vmatprep.subr.bf16.mxu0 %v2005
    %7801 = vmatpush1.bf16.msra.mxu0 %v2004
    %7802 = vmatprep.subr.bf16.mxu0 %v2013
    %7803 = vmatpush1.bf16.msra.mxu0 %v2012
    %7804 = vmatprep.subr.bf16.mxu0 %v2021
    %7805 = vmatpush1.bf16.msra.mxu0 %v2020
    %7806 = vmatprep.subr.bf16.mxu0 %v2029
    %7807 = vmatpush1.bf16.msra.mxu0 %v2028
    %7808 = vmatprep.subr.bf16.mxu0 %v2037
    %7809 = vmatpush1.bf16.msra.mxu0 %v2036
    %7810 = vmatprep.subr.bf16.mxu0 %v2045
    %7811 = vmatpush1.bf16.msra.mxu0 %v2044
    %7812 = vmatprep.subr.bf16.mxu0 %v2053
    %7813 = vmatpush1.bf16.msra.mxu0 %v2052
    %7814 = vmatprep.mubr.bf16.mxu0 %v7628
    %7815 = vmatmul.mubr.bf16.gmra.mrb[0].mxu0 %v7627
    %v7816 = vpop.f32.mrb[0].mxu0
    %v7817 = vadd.f32 0.0, %v7816
    %v7818 = vpop.f32.mrb[0].mxu0
    %v7819 = vadd.f32 0.0, %v7818
    %v7820 = vpop.f32.mrb[0].mxu0
    %v7821 = vadd.f32 0.0, %v7820
    %v7822 = vpop.f32.mrb[0].mxu0
    %v7823 = vadd.f32 0.0, %v7822
    %7824 = vdwg.mxu0
    %v7825 = vadd.f32 %v7637, %v7688
    %v7826 = vadd.f32 %v7638, %v7690
    %v7827 = vadd.f32 %v7639, %v7731
    %v7828 = vadd.f32 %v7640, %v7733
    %v7829 = vadd.f32 %v7641, %v7774
    %v7830 = vadd.f32 %v7642, %v7776
    %v7831 = vadd.f32 %v7643, %v7817
    %v7832 = vadd.f32 %v7644, %v7819
    %v7833 = vadd.f32 %v7645, %v7692
    %v7834 = vadd.f32 %v7646, %v7694
    %v7835 = vadd.f32 %v7647, %v7735
    %v7836 = vadd.f32 %v7648, %v7737
    %v7837 = vadd.f32 %v7649, %v7778
    %v7838 = vadd.f32 %v7650, %v7780
    %v7839 = vadd.f32 %v7651, %v7821
    %v7840 = vadd.f32 %v7652, %v7823
    %v7841 = vxor.u32 %v7825, 2147483648
    %v7842 = vxor.u32 %v7826, 2147483648
    %v7843 = vxor.u32 %v7833, 2147483648
    %v7844 = vxor.u32 %v7834, 2147483648
    %v7845 = vmul.f32 %v7841, 1.442695
    %v7846 = vpow.pop %v7845
    %v7847 = vmul.f32 %v7842, 1.442695
    %v7848 = vpow.pop %v7847
    %v7849 = vmul.f32 %v7843, 1.442695
    %v7850 = vpow.pop %v7849
    %v7851 = vmul.f32 %v7844, 1.442695
    %v7852 = vpow.pop %v7851
    %v7853 = vadd.f32 %v7846, 1.0
    %v7854 = vadd.f32 %v7848, 1.0
    %v7855 = vadd.f32 %v7850, 1.0
    %v7856 = vadd.f32 %v7852, 1.0
    %v7857 = vrcp.pop %v7853
    %v7858 = vmul.f32 1.0, %v7857
    %v7859 = vrcp.pop %v7854
    %v7860 = vmul.f32 1.0, %v7859
    %v7861 = vrcp.pop %v7855
    %v7862 = vmul.f32 1.0, %v7861
    %v7863 = vrcp.pop %v7856
    %v7864 = vmul.f32 1.0, %v7863
    %v7865 = vxor.u32 %v7827, 2147483648
    %v7866 = vxor.u32 %v7828, 2147483648
    %v7867 = vxor.u32 %v7835, 2147483648
    %v7868 = vxor.u32 %v7836, 2147483648
    %v7869 = vmul.f32 %v7865, 1.442695
    %v7870 = vpow.pop %v7869
    %v7871 = vmul.f32 %v7866, 1.442695
    %v7872 = vpow.pop %v7871
    %v7873 = vmul.f32 %v7867, 1.442695
    %v7874 = vpow.pop %v7873
    %v7875 = vmul.f32 %v7868, 1.442695
    %v7876 = vpow.pop %v7875
    %v7877 = vadd.f32 %v7870, 1.0
    %v7878 = vadd.f32 %v7872, 1.0
    %v7879 = vadd.f32 %v7874, 1.0
    %v7880 = vadd.f32 %v7876, 1.0
    %v7881 = vrcp.pop %v7877
    %v7882 = vmul.f32 1.0, %v7881
    %v7883 = vrcp.pop %v7878
    %v7884 = vmul.f32 1.0, %v7883
    %v7885 = vrcp.pop %v7879
    %v7886 = vmul.f32 1.0, %v7885
    %v7887 = vrcp.pop %v7880
    %v7888 = vmul.f32 1.0, %v7887
    %v7889 = vtanh.pop %v7829
    %v7890 = vtanh.pop %v7830
    %v7891 = vtanh.pop %v7837
    %v7892 = vtanh.pop %v7838
    %v7893 = vxor.u32 %v7831, 2147483648
    %v7894 = vxor.u32 %v7832, 2147483648
    %v7895 = vxor.u32 %v7839, 2147483648
    %v7896 = vxor.u32 %v7840, 2147483648
    %v7897 = vmul.f32 %v7893, 1.442695
    %v7898 = vpow.pop %v7897
    %v7899 = vmul.f32 %v7894, 1.442695
    %v7900 = vpow.pop %v7899
    %v7901 = vmul.f32 %v7895, 1.442695
    %v7902 = vpow.pop %v7901
    %v7903 = vmul.f32 %v7896, 1.442695
    %v7904 = vpow.pop %v7903
    %v7905 = vadd.f32 %v7898, 1.0
    %v7906 = vadd.f32 %v7900, 1.0
    %v7907 = vadd.f32 %v7902, 1.0
    %v7908 = vadd.f32 %v7904, 1.0
    %v7909 = vrcp.pop %v7905
    %v7910 = vmul.f32 1.0, %v7909
    %v7911 = vrcp.pop %v7906
    %v7912 = vmul.f32 1.0, %v7911
    %v7913 = vrcp.pop %v7907
    %v7914 = vmul.f32 1.0, %v7913
    %v7915 = vrcp.pop %v7908
    %v7916 = vmul.f32 1.0, %v7915
    %v7917 = vmul.f32 %v7882, %v7157
    %v7918 = vmul.f32 %v7884, %v7158
    %v7919 = vmul.f32 %v7886, %v7159
    %v7920 = vmul.f32 %v7888, %v7160
    %v7921 = vmul.f32 %v7858, %v7889
    %v7922 = vmul.f32 %v7860, %v7890
    %v7923 = vmul.f32 %v7862, %v7891
    %v7924 = vmul.f32 %v7864, %v7892
    %v7925 = vadd.f32 %v7917, %v7921
    %v7926 = vadd.f32 %v7918, %v7922
    %v7927 = vadd.f32 %v7919, %v7923
    %v7928 = vadd.f32 %v7920, %v7924
    %v7929 = vtanh.pop %v7925
    %v7930 = vtanh.pop %v7926
    %v7931 = vtanh.pop %v7927
    %v7932 = vtanh.pop %v7928
    %v7933 = vmul.f32 %v7910, %v7929
    %v7934 = vmul.f32 %v7912, %v7930
    %v7935 = vmul.f32 %v7914, %v7931
    %v7936 = vmul.f32 %v7916, %v7932
    %v7937 = vpack.c.bf16 %v7609, %v7607
    %v7938 = vpack.c.bf16 %v7610, %v7608
    %7939 = vmatprep.subr.bf16.mxu0 %v3586
    %7940 = vmatpush1.bf16.msra.mxu0 %v3585
    %7941 = vmatprep.subr.bf16.mxu0 %v3594
    %7942 = vmatpush1.bf16.msra.mxu0 %v3593
    %7943 = vmatprep.subr.bf16.mxu0 %v3602
    %7944 = vmatpush1.bf16.msra.mxu0 %v3601
    %7945 = vmatprep.subr.bf16.mxu0 %v3610
    %7946 = vmatpush1.bf16.msra.mxu0 %v3609
    %7947 = vmatprep.subr.bf16.mxu0 %v3618
    %7948 = vmatpush1.bf16.msra.mxu0 %v3617
    %7949 = vmatprep.subr.bf16.mxu0 %v3626
    %7950 = vmatpush1.bf16.msra.mxu0 %v3625
    %7951 = vmatprep.subr.bf16.mxu0 %v3634
    %7952 = vmatpush1.bf16.msra.mxu0 %v3633
    %7953 = vmatprep.subr.bf16.mxu0 %v3642
    %7954 = vmatpush1.bf16.msra.mxu0 %v3641
    %7955 = vmatprep.subr.bf16.mxu0 %v3650
    %7956 = vmatpush1.bf16.msra.mxu0 %v3649
    %7957 = vmatprep.subr.bf16.mxu0 %v3658
    %7958 = vmatpush1.bf16.msra.mxu0 %v3657
    %7959 = vmatprep.subr.bf16.mxu0 %v3666
    %7960 = vmatpush1.bf16.msra.mxu0 %v3665
    %7961 = vmatprep.subr.bf16.mxu0 %v3674
    %7962 = vmatpush1.bf16.msra.mxu0 %v3673
    %7963 = vmatprep.subr.bf16.mxu0 %v3682
    %7964 = vmatpush1.bf16.msra.mxu0 %v3681
    %7965 = vmatprep.subr.bf16.mxu0 %v3690
    %7966 = vmatpush1.bf16.msra.mxu0 %v3689
    %7967 = vmatprep.subr.bf16.mxu0 %v3698
    %7968 = vmatpush1.bf16.msra.mxu0 %v3697
    %7969 = vmatprep.subr.bf16.mxu0 %v3706
    %7970 = vmatpush1.bf16.msra.mxu0 %v3705
    %7971 = vmatprep.mubr.bf16.mxu0 %v7628
    %7972 = vmatmul.mubr.bf16.gmra.mrb[0].mxu0 %v7627
    %v7973 = vpop.f32.mrb[0].mxu0
    %v7974 = vadd.f32 %v2780, %v7973
    %v7975 = vpop.f32.mrb[0].mxu0
    %v7976 = vadd.f32 %v2784, %v7975
    %v7977 = vpop.f32.mrb[0].mxu0
    %v7978 = vadd.f32 %v2780, %v7977
    %v7979 = vpop.f32.mrb[0].mxu0
    %v7980 = vadd.f32 %v2784, %v7979
    %7981 = vdwg.mxu0
    %7982 = vmatprep.subr.bf16.mxu0 %v3714
    %7983 = vmatpush1.bf16.msra.mxu0 %v3713
    %7984 = vmatprep.subr.bf16.mxu0 %v3722
    %7985 = vmatpush1.bf16.msra.mxu0 %v3721
    %7986 = vmatprep.subr.bf16.mxu0 %v3730
    %7987 = vmatpush1.bf16.msra.mxu0 %v3729
    %7988 = vmatprep.subr.bf16.mxu0 %v3738
    %7989 = vmatpush1.bf16.msra.mxu0 %v3737
    %7990 = vmatprep.subr.bf16.mxu0 %v3746
    %7991 = vmatpush1.bf16.msra.mxu0 %v3745
    %7992 = vmatprep.subr.bf16.mxu0 %v3754
    %7993 = vmatpush1.bf16.msra.mxu0 %v3753
    %7994 = vmatprep.subr.bf16.mxu0 %v3762
    %7995 = vmatpush1.bf16.msra.mxu0 %v3761
    %7996 = vmatprep.subr.bf16.mxu0 %v3770
    %7997 = vmatpush1.bf16.msra.mxu0 %v3769
    %7998 = vmatprep.subr.bf16.mxu0 %v3778
    %7999 = vmatpush1.bf16.msra.mxu0 %v3777
    %8000 = vmatprep.subr.bf16.mxu0 %v3786
    %8001 = vmatpush1.bf16.msra.mxu0 %v3785
    %8002 = vmatprep.subr.bf16.mxu0 %v3794
    %8003 = vmatpush1.bf16.msra.mxu0 %v3793
    %8004 = vmatprep.subr.bf16.mxu0 %v3802
    %8005 = vmatpush1.bf16.msra.mxu0 %v3801
    %8006 = vmatprep.subr.bf16.mxu0 %v3810
    %8007 = vmatpush1.bf16.msra.mxu0 %v3809
    %8008 = vmatprep.subr.bf16.mxu0 %v3818
    %8009 = vmatpush1.bf16.msra.mxu0 %v3817
    %8010 = vmatprep.subr.bf16.mxu0 %v3826
    %8011 = vmatpush1.bf16.msra.mxu0 %v3825
    %8012 = vmatprep.subr.bf16.mxu0 %v3834
    %8013 = vmatpush1.bf16.msra.mxu0 %v3833
    %8014 = vmatprep.mubr.bf16.mxu0 %v7938
    %8015 = vmatmul.mubr.bf16.gmra.mrb[0].mxu0 %v7937
    %v8016 = vpop.f32.mrb[0].mxu0
    %v8017 = vadd.f32 %v7974, %v8016
    %v8018 = vpop.f32.mrb[0].mxu0
    %v8019 = vadd.f32 %v7976, %v8018
    %v8020 = vpop.f32.mrb[0].mxu0
    %v8021 = vadd.f32 %v7978, %v8020
    %v8022 = vpop.f32.mrb[0].mxu0
    %v8023 = vadd.f32 %v7980, %v8022
    %8024 = vdwg.mxu0
    %8025 = vmatprep.subr.bf16.mxu0 %v3588
    %8026 = vmatpush1.bf16.msra.mxu0 %v3587
    %8027 = vmatprep.subr.bf16.mxu0 %v3596
    %8028 = vmatpush1.bf16.msra.mxu0 %v3595
    %8029 = vmatprep.subr.bf16.mxu0 %v3604
    %8030 = vmatpush1.bf16.msra.mxu0 %v3603
    %8031 = vmatprep.subr.bf16.mxu0 %v3612
    %8032 = vmatpush1.bf16.msra.mxu0 %v3611
    %8033 = vmatprep.subr.bf16.mxu0 %v3620
    %8034 = vmatpush1.bf16.msra.mxu0 %v3619
    %8035 = vmatprep.subr.bf16.mxu0 %v3628
    %8036 = vmatpush1.bf16.msra.mxu0 %v3627
    %8037 = vmatprep.subr.bf16.mxu0 %v3636
    %8038 = vmatpush1.bf16.msra.mxu0 %v3635
    %8039 = vmatprep.subr.bf16.mxu0 %v3644
    %8040 = vmatpush1.bf16.msra.mxu0 %v3643
    %8041 = vmatprep.subr.bf16.mxu0 %v3652
    %8042 = vmatpush1.bf16.msra.mxu0 %v3651
    %8043 = vmatprep.subr.bf16.mxu0 %v3660
    %8044 = vmatpush1.bf16.msra.mxu0 %v3659
    %8045 = vmatprep.subr.bf16.mxu0 %v3668
    %8046 = vmatpush1.bf16.msra.mxu0 %v3667
    %8047 = vmatprep.subr.bf16.mxu0 %v3676
    %8048 = vmatpush1.bf16.msra.mxu0 %v3675
    %8049 = vmatprep.subr.bf16.mxu0 %v3684
    %8050 = vmatpush1.bf16.msra.mxu0 %v3683
    %8051 = vmatprep.subr.bf16.mxu0 %v3692
    %8052 = vmatpush1.bf16.msra.mxu0 %v3691
    %8053 = vmatprep.subr.bf16.mxu0 %v3700
    %8054 = vmatpush1.bf16.msra.mxu0 %v3699
    %8055 = vmatprep.subr.bf16.mxu0 %v3708
    %8056 = vmatpush1.bf16.msra.mxu0 %v3707
    %8057 = vmatprep.mubr.bf16.mxu0 %v7628
    %8058 = vmatmul.mubr.bf16.gmra.mrb[0].mxu0 %v7627
    %v8059 = vpop.f32.mrb[0].mxu0
    %v8060 = vadd.f32 %v2788, %v8059
    %v8061 = vpop.f32.mrb[0].mxu0
    %v8062 = vadd.f32 %v2792, %v8061
    %v8063 = vpop.f32.mrb[0].mxu0
    %v8064 = vadd.f32 %v2788, %v8063
    %v8065 = vpop.f32.mrb[0].mxu0
    %v8066 = vadd.f32 %v2792, %v8065
    %8067 = vdwg.mxu0
    %8068 = vmatprep.subr.bf16.mxu0 %v3716
    %8069 = vmatpush1.bf16.msra.mxu0 %v3715
    %8070 = vmatprep.subr.bf16.mxu0 %v3724
    %8071 = vmatpush1.bf16.msra.mxu0 %v3723
    %8072 = vmatprep.subr.bf16.mxu0 %v3732
    %8073 = vmatpush1.bf16.msra.mxu0 %v3731
    %8074 = vmatprep.subr.bf16.mxu0 %v3740
    %8075 = vmatpush1.bf16.msra.mxu0 %v3739
    %8076 = vmatprep.subr.bf16.mxu0 %v3748
    %8077 = vmatpush1.bf16.msra.mxu0 %v3747
    %8078 = vmatprep.subr.bf16.mxu0 %v3756
    %8079 = vmatpush1.bf16.msra.mxu0 %v3755
    %8080 = vmatprep.subr.bf16.mxu0 %v3764
    %8081 = vmatpush1.bf16.msra.mxu0 %v3763
    %8082 = vmatprep.subr.bf16.mxu0 %v3772
    %8083 = vmatpush1.bf16.msra.mxu0 %v3771
    %8084 = vmatprep.subr.bf16.mxu0 %v3780
    %8085 = vmatpush1.bf16.msra.mxu0 %v3779
    %8086 = vmatprep.subr.bf16.mxu0 %v3788
    %8087 = vmatpush1.bf16.msra.mxu0 %v3787
    %8088 = vmatprep.subr.bf16.mxu0 %v3796
    %8089 = vmatpush1.bf16.msra.mxu0 %v3795
    %8090 = vmatprep.subr.bf16.mxu0 %v3804
    %8091 = vmatpush1.bf16.msra.mxu0 %v3803
    %8092 = vmatprep.subr.bf16.mxu0 %v3812
    %8093 = vmatpush1.bf16.msra.mxu0 %v3811
    %8094 = vmatprep.subr.bf16.mxu0 %v3820
    %8095 = vmatpush1.bf16.msra.mxu0 %v3819
    %8096 = vmatprep.subr.bf16.mxu0 %v3828
    %8097 = vmatpush1.bf16.msra.mxu0 %v3827
    %8098 = vmatprep.subr.bf16.mxu0 %v3836
    %8099 = vmatpush1.bf16.msra.mxu0 %v3835
    %8100 = vmatprep.mubr.bf16.mxu0 %v7938
    %8101 = vmatmul.mubr.bf16.gmra.mrb[0].mxu0 %v7937
    %v8102 = vpop.f32.mrb[0].mxu0
    %v8103 = vadd.f32 %v8060, %v8102
    %v8104 = vpop.f32.mrb[0].mxu0
    %v8105 = vadd.f32 %v8062, %v8104
    %v8106 = vpop.f32.mrb[0].mxu0
    %v8107 = vadd.f32 %v8064, %v8106
    %v8108 = vpop.f32.mrb[0].mxu0
    %v8109 = vadd.f32 %v8066, %v8108
    %8110 = vdwg.mxu0
    %8111 = vmatprep.subr.bf16.mxu0 %v3590
    %8112 = vmatpush1.bf16.msra.mxu0 %v3589
    %8113 = vmatprep.subr.bf16.mxu0 %v3598
    %8114 = vmatpush1.bf16.msra.mxu0 %v3597
    %8115 = vmatprep.subr.bf16.mxu0 %v3606
    %8116 = vmatpush1.bf16.msra.mxu0 %v3605
    %8117 = vmatprep.subr.bf16.mxu0 %v3614
    %8118 = vmatpush1.bf16.msra.mxu0 %v3613
    %8119 = vmatprep.subr.bf16.mxu0 %v3622
    %8120 = vmatpush1.bf16.msra.mxu0 %v3621
    %8121 = vmatprep.subr.bf16.mxu0 %v3630
    %8122 = vmatpush1.bf16.msra.mxu0 %v3629
    %8123 = vmatprep.subr.bf16.mxu0 %v3638
    %8124 = vmatpush1.bf16.msra.mxu0 %v3637
    %8125 = vmatprep.subr.bf16.mxu0 %v3646
    %8126 = vmatpush1.bf16.msra.mxu0 %v3645
    %8127 = vmatprep.subr.bf16.mxu0 %v3654
    %8128 = vmatpush1.bf16.msra.mxu0 %v3653
    %8129 = vmatprep.subr.bf16.mxu0 %v3662
    %8130 = vmatpush1.bf16.msra.mxu0 %v3661
    %8131 = vmatprep.subr.bf16.mxu0 %v3670
    %8132 = vmatpush1.bf16.msra.mxu0 %v3669
    %8133 = vmatprep.subr.bf16.mxu0 %v3678
    %8134 = vmatpush1.bf16.msra.mxu0 %v3677
    %8135 = vmatprep.subr.bf16.mxu0 %v3686
    %8136 = vmatpush1.bf16.msra.mxu0 %v3685
    %8137 = vmatprep.subr.bf16.mxu0 %v3694
    %8138 = vmatpush1.bf16.msra.mxu0 %v3693
    %8139 = vmatprep.subr.bf16.mxu0 %v3702
    %8140 = vmatpush1.bf16.msra.mxu0 %v3701
    %8141 = vmatprep.subr.bf16.mxu0 %v3710
    %8142 = vmatpush1.bf16.msra.mxu0 %v3709
    %8143 = vmatprep.mubr.bf16.mxu0 %v7628
    %8144 = vmatmul.mubr.bf16.gmra.mrb[0].mxu0 %v7627
    %v8145 = vpop.f32.mrb[0].mxu0
    %v8146 = vadd.f32 %v2796, %v8145
    %v8147 = vpop.f32.mrb[0].mxu0
    %v8148 = vadd.f32 %v2800, %v8147
    %v8149 = vpop.f32.mrb[0].mxu0
    %v8150 = vadd.f32 %v2796, %v8149
    %v8151 = vpop.f32.mrb[0].mxu0
    %v8152 = vadd.f32 %v2800, %v8151
    %8153 = vdwg.mxu0
    %8154 = vmatprep.subr.bf16.mxu0 %v3718
    %8155 = vmatpush1.bf16.msra.mxu0 %v3717
    %8156 = vmatprep.subr.bf16.mxu0 %v3726
    %8157 = vmatpush1.bf16.msra.mxu0 %v3725
    %8158 = vmatprep.subr.bf16.mxu0 %v3734
    %8159 = vmatpush1.bf16.msra.mxu0 %v3733
    %8160 = vmatprep.subr.bf16.mxu0 %v3742
    %8161 = vmatpush1.bf16.msra.mxu0 %v3741
    %8162 = vmatprep.subr.bf16.mxu0 %v3750
    %8163 = vmatpush1.bf16.msra.mxu0 %v3749
    %8164 = vmatprep.subr.bf16.mxu0 %v3758
    %8165 = vmatpush1.bf16.msra.mxu0 %v3757
    %8166 = vmatprep.subr.bf16.mxu0 %v3766
    %8167 = vmatpush1.bf16.msra.mxu0 %v3765
    %8168 = vmatprep.subr.bf16.mxu0 %v3774
    %8169 = vmatpush1.bf16.msra.mxu0 %v3773
    %8170 = vmatprep.subr.bf16.mxu0 %v3782
    %8171 = vmatpush1.bf16.msra.mxu0 %v3781
    %8172 = vmatprep.subr.bf16.mxu0 %v3790
    %8173 = vmatpush1.bf16.msra.mxu0 %v3789
    %8174 = vmatprep.subr.bf16.mxu0 %v3798
    %8175 = vmatpush1.bf16.msra.mxu0 %v3797
    %8176 = vmatprep.subr.bf16.mxu0 %v3806
    %8177 = vmatpush1.bf16.msra.mxu0 %v3805
    %8178 = vmatprep.subr.bf16.mxu0 %v3814
    %8179 = vmatpush1.bf16.msra.mxu0 %v3813
    %8180 = vmatprep.subr.bf16.mxu0 %v3822
    %8181 = vmatpush1.bf16.msra.mxu0 %v3821
    %8182 = vmatprep.subr.bf16.mxu0 %v3830
    %8183 = vmatpush1.bf16.msra.mxu0 %v3829
    %8184 = vmatprep.subr.bf16.mxu0 %v3838
    %8185 = vmatpush1.bf16.msra.mxu0 %v3837
    %8186 = vmatprep.mubr.bf16.mxu0 %v7938
    %8187 = vmatmul.mubr.bf16.gmra.mrb[0].mxu0 %v7937
    %v8188 = vpop.f32.mrb[0].mxu0
    %v8189 = vadd.f32 %v8146, %v8188
    %v8190 = vpop.f32.mrb[0].mxu0
    %v8191 = vadd.f32 %v8148, %v8190
    %v8192 = vpop.f32.mrb[0].mxu0
    %v8193 = vadd.f32 %v8150, %v8192
    %v8194 = vpop.f32.mrb[0].mxu0
    %v8195 = vadd.f32 %v8152, %v8194
    %8196 = vdwg.mxu0
    %8197 = vmatprep.subr.bf16.mxu0 %v3592
    %8198 = vmatpush1.bf16.msra.mxu0 %v3591
    %8199 = vmatprep.subr.bf16.mxu0 %v3600
    %8200 = vmatpush1.bf16.msra.mxu0 %v3599
    %8201 = vmatprep.subr.bf16.mxu0 %v3608
    %8202 = vmatpush1.bf16.msra.mxu0 %v3607
    %8203 = vmatprep.subr.bf16.mxu0 %v3616
    %8204 = vmatpush1.bf16.msra.mxu0 %v3615
    %8205 = vmatprep.subr.bf16.mxu0 %v3624
    %8206 = vmatpush1.bf16.msra.mxu0 %v3623
    %8207 = vmatprep.subr.bf16.mxu0 %v3632
    %8208 = vmatpush1.bf16.msra.mxu0 %v3631
    %8209 = vmatprep.subr.bf16.mxu0 %v3640
    %8210 = vmatpush1.bf16.msra.mxu0 %v3639
    %8211 = vmatprep.subr.bf16.mxu0 %v3648
    %8212 = vmatpush1.bf16.msra.mxu0 %v3647
    %8213 = vmatprep.subr.bf16.mxu0 %v3656
    %8214 = vmatpush1.bf16.msra.mxu0 %v3655
    %8215 = vmatprep.subr.bf16.mxu0 %v3664
    %8216 = vmatpush1.bf16.msra.mxu0 %v3663
    %8217 = vmatprep.subr.bf16.mxu0 %v3672
    %8218 = vmatpush1.bf16.msra.mxu0 %v3671
    %8219 = vmatprep.subr.bf16.mxu0 %v3680
    %8220 = vmatpush1.bf16.msra.mxu0 %v3679
    %8221 = vmatprep.subr.bf16.mxu0 %v3688
    %8222 = vmatpush1.bf16.msra.mxu0 %v3687
    %8223 = vmatprep.subr.bf16.mxu0 %v3696
    %8224 = vmatpush1.bf16.msra.mxu0 %v3695
    %8225 = vmatprep.subr.bf16.mxu0 %v3704
    %8226 = vmatpush1.bf16.msra.mxu0 %v3703
    %8227 = vmatprep.subr.bf16.mxu0 %v3712
    %8228 = vmatpush1.bf16.msra.mxu0 %v3711
    %8229 = vmatprep.mubr.bf16.mxu0 %v7628
    %8230 = vmatmul.mubr.bf16.gmra.mrb[0].mxu0 %v7627
    %v8231 = vpop.f32.mrb[0].mxu0
    %v8232 = vadd.f32 %v2804, %v8231
    %v8233 = vpop.f32.mrb[0].mxu0
    %v8234 = vadd.f32 %v2808, %v8233
    %v8235 = vpop.f32.mrb[0].mxu0
    %v8236 = vadd.f32 %v2804, %v8235
    %v8237 = vpop.f32.mrb[0].mxu0
    %v8238 = vadd.f32 %v2808, %v8237
    %8239 = vdwg.mxu0
    %8240 = vmatprep.subr.bf16.mxu0 %v3720
    %8241 = vmatpush1.bf16.msra.mxu0 %v3719
    %8242 = vmatprep.subr.bf16.mxu0 %v3728
    %8243 = vmatpush1.bf16.msra.mxu0 %v3727
    %8244 = vmatprep.subr.bf16.mxu0 %v3736
    %8245 = vmatpush1.bf16.msra.mxu0 %v3735
    %8246 = vmatprep.subr.bf16.mxu0 %v3744
    %8247 = vmatpush1.bf16.msra.mxu0 %v3743
    %8248 = vmatprep.subr.bf16.mxu0 %v3752
    %8249 = vmatpush1.bf16.msra.mxu0 %v3751
    %8250 = vmatprep.subr.bf16.mxu0 %v3760
    %8251 = vmatpush1.bf16.msra.mxu0 %v3759
    %8252 = vmatprep.subr.bf16.mxu0 %v3768
    %8253 = vmatpush1.bf16.msra.mxu0 %v3767
    %8254 = vmatprep.subr.bf16.mxu0 %v3776
    %8255 = vmatpush1.bf16.msra.mxu0 %v3775
    %8256 = vmatprep.subr.bf16.mxu0 %v3784
    %8257 = vmatpush1.bf16.msra.mxu0 %v3783
    %8258 = vmatprep.subr.bf16.mxu0 %v3792
    %8259 = vmatpush1.bf16.msra.mxu0 %v3791
    %8260 = vmatprep.subr.bf16.mxu0 %v3800
    %8261 = vmatpush1.bf16.msra.mxu0 %v3799
    %8262 = vmatprep.subr.bf16.mxu0 %v3808
    %8263 = vmatpush1.bf16.msra.mxu0 %v3807
    %8264 = vmatprep.subr.bf16.mxu0 %v3816
    %8265 = vmatpush1.bf16.msra.mxu0 %v3815
    %8266 = vmatprep.subr.bf16.mxu0 %v3824
    %8267 = vmatpush1.bf16.msra.mxu0 %v3823
    %8268 = vmatprep.subr.bf16.mxu0 %v3832
    %8269 = vmatpush1.bf16.msra.mxu0 %v3831
    %8270 = vmatprep.subr.bf16.mxu0 %v3840
    %8271 = vmatpush1.bf16.msra.mxu0 %v3839
    %8272 = vmatprep.mubr.bf16.mxu0 %v7938
    %8273 = vmatmul.mubr.bf16.gmra.mrb[0].mxu0 %v7937
    %v8274 = vpop.f32.mrb[0].mxu0
    %v8275 = vadd.f32 %v8232, %v8274
    %v8276 = vpop.f32.mrb[0].mxu0
    %v8277 = vadd.f32 %v8234, %v8276
    %v8278 = vpop.f32.mrb[0].mxu0
    %v8279 = vadd.f32 %v8236, %v8278
    %v8280 = vpop.f32.mrb[0].mxu0
    %v8281 = vadd.f32 %v8238, %v8280
    %8282 = vdwg.mxu0
    %v8283 = vxor.u32 %v8017, 2147483648
    %v8284 = vxor.u32 %v8019, 2147483648
    %v8285 = vxor.u32 %v8021, 2147483648
    %v8286 = vxor.u32 %v8023, 2147483648
    %v8287 = vmul.f32 %v8283, 1.442695
    %v8288 = vpow.pop %v8287
    %v8289 = vmul.f32 %v8284, 1.442695
    %v8290 = vpow.pop %v8289
    %v8291 = vmul.f32 %v8285, 1.442695
    %v8292 = vpow.pop %v8291
    %v8293 = vmul.f32 %v8286, 1.442695
    %v8294 = vpow.pop %v8293
    %v8295 = vadd.f32 %v8288, 1.0
    %v8296 = vadd.f32 %v8290, 1.0
    %v8297 = vadd.f32 %v8292, 1.0
    %v8298 = vadd.f32 %v8294, 1.0
    %v8299 = vrcp.pop %v8295
    %v8300 = vmul.f32 1.0, %v8299
    %v8301 = vrcp.pop %v8296
    %v8302 = vmul.f32 1.0, %v8301
    %v8303 = vrcp.pop %v8297
    %v8304 = vmul.f32 1.0, %v8303
    %v8305 = vrcp.pop %v8298
    %v8306 = vmul.f32 1.0, %v8305
    %v8307 = vxor.u32 %v8103, 2147483648
    %v8308 = vxor.u32 %v8105, 2147483648
    %v8309 = vxor.u32 %v8107, 2147483648
    %v8310 = vxor.u32 %v8109, 2147483648
    %v8311 = vmul.f32 %v8307, 1.442695
    %v8312 = vpow.pop %v8311
    %v8313 = vmul.f32 %v8308, 1.442695
    %v8314 = vpow.pop %v8313
    %v8315 = vmul.f32 %v8309, 1.442695
    %v8316 = vpow.pop %v8315
    %v8317 = vmul.f32 %v8310, 1.442695
    %v8318 = vpow.pop %v8317
    %v8319 = vadd.f32 %v8312, 1.0
    %v8320 = vadd.f32 %v8314, 1.0
    %v8321 = vadd.f32 %v8316, 1.0
    %v8322 = vadd.f32 %v8318, 1.0
    %v8323 = vrcp.pop %v8319
    %v8324 = vmul.f32 1.0, %v8323
    %v8325 = vrcp.pop %v8320
    %v8326 = vmul.f32 1.0, %v8325
    %v8327 = vrcp.pop %v8321
    %v8328 = vmul.f32 1.0, %v8327
    %v8329 = vrcp.pop %v8322
    %v8330 = vmul.f32 1.0, %v8329
    %v8331 = vtanh.pop %v8189
    %v8332 = vtanh.pop %v8191
    %v8333 = vtanh.pop %v8193
    %v8334 = vtanh.pop %v8195
    %v8335 = vxor.u32 %v8275, 2147483648
    %v8336 = vxor.u32 %v8277, 2147483648
    %v8337 = vxor.u32 %v8279, 2147483648
    %v8338 = vxor.u32 %v8281, 2147483648
    %v8339 = vmul.f32 %v8335, 1.442695
    %v8340 = vpow.pop %v8339
    %v8341 = vmul.f32 %v8336, 1.442695
    %v8342 = vpow.pop %v8341
    %v8343 = vmul.f32 %v8337, 1.442695
    %v8344 = vpow.pop %v8343
    %v8345 = vmul.f32 %v8338, 1.442695
    %v8346 = vpow.pop %v8345
    %v8347 = vadd.f32 %v8340, 1.0
    %v8348 = vadd.f32 %v8342, 1.0
    %v8349 = vadd.f32 %v8344, 1.0
    %v8350 = vadd.f32 %v8346, 1.0
    %v8351 = vrcp.pop %v8347
    %v8352 = vmul.f32 1.0, %v8351
    %v8353 = vrcp.pop %v8348
    %v8354 = vmul.f32 1.0, %v8353
    %v8355 = vrcp.pop %v8349
    %v8356 = vmul.f32 1.0, %v8355
    %v8357 = vrcp.pop %v8350
    %v8358 = vmul.f32 1.0, %v8357
    %v8359 = vmul.f32 %v8324, %v7599
    %v8360 = vmul.f32 %v8326, %v7600
    %v8361 = vmul.f32 %v8328, %v7601
    %v8362 = vmul.f32 %v8330, %v7602
    %v8363 = vmul.f32 %v8300, %v8331
    %v8364 = vmul.f32 %v8302, %v8332
    %v8365 = vmul.f32 %v8304, %v8333
    %v8366 = vmul.f32 %v8306, %v8334
    %v8367 = vadd.f32 %v8359, %v8363
    %v8368 = vadd.f32 %v8360, %v8364
    %v8369 = vadd.f32 %v8361, %v8365
    %v8370 = vadd.f32 %v8362, %v8366
    %v8371 = vtanh.pop %v8367
    %v8372 = vtanh.pop %v8368
    %v8373 = vtanh.pop %v8369
    %v8374 = vtanh.pop %v8370
    %v8375 = vmul.f32 %v8352, %v8371
    %v8376 = vmul.f32 %v8354, %v8372
    %v8377 = vmul.f32 %v8356, %v8373
    %v8378 = vmul.f32 %v8358, %v8374
    %vm8379 = vcmp.eq.s32.totalorder %v4537, 5
    %vm8380 = vcmp.eq.s32.totalorder %v4538, 5
    %v8381 = vsel %vm8379, 1, 0
    %v8382 = vsel %vm8380, 1, 0
    %8383 = vset.pattern.permute.xlu0 0
    %8384 = vperm.xlu0 %8383, %v8381
    %v8385 = vpop.permute.xlu0 %8384
    %8386 = vset.pattern.permute.xlu0 0
    %8387 = vperm.xlu0 %8386, %v8382
    %v8388 = vpop.permute.xlu0 %8387
    %vm8389 = vcmp.eq.s32.totalorder %v8385, 1
    %vm8390 = vcmp.eq.s32.totalorder %v8388, 1
    %v8391 = vsel %vm8389, %v8375, %v7623
    %v8392 = vsel %vm8389, %v8376, %v7624
    %v8393 = vsel %vm8390, %v8377, %v7625
    %v8394 = vsel %vm8390, %v8378, %v7626
    %v8395 = vpack.c.bf16 %v7935, %v7933
    %v8396 = vpack.c.bf16 %v7936, %v7934
    %v8397 = vld [vmem:[#allocation2 + $0x1c0] sm:$0xff]
    %v8398 = vld [vmem:[#allocation2 + $0x1c8] sm:$0xff]
    %v8399 = vld [vmem:[#allocation2 + $0x1d0] sm:$0xff]
    %v8400 = vld [vmem:[#allocation2 + $0x1d8] sm:$0xff]
    %v8401 = vld [vmem:[#allocation2 + $0x1e0] sm:$0xff]
    %v8402 = vld [vmem:[#allocation2 + $0x1e8] sm:$0xff]
    %v8403 = vld [vmem:[#allocation2 + $0x1f0] sm:$0xff]
    %v8404 = vld [vmem:[#allocation2 + $0x1f8] sm:$0xff]
    %v8405 = vunpack.c.l.bf16 %v8397
    %v8406 = vunpack.c.l.bf16 %v8398
    %v8407 = vunpack.c.l.bf16 %v8399
    %v8408 = vunpack.c.l.bf16 %v8400
    %v8409 = vunpack.c.l.bf16 %v8401
    %v8410 = vunpack.c.l.bf16 %v8402
    %v8411 = vunpack.c.l.bf16 %v8403
    %v8412 = vunpack.c.l.bf16 %v8404
    %v8413 = vunpack.c.h.bf16 %v8397
    %v8414 = vunpack.c.h.bf16 %v8398
    %v8415 = vunpack.c.h.bf16 %v8399
    %v8416 = vunpack.c.h.bf16 %v8400
    %v8417 = vunpack.c.h.bf16 %v8401
    %v8418 = vunpack.c.h.bf16 %v8402
    %v8419 = vunpack.c.h.bf16 %v8403
    %v8420 = vunpack.c.h.bf16 %v8404
    %8421 = vmatprep.subr.bf16.mxu0 %v1927
    %8422 = vmatpush1.bf16.msra.mxu0 %v1926
    %8423 = vmatprep.subr.bf16.mxu0 %v1935
    %8424 = vmatpush1.bf16.msra.mxu0 %v1934
    %8425 = vmatprep.subr.bf16.mxu0 %v1943
    %8426 = vmatpush1.bf16.msra.mxu0 %v1942
    %8427 = vmatprep.subr.bf16.mxu0 %v1951
    %8428 = vmatpush1.bf16.msra.mxu0 %v1950
    %8429 = vmatprep.subr.bf16.mxu0 %v1959
    %8430 = vmatpush1.bf16.msra.mxu0 %v1958
    %8431 = vmatprep.subr.bf16.mxu0 %v1967
    %8432 = vmatpush1.bf16.msra.mxu0 %v1966
    %8433 = vmatprep.subr.bf16.mxu0 %v1975
    %8434 = vmatpush1.bf16.msra.mxu0 %v1974
    %8435 = vmatprep.subr.bf16.mxu0 %v1983
    %8436 = vmatpush1.bf16.msra.mxu0 %v1982
    %8437 = vmatprep.subr.bf16.mxu0 %v1991
    %8438 = vmatpush1.bf16.msra.mxu0 %v1990
    %8439 = vmatprep.subr.bf16.mxu0 %v1999
    %8440 = vmatpush1.bf16.msra.mxu0 %v1998
    %8441 = vmatprep.subr.bf16.mxu0 %v2007
    %8442 = vmatpush1.bf16.msra.mxu0 %v2006
    %8443 = vmatprep.subr.bf16.mxu0 %v2015
    %8444 = vmatpush1.bf16.msra.mxu0 %v2014
    %8445 = vmatprep.subr.bf16.mxu0 %v2023
    %8446 = vmatpush1.bf16.msra.mxu0 %v2022
    %8447 = vmatprep.subr.bf16.mxu0 %v2031
    %8448 = vmatpush1.bf16.msra.mxu0 %v2030
    %8449 = vmatprep.subr.bf16.mxu0 %v2039
    %8450 = vmatpush1.bf16.msra.mxu0 %v2038
    %8451 = vmatprep.subr.bf16.mxu0 %v2047
    %8452 = vmatpush1.bf16.msra.mxu0 %v2046
    %8453 = vmatprep.mubr.bf16.mxu0 %v8396
    %8454 = vmatmul.mubr.bf16.gmra.mrb[0].mxu0 %v8395
    %v8455 = vpop.f32.mrb[0].mxu0
    %v8456 = vadd.f32 0.0, %v8455
    %v8457 = vpop.f32.mrb[0].mxu0
    %v8458 = vadd.f32 0.0, %v8457
    %v8459 = vpop.f32.mrb[0].mxu0
    %v8460 = vadd.f32 0.0, %v8459
    %v8461 = vpop.f32.mrb[0].mxu0
    %v8462 = vadd.f32 0.0, %v8461
    %8463 = vdwg.mxu0
    %8464 = vmatprep.subr.bf16.mxu0 %v1929
    %8465 = vmatpush1.bf16.msra.mxu0 %v1928
    %8466 = vmatprep.subr.bf16.mxu0 %v1937
    %8467 = vmatpush1.bf16.msra.mxu0 %v1936
    %8468 = vmatprep.subr.bf16.mxu0 %v1945
    %8469 = vmatpush1.bf16.msra.mxu0 %v1944
    %8470 = vmatprep.subr.bf16.mxu0 %v1953
    %8471 = vmatpush1.bf16.msra.mxu0 %v1952
    %8472 = vmatprep.subr.bf16.mxu0 %v1961
    %8473 = vmatpush1.bf16.msra.mxu0 %v1960
    %8474 = vmatprep.subr.bf16.mxu0 %v1969
    %8475 = vmatpush1.bf16.msra.mxu0 %v1968
    %8476 = vmatprep.subr.bf16.mxu0 %v1977
    %8477 = vmatpush1.bf16.msra.mxu0 %v1976
    %8478 = vmatprep.subr.bf16.mxu0 %v1985
    %8479 = vmatpush1.bf16.msra.mxu0 %v1984
    %8480 = vmatprep.subr.bf16.mxu0 %v1993
    %8481 = vmatpush1.bf16.msra.mxu0 %v1992
    %8482 = vmatprep.subr.bf16.mxu0 %v2001
    %8483 = vmatpush1.bf16.msra.mxu0 %v2000
    %8484 = vmatprep.subr.bf16.mxu0 %v2009
    %8485 = vmatpush1.bf16.msra.mxu0 %v2008
    %8486 = vmatprep.subr.bf16.mxu0 %v2017
    %8487 = vmatpush1.bf16.msra.mxu0 %v2016
    %8488 = vmatprep.subr.bf16.mxu0 %v2025
    %8489 = vmatpush1.bf16.msra.mxu0 %v2024
    %8490 = vmatprep.subr.bf16.mxu0 %v2033
    %8491 = vmatpush1.bf16.msra.mxu0 %v2032
    %8492 = vmatprep.subr.bf16.mxu0 %v2041
    %8493 = vmatpush1.bf16.msra.mxu0 %v2040
    %8494 = vmatprep.subr.bf16.mxu0 %v2049
    %8495 = vmatpush1.bf16.msra.mxu0 %v2048
    %8496 = vmatprep.mubr.bf16.mxu0 %v8396
    %8497 = vmatmul.mubr.bf16.gmra.mrb[0].mxu0 %v8395
    %v8498 = vpop.f32.mrb[0].mxu0
    %v8499 = vadd.f32 0.0, %v8498
    %v8500 = vpop.f32.mrb[0].mxu0
    %v8501 = vadd.f32 0.0, %v8500
    %v8502 = vpop.f32.mrb[0].mxu0
    %v8503 = vadd.f32 0.0, %v8502
    %v8504 = vpop.f32.mrb[0].mxu0
    %v8505 = vadd.f32 0.0, %v8504
    %8506 = vdwg.mxu0
    %8507 = vmatprep.subr.bf16.mxu0 %v1931
    %8508 = vmatpush1.bf16.msra.mxu0 %v1930
    %8509 = vmatprep.subr.bf16.mxu0 %v1939
    %8510 = vmatpush1.bf16.msra.mxu0 %v1938
    %8511 = vmatprep.subr.bf16.mxu0 %v1947
    %8512 = vmatpush1.bf16.msra.mxu0 %v1946
    %8513 = vmatprep.subr.bf16.mxu0 %v1955
    %8514 = vmatpush1.bf16.msra.mxu0 %v1954
    %8515 = vmatprep.subr.bf16.mxu0 %v1963
    %8516 = vmatpush1.bf16.msra.mxu0 %v1962
    %8517 = vmatprep.subr.bf16.mxu0 %v1971
    %8518 = vmatpush1.bf16.msra.mxu0 %v1970
    %8519 = vmatprep.subr.bf16.mxu0 %v1979
    %8520 = vmatpush1.bf16.msra.mxu0 %v1978
    %8521 = vmatprep.subr.bf16.mxu0 %v1987
    %8522 = vmatpush1.bf16.msra.mxu0 %v1986
    %8523 = vmatprep.subr.bf16.mxu0 %v1995
    %8524 = vmatpush1.bf16.msra.mxu0 %v1994
    %8525 = vmatprep.subr.bf16.mxu0 %v2003
    %8526 = vmatpush1.bf16.msra.mxu0 %v2002
    %8527 = vmatprep.subr.bf16.mxu0 %v2011
    %8528 = vmatpush1.bf16.msra.mxu0 %v2010
    %8529 = vmatprep.subr.bf16.mxu0 %v2019
    %8530 = vmatpush1.bf16.msra.mxu0 %v2018
    %8531 = vmatprep.subr.bf16.mxu0 %v2027
    %8532 = vmatpush1.bf16.msra.mxu0 %v2026
    %8533 = vmatprep.subr.bf16.mxu0 %v2035
    %8534 = vmatpush1.bf16.msra.mxu0 %v2034
    %8535 = vmatprep.subr.bf16.mxu0 %v2043
    %8536 = vmatpush1.bf16.msra.mxu0 %v2042
    %8537 = vmatprep.subr.bf16.mxu0 %v2051
    %8538 = vmatpush1.bf16.msra.mxu0 %v2050
    %8539 = vmatprep.mubr.bf16.mxu0 %v8396
    %8540 = vmatmul.mubr.bf16.gmra.mrb[0].mxu0 %v8395
    %v8541 = vpop.f32.mrb[0].mxu0
    %v8542 = vadd.f32 0.0, %v8541
    %v8543 = vpop.f32.mrb[0].mxu0
    %v8544 = vadd.f32 0.0, %v8543
    %v8545 = vpop.f32.mrb[0].mxu0
    %v8546 = vadd.f32 0.0, %v8545
    %v8547 = vpop.f32.mrb[0].mxu0
    %v8548 = vadd.f32 0.0, %v8547
    %8549 = vdwg.mxu0
    %8550 = vmatprep.subr.bf16.mxu0 %v1933
    %8551 = vmatpush1.bf16.msra.mxu0 %v1932
    %8552 = vmatprep.subr.bf16.mxu0 %v1941
    %8553 = vmatpush1.bf16.msra.mxu0 %v1940
    %8554 = vmatprep.subr.bf16.mxu0 %v1949
    %8555 = vmatpush1.bf16.msra.mxu0 %v1948
    %8556 = vmatprep.subr.bf16.mxu0 %v1957
    %8557 = vmatpush1.bf16.msra.mxu0 %v1956
    %8558 = vmatprep.subr.bf16.mxu0 %v1965
    %8559 = vmatpush1.bf16.msra.mxu0 %v1964
    %8560 = vmatprep.subr.bf16.mxu0 %v1973
    %8561 = vmatpush1.bf16.msra.mxu0 %v1972
    %8562 = vmatprep.subr.bf16.mxu0 %v1981
    %8563 = vmatpush1.bf16.msra.mxu0 %v1980
    %8564 = vmatprep.subr.bf16.mxu0 %v1989
    %8565 = vmatpush1.bf16.msra.mxu0 %v1988
    %8566 = vmatprep.subr.bf16.mxu0 %v1997
    %8567 = vmatpush1.bf16.msra.mxu0 %v1996
    %8568 = vmatprep.subr.bf16.mxu0 %v2005
    %8569 = vmatpush1.bf16.msra.mxu0 %v2004
    %8570 = vmatprep.subr.bf16.mxu0 %v2013
    %8571 = vmatpush1.bf16.msra.mxu0 %v2012
    %8572 = vmatprep.subr.bf16.mxu0 %v2021
    %8573 = vmatpush1.bf16.msra.mxu0 %v2020
    %8574 = vmatprep.subr.bf16.mxu0 %v2029
    %8575 = vmatpush1.bf16.msra.mxu0 %v2028
    %8576 = vmatprep.subr.bf16.mxu0 %v2037
    %8577 = vmatpush1.bf16.msra.mxu0 %v2036
    %8578 = vmatprep.subr.bf16.mxu0 %v2045
    %8579 = vmatpush1.bf16.msra.mxu0 %v2044
    %8580 = vmatprep.subr.bf16.mxu0 %v2053
    %8581 = vmatpush1.bf16.msra.mxu0 %v2052
    %8582 = vmatprep.mubr.bf16.mxu0 %v8396
    %8583 = vmatmul.mubr.bf16.gmra.mrb[0].mxu0 %v8395
    %v8584 = vpop.f32.mrb[0].mxu0
    %v8585 = vadd.f32 0.0, %v8584
    %v8586 = vpop.f32.mrb[0].mxu0
    %v8587 = vadd.f32 0.0, %v8586
    %v8588 = vpop.f32.mrb[0].mxu0
    %v8589 = vadd.f32 0.0, %v8588
    %v8590 = vpop.f32.mrb[0].mxu0
    %v8591 = vadd.f32 0.0, %v8590
    %8592 = vdwg.mxu0
    %v8593 = vadd.f32 %v8405, %v8456
    %v8594 = vadd.f32 %v8406, %v8458
    %v8595 = vadd.f32 %v8407, %v8499
    %v8596 = vadd.f32 %v8408, %v8501
    %v8597 = vadd.f32 %v8409, %v8542
    %v8598 = vadd.f32 %v8410, %v8544
    %v8599 = vadd.f32 %v8411, %v8585
    %v8600 = vadd.f32 %v8412, %v8587
    %v8601 = vadd.f32 %v8413, %v8460
    %v8602 = vadd.f32 %v8414, %v8462
    %v8603 = vadd.f32 %v8415, %v8503
    %v8604 = vadd.f32 %v8416, %v8505
    %v8605 = vadd.f32 %v8417, %v8546
    %v8606 = vadd.f32 %v8418, %v8548
    %v8607 = vadd.f32 %v8419, %v8589
    %v8608 = vadd.f32 %v8420, %v8591
    %v8609 = vxor.u32 %v8593, 2147483648
    %v8610 = vxor.u32 %v8594, 2147483648
    %v8611 = vxor.u32 %v8601, 2147483648
    %v8612 = vxor.u32 %v8602, 2147483648
    %v8613 = vmul.f32 %v8609, 1.442695
    %v8614 = vpow.pop %v8613
    %v8615 = vmul.f32 %v8610, 1.442695
    %v8616 = vpow.pop %v8615
    %v8617 = vmul.f32 %v8611, 1.442695
    %v8618 = vpow.pop %v8617
    %v8619 = vmul.f32 %v8612, 1.442695
    %v8620 = vpow.pop %v8619
    %v8621 = vadd.f32 %v8614, 1.0
    %v8622 = vadd.f32 %v8616, 1.0
    %v8623 = vadd.f32 %v8618, 1.0
    %v8624 = vadd.f32 %v8620, 1.0
    %v8625 = vrcp.pop %v8621
    %v8626 = vmul.f32 1.0, %v8625
    %v8627 = vrcp.pop %v8622
    %v8628 = vmul.f32 1.0, %v8627
    %v8629 = vrcp.pop %v8623
    %v8630 = vmul.f32 1.0, %v8629
    %v8631 = vrcp.pop %v8624
    %v8632 = vmul.f32 1.0, %v8631
    %v8633 = vxor.u32 %v8595, 2147483648
    %v8634 = vxor.u32 %v8596, 2147483648
    %v8635 = vxor.u32 %v8603, 2147483648
    %v8636 = vxor.u32 %v8604, 2147483648
    %v8637 = vmul.f32 %v8633, 1.442695
    %v8638 = vpow.pop %v8637
    %v8639 = vmul.f32 %v8634, 1.442695
    %v8640 = vpow.pop %v8639
    %v8641 = vmul.f32 %v8635, 1.442695
    %v8642 = vpow.pop %v8641
    %v8643 = vmul.f32 %v8636, 1.442695
    %v8644 = vpow.pop %v8643
    %v8645 = vadd.f32 %v8638, 1.0
    %v8646 = vadd.f32 %v8640, 1.0
    %v8647 = vadd.f32 %v8642, 1.0
    %v8648 = vadd.f32 %v8644, 1.0
    %v8649 = vrcp.pop %v8645
    %v8650 = vmul.f32 1.0, %v8649
    %v8651 = vrcp.pop %v8646
    %v8652 = vmul.f32 1.0, %v8651
    %v8653 = vrcp.pop %v8647
    %v8654 = vmul.f32 1.0, %v8653
    %v8655 = vrcp.pop %v8648
    %v8656 = vmul.f32 1.0, %v8655
    %v8657 = vtanh.pop %v8597
    %v8658 = vtanh.pop %v8598
    %v8659 = vtanh.pop %v8605
    %v8660 = vtanh.pop %v8606
    %v8661 = vxor.u32 %v8599, 2147483648
    %v8662 = vxor.u32 %v8600, 2147483648
    %v8663 = vxor.u32 %v8607, 2147483648
    %v8664 = vxor.u32 %v8608, 2147483648
    %v8665 = vmul.f32 %v8661, 1.442695
    %v8666 = vpow.pop %v8665
    %v8667 = vmul.f32 %v8662, 1.442695
    %v8668 = vpow.pop %v8667
    %v8669 = vmul.f32 %v8663, 1.442695
    %v8670 = vpow.pop %v8669
    %v8671 = vmul.f32 %v8664, 1.442695
    %v8672 = vpow.pop %v8671
    %v8673 = vadd.f32 %v8666, 1.0
    %v8674 = vadd.f32 %v8668, 1.0
    %v8675 = vadd.f32 %v8670, 1.0
    %v8676 = vadd.f32 %v8672, 1.0
    %v8677 = vrcp.pop %v8673
    %v8678 = vmul.f32 1.0, %v8677
    %v8679 = vrcp.pop %v8674
    %v8680 = vmul.f32 1.0, %v8679
    %v8681 = vrcp.pop %v8675
    %v8682 = vmul.f32 1.0, %v8681
    %v8683 = vrcp.pop %v8676
    %v8684 = vmul.f32 1.0, %v8683
    %v8685 = vmul.f32 %v8650, %v7925
    %v8686 = vmul.f32 %v8652, %v7926
    %v8687 = vmul.f32 %v8654, %v7927
    %v8688 = vmul.f32 %v8656, %v7928
    %v8689 = vmul.f32 %v8626, %v8657
    %v8690 = vmul.f32 %v8628, %v8658
    %v8691 = vmul.f32 %v8630, %v8659
    %v8692 = vmul.f32 %v8632, %v8660
    %v8693 = vadd.f32 %v8685, %v8689
    %v8694 = vadd.f32 %v8686, %v8690
    %v8695 = vadd.f32 %v8687, %v8691
    %v8696 = vadd.f32 %v8688, %v8692
    %v8697 = vtanh.pop %v8693
    %v8698 = vtanh.pop %v8694
    %v8699 = vtanh.pop %v8695
    %v8700 = vtanh.pop %v8696
    %v8701 = vmul.f32 %v8678, %v8697
    %v8702 = vmul.f32 %v8680, %v8698
    %v8703 = vmul.f32 %v8682, %v8699
    %v8704 = vmul.f32 %v8684, %v8700
    %v8705 = vpack.c.bf16 %v8377, %v8375
    %v8706 = vpack.c.bf16 %v8378, %v8376
    %8707 = vmatprep.subr.bf16.mxu0 %v3586
    %8708 = vmatpush1.bf16.msra.mxu0 %v3585
    %8709 = vmatprep.subr.bf16.mxu0 %v3594
    %8710 = vmatpush1.bf16.msra.mxu0 %v3593
    %8711 = vmatprep.subr.bf16.mxu0 %v3602
    %8712 = vmatpush1.bf16.msra.mxu0 %v3601
    %8713 = vmatprep.subr.bf16.mxu0 %v3610
    %8714 = vmatpush1.bf16.msra.mxu0 %v3609
    %8715 = vmatprep.subr.bf16.mxu0 %v3618
    %8716 = vmatpush1.bf16.msra.mxu0 %v3617
    %8717 = vmatprep.subr.bf16.mxu0 %v3626
    %8718 = vmatpush1.bf16.msra.mxu0 %v3625
    %8719 = vmatprep.subr.bf16.mxu0 %v3634
    %8720 = vmatpush1.bf16.msra.mxu0 %v3633
    %8721 = vmatprep.subr.bf16.mxu0 %v3642
    %8722 = vmatpush1.bf16.msra.mxu0 %v3641
    %8723 = vmatprep.subr.bf16.mxu0 %v3650
    %8724 = vmatpush1.bf16.msra.mxu0 %v3649
    %8725 = vmatprep.subr.bf16.mxu0 %v3658
    %8726 = vmatpush1.bf16.msra.mxu0 %v3657
    %8727 = vmatprep.subr.bf16.mxu0 %v3666
    %8728 = vmatpush1.bf16.msra.mxu0 %v3665
    %8729 = vmatprep.subr.bf16.mxu0 %v3674
    %8730 = vmatpush1.bf16.msra.mxu0 %v3673
    %8731 = vmatprep.subr.bf16.mxu0 %v3682
    %8732 = vmatpush1.bf16.msra.mxu0 %v3681
    %8733 = vmatprep.subr.bf16.mxu0 %v3690
    %8734 = vmatpush1.bf16.msra.mxu0 %v3689
    %8735 = vmatprep.subr.bf16.mxu0 %v3698
    %8736 = vmatpush1.bf16.msra.mxu0 %v3697
    %8737 = vmatprep.subr.bf16.mxu0 %v3706
    %8738 = vmatpush1.bf16.msra.mxu0 %v3705
    %8739 = vmatprep.mubr.bf16.mxu0 %v8396
    %8740 = vmatmul.mubr.bf16.gmra.mrb[0].mxu0 %v8395
    %v8741 = vpop.f32.mrb[0].mxu0
    %v8742 = vadd.f32 %v2780, %v8741
    %v8743 = vpop.f32.mrb[0].mxu0
    %v8744 = vadd.f32 %v2784, %v8743
    %v8745 = vpop.f32.mrb[0].mxu0
    %v8746 = vadd.f32 %v2780, %v8745
    %v8747 = vpop.f32.mrb[0].mxu0
    %v8748 = vadd.f32 %v2784, %v8747
    %8749 = vdwg.mxu0
    %8750 = vmatprep.subr.bf16.mxu0 %v3714
    %8751 = vmatpush1.bf16.msra.mxu0 %v3713
    %8752 = vmatprep.subr.bf16.mxu0 %v3722
    %8753 = vmatpush1.bf16.msra.mxu0 %v3721
    %8754 = vmatprep.subr.bf16.mxu0 %v3730
    %8755 = vmatpush1.bf16.msra.mxu0 %v3729
    %8756 = vmatprep.subr.bf16.mxu0 %v3738
    %8757 = vmatpush1.bf16.msra.mxu0 %v3737
    %8758 = vmatprep.subr.bf16.mxu0 %v3746
    %8759 = vmatpush1.bf16.msra.mxu0 %v3745
    %8760 = vmatprep.subr.bf16.mxu0 %v3754
    %8761 = vmatpush1.bf16.msra.mxu0 %v3753
    %8762 = vmatprep.subr.bf16.mxu0 %v3762
    %8763 = vmatpush1.bf16.msra.mxu0 %v3761
    %8764 = vmatprep.subr.bf16.mxu0 %v3770
    %8765 = vmatpush1.bf16.msra.mxu0 %v3769
    %8766 = vmatprep.subr.bf16.mxu0 %v3778
    %8767 = vmatpush1.bf16.msra.mxu0 %v3777
    %8768 = vmatprep.subr.bf16.mxu0 %v3786
    %8769 = vmatpush1.bf16.msra.mxu0 %v3785
    %8770 = vmatprep.subr.bf16.mxu0 %v3794
    %8771 = vmatpush1.bf16.msra.mxu0 %v3793
    %8772 = vmatprep.subr.bf16.mxu0 %v3802
    %8773 = vmatpush1.bf16.msra.mxu0 %v3801
    %8774 = vmatprep.subr.bf16.mxu0 %v3810
    %8775 = vmatpush1.bf16.msra.mxu0 %v3809
    %8776 = vmatprep.subr.bf16.mxu0 %v3818
    %8777 = vmatpush1.bf16.msra.mxu0 %v3817
    %8778 = vmatprep.subr.bf16.mxu0 %v3826
    %8779 = vmatpush1.bf16.msra.mxu0 %v3825
    %8780 = vmatprep.subr.bf16.mxu0 %v3834
    %8781 = vmatpush1.bf16.msra.mxu0 %v3833
    %8782 = vmatprep.mubr.bf16.mxu0 %v8706
    %8783 = vmatmul.mubr.bf16.gmra.mrb[0].mxu0 %v8705
    %v8784 = vpop.f32.mrb[0].mxu0
    %v8785 = vadd.f32 %v8742, %v8784
    %v8786 = vpop.f32.mrb[0].mxu0
    %v8787 = vadd.f32 %v8744, %v8786
    %v8788 = vpop.f32.mrb[0].mxu0
    %v8789 = vadd.f32 %v8746, %v8788
    %v8790 = vpop.f32.mrb[0].mxu0
    %v8791 = vadd.f32 %v8748, %v8790
    %8792 = vdwg.mxu0
    %8793 = vmatprep.subr.bf16.mxu0 %v3588
    %8794 = vmatpush1.bf16.msra.mxu0 %v3587
    %8795 = vmatprep.subr.bf16.mxu0 %v3596
    %8796 = vmatpush1.bf16.msra.mxu0 %v3595
    %8797 = vmatprep.subr.bf16.mxu0 %v3604
    %8798 = vmatpush1.bf16.msra.mxu0 %v3603
    %8799 = vmatprep.subr.bf16.mxu0 %v3612
    %8800 = vmatpush1.bf16.msra.mxu0 %v3611
    %8801 = vmatprep.subr.bf16.mxu0 %v3620
    %8802 = vmatpush1.bf16.msra.mxu0 %v3619
    %8803 = vmatprep.subr.bf16.mxu0 %v3628
    %8804 = vmatpush1.bf16.msra.mxu0 %v3627
    %8805 = vmatprep.subr.bf16.mxu0 %v3636
    %8806 = vmatpush1.bf16.msra.mxu0 %v3635
    %8807 = vmatprep.subr.bf16.mxu0 %v3644
    %8808 = vmatpush1.bf16.msra.mxu0 %v3643
    %8809 = vmatprep.subr.bf16.mxu0 %v3652
    %8810 = vmatpush1.bf16.msra.mxu0 %v3651
    %8811 = vmatprep.subr.bf16.mxu0 %v3660
    %8812 = vmatpush1.bf16.msra.mxu0 %v3659
    %8813 = vmatprep.subr.bf16.mxu0 %v3668
    %8814 = vmatpush1.bf16.msra.mxu0 %v3667
    %8815 = vmatprep.subr.bf16.mxu0 %v3676
    %8816 = vmatpush1.bf16.msra.mxu0 %v3675
    %8817 = vmatprep.subr.bf16.mxu0 %v3684
    %8818 = vmatpush1.bf16.msra.mxu0 %v3683
    %8819 = vmatprep.subr.bf16.mxu0 %v3692
    %8820 = vmatpush1.bf16.msra.mxu0 %v3691
    %8821 = vmatprep.subr.bf16.mxu0 %v3700
    %8822 = vmatpush1.bf16.msra.mxu0 %v3699
    %8823 = vmatprep.subr.bf16.mxu0 %v3708
    %8824 = vmatpush1.bf16.msra.mxu0 %v3707
    %8825 = vmatprep.mubr.bf16.mxu0 %v8396
    %8826 = vmatmul.mubr.bf16.gmra.mrb[0].mxu0 %v8395
    %v8827 = vpop.f32.mrb[0].mxu0
    %v8828 = vadd.f32 %v2788, %v8827
    %v8829 = vpop.f32.mrb[0].mxu0
    %v8830 = vadd.f32 %v2792, %v8829
    %v8831 = vpop.f32.mrb[0].mxu0
    %v8832 = vadd.f32 %v2788, %v8831
    %v8833 = vpop.f32.mrb[0].mxu0
    %v8834 = vadd.f32 %v2792, %v8833
    %8835 = vdwg.mxu0
    %8836 = vmatprep.subr.bf16.mxu0 %v3716
    %8837 = vmatpush1.bf16.msra.mxu0 %v3715
    %8838 = vmatprep.subr.bf16.mxu0 %v3724
    %8839 = vmatpush1.bf16.msra.mxu0 %v3723
    %8840 = vmatprep.subr.bf16.mxu0 %v3732
    %8841 = vmatpush1.bf16.msra.mxu0 %v3731
    %8842 = vmatprep.subr.bf16.mxu0 %v3740
    %8843 = vmatpush1.bf16.msra.mxu0 %v3739
    %8844 = vmatprep.subr.bf16.mxu0 %v3748
    %8845 = vmatpush1.bf16.msra.mxu0 %v3747
    %8846 = vmatprep.subr.bf16.mxu0 %v3756
    %8847 = vmatpush1.bf16.msra.mxu0 %v3755
    %8848 = vmatprep.subr.bf16.mxu0 %v3764
    %8849 = vmatpush1.bf16.msra.mxu0 %v3763
    %8850 = vmatprep.subr.bf16.mxu0 %v3772
    %8851 = vmatpush1.bf16.msra.mxu0 %v3771
    %8852 = vmatprep.subr.bf16.mxu0 %v3780
    %8853 = vmatpush1.bf16.msra.mxu0 %v3779
    %8854 = vmatprep.subr.bf16.mxu0 %v3788
    %8855 = vmatpush1.bf16.msra.mxu0 %v3787
    %8856 = vmatprep.subr.bf16.mxu0 %v3796
    %8857 = vmatpush1.bf16.msra.mxu0 %v3795
    %8858 = vmatprep.subr.bf16.mxu0 %v3804
    %8859 = vmatpush1.bf16.msra.mxu0 %v3803
    %8860 = vmatprep.subr.bf16.mxu0 %v3812
    %8861 = vmatpush1.bf16.msra.mxu0 %v3811
    %8862 = vmatprep.subr.bf16.mxu0 %v3820
    %8863 = vmatpush1.bf16.msra.mxu0 %v3819
    %8864 = vmatprep.subr.bf16.mxu0 %v3828
    %8865 = vmatpush1.bf16.msra.mxu0 %v3827
    %8866 = vmatprep.subr.bf16.mxu0 %v3836
    %8867 = vmatpush1.bf16.msra.mxu0 %v3835
    %8868 = vmatprep.mubr.bf16.mxu0 %v8706
    %8869 = vmatmul.mubr.bf16.gmra.mrb[0].mxu0 %v8705
    %v8870 = vpop.f32.mrb[0].mxu0
    %v8871 = vadd.f32 %v8828, %v8870
    %v8872 = vpop.f32.mrb[0].mxu0
    %v8873 = vadd.f32 %v8830, %v8872
    %v8874 = vpop.f32.mrb[0].mxu0
    %v8875 = vadd.f32 %v8832, %v8874
    %v8876 = vpop.f32.mrb[0].mxu0
    %v8877 = vadd.f32 %v8834, %v8876
    %8878 = vdwg.mxu0
    %8879 = vmatprep.subr.bf16.mxu0 %v3590
    %8880 = vmatpush1.bf16.msra.mxu0 %v3589
    %8881 = vmatprep.subr.bf16.mxu0 %v3598
    %8882 = vmatpush1.bf16.msra.mxu0 %v3597
    %8883 = vmatprep.subr.bf16.mxu0 %v3606
    %8884 = vmatpush1.bf16.msra.mxu0 %v3605
    %8885 = vmatprep.subr.bf16.mxu0 %v3614
    %8886 = vmatpush1.bf16.msra.mxu0 %v3613
    %8887 = vmatprep.subr.bf16.mxu0 %v3622
    %8888 = vmatpush1.bf16.msra.mxu0 %v3621
    %8889 = vmatprep.subr.bf16.mxu0 %v3630
    %8890 = vmatpush1.bf16.msra.mxu0 %v3629
    %8891 = vmatprep.subr.bf16.mxu0 %v3638
    %8892 = vmatpush1.bf16.msra.mxu0 %v3637
    %8893 = vmatprep.subr.bf16.mxu0 %v3646
    %8894 = vmatpush1.bf16.msra.mxu0 %v3645
    %8895 = vmatprep.subr.bf16.mxu0 %v3654
    %8896 = vmatpush1.bf16.msra.mxu0 %v3653
    %8897 = vmatprep.subr.bf16.mxu0 %v3662
    %8898 = vmatpush1.bf16.msra.mxu0 %v3661
    %8899 = vmatprep.subr.bf16.mxu0 %v3670
    %8900 = vmatpush1.bf16.msra.mxu0 %v3669
    %8901 = vmatprep.subr.bf16.mxu0 %v3678
    %8902 = vmatpush1.bf16.msra.mxu0 %v3677
    %8903 = vmatprep.subr.bf16.mxu0 %v3686
    %8904 = vmatpush1.bf16.msra.mxu0 %v3685
    %8905 = vmatprep.subr.bf16.mxu0 %v3694
    %8906 = vmatpush1.bf16.msra.mxu0 %v3693
    %8907 = vmatprep.subr.bf16.mxu0 %v3702
    %8908 = vmatpush1.bf16.msra.mxu0 %v3701
    %8909 = vmatprep.subr.bf16.mxu0 %v3710
    %8910 = vmatpush1.bf16.msra.mxu0 %v3709
    %8911 = vmatprep.mubr.bf16.mxu0 %v8396
    %8912 = vmatmul.mubr.bf16.gmra.mrb[0].mxu0 %v8395
    %v8913 = vpop.f32.mrb[0].mxu0
    %v8914 = vadd.f32 %v2796, %v8913
    %v8915 = vpop.f32.mrb[0].mxu0
    %v8916 = vadd.f32 %v2800, %v8915
    %v8917 = vpop.f32.mrb[0].mxu0
    %v8918 = vadd.f32 %v2796, %v8917
    %v8919 = vpop.f32.mrb[0].mxu0
    %v8920 = vadd.f32 %v2800, %v8919
    %8921 = vdwg.mxu0
    %8922 = vmatprep.subr.bf16.mxu0 %v3718
    %8923 = vmatpush1.bf16.msra.mxu0 %v3717
    %8924 = vmatprep.subr.bf16.mxu0 %v3726
    %8925 = vmatpush1.bf16.msra.mxu0 %v3725
    %8926 = vmatprep.subr.bf16.mxu0 %v3734
    %8927 = vmatpush1.bf16.msra.mxu0 %v3733
    %8928 = vmatprep.subr.bf16.mxu0 %v3742
    %8929 = vmatpush1.bf16.msra.mxu0 %v3741
    %8930 = vmatprep.subr.bf16.mxu0 %v3750
    %8931 = vmatpush1.bf16.msra.mxu0 %v3749
    %8932 = vmatprep.subr.bf16.mxu0 %v3758
    %8933 = vmatpush1.bf16.msra.mxu0 %v3757
    %8934 = vmatprep.subr.bf16.mxu0 %v3766
    %8935 = vmatpush1.bf16.msra.mxu0 %v3765
    %8936 = vmatprep.subr.bf16.mxu0 %v3774
    %8937 = vmatpush1.bf16.msra.mxu0 %v3773
    %8938 = vmatprep.subr.bf16.mxu0 %v3782
    %8939 = vmatpush1.bf16.msra.mxu0 %v3781
    %8940 = vmatprep.subr.bf16.mxu0 %v3790
    %8941 = vmatpush1.bf16.msra.mxu0 %v3789
    %8942 = vmatprep.subr.bf16.mxu0 %v3798
    %8943 = vmatpush1.bf16.msra.mxu0 %v3797
    %8944 = vmatprep.subr.bf16.mxu0 %v3806
    %8945 = vmatpush1.bf16.msra.mxu0 %v3805
    %8946 = vmatprep.subr.bf16.mxu0 %v3814
    %8947 = vmatpush1.bf16.msra.mxu0 %v3813
    %8948 = vmatprep.subr.bf16.mxu0 %v3822
    %8949 = vmatpush1.bf16.msra.mxu0 %v3821
    %8950 = vmatprep.subr.bf16.mxu0 %v3830
    %8951 = vmatpush1.bf16.msra.mxu0 %v3829
    %8952 = vmatprep.subr.bf16.mxu0 %v3838
    %8953 = vmatpush1.bf16.msra.mxu0 %v3837
    %8954 = vmatprep.mubr.bf16.mxu0 %v8706
    %8955 = vmatmul.mubr.bf16.gmra.mrb[0].mxu0 %v8705
    %v8956 = vpop.f32.mrb[0].mxu0
    %v8957 = vadd.f32 %v8914, %v8956
    %v8958 = vpop.f32.mrb[0].mxu0
    %v8959 = vadd.f32 %v8916, %v8958
    %v8960 = vpop.f32.mrb[0].mxu0
    %v8961 = vadd.f32 %v8918, %v8960
    %v8962 = vpop.f32.mrb[0].mxu0
    %v8963 = vadd.f32 %v8920, %v8962
    %8964 = vdwg.mxu0
    %8965 = vmatprep.subr.bf16.mxu0 %v3592
    %8966 = vmatpush1.bf16.msra.mxu0 %v3591
    %8967 = vmatprep.subr.bf16.mxu0 %v3600
    %8968 = vmatpush1.bf16.msra.mxu0 %v3599
    %8969 = vmatprep.subr.bf16.mxu0 %v3608
    %8970 = vmatpush1.bf16.msra.mxu0 %v3607
    %8971 = vmatprep.subr.bf16.mxu0 %v3616
    %8972 = vmatpush1.bf16.msra.mxu0 %v3615
    %8973 = vmatprep.subr.bf16.mxu0 %v3624
    %8974 = vmatpush1.bf16.msra.mxu0 %v3623
    %8975 = vmatprep.subr.bf16.mxu0 %v3632
    %8976 = vmatpush1.bf16.msra.mxu0 %v3631
    %8977 = vmatprep.subr.bf16.mxu0 %v3640
    %8978 = vmatpush1.bf16.msra.mxu0 %v3639
    %8979 = vmatprep.subr.bf16.mxu0 %v3648
    %8980 = vmatpush1.bf16.msra.mxu0 %v3647
    %8981 = vmatprep.subr.bf16.mxu0 %v3656
    %8982 = vmatpush1.bf16.msra.mxu0 %v3655
    %8983 = vmatprep.subr.bf16.mxu0 %v3664
    %8984 = vmatpush1.bf16.msra.mxu0 %v3663
    %8985 = vmatprep.subr.bf16.mxu0 %v3672
    %8986 = vmatpush1.bf16.msra.mxu0 %v3671
    %8987 = vmatprep.subr.bf16.mxu0 %v3680
    %8988 = vmatpush1.bf16.msra.mxu0 %v3679
    %8989 = vmatprep.subr.bf16.mxu0 %v3688
    %8990 = vmatpush1.bf16.msra.mxu0 %v3687
    %8991 = vmatprep.subr.bf16.mxu0 %v3696
    %8992 = vmatpush1.bf16.msra.mxu0 %v3695
    %8993 = vmatprep.subr.bf16.mxu0 %v3704
    %8994 = vmatpush1.bf16.msra.mxu0 %v3703
    %8995 = vmatprep.subr.bf16.mxu0 %v3712
    %8996 = vmatpush1.bf16.msra.mxu0 %v3711
    %8997 = vmatprep.mubr.bf16.mxu0 %v8396
    %8998 = vmatmul.mubr.bf16.gmra.mrb[0].mxu0 %v8395
    %v8999 = vpop.f32.mrb[0].mxu0
    %v9000 = vadd.f32 %v2804, %v8999
    %v9001 = vpop.f32.mrb[0].mxu0
    %v9002 = vadd.f32 %v2808, %v9001
    %v9003 = vpop.f32.mrb[0].mxu0
    %v9004 = vadd.f32 %v2804, %v9003
    %v9005 = vpop.f32.mrb[0].mxu0
    %v9006 = vadd.f32 %v2808, %v9005
    %9007 = vdwg.mxu0
    %9008 = vmatprep.subr.bf16.mxu0 %v3720
    %9009 = vmatpush1.bf16.msra.mxu0 %v3719
    %9010 = vmatprep.subr.bf16.mxu0 %v3728
    %9011 = vmatpush1.bf16.msra.mxu0 %v3727
    %9012 = vmatprep.subr.bf16.mxu0 %v3736
    %9013 = vmatpush1.bf16.msra.mxu0 %v3735
    %9014 = vmatprep.subr.bf16.mxu0 %v3744
    %9015 = vmatpush1.bf16.msra.mxu0 %v3743
    %9016 = vmatprep.subr.bf16.mxu0 %v3752
    %9017 = vmatpush1.bf16.msra.mxu0 %v3751
    %9018 = vmatprep.subr.bf16.mxu0 %v3760
    %9019 = vmatpush1.bf16.msra.mxu0 %v3759
    %9020 = vmatprep.subr.bf16.mxu0 %v3768
    %9021 = vmatpush1.bf16.msra.mxu0 %v3767
    %9022 = vmatprep.subr.bf16.mxu0 %v3776
    %9023 = vmatpush1.bf16.msra.mxu0 %v3775
    %9024 = vmatprep.subr.bf16.mxu0 %v3784
    %9025 = vmatpush1.bf16.msra.mxu0 %v3783
    %9026 = vmatprep.subr.bf16.mxu0 %v3792
    %9027 = vmatpush1.bf16.msra.mxu0 %v3791
    %9028 = vmatprep.subr.bf16.mxu0 %v3800
    %9029 = vmatpush1.bf16.msra.mxu0 %v3799
    %9030 = vmatprep.subr.bf16.mxu0 %v3808
    %9031 = vmatpush1.bf16.msra.mxu0 %v3807
    %9032 = vmatprep.subr.bf16.mxu0 %v3816
    %9033 = vmatpush1.bf16.msra.mxu0 %v3815
    %9034 = vmatprep.subr.bf16.mxu0 %v3824
    %9035 = vmatpush1.bf16.msra.mxu0 %v3823
    %9036 = vmatprep.subr.bf16.mxu0 %v3832
    %9037 = vmatpush1.bf16.msra.mxu0 %v3831
    %9038 = vmatprep.subr.bf16.mxu0 %v3840
    %9039 = vmatpush1.bf16.msra.mxu0 %v3839
    %9040 = vmatprep.mubr.bf16.mxu0 %v8706
    %9041 = vmatmul.mubr.bf16.gmra.mrb[0].mxu0 %v8705
    %v9042 = vpop.f32.mrb[0].mxu0
    %v9043 = vadd.f32 %v9000, %v9042
    %v9044 = vpop.f32.mrb[0].mxu0
    %v9045 = vadd.f32 %v9002, %v9044
    %v9046 = vpop.f32.mrb[0].mxu0
    %v9047 = vadd.f32 %v9004, %v9046
    %v9048 = vpop.f32.mrb[0].mxu0
    %v9049 = vadd.f32 %v9006, %v9048
    %9050 = vdwg.mxu0
    %v9051 = vxor.u32 %v8785, 2147483648
    %v9052 = vxor.u32 %v8787, 2147483648
    %v9053 = vxor.u32 %v8789, 2147483648
    %v9054 = vxor.u32 %v8791, 2147483648
    %v9055 = vmul.f32 %v9051, 1.442695
    %v9056 = vpow.pop %v9055
    %v9057 = vmul.f32 %v9052, 1.442695
    %v9058 = vpow.pop %v9057
    %v9059 = vmul.f32 %v9053, 1.442695
    %v9060 = vpow.pop %v9059
    %v9061 = vmul.f32 %v9054, 1.442695
    %v9062 = vpow.pop %v9061
    %v9063 = vadd.f32 %v9056, 1.0
    %v9064 = vadd.f32 %v9058, 1.0
    %v9065 = vadd.f32 %v9060, 1.0
    %v9066 = vadd.f32 %v9062, 1.0
    %v9067 = vrcp.pop %v9063
    %v9068 = vmul.f32 1.0, %v9067
    %v9069 = vrcp.pop %v9064
    %v9070 = vmul.f32 1.0, %v9069
    %v9071 = vrcp.pop %v9065
    %v9072 = vmul.f32 1.0, %v9071
    %v9073 = vrcp.pop %v9066
    %v9074 = vmul.f32 1.0, %v9073
    %v9075 = vxor.u32 %v8871, 2147483648
    %v9076 = vxor.u32 %v8873, 2147483648
    %v9077 = vxor.u32 %v8875, 2147483648
    %v9078 = vxor.u32 %v8877, 2147483648
    %v9079 = vmul.f32 %v9075, 1.442695
    %v9080 = vpow.pop %v9079
    %v9081 = vmul.f32 %v9076, 1.442695
    %v9082 = vpow.pop %v9081
    %v9083 = vmul.f32 %v9077, 1.442695
    %v9084 = vpow.pop %v9083
    %v9085 = vmul.f32 %v9078, 1.442695
    %v9086 = vpow.pop %v9085
    %v9087 = vadd.f32 %v9080, 1.0
    %v9088 = vadd.f32 %v9082, 1.0
    %v9089 = vadd.f32 %v9084, 1.0
    %v9090 = vadd.f32 %v9086, 1.0
    %v9091 = vrcp.pop %v9087
    %v9092 = vmul.f32 1.0, %v9091
    %v9093 = vrcp.pop %v9088
    %v9094 = vmul.f32 1.0, %v9093
    %v9095 = vrcp.pop %v9089
    %v9096 = vmul.f32 1.0, %v9095
    %v9097 = vrcp.pop %v9090
    %v9098 = vmul.f32 1.0, %v9097
    %v9099 = vtanh.pop %v8957
    %v9100 = vtanh.pop %v8959
    %v9101 = vtanh.pop %v8961
    %v9102 = vtanh.pop %v8963
    %v9103 = vxor.u32 %v9043, 2147483648
    %v9104 = vxor.u32 %v9045, 2147483648
    %v9105 = vxor.u32 %v9047, 2147483648
    %v9106 = vxor.u32 %v9049, 2147483648
    %v9107 = vmul.f32 %v9103, 1.442695
    %v9108 = vpow.pop %v9107
    %v9109 = vmul.f32 %v9104, 1.442695
    %v9110 = vpow.pop %v9109
    %v9111 = vmul.f32 %v9105, 1.442695
    %v9112 = vpow.pop %v9111
    %v9113 = vmul.f32 %v9106, 1.442695
    %v9114 = vpow.pop %v9113
    %v9115 = vadd.f32 %v9108, 1.0
    %v9116 = vadd.f32 %v9110, 1.0
    %v9117 = vadd.f32 %v9112, 1.0
    %v9118 = vadd.f32 %v9114, 1.0
    %v9119 = vrcp.pop %v9115
    %v9120 = vmul.f32 1.0, %v9119
    %v9121 = vrcp.pop %v9116
    %v9122 = vmul.f32 1.0, %v9121
    %v9123 = vrcp.pop %v9117
    %v9124 = vmul.f32 1.0, %v9123
    %v9125 = vrcp.pop %v9118
    %v9126 = vmul.f32 1.0, %v9125
    %v9127 = vmul.f32 %v9092, %v8367
    %v9128 = vmul.f32 %v9094, %v8368
    %v9129 = vmul.f32 %v9096, %v8369
    %v9130 = vmul.f32 %v9098, %v8370
    %v9131 = vmul.f32 %v9068, %v9099
    %v9132 = vmul.f32 %v9070, %v9100
    %v9133 = vmul.f32 %v9072, %v9101
    %v9134 = vmul.f32 %v9074, %v9102
    %v9135 = vadd.f32 %v9127, %v9131
    %v9136 = vadd.f32 %v9128, %v9132
    %v9137 = vadd.f32 %v9129, %v9133
    %v9138 = vadd.f32 %v9130, %v9134
    %v9139 = vtanh.pop %v9135
    %v9140 = vtanh.pop %v9136
    %v9141 = vtanh.pop %v9137
    %v9142 = vtanh.pop %v9138
    %v9143 = vmul.f32 %v9120, %v9139
    %v9144 = vmul.f32 %v9122, %v9140
    %v9145 = vmul.f32 %v9124, %v9141
    %v9146 = vmul.f32 %v9126, %v9142
    %vm9147 = vcmp.eq.s32.totalorder %v4537, 6
    %vm9148 = vcmp.eq.s32.totalorder %v4538, 6
    %v9149 = vsel %vm9147, 1, 0
    %v9150 = vsel %vm9148, 1, 0
    %9151 = vset.pattern.permute.xlu0 0
    %9152 = vperm.xlu0 %9151, %v9149
    %v9153 = vpop.permute.xlu0 %9152
    %9154 = vset.pattern.permute.xlu0 0
    %9155 = vperm.xlu0 %9154, %v9150
    %v9156 = vpop.permute.xlu0 %9155
    %vm9157 = vcmp.eq.s32.totalorder %v9153, 1
    %vm9158 = vcmp.eq.s32.totalorder %v9156, 1
    %v9159 = vsel %vm9157, %v9143, %v8391
    %v9160 = vsel %vm9157, %v9144, %v8392
    %v9161 = vsel %vm9158, %v9145, %v8393
    %v9162 = vsel %vm9158, %v9146, %v8394
    %v9163 = vpack.c.bf16 %v8703, %v8701
    %v9164 = vpack.c.bf16 %v8704, %v8702
    %v9165 = vpack.c.bf16 %v9145, %v9143
    %v9166 = vpack.c.bf16 %v9146, %v9144
    %9167 = vmatprep.subr.bf16.mxu0 %v3586
    %9168 = vmatpush1.bf16.msra.mxu0 %v3585
    %9169 = vmatprep.subr.bf16.mxu0 %v3594
    %9170 = vmatpush1.bf16.msra.mxu0 %v3593
    %9171 = vmatprep.subr.bf16.mxu0 %v3602
    %9172 = vmatpush1.bf16.msra.mxu0 %v3601
    %9173 = vmatprep.subr.bf16.mxu0 %v3610
    %9174 = vmatpush1.bf16.msra.mxu0 %v3609
    %9175 = vmatprep.subr.bf16.mxu0 %v3618
    %9176 = vmatpush1.bf16.msra.mxu0 %v3617
    %9177 = vmatprep.subr.bf16.mxu0 %v3626
    %9178 = vmatpush1.bf16.msra.mxu0 %v3625
    %9179 = vmatprep.subr.bf16.mxu0 %v3634
    %9180 = vmatpush1.bf16.msra.mxu0 %v3633
    %9181 = vmatprep.subr.bf16.mxu0 %v3642
    %9182 = vmatpush1.bf16.msra.mxu0 %v3641
    %9183 = vmatprep.subr.bf16.mxu0 %v3650
    %9184 = vmatpush1.bf16.msra.mxu0 %v3649
    %9185 = vmatprep.subr.bf16.mxu0 %v3658
    %9186 = vmatpush1.bf16.msra.mxu0 %v3657
    %9187 = vmatprep.subr.bf16.mxu0 %v3666
    %9188 = vmatpush1.bf16.msra.mxu0 %v3665
    %9189 = vmatprep.subr.bf16.mxu0 %v3674
    %9190 = vmatpush1.bf16.msra.mxu0 %v3673
    %9191 = vmatprep.subr.bf16.mxu0 %v3682
    %9192 = vmatpush1.bf16.msra.mxu0 %v3681
    %9193 = vmatprep.subr.bf16.mxu0 %v3690
    %9194 = vmatpush1.bf16.msra.mxu0 %v3689
    %9195 = vmatprep.subr.bf16.mxu0 %v3698
    %9196 = vmatpush1.bf16.msra.mxu0 %v3697
    %9197 = vmatprep.subr.bf16.mxu0 %v3706
    %9198 = vmatpush1.bf16.msra.mxu0 %v3705
    %9199 = vmatprep.mubr.bf16.mxu0 %v9164
    %9200 = vmatmul.mubr.bf16.gmra.mrb[0].mxu0 %v9163
    %v9201 = vpop.f32.mrb[0].mxu0
    %v9202 = vadd.f32 %v2780, %v9201
    %v9203 = vpop.f32.mrb[0].mxu0
    %v9204 = vadd.f32 %v2784, %v9203
    %v9205 = vpop.f32.mrb[0].mxu0
    %v9206 = vadd.f32 %v2780, %v9205
    %v9207 = vpop.f32.mrb[0].mxu0
    %v9208 = vadd.f32 %v2784, %v9207
    %9209 = vdwg.mxu0
    %9210 = vmatprep.subr.bf16.mxu0 %v3714
    %9211 = vmatpush1.bf16.msra.mxu0 %v3713
    %9212 = vmatprep.subr.bf16.mxu0 %v3722
    %9213 = vmatpush1.bf16.msra.mxu0 %v3721
    %9214 = vmatprep.subr.bf16.mxu0 %v3730
    %9215 = vmatpush1.bf16.msra.mxu0 %v3729
    %9216 = vmatprep.subr.bf16.mxu0 %v3738
    %9217 = vmatpush1.bf16.msra.mxu0 %v3737
    %9218 = vmatprep.subr.bf16.mxu0 %v3746
    %9219 = vmatpush1.bf16.msra.mxu0 %v3745
    %9220 = vmatprep.subr.bf16.mxu0 %v3754
    %9221 = vmatpush1.bf16.msra.mxu0 %v3753
    %9222 = vmatprep.subr.bf16.mxu0 %v3762
    %9223 = vmatpush1.bf16.msra.mxu0 %v3761
    %9224 = vmatprep.subr.bf16.mxu0 %v3770
    %9225 = vmatpush1.bf16.msra.mxu0 %v3769
    %9226 = vmatprep.subr.bf16.mxu0 %v3778
    %9227 = vmatpush1.bf16.msra.mxu0 %v3777
    %9228 = vmatprep.subr.bf16.mxu0 %v3786
    %9229 = vmatpush1.bf16.msra.mxu0 %v3785
    %9230 = vmatprep.subr.bf16.mxu0 %v3794
    %9231 = vmatpush1.bf16.msra.mxu0 %v3793
    %9232 = vmatprep.subr.bf16.mxu0 %v3802
    %9233 = vmatpush1.bf16.msra.mxu0 %v3801
    %9234 = vmatprep.subr.bf16.mxu0 %v3810
    %9235 = vmatpush1.bf16.msra.mxu0 %v3809
    %9236 = vmatprep.subr.bf16.mxu0 %v3818
    %9237 = vmatpush1.bf16.msra.mxu0 %v3817
    %9238 = vmatprep.subr.bf16.mxu0 %v3826
    %9239 = vmatpush1.bf16.msra.mxu0 %v3825
    %9240 = vmatprep.subr.bf16.mxu0 %v3834
    %9241 = vmatpush1.bf16.msra.mxu0 %v3833
    %9242 = vmatprep.mubr.bf16.mxu0 %v9166
    %9243 = vmatmul.mubr.bf16.gmra.mrb[0].mxu0 %v9165
    %v9244 = vpop.f32.mrb[0].mxu0
    %v9245 = vadd.f32 %v9202, %v9244
    %v9246 = vpop.f32.mrb[0].mxu0
    %v9247 = vadd.f32 %v9204, %v9246
    %v9248 = vpop.f32.mrb[0].mxu0
    %v9249 = vadd.f32 %v9206, %v9248
    %v9250 = vpop.f32.mrb[0].mxu0
    %v9251 = vadd.f32 %v9208, %v9250
    %9252 = vdwg.mxu0
    %9253 = vmatprep.subr.bf16.mxu0 %v3588
    %9254 = vmatpush1.bf16.msra.mxu0 %v3587
    %9255 = vmatprep.subr.bf16.mxu0 %v3596
    %9256 = vmatpush1.bf16.msra.mxu0 %v3595
    %9257 = vmatprep.subr.bf16.mxu0 %v3604
    %9258 = vmatpush1.bf16.msra.mxu0 %v3603
    %9259 = vmatprep.subr.bf16.mxu0 %v3612
    %9260 = vmatpush1.bf16.msra.mxu0 %v3611
    %9261 = vmatprep.subr.bf16.mxu0 %v3620
    %9262 = vmatpush1.bf16.msra.mxu0 %v3619
    %9263 = vmatprep.subr.bf16.mxu0 %v3628
    %9264 = vmatpush1.bf16.msra.mxu0 %v3627
    %9265 = vmatprep.subr.bf16.mxu0 %v3636
    %9266 = vmatpush1.bf16.msra.mxu0 %v3635
    %9267 = vmatprep.subr.bf16.mxu0 %v3644
    %9268 = vmatpush1.bf16.msra.mxu0 %v3643
    %9269 = vmatprep.subr.bf16.mxu0 %v3652
    %9270 = vmatpush1.bf16.msra.mxu0 %v3651
    %9271 = vmatprep.subr.bf16.mxu0 %v3660
    %9272 = vmatpush1.bf16.msra.mxu0 %v3659
    %9273 = vmatprep.subr.bf16.mxu0 %v3668
    %9274 = vmatpush1.bf16.msra.mxu0 %v3667
    %9275 = vmatprep.subr.bf16.mxu0 %v3676
    %9276 = vmatpush1.bf16.msra.mxu0 %v3675
    %9277 = vmatprep.subr.bf16.mxu0 %v3684
    %9278 = vmatpush1.bf16.msra.mxu0 %v3683
    %9279 = vmatprep.subr.bf16.mxu0 %v3692
    %9280 = vmatpush1.bf16.msra.mxu0 %v3691
    %9281 = vmatprep.subr.bf16.mxu0 %v3700
    %9282 = vmatpush1.bf16.msra.mxu0 %v3699
    %9283 = vmatprep.subr.bf16.mxu0 %v3708
    %9284 = vmatpush1.bf16.msra.mxu0 %v3707
    %9285 = vmatprep.mubr.bf16.mxu0 %v9164
    %9286 = vmatmul.mubr.bf16.gmra.mrb[0].mxu0 %v9163
    %v9287 = vpop.f32.mrb[0].mxu0
    %v9288 = vadd.f32 %v2788, %v9287
    %v9289 = vpop.f32.mrb[0].mxu0
    %v9290 = vadd.f32 %v2792, %v9289
    %v9291 = vpop.f32.mrb[0].mxu0
    %v9292 = vadd.f32 %v2788, %v9291
    %v9293 = vpop.f32.mrb[0].mxu0
    %v9294 = vadd.f32 %v2792, %v9293
    %9295 = vdwg.mxu0
    %9296 = vmatprep.subr.bf16.mxu0 %v3716
    %9297 = vmatpush1.bf16.msra.mxu0 %v3715
    %9298 = vmatprep.subr.bf16.mxu0 %v3724
    %9299 = vmatpush1.bf16.msra.mxu0 %v3723
    %9300 = vmatprep.subr.bf16.mxu0 %v3732
    %9301 = vmatpush1.bf16.msra.mxu0 %v3731
    %9302 = vmatprep.subr.bf16.mxu0 %v3740
    %9303 = vmatpush1.bf16.msra.mxu0 %v3739
    %9304 = vmatprep.subr.bf16.mxu0 %v3748
    %9305 = vmatpush1.bf16.msra.mxu0 %v3747
    %9306 = vmatprep.subr.bf16.mxu0 %v3756
    %9307 = vmatpush1.bf16.msra.mxu0 %v3755
    %9308 = vmatprep.subr.bf16.mxu0 %v3764
    %9309 = vmatpush1.bf16.msra.mxu0 %v3763
    %9310 = vmatprep.subr.bf16.mxu0 %v3772
    %9311 = vmatpush1.bf16.msra.mxu0 %v3771
    %9312 = vmatprep.subr.bf16.mxu0 %v3780
    %9313 = vmatpush1.bf16.msra.mxu0 %v3779
    %9314 = vmatprep.subr.bf16.mxu0 %v3788
    %9315 = vmatpush1.bf16.msra.mxu0 %v3787
    %9316 = vmatprep.subr.bf16.mxu0 %v3796
    %9317 = vmatpush1.bf16.msra.mxu0 %v3795
    %9318 = vmatprep.subr.bf16.mxu0 %v3804
    %9319 = vmatpush1.bf16.msra.mxu0 %v3803
    %9320 = vmatprep.subr.bf16.mxu0 %v3812
    %9321 = vmatpush1.bf16.msra.mxu0 %v3811
    %9322 = vmatprep.subr.bf16.mxu0 %v3820
    %9323 = vmatpush1.bf16.msra.mxu0 %v3819
    %9324 = vmatprep.subr.bf16.mxu0 %v3828
    %9325 = vmatpush1.bf16.msra.mxu0 %v3827
    %9326 = vmatprep.subr.bf16.mxu0 %v3836
    %9327 = vmatpush1.bf16.msra.mxu0 %v3835
    %9328 = vmatprep.mubr.bf16.mxu0 %v9166
    %9329 = vmatmul.mubr.bf16.gmra.mrb[0].mxu0 %v9165
    %v9330 = vpop.f32.mrb[0].mxu0
    %v9331 = vadd.f32 %v9288, %v9330
    %v9332 = vpop.f32.mrb[0].mxu0
    %v9333 = vadd.f32 %v9290, %v9332
    %v9334 = vpop.f32.mrb[0].mxu0
    %v9335 = vadd.f32 %v9292, %v9334
    %v9336 = vpop.f32.mrb[0].mxu0
    %v9337 = vadd.f32 %v9294, %v9336
    %9338 = vdwg.mxu0
    %9339 = vmatprep.subr.bf16.mxu0 %v3590
    %9340 = vmatpush1.bf16.msra.mxu0 %v3589
    %9341 = vmatprep.subr.bf16.mxu0 %v3598
    %9342 = vmatpush1.bf16.msra.mxu0 %v3597
    %9343 = vmatprep.subr.bf16.mxu0 %v3606
    %9344 = vmatpush1.bf16.msra.mxu0 %v3605
    %9345 = vmatprep.subr.bf16.mxu0 %v3614
    %9346 = vmatpush1.bf16.msra.mxu0 %v3613
    %9347 = vmatprep.subr.bf16.mxu0 %v3622
    %9348 = vmatpush1.bf16.msra.mxu0 %v3621
    %9349 = vmatprep.subr.bf16.mxu0 %v3630
    %9350 = vmatpush1.bf16.msra.mxu0 %v3629
    %9351 = vmatprep.subr.bf16.mxu0 %v3638
    %9352 = vmatpush1.bf16.msra.mxu0 %v3637
    %9353 = vmatprep.subr.bf16.mxu0 %v3646
    %9354 = vmatpush1.bf16.msra.mxu0 %v3645
    %9355 = vmatprep.subr.bf16.mxu0 %v3654
    %9356 = vmatpush1.bf16.msra.mxu0 %v3653
    %9357 = vmatprep.subr.bf16.mxu0 %v3662
    %9358 = vmatpush1.bf16.msra.mxu0 %v3661
    %9359 = vmatprep.subr.bf16.mxu0 %v3670
    %9360 = vmatpush1.bf16.msra.mxu0 %v3669
    %9361 = vmatprep.subr.bf16.mxu0 %v3678
    %9362 = vmatpush1.bf16.msra.mxu0 %v3677
    %9363 = vmatprep.subr.bf16.mxu0 %v3686
    %9364 = vmatpush1.bf16.msra.mxu0 %v3685
    %9365 = vmatprep.subr.bf16.mxu0 %v3694
    %9366 = vmatpush1.bf16.msra.mxu0 %v3693
    %9367 = vmatprep.subr.bf16.mxu0 %v3702
    %9368 = vmatpush1.bf16.msra.mxu0 %v3701
    %9369 = vmatprep.subr.bf16.mxu0 %v3710
    %9370 = vmatpush1.bf16.msra.mxu0 %v3709
    %9371 = vmatprep.mubr.bf16.mxu0 %v9164
    %9372 = vmatmul.mubr.bf16.gmra.mrb[0].mxu0 %v9163
    %v9373 = vpop.f32.mrb[0].mxu0
    %v9374 = vadd.f32 %v2796, %v9373
    %v9375 = vpop.f32.mrb[0].mxu0
    %v9376 = vadd.f32 %v2800, %v9375
    %v9377 = vpop.f32.mrb[0].mxu0
    %v9378 = vadd.f32 %v2796, %v9377
    %v9379 = vpop.f32.mrb[0].mxu0
    %v9380 = vadd.f32 %v2800, %v9379
    %9381 = vdwg.mxu0
    %9382 = vmatprep.subr.bf16.mxu0 %v3718
    %9383 = vmatpush1.bf16.msra.mxu0 %v3717
    %9384 = vmatprep.subr.bf16.mxu0 %v3726
    %9385 = vmatpush1.bf16.msra.mxu0 %v3725
    %9386 = vmatprep.subr.bf16.mxu0 %v3734
    %9387 = vmatpush1.bf16.msra.mxu0 %v3733
    %9388 = vmatprep.subr.bf16.mxu0 %v3742
    %9389 = vmatpush1.bf16.msra.mxu0 %v3741
    %9390 = vmatprep.subr.bf16.mxu0 %v3750
    %9391 = vmatpush1.bf16.msra.mxu0 %v3749
    %9392 = vmatprep.subr.bf16.mxu0 %v3758
    %9393 = vmatpush1.bf16.msra.mxu0 %v3757
    %9394 = vmatprep.subr.bf16.mxu0 %v3766
    %9395 = vmatpush1.bf16.msra.mxu0 %v3765
    %9396 = vmatprep.subr.bf16.mxu0 %v3774
    %9397 = vmatpush1.bf16.msra.mxu0 %v3773
    %9398 = vmatprep.subr.bf16.mxu0 %v3782
    %9399 = vmatpush1.bf16.msra.mxu0 %v3781
    %9400 = vmatprep.subr.bf16.mxu0 %v3790
    %9401 = vmatpush1.bf16.msra.mxu0 %v3789
    %9402 = vmatprep.subr.bf16.mxu0 %v3798
    %9403 = vmatpush1.bf16.msra.mxu0 %v3797
    %9404 = vmatprep.subr.bf16.mxu0 %v3806
    %9405 = vmatpush1.bf16.msra.mxu0 %v3805
    %9406 = vmatprep.subr.bf16.mxu0 %v3814
    %9407 = vmatpush1.bf16.msra.mxu0 %v3813
    %9408 = vmatprep.subr.bf16.mxu0 %v3822
    %9409 = vmatpush1.bf16.msra.mxu0 %v3821
    %9410 = vmatprep.subr.bf16.mxu0 %v3830
    %9411 = vmatpush1.bf16.msra.mxu0 %v3829
    %9412 = vmatprep.subr.bf16.mxu0 %v3838
    %9413 = vmatpush1.bf16.msra.mxu0 %v3837
    %9414 = vmatprep.mubr.bf16.mxu0 %v9166
    %9415 = vmatmul.mubr.bf16.gmra.mrb[0].mxu0 %v9165
    %v9416 = vpop.f32.mrb[0].mxu0
    %v9417 = vadd.f32 %v9374, %v9416
    %v9418 = vpop.f32.mrb[0].mxu0
    %v9419 = vadd.f32 %v9376, %v9418
    %v9420 = vpop.f32.mrb[0].mxu0
    %v9421 = vadd.f32 %v9378, %v9420
    %v9422 = vpop.f32.mrb[0].mxu0
    %v9423 = vadd.f32 %v9380, %v9422
    %9424 = vdwg.mxu0
    %9425 = vmatprep.subr.bf16.mxu0 %v3592
    %9426 = vmatpush1.bf16.msra.mxu0 %v3591
    %9427 = vmatprep.subr.bf16.mxu0 %v3600
    %9428 = vmatpush1.bf16.msra.mxu0 %v3599
    %9429 = vmatprep.subr.bf16.mxu0 %v3608
    %9430 = vmatpush1.bf16.msra.mxu0 %v3607
    %9431 = vmatprep.subr.bf16.mxu0 %v3616
    %9432 = vmatpush1.bf16.msra.mxu0 %v3615
    %9433 = vmatprep.subr.bf16.mxu0 %v3624
    %9434 = vmatpush1.bf16.msra.mxu0 %v3623
    %9435 = vmatprep.subr.bf16.mxu0 %v3632
    %9436 = vmatpush1.bf16.msra.mxu0 %v3631
    %9437 = vmatprep.subr.bf16.mxu0 %v3640
    %9438 = vmatpush1.bf16.msra.mxu0 %v3639
    %9439 = vmatprep.subr.bf16.mxu0 %v3648
    %9440 = vmatpush1.bf16.msra.mxu0 %v3647
    %9441 = vmatprep.subr.bf16.mxu0 %v3656
    %9442 = vmatpush1.bf16.msra.mxu0 %v3655
    %9443 = vmatprep.subr.bf16.mxu0 %v3664
    %9444 = vmatpush1.bf16.msra.mxu0 %v3663
    %9445 = vmatprep.subr.bf16.mxu0 %v3672
    %9446 = vmatpush1.bf16.msra.mxu0 %v3671
    %9447 = vmatprep.subr.bf16.mxu0 %v3680
    %9448 = vmatpush1.bf16.msra.mxu0 %v3679
    %9449 = vmatprep.subr.bf16.mxu0 %v3688
    %9450 = vmatpush1.bf16.msra.mxu0 %v3687
    %9451 = vmatprep.subr.bf16.mxu0 %v3696
    %9452 = vmatpush1.bf16.msra.mxu0 %v3695
    %9453 = vmatprep.subr.bf16.mxu0 %v3704
    %9454 = vmatpush1.bf16.msra.mxu0 %v3703
    %9455 = vmatprep.subr.bf16.mxu0 %v3712
    %9456 = vmatpush1.bf16.msra.mxu0 %v3711
    %9457 = vmatprep.mubr.bf16.mxu0 %v9164
    %9458 = vmatmul.mubr.bf16.gmra.mrb[0].mxu0 %v9163
    %v9459 = vpop.f32.mrb[0].mxu0
    %v9460 = vadd.f32 %v2804, %v9459
    %v9461 = vpop.f32.mrb[0].mxu0
    %v9462 = vadd.f32 %v2808, %v9461
    %v9463 = vpop.f32.mrb[0].mxu0
    %v9464 = vadd.f32 %v2804, %v9463
    %v9465 = vpop.f32.mrb[0].mxu0
    %v9466 = vadd.f32 %v2808, %v9465
    %9467 = vdwg.mxu0
    %9468 = vmatprep.subr.bf16.mxu0 %v3720
    %9469 = vmatpush1.bf16.msra.mxu0 %v3719
    %9470 = vmatprep.subr.bf16.mxu0 %v3728
    %9471 = vmatpush1.bf16.msra.mxu0 %v3727
    %9472 = vmatprep.subr.bf16.mxu0 %v3736
    %9473 = vmatpush1.bf16.msra.mxu0 %v3735
    %9474 = vmatprep.subr.bf16.mxu0 %v3744
    %9475 = vmatpush1.bf16.msra.mxu0 %v3743
    %9476 = vmatprep.subr.bf16.mxu0 %v3752
    %9477 = vmatpush1.bf16.msra.mxu0 %v3751
    %9478 = vmatprep.subr.bf16.mxu0 %v3760
    %9479 = vmatpush1.bf16.msra.mxu0 %v3759
    %9480 = vmatprep.subr.bf16.mxu0 %v3768
    %9481 = vmatpush1.bf16.msra.mxu0 %v3767
    %9482 = vmatprep.subr.bf16.mxu0 %v3776
    %9483 = vmatpush1.bf16.msra.mxu0 %v3775
    %9484 = vmatprep.subr.bf16.mxu0 %v3784
    %9485 = vmatpush1.bf16.msra.mxu0 %v3783
    %9486 = vmatprep.subr.bf16.mxu0 %v3792
    %9487 = vmatpush1.bf16.msra.mxu0 %v3791
    %9488 = vmatprep.subr.bf16.mxu0 %v3800
    %9489 = vmatpush1.bf16.msra.mxu0 %v3799
    %9490 = vmatprep.subr.bf16.mxu0 %v3808
    %9491 = vmatpush1.bf16.msra.mxu0 %v3807
    %9492 = vmatprep.subr.bf16.mxu0 %v3816
    %9493 = vmatpush1.bf16.msra.mxu0 %v3815
    %9494 = vmatprep.subr.bf16.mxu0 %v3824
    %9495 = vmatpush1.bf16.msra.mxu0 %v3823
    %9496 = vmatprep.subr.bf16.mxu0 %v3832
    %9497 = vmatpush1.bf16.msra.mxu0 %v3831
    %9498 = vmatprep.subr.bf16.mxu0 %v3840
    %9499 = vmatpush1.bf16.msra.mxu0 %v3839
    %9500 = vmatprep.mubr.bf16.mxu0 %v9166
    %9501 = vmatmul.mubr.bf16.gmra.mrb[0].mxu0 %v9165
    %v9502 = vpop.f32.mrb[0].mxu0
    %v9503 = vadd.f32 %v9460, %v9502
    %v9504 = vpop.f32.mrb[0].mxu0
    %v9505 = vadd.f32 %v9462, %v9504
    %v9506 = vpop.f32.mrb[0].mxu0
    %v9507 = vadd.f32 %v9464, %v9506
    %v9508 = vpop.f32.mrb[0].mxu0
    %v9509 = vadd.f32 %v9466, %v9508
    %9510 = vdwg.mxu0
    %v9511 = vxor.u32 %v9245, 2147483648
    %v9512 = vxor.u32 %v9247, 2147483648
    %v9513 = vxor.u32 %v9249, 2147483648
    %v9514 = vxor.u32 %v9251, 2147483648
    %v9515 = vmul.f32 %v9511, 1.442695
    %v9516 = vpow.pop %v9515
    %v9517 = vmul.f32 %v9512, 1.442695
    %v9518 = vpow.pop %v9517
    %v9519 = vmul.f32 %v9513, 1.442695
    %v9520 = vpow.pop %v9519
    %v9521 = vmul.f32 %v9514, 1.442695
    %v9522 = vpow.pop %v9521
    %v9523 = vadd.f32 %v9516, 1.0
    %v9524 = vadd.f32 %v9518, 1.0
    %v9525 = vadd.f32 %v9520, 1.0
    %v9526 = vadd.f32 %v9522, 1.0
    %v9527 = vrcp.pop %v9523
    %v9528 = vmul.f32 1.0, %v9527
    %v9529 = vrcp.pop %v9524
    %v9530 = vmul.f32 1.0, %v9529
    %v9531 = vrcp.pop %v9525
    %v9532 = vmul.f32 1.0, %v9531
    %v9533 = vrcp.pop %v9526
    %v9534 = vmul.f32 1.0, %v9533
    %v9535 = vxor.u32 %v9331, 2147483648
    %v9536 = vxor.u32 %v9333, 2147483648
    %v9537 = vxor.u32 %v9335, 2147483648
    %v9538 = vxor.u32 %v9337, 2147483648
    %v9539 = vmul.f32 %v9535, 1.442695
    %v9540 = vpow.pop %v9539
    %v9541 = vmul.f32 %v9536, 1.442695
    %v9542 = vpow.pop %v9541
    %v9543 = vmul.f32 %v9537, 1.442695
    %v9544 = vpow.pop %v9543
    %v9545 = vmul.f32 %v9538, 1.442695
    %v9546 = vpow.pop %v9545
    %v9547 = vadd.f32 %v9540, 1.0
    %v9548 = vadd.f32 %v9542, 1.0
    %v9549 = vadd.f32 %v9544, 1.0
    %v9550 = vadd.f32 %v9546, 1.0
    %v9551 = vrcp.pop %v9547
    %v9552 = vmul.f32 1.0, %v9551
    %v9553 = vrcp.pop %v9548
    %v9554 = vmul.f32 1.0, %v9553
    %v9555 = vrcp.pop %v9549
    %v9556 = vmul.f32 1.0, %v9555
    %v9557 = vrcp.pop %v9550
    %v9558 = vmul.f32 1.0, %v9557
    %v9559 = vtanh.pop %v9417
    %v9560 = vtanh.pop %v9419
    %v9561 = vtanh.pop %v9421
    %v9562 = vtanh.pop %v9423
    %v9563 = vxor.u32 %v9503, 2147483648
    %v9564 = vxor.u32 %v9505, 2147483648
    %v9565 = vxor.u32 %v9507, 2147483648
    %v9566 = vxor.u32 %v9509, 2147483648
    %v9567 = vmul.f32 %v9563, 1.442695
    %v9568 = vpow.pop %v9567
    %v9569 = vmul.f32 %v9564, 1.442695
    %v9570 = vpow.pop %v9569
    %v9571 = vmul.f32 %v9565, 1.442695
    %v9572 = vpow.pop %v9571
    %v9573 = vmul.f32 %v9566, 1.442695
    %v9574 = vpow.pop %v9573
    %v9575 = vadd.f32 %v9568, 1.0
    %v9576 = vadd.f32 %v9570, 1.0
    %v9577 = vadd.f32 %v9572, 1.0
    %v9578 = vadd.f32 %v9574, 1.0
    %v9579 = vrcp.pop %v9575
    %v9580 = vmul.f32 1.0, %v9579
    %v9581 = vrcp.pop %v9576
    %v9582 = vmul.f32 1.0, %v9581
    %v9583 = vrcp.pop %v9577
    %v9584 = vmul.f32 1.0, %v9583
    %v9585 = vrcp.pop %v9578
    %v9586 = vmul.f32 1.0, %v9585
    %v9587 = vmul.f32 %v9552, %v9135
    %v9588 = vmul.f32 %v9554, %v9136
    %v9589 = vmul.f32 %v9556, %v9137
    %v9590 = vmul.f32 %v9558, %v9138
    %v9591 = vmul.f32 %v9528, %v9559
    %v9592 = vmul.f32 %v9530, %v9560
    %v9593 = vmul.f32 %v9532, %v9561
    %v9594 = vmul.f32 %v9534, %v9562
    %v9595 = vadd.f32 %v9587, %v9591
    %v9596 = vadd.f32 %v9588, %v9592
    %v9597 = vadd.f32 %v9589, %v9593
    %v9598 = vadd.f32 %v9590, %v9594
    %v9599 = vtanh.pop %v9595
    %v9600 = vtanh.pop %v9596
    %v9601 = vtanh.pop %v9597
    %v9602 = vtanh.pop %v9598
    %v9603 = vmul.f32 %v9580, %v9599
    %v9604 = vmul.f32 %v9582, %v9600
    %v9605 = vmul.f32 %v9584, %v9601
    %v9606 = vmul.f32 %v9586, %v9602
    %vm9607 = vcmp.eq.s32.totalorder %v4537, 7
    %vm9608 = vcmp.eq.s32.totalorder %v4538, 7
    %v9609 = vsel %vm9607, 1, 0
    %v9610 = vsel %vm9608, 1, 0
    %9611 = vset.pattern.permute.xlu0 0
    %9612 = vperm.xlu0 %9611, %v9609
    %v9613 = vpop.permute.xlu0 %9612
    %9614 = vset.pattern.permute.xlu0 0
    %9615 = vperm.xlu0 %9614, %v9610
    %v9616 = vpop.permute.xlu0 %9615
    %vm9617 = vcmp.eq.s32.totalorder %v9613, 1
    %vm9618 = vcmp.eq.s32.totalorder %v9616, 1
    %v9619 = vsel %vm9617, %v9603, %v9159
    %v9620 = vsel %vm9617, %v9604, %v9160
    %v9621 = vsel %vm9618, %v9605, %v9161
    %v9622 = vsel %vm9618, %v9606, %v9162
    %v9623 = vpack.c.bf16 %v9621, %v9619
    %v9624 = vpack.c.bf16 %v9622, %v9620
    %v9625 = vld [vmem:[%s6] sm:$0xf]
    %v9626 = vld [vmem:[%s6 + $0x4] sm:$0xf]
    %v9627 = vld [vmem:[%s6 + $0x8] sm:$0xf]
    %v9628 = vld [vmem:[%s6 + $0xc] sm:$0xf]
    %v9629 = vld [vmem:[%s6 + $0x10] sm:$0xf]
    %v9630 = vld [vmem:[%s6 + $0x14] sm:$0xf]
    %v9631 = vld [vmem:[%s6 + $0x18] sm:$0xf]
    %v9632 = vld [vmem:[%s6 + $0x1c] sm:$0xf]
    %v9633 = vld [vmem:[%s6 + $0x20] sm:$0xf]
    %v9634 = vld [vmem:[%s6 + $0x24] sm:$0xf]
    %v9635 = vld [vmem:[%s6 + $0x28] sm:$0xf]
    %v9636 = vld [vmem:[%s6 + $0x2c] sm:$0xf]
    %v9637 = vld [vmem:[%s6 + $0x30] sm:$0xf]
    %v9638 = vld [vmem:[%s6 + $0x34] sm:$0xf]
    %v9639 = vld [vmem:[%s6 + $0x38] sm:$0xf]
    %v9640 = vld [vmem:[%s6 + $0x3c] sm:$0xf]
    %v9641 = vld [vmem:[%s6 + $0x40] sm:$0xf]
    %v9642 = vld [vmem:[%s6 + $0x44] sm:$0xf]
    %v9643 = vld [vmem:[%s6 + $0x48] sm:$0xf]
    %v9644 = vld [vmem:[%s6 + $0x4c] sm:$0xf]
    %v9645 = vld [vmem:[%s6 + $0x50] sm:$0xf]
    %v9646 = vld [vmem:[%s6 + $0x54] sm:$0xf]
    %v9647 = vld [vmem:[%s6 + $0x58] sm:$0xf]
    %v9648 = vld [vmem:[%s6 + $0x5c] sm:$0xf]
    %v9649 = vld [vmem:[%s6 + $0x60] sm:$0xf]
    %v9650 = vld [vmem:[%s6 + $0x64] sm:$0xf]
    %v9651 = vld [vmem:[%s6 + $0x68] sm:$0xf]
    %v9652 = vld [vmem:[%s6 + $0x6c] sm:$0xf]
    %v9653 = vld [vmem:[%s6 + $0x70] sm:$0xf]
    %v9654 = vld [vmem:[%s6 + $0x74] sm:$0xf]
    %v9655 = vld [vmem:[%s6 + $0x78] sm:$0xf]
    %v9656 = vld [vmem:[%s6 + $0x7c] sm:$0xf]
    %v9657 = vld [vmem:[%s7] sm:$0x1]
    %v9659 = vlaneseq
    %v9660 = vshrl.u32 %v9659, 7
    %v9661 = vsub.s32 0, %v9660
    %v9662 = vrot.slane %v9657, %v9661
    %v9696 = vunpack.c.l.b16 %v9625
    %v9697 = vunpack.c.l.b16 %v9626
    %v9698 = vunpack.c.l.b16 %v9627
    %v9699 = vunpack.c.l.b16 %v9628
    %v9700 = vunpack.c.l.b16 %v9629
    %v9701 = vunpack.c.l.b16 %v9630
    %v9702 = vunpack.c.l.b16 %v9631
    %v9703 = vunpack.c.l.b16 %v9632
    %v9704 = vunpack.c.l.b16 %v9633
    %v9705 = vunpack.c.l.b16 %v9634
    %v9706 = vunpack.c.l.b16 %v9635
    %v9707 = vunpack.c.l.b16 %v9636
    %v9708 = vunpack.c.l.b16 %v9637
    %v9709 = vunpack.c.l.b16 %v9638
    %v9710 = vunpack.c.l.b16 %v9639
    %v9711 = vunpack.c.l.b16 %v9640
    %v9712 = vunpack.c.l.b16 %v9641
    %v9713 = vunpack.c.l.b16 %v9642
    %v9714 = vunpack.c.l.b16 %v9643
    %v9715 = vunpack.c.l.b16 %v9644
    %v9716 = vunpack.c.l.b16 %v9645
    %v9717 = vunpack.c.l.b16 %v9646
    %v9718 = vunpack.c.l.b16 %v9647
    %v9719 = vunpack.c.l.b16 %v9648
    %v9720 = vunpack.c.l.b16 %v9649
    %v9721 = vunpack.c.l.b16 %v9650
    %v9722 = vunpack.c.l.b16 %v9651
    %v9723 = vunpack.c.l.b16 %v9652
    %v9724 = vunpack.c.l.b16 %v9653
    %v9725 = vunpack.c.l.b16 %v9654
    %v9726 = vunpack.c.l.b16 %v9655
    %v9727 = vunpack.c.l.b16 %v9656
    %v9728 = vpack.c.b16 %v9697, %v9696
    %v9729 = vpack.c.b16 %v9699, %v9698
    %v9730 = vpack.c.b16 %v9701, %v9700
    %v9731 = vpack.c.b16 %v9703, %v9702
    %v9732 = vpack.c.b16 %v9705, %v9704
    %v9733 = vpack.c.b16 %v9707, %v9706
    %v9734 = vpack.c.b16 %v9709, %v9708
    %v9735 = vpack.c.b16 %v9711, %v9710
    %v9736 = vpack.c.b16 %v9713, %v9712
    %v9737 = vpack.c.b16 %v9715, %v9714
    %v9738 = vpack.c.b16 %v9717, %v9716
    %v9739 = vpack.c.b16 %v9719, %v9718
    %v9740 = vpack.c.b16 %v9721, %v9720
    %v9741 = vpack.c.b16 %v9723, %v9722
    %v9742 = vpack.c.b16 %v9725, %v9724
    %v9743 = vpack.c.b16 %v9727, %v9726
    %9760 = vmatprep.subr.bf16.mxu0 0
    %9761 = vmatpush1.bf16.msra.mxu0 %v9728
    %9762 = vmatprep.subr.bf16.mxu0 0
    %9763 = vmatpush1.bf16.msra.mxu0 %v9729
    %9764 = vmatprep.subr.bf16.mxu0 0
    %9765 = vmatpush1.bf16.msra.mxu0 %v9730
    %9766 = vmatprep.subr.bf16.mxu0 0
    %9767 = vmatpush1.bf16.msra.mxu0 %v9731
    %9768 = vmatprep.subr.bf16.mxu0 0
    %9769 = vmatpush1.bf16.msra.mxu0 %v9732
    %9770 = vmatprep.subr.bf16.mxu0 0
    %9771 = vmatpush1.bf16.msra.mxu0 %v9733
    %9772 = vmatprep.subr.bf16.mxu0 0
    %9773 = vmatpush1.bf16.msra.mxu0 %v9734
    %9774 = vmatprep.subr.bf16.mxu0 0
    %9775 = vmatpush1.bf16.msra.mxu0 %v9735
    %9776 = vmatprep.subr.bf16.mxu0 0
    %9777 = vmatpush1.bf16.msra.mxu0 %v9736
    %9778 = vmatprep.subr.bf16.mxu0 0
    %9779 = vmatpush1.bf16.msra.mxu0 %v9737
    %9780 = vmatprep.subr.bf16.mxu0 0
    %9781 = vmatpush1.bf16.msra.mxu0 %v9738
    %9782 = vmatprep.subr.bf16.mxu0 0
    %9783 = vmatpush1.bf16.msra.mxu0 %v9739
    %9784 = vmatprep.subr.bf16.mxu0 0
    %9785 = vmatpush1.bf16.msra.mxu0 %v9740
    %9786 = vmatprep.subr.bf16.mxu0 0
    %9787 = vmatpush1.bf16.msra.mxu0 %v9741
    %9788 = vmatprep.subr.bf16.mxu0 0
    %9789 = vmatpush1.bf16.msra.mxu0 %v9742
    %9790 = vmatprep.subr.bf16.mxu0 0
    %9791 = vmatpush1.bf16.msra.mxu0 %v9743
    %9792 = vmatprep.mubr.bf16.mxu0 %v9624
    %9793 = vmatmul.mubr.bf16.gmra.mrb[0].mxu0 %v9623
    %v9794 = vpop.f32.mrb[0].mxu0
    %v9795 = vadd.f32 %v9662, %v9794
    %v9796 = vpop.f32.mrb[0].mxu0
    %v9797 = vpop.f32.mrb[0].mxu0
    %v9798 = vadd.f32 %v9662, %v9797
    %v9799 = vpop.f32.mrb[0].mxu0
    %9800 = vdwg.mxu0
    %9801 = vst [vmem:[%s9] sm:$0xff] %v9795
    %9802 = vst [vmem:[%s9 + $0x8] sm:$0xff] %v9798
    // Predicated region
    $region46: #{lstm_forward.1} parent=1 // pred_check
      _
    $region47: #{lstm_forward.1} parent=1 // pred_check_branch
      %9804 = sbr.rel (0) target = $region49
    $region48: #{lstm_forward.1} parent=1 // pred_region
      _
    $region49: #{lstm_forward.1} parent=1 // pred_fallthru
      _
    // Predicated region
    $region50: #{lstm_forward.1} parent=1 // pred_check
      _
    $region51: #{lstm_forward.1} parent=1 // pred_check_branch
      %9806 = sbr.rel (0) target = $region53
    $region52: #{lstm_forward.1} parent=1 // pred_region
      _
    $region53: #{lstm_forward.1} parent=1 // pred_fallthru
      _
    %9807 = vsyncpa [#allocation4], 1
    %9808 = vsyncpa [#allocation6], 1

</llo_original>
